<compile_context>
chip_gen: v7x
topology: tpu7x:2x2x1
jax: 0.10.0
libtpu: 0.0.40
codegen_flags: <defaults>
</compile_context>

<pallas_src>
import functools
import numpy as np
import jax
import jax.numpy as jnp
from jax import lax
from jax.experimental import pallas as pl
from jax.experimental.pallas import tpu as pltpu


# bf16 operands / VMEM intermediates on the conv path (full-rate MXU, half the
# scratch bytes); accumulation stays f32.  prj / GCN matmuls stay f32 (tiny and
# accuracy-sensitive: data-consistency step, graph step).
_CONV_DTYPE = jnp.bfloat16


def _vmem_limit_bytes():
    # Leave headroom below physical VMEM: v5e/v6e = 128 MiB -> 112 MiB,
    # v7x = 64 MiB -> 48 MiB.  Falls back to 48 MiB if the query is unavailable.
    try:
        cap = int(pltpu.get_tpu_info().vmem_capacity_bytes)
    except Exception:  # pragma: no cover - conservative fallback
        cap = 64 << 20
    return max(32 << 20, cap - (16 << 20))


_VMEM_LIMIT = _vmem_limit_bytes()
_TAPS = [(di, dj) for di in range(3) for dj in range(3)]


# --------------------------------------------------------------------------
# Fused conv stack (block2): conv3x3(1->64)+ReLU -> conv3x3(64->64)+ReLU ->
# conv3x3(64->1).  One kernel per image; nothing but the final map hits HBM.
# --------------------------------------------------------------------------
def _conv_stack_kernel(S, x_ref, w1_ref, b1_ref, w2_ref, b2_ref, w3_ref, b3_ref,
                       o_ref, h1_pad, h2_pad):
    f32 = jnp.float32
    # Re-zero the padded scratches every step: under megacore "parallel" a core
    # may start at program_id != 0, so a pl.when(pid == 0) init would be unsafe.
    # (Only the 1-pixel border strictly needs it; buffers are small.)
    h1_pad[...] = jnp.zeros_like(h1_pad)
    h2_pad[...] = jnp.zeros_like(h2_pad)

    # ---- conv1: Cin=1, K=9 -> 9 shifted VPU FMAs (MXU depth would be wasted).
    x0 = x_ref[0]                                   # (S+2, S+2) f32, pre-padded
    w1 = w1_ref[...]                                # (9, 64) f32
    acc1 = jnp.zeros((S, S, 64), f32)
    for t, (di, dj) in enumerate(_TAPS):
        acc1 = acc1 + x0[di:di + S, dj:dj + S][:, :, None] * w1[t][None, None, :]
    h1 = jnp.maximum(acc1 + b1_ref[...], 0.0)
    h1_pad[1:S + 1, 1:S + 1, :] = h1.astype(h1_pad.dtype)

    # ---- conv2: tap-sum of 9 (S*S,64)@(64,64) bf16 MXU matmuls, f32 accum.
    # The 9x im2col column never exists (neither in HBM nor in VMEM).
    w2 = w2_ref[...]                                # (9, 64, 64) bf16
    acc2 = jnp.zeros((S * S, 64), f32)
    for t, (di, dj) in enumerate(_TAPS):
        lhs = h1_pad[di:di + S, dj:dj + S, :].reshape(S * S, 64)
        acc2 = acc2 + jnp.dot(lhs, w2[t], preferred_element_type=f32)
    h2 = jnp.maximum(acc2 + b2_ref[...], 0.0)
    h2_pad[1:S + 1, 1:S + 1, :] = h2.reshape(S, S, 64).astype(h2_pad.dtype)

    # ---- conv3: Cout=1 -> VPU FMAs + one lane reduction (avoids the 1-output-
    # lane MXU matmul and the 1-lane masked store flagged in review).
    w3 = w3_ref[...]                                # (9, 64) f32
    acc3 = jnp.zeros((S, S, 64), f32)
    for t, (di, dj) in enumerate(_TAPS):
        acc3 = acc3 + h2_pad[di:di + S, dj:dj + S, :].astype(f32) * w3[t][None, None, :]
    o_ref[0] = jnp.sum(acc3, axis=-1) + b3_ref[0]


def pallas_conv_stack(x_img, p):
    """block2 conv stack, fused.  x_img: (B, S, S) f32 -> (B, S, S) f32."""
    B, S, _ = x_img.shape
    xpad = jnp.pad(x_img, ((0, 0), (1, 1), (1, 1)))             # conv1's zero pad
    # PyTorch (Cout, Cin, kh, kw) -> tap-major (9, Cin, Cout) matrices.
    w1 = jnp.transpose(p['c1_w'], (2, 3, 1, 0)).reshape(9, 64)               # f32
    w2 = jnp.transpose(p['c2_w'], (2, 3, 1, 0)).reshape(9, 64, 64).astype(_CONV_DTYPE)
    w3 = jnp.transpose(p['c3_w'], (2, 3, 1, 0)).reshape(9, 64)               # f32
    b1 = p['c1_b'].reshape(1, 64)
    b2 = p['c2_b'].reshape(1, 64)
    b3 = p['c3_b']                                                            # (1,)
    return pl.pallas_call(
        functools.partial(_conv_stack_kernel, S),
        out_shape=jax.ShapeDtypeStruct((B, S, S), jnp.float32),
        grid=(B,),
        in_specs=[
            pl.BlockSpec((1, S + 2, S + 2), lambda b: (b, 0, 0)),
            pl.BlockSpec((9, 64), lambda b: (0, 0)),             # resident weights
            pl.BlockSpec((1, 64), lambda b: (0, 0)),
            pl.BlockSpec((9, 64, 64), lambda b: (0, 0, 0)),
            pl.BlockSpec((1, 64), lambda b: (0, 0)),
            pl.BlockSpec((9, 64), lambda b: (0, 0)),
            pl.BlockSpec(memory_space=pltpu.MemorySpace.SMEM),   # conv3 bias scalar
        ],
        out_specs=pl.BlockSpec((1, S, S), lambda b: (b, 0, 0)),
        scratch_shapes=[pltpu.VMEM((S + 2, S + 2, 64), _CONV_DTYPE),
                        pltpu.VMEM((S + 2, S + 2, 64), _CONV_DTYPE)],
        compiler_params=pltpu.CompilerParams(
            dimension_semantics=("parallel",),
            vmem_limit_bytes=_VMEM_LIMIT),
    )(xpad, w1, b1, w2, b2, w3, b3)


# --------------------------------------------------------------------------
# prj_module gradient step, batched over B, with fused add3 + ReLU epilogue.
# --------------------------------------------------------------------------
def _prj_fuse_kernel(x_ref, p_ref, a_ref, t2_ref, t3_ref, w_ref, o_ref):
    # out = relu( x - w * A^T (A x - proj) + tmp2 + tmp3 )
    X = x_ref[...]                                              # (B, Q)
    A = a_ref[...]                                              # (P, Q), loaded once
    sino = lax.dot_general(X, A, (((1,), (1,)), ((), ())),
                           preferred_element_type=jnp.float32) - p_ref[...]   # (B, P)
    back = jnp.dot(sino, A, preferred_element_type=jnp.float32)               # (B, Q)
    out = X - w_ref[0] * back + t2_ref[...] + t3_ref[...]
    o_ref[...] = jnp.maximum(out, 0.0)


def pallas_prj_fused(x2, proj2, tmp2, tmp3, A, w):
    """x2/tmp2/tmp3: (B, Q); proj2: (B, P); A: (P, Q); w: (1,)."""
    B, Q = x2.shape
    P = A.shape[0]
    return pl.pallas_call(
        _prj_fuse_kernel,
        out_shape=jax.ShapeDtypeStruct((B, Q), jnp.float32),
        grid=(1,),
        in_specs=[
            pl.BlockSpec((B, Q), lambda i: (0, 0)),
            pl.BlockSpec((B, P), lambda i: (0, 0)),
            pl.BlockSpec((P, Q), lambda i: (0, 0)),              # A (no A^T copy)
            pl.BlockSpec((B, Q), lambda i: (0, 0)),
            pl.BlockSpec((B, Q), lambda i: (0, 0)),
            pl.BlockSpec(memory_space=pltpu.MemorySpace.SMEM),
        ],
        out_specs=pl.BlockSpec((B, Q), lambda i: (0, 0)),
        compiler_params=pltpu.CompilerParams(
            dimension_semantics=("arbitrary",),
            vmem_limit_bytes=_VMEM_LIMIT),
    )(x2, proj2, A, tmp2, tmp3, w)


# --------------------------------------------------------------------------
# GCN branch (block3 + block4 fused) and Gram/sq-norm kernel for adjacency.
# --------------------------------------------------------------------------
def _gcn2_kernel(x_ref, adj_ref, w3_ref, b3_ref, w4_ref, b4_ref, o_ref):
    # Two fused gcn_module layers; adjacency DMA'd once, (Nn,64) intermediate
    # never leaves VMEM.  relu between block3 and block4, none after block4.
    x = x_ref[0]
    adj = adj_ref[0]
    s1 = jnp.dot(x, w3_ref[...], preferred_element_type=jnp.float32)
    h1 = jnp.dot(adj, s1, preferred_element_type=jnp.float32) + b3_ref[...]
    h1 = jnp.maximum(h1, 0.0)
    s2 = jnp.dot(h1, w4_ref[...], preferred_element_type=jnp.float32)
    o_ref[0] = jnp.dot(adj, s2, preferred_element_type=jnp.float32) + b4_ref[...]


def pallas_gcn2(x, adj, w3, b3, w4, b4):
    B, Nn, Fin = x.shape
    Fmid, Fout = w3.shape[1], w4.shape[1]
    return pl.pallas_call(
        _gcn2_kernel,
        out_shape=jax.ShapeDtypeStruct((B, Nn, Fout), jnp.float32),
        grid=(B,),
        in_specs=[
            pl.BlockSpec((1, Nn, Fin), lambda b: (b, 0, 0)),
            pl.BlockSpec((1, Nn, Nn), lambda b: (b, 0, 0)),
            pl.BlockSpec((Fin, Fmid), lambda b: (0, 0)),
            pl.BlockSpec((1, Fmid), lambda b: (0, 0)),
            pl.BlockSpec((Fmid, Fout), lambda b: (0, 0)),
            pl.BlockSpec((1, Fout), lambda b: (0, 0)),
        ],
        out_specs=pl.BlockSpec((1, Nn, Fout), lambda b: (b, 0, 0)),
        compiler_params=pltpu.CompilerParams(
            dimension_semantics=("parallel",),
            vmem_limit_bytes=_VMEM_LIMIT),
    )(x, adj, w3, b3.reshape(1, Fmid), w4, b4.reshape(1, Fout))


def _gram_sq_kernel(x_ref, g_ref, s_ref):
    # Gram matrix + squared norms in one pass; sq emitted lane-dense (1, Nn).
    xv = x_ref[0]
    g_ref[0] = lax.dot_general(xv, xv, (((1,), (1,)), ((), ())),
                               preferred_element_type=jnp.float32)
    s_ref[0] = jnp.sum(xv * xv, axis=-1).reshape(1, -1)


def pallas_gram_sq(x):
    B, Nn, F = x.shape
    return pl.pallas_call(
        _gram_sq_kernel,
        out_shape=(jax.ShapeDtypeStruct((B, Nn, Nn), jnp.float32),
                   jax.ShapeDtypeStruct((B, 1, Nn), jnp.float32)),
        grid=(B,),
        in_specs=[pl.BlockSpec((1, Nn, F), lambda b: (b, 0, 0))],
        out_specs=(pl.BlockSpec((1, Nn, Nn), lambda b: (b, 0, 0)),
                   pl.BlockSpec((1, 1, Nn), lambda b: (b, 0, 0))),
        compiler_params=pltpu.CompilerParams(dimension_semantics=("parallel",)),
    )(x)


# --------------------------------------------------------------------------
# Glue: patch transforms, adjacency
# --------------------------------------------------------------------------
def make_geometry(image_size=16, psize=6, stride=2):
    window_size = image_size + 1 - psize
    cur = np.arange(0, window_size, stride)
    if cur[-1] != window_size - 1:
        cur = np.concatenate([cur, np.array([window_size - 1])])
    nc = len(cur)
    win_r = np.repeat(cur, nc)
    win_c = np.tile(cur, nc)
    off_r = np.repeat(np.arange(psize), psize)
    off_c = np.tile(np.arange(psize), psize)
    row_idx = win_r[:, None] + off_r[None, :]             # (n_patch, psize^2)
    col_idx = win_c[:, None] + off_c[None, :]
    ave = np.zeros((image_size, image_size), dtype=np.float32)
    np.add.at(ave, (row_idx, col_idx), 1.0)               # == ave_mask_com
    ave = np.maximum(ave, 1.0)                            # guard (full coverage here)
    return dict(S=image_size,
                row_idx=jnp.asarray(row_idx), col_idx=jnp.asarray(col_idx),
                ave_mask=jnp.asarray(ave),
                n_patch=nc * nc, patch_dim=psize * psize)


def image2patch(x, geom):
    # to_patch: (B, 1, S, S) -> (B, n_patch, psize^2)
    return x[:, 0][:, geom['row_idx'], geom['col_idx']]


def patch2image(p, geom):
    # to_image(mode='ave'): (B, n_patch, psize^2) -> (B, 1, S, S)
    B = p.shape[0]
    S = geom['S']
    out = jnp.zeros((B, S, S), dtype=jnp.float32)
    out = out.at[:, geom['row_idx'], geom['col_idx']].add(p)
    out = out / geom['ave_mask']
    return out[:, None, :, :]


def build_adj(patch, k=9):
    # TODO(synk): stand-in for graph_laplacian.forward (semantics unavailable):
    # symmetric-normalized kNN adjacency from Euclidean distances.
    B, Nn, _ = patch.shape
    gram, sq = pallas_gram_sq(patch)                      # sq: (B, 1, Nn) lane-dense
    dist = jnp.swapaxes(sq, 1, 2) + sq - 2.0 * gram
    _, idx = lax.top_k(-dist, k)                          # (B, Nn, k)
    b_ix = jnp.arange(B)[:, None, None]
    r_ix = jnp.arange(Nn)[None, :, None]
    adj = jnp.zeros((B, Nn, Nn), jnp.float32).at[b_ix, r_ix, idx].set(1.0)
    adj = jnp.maximum(adj, jnp.swapaxes(adj, 1, 2))
    deg = jnp.sum(adj, axis=-1)
    dinv = lax.rsqrt(jnp.maximum(deg, 1e-6))
    return adj * dinv[:, :, None] * dinv[:, None, :]


# --------------------------------------------------------------------------
# Model forward
# --------------------------------------------------------------------------
def iter_block_forward(p, x, proj, adj, A, geom):
    B, _, S, _ = x.shape
    Q = S * S
    # block2: fused conv stack (no im2col, no intermediate HBM traffic).
    tmp2 = pallas_conv_stack(x[:, 0], p)                        # (B, S, S)
    # block3/4: GCN path fused into one kernel.
    patch = image2patch(x, geom)
    g = pallas_gcn2(patch, adj, p['g3_w'], p['g3_b'], p['g4_w'], p['g4_b'])
    tmp3 = patch2image(g, geom)                                 # (B, 1, S, S)
    # block1 prj step with fused add3 + ReLU epilogue; reshapes below are free.
    out = pallas_prj_fused(x.reshape(B, Q),
                           proj.reshape(B, -1),
                           tmp2.reshape(B, Q),
                           tmp3.reshape(B, Q),
                           A, p['prj_w'])
    return out.reshape(B, 1, S, S)


def magic_forward(params, x, proj, A, geom, k=9):
    patch1 = image2patch(x, geom)
    adj1 = build_adj(patch1, k)
    for p in params['block1']:
        x = iter_block_forward(p, x, proj, adj1, A, geom)
    patch2 = image2patch(x, geom)
    adj2 = build_adj(patch2, k)
    for p in params['block2']:
        x = iter_block_forward(p, x, proj, adj2, A, geom)
    return x


def init_iterblock(key, patch_dim):
    ks = jax.random.split(key, 10)
    w = lambda k, shape, s: jax.random.normal(k, shape, dtype=jnp.float32) * s
    return {
        'prj_w': jnp.array([0.05], dtype=jnp.float32),
        'c1_w': w(ks[0], (64, 1, 3, 3), 0.1),   'c1_b': w(ks[1], (64,), 0.01),
        'c2_w': w(ks[2], (64, 64, 3, 3), 0.05), 'c2_b': w(ks[3], (64,), 0.01),
        'c3_w': w(ks[4], (1, 64, 3, 3), 0.05),  'c3_b': w(ks[5], (1,), 0.01),
        'g3_w': w(ks[6], (patch_dim, 64), 0.1), 'g3_b': w(ks[7], (64,), 0.01),
        'g4_w': w(ks[8], (64, patch_dim), 0.1), 'g4_b': w(ks[9], (patch_dim,), 0.01),
    }


if __name__ == "__main__":
    key = jax.random.PRNGKey(0)
    B, S = 2, 16                     # small image (module default 256 scaled down)
    views, dets = 8, 16              # CT geometry -> sinogram (views, dets)
    block_num = 2                    # -> 1 IterBlock in block1, 1 in block2

    geom = make_geometry(image_size=S, psize=6, stride=2)

    kA, kx, kp, kb1, kb2 = jax.random.split(key, 5)
    Q, P = S * S, views * dets
    # Synthetic system matrix standing in for the ctlib projection operator.
    A = jax.random.normal(kA, (P, Q), dtype=jnp.float32) / jnp.sqrt(float(Q))

    params = {
        'block1': [init_iterblock(k, geom['patch_dim'])
                   for k in jax.random.split(kb1, block_num // 2)],
        'block2': [init_iterblock(k, geom['patch_dim'])
                   for k in jax.random.split(kb2, block_num // 2)],
    }

    x = jax.random.normal(kx, (B, 1, S, S), dtype=jnp.float32)
    proj = jax.random.normal(kp, (B, 1, views, dets), dtype=jnp.float32)

    fwd = jax.jit(lambda params, x, proj: magic_forward(params, x, proj, A, geom))
    out = fwd(params, x, proj)
    jax.block_until_ready(out)
    assert out.shape == (B, 1, S, S) and out.dtype == jnp.float32
    assert bool(jnp.isfinite(out).all())
    print("KERNEL_OK")
</pallas_src>

<mosaic_0001>
module attributes {stable_mosaic.version = 11 : i64} {
  func.func @_conv_stack_kernel(%arg0: i32, %arg1: memref<1x18x18xf32, #tpu.memory_space<vmem>>, %arg2: memref<9x64xf32, #tpu.memory_space<vmem>>, %arg3: memref<1x64xf32, #tpu.memory_space<vmem>>, %arg4: memref<9x64x64xbf16, #tpu.memory_space<vmem>>, %arg5: memref<1x64xf32, #tpu.memory_space<vmem>>, %arg6: memref<9x64xf32, #tpu.memory_space<vmem>>, %arg7: memref<1xf32, #tpu.memory_space<smem>>, %arg8: memref<1x16x16xf32, #tpu.memory_space<vmem>>, %arg9: memref<18x18x64xbf16, #tpu.memory_space<vmem>>, %arg10: memref<18x18x64xbf16, #tpu.memory_space<vmem>>) attributes {dimension_semantics = [#tpu.dimension_semantics<parallel>], iteration_bounds = array<i64: 2>, scalar_prefetch = 0 : i64, scratch_operands = 2 : i64, tpu.core_type = #tpu.core_type<tc>, window_params = [{transform_indices = @transform_0, window_bounds = array<i64: 1, 18, 18>}, {pipeline_mode = #tpu.pipeline_mode<synchronous>, transform_indices = @transform_1, window_bounds = array<i64: 9, 64>}, {pipeline_mode = #tpu.pipeline_mode<synchronous>, transform_indices = @transform_2, window_bounds = array<i64: 1, 64>}, {pipeline_mode = #tpu.pipeline_mode<synchronous>, transform_indices = @transform_3, window_bounds = array<i64: 9, 64, 64>}, {pipeline_mode = #tpu.pipeline_mode<synchronous>, transform_indices = @transform_4, window_bounds = array<i64: 1, 64>}, {pipeline_mode = #tpu.pipeline_mode<synchronous>, transform_indices = @transform_5, window_bounds = array<i64: 9, 64>}, {transform_indices = @transform_6, window_bounds = array<i64: 1>}, {transform_indices = @transform_7, window_bounds = array<i64: 1, 16, 16>}]} {
    %cst = arith.constant 0.000000e+00 : bf16
    %0 = vector.broadcast %cst : bf16 to vector<18x18x64xbf16>
    %c0 = arith.constant 0 : index
    %c0_0 = arith.constant 0 : index
    %c0_1 = arith.constant 0 : index
    %1 = vector.load %arg9[%c0, %c0_0, %c0_1] : memref<18x18x64xbf16, #tpu.memory_space<vmem>>, vector<18x18x64xbf16>
    tpu.vector_store %arg9[%c0, %c0_0, %c0_1], %0 {strides = array<i32>} : memref<18x18x64xbf16, #tpu.memory_space<vmem>>, vector<18x18x64xbf16>,
    %cst_2 = arith.constant 0.000000e+00 : bf16
    %2 = vector.broadcast %cst_2 : bf16 to vector<18x18x64xbf16>
    %c0_3 = arith.constant 0 : index
    %c0_4 = arith.constant 0 : index
    %c0_5 = arith.constant 0 : index
    %3 = vector.load %arg10[%c0_3, %c0_4, %c0_5] : memref<18x18x64xbf16, #tpu.memory_space<vmem>>, vector<18x18x64xbf16>
    tpu.vector_store %arg10[%c0_3, %c0_4, %c0_5], %2 {strides = array<i32>} : memref<18x18x64xbf16, #tpu.memory_space<vmem>>, vector<18x18x64xbf16>,
    %c0_6 = arith.constant 0 : index
    %c0_7 = arith.constant 0 : index
    %c0_8 = arith.constant 0 : index
    %4 = vector.load %arg1[%c0_6, %c0_7, %c0_8] : memref<1x18x18xf32, #tpu.memory_space<vmem>>, vector<1x18x18xf32>
    %5 = vector.shape_cast %4 : vector<1x18x18xf32> to vector<18x18xf32>
    %c0_9 = arith.constant 0 : index
    %c0_10 = arith.constant 0 : index
    %6 = vector.load %arg2[%c0_9, %c0_10] : memref<9x64xf32, #tpu.memory_space<vmem>>, vector<9x64xf32>
    %cst_11 = arith.constant 0.000000e+00 : f32
    %7 = vector.broadcast %cst_11 : f32 to vector<16x16x64xf32>
    %8 = vector.extract_strided_slice %5 {offsets = [0, 0], sizes = [16, 16], strides = [1, 1]} : vector<18x18xf32> to vector<16x16xf32>
    %9 = vector.shape_cast %8 : vector<16x16xf32> to vector<16x16x1xf32>
    %10 = vector.extract_strided_slice %6 {offsets = [0, 0], sizes = [1, 64], strides = [1, 1]} : vector<9x64xf32> to vector<1x64xf32>
    %11 = vector.shape_cast %10 : vector<1x64xf32> to vector<64xf32>
    %12 = vector.shape_cast %11 : vector<64xf32> to vector<1x1x64xf32>
    %13 = vector.broadcast %9 : vector<16x16x1xf32> to vector<16x16x64xf32>
    %14 = vector.broadcast %12 : vector<1x1x64xf32> to vector<16x16x64xf32>
    %15 = arith.mulf %13, %14 : vector<16x16x64xf32>
    %16 = arith.addf %7, %15 : vector<16x16x64xf32>
    %17 = vector.extract_strided_slice %5 {offsets = [0, 1], sizes = [16, 16], strides = [1, 1]} : vector<18x18xf32> to vector<16x16xf32>
    %18 = vector.shape_cast %17 : vector<16x16xf32> to vector<16x16x1xf32>
    %19 = vector.extract_strided_slice %6 {offsets = [1, 0], sizes = [1, 64], strides = [1, 1]} : vector<9x64xf32> to vector<1x64xf32>
    %20 = vector.shape_cast %19 : vector<1x64xf32> to vector<64xf32>
    %21 = vector.shape_cast %20 : vector<64xf32> to vector<1x1x64xf32>
    %22 = vector.broadcast %18 : vector<16x16x1xf32> to vector<16x16x64xf32>
    %23 = vector.broadcast %21 : vector<1x1x64xf32> to vector<16x16x64xf32>
    %24 = arith.mulf %22, %23 : vector<16x16x64xf32>
    %25 = arith.addf %16, %24 : vector<16x16x64xf32>
    %26 = vector.extract_strided_slice %5 {offsets = [0, 2], sizes = [16, 16], strides = [1, 1]} : vector<18x18xf32> to vector<16x16xf32>
    %27 = vector.shape_cast %26 : vector<16x16xf32> to vector<16x16x1xf32>
    %28 = vector.extract_strided_slice %6 {offsets = [2, 0], sizes = [1, 64], strides = [1, 1]} : vector<9x64xf32> to vector<1x64xf32>
    %29 = vector.shape_cast %28 : vector<1x64xf32> to vector<64xf32>
    %30 = vector.shape_cast %29 : vector<64xf32> to vector<1x1x64xf32>
    %31 = vector.broadcast %27 : vector<16x16x1xf32> to vector<16x16x64xf32>
    %32 = vector.broadcast %30 : vector<1x1x64xf32> to vector<16x16x64xf32>
    %33 = arith.mulf %31, %32 : vector<16x16x64xf32>
    %34 = arith.addf %25, %33 : vector<16x16x64xf32>
    %35 = vector.extract_strided_slice %5 {offsets = [1, 0], sizes = [16, 16], strides = [1, 1]} : vector<18x18xf32> to vector<16x16xf32>
    %36 = vector.shape_cast %35 : vector<16x16xf32> to vector<16x16x1xf32>
    %37 = vector.extract_strided_slice %6 {offsets = [3, 0], sizes = [1, 64], strides = [1, 1]} : vector<9x64xf32> to vector<1x64xf32>
    %38 = vector.shape_cast %37 : vector<1x64xf32> to vector<64xf32>
    %39 = vector.shape_cast %38 : vector<64xf32> to vector<1x1x64xf32>
    %40 = vector.broadcast %36 : vector<16x16x1xf32> to vector<16x16x64xf32>
    %41 = vector.broadcast %39 : vector<1x1x64xf32> to vector<16x16x64xf32>
    %42 = arith.mulf %40, %41 : vector<16x16x64xf32>
    %43 = arith.addf %34, %42 : vector<16x16x64xf32>
    %44 = vector.extract_strided_slice %5 {offsets = [1, 1], sizes = [16, 16], strides = [1, 1]} : vector<18x18xf32> to vector<16x16xf32>
    %45 = vector.shape_cast %44 : vector<16x16xf32> to vector<16x16x1xf32>
    %46 = vector.extract_strided_slice %6 {offsets = [4, 0], sizes = [1, 64], strides = [1, 1]} : vector<9x64xf32> to vector<1x64xf32>
    %47 = vector.shape_cast %46 : vector<1x64xf32> to vector<64xf32>
    %48 = vector.shape_cast %47 : vector<64xf32> to vector<1x1x64xf32>
    %49 = vector.broadcast %45 : vector<16x16x1xf32> to vector<16x16x64xf32>
    %50 = vector.broadcast %48 : vector<1x1x64xf32> to vector<16x16x64xf32>
    %51 = arith.mulf %49, %50 : vector<16x16x64xf32>
    %52 = arith.addf %43, %51 : vector<16x16x64xf32>
    %53 = vector.extract_strided_slice %5 {offsets = [1, 2], sizes = [16, 16], strides = [1, 1]} : vector<18x18xf32> to vector<16x16xf32>
    %54 = vector.shape_cast %53 : vector<16x16xf32> to vector<16x16x1xf32>
    %55 = vector.extract_strided_slice %6 {offsets = [5, 0], sizes = [1, 64], strides = [1, 1]} : vector<9x64xf32> to vector<1x64xf32>
    %56 = vector.shape_cast %55 : vector<1x64xf32> to vector<64xf32>
    %57 = vector.shape_cast %56 : vector<64xf32> to vector<1x1x64xf32>
    %58 = vector.broadcast %54 : vector<16x16x1xf32> to vector<16x16x64xf32>
    %59 = vector.broadcast %57 : vector<1x1x64xf32> to vector<16x16x64xf32>
    %60 = arith.mulf %58, %59 : vector<16x16x64xf32>
    %61 = arith.addf %52, %60 : vector<16x16x64xf32>
    %62 = vector.extract_strided_slice %5 {offsets = [2, 0], sizes = [16, 16], strides = [1, 1]} : vector<18x18xf32> to vector<16x16xf32>
    %63 = vector.shape_cast %62 : vector<16x16xf32> to vector<16x16x1xf32>
    %64 = vector.extract_strided_slice %6 {offsets = [6, 0], sizes = [1, 64], strides = [1, 1]} : vector<9x64xf32> to vector<1x64xf32>
    %65 = vector.shape_cast %64 : vector<1x64xf32> to vector<64xf32>
    %66 = vector.shape_cast %65 : vector<64xf32> to vector<1x1x64xf32>
    %67 = vector.broadcast %63 : vector<16x16x1xf32> to vector<16x16x64xf32>
    %68 = vector.broadcast %66 : vector<1x1x64xf32> to vector<16x16x64xf32>
    %69 = arith.mulf %67, %68 : vector<16x16x64xf32>
    %70 = arith.addf %61, %69 : vector<16x16x64xf32>
    %71 = vector.extract_strided_slice %5 {offsets = [2, 1], sizes = [16, 16], strides = [1, 1]} : vector<18x18xf32> to vector<16x16xf32>
    %72 = vector.shape_cast %71 : vector<16x16xf32> to vector<16x16x1xf32>
    %73 = vector.extract_strided_slice %6 {offsets = [7, 0], sizes = [1, 64], strides = [1, 1]} : vector<9x64xf32> to vector<1x64xf32>
    %74 = vector.shape_cast %73 : vector<1x64xf32> to vector<64xf32>
    %75 = vector.shape_cast %74 : vector<64xf32> to vector<1x1x64xf32>
    %76 = vector.broadcast %72 : vector<16x16x1xf32> to vector<16x16x64xf32>
    %77 = vector.broadcast %75 : vector<1x1x64xf32> to vector<16x16x64xf32>
    %78 = arith.mulf %76, %77 : vector<16x16x64xf32>
    %79 = arith.addf %70, %78 : vector<16x16x64xf32>
    %80 = vector.extract_strided_slice %5 {offsets = [2, 2], sizes = [16, 16], strides = [1, 1]} : vector<18x18xf32> to vector<16x16xf32>
    %81 = vector.shape_cast %80 : vector<16x16xf32> to vector<16x16x1xf32>
    %82 = vector.extract_strided_slice %6 {offsets = [8, 0], sizes = [1, 64], strides = [1, 1]} : vector<9x64xf32> to vector<1x64xf32>
    %83 = vector.shape_cast %82 : vector<1x64xf32> to vector<64xf32>
    %84 = vector.shape_cast %83 : vector<64xf32> to vector<1x1x64xf32>
    %85 = vector.broadcast %81 : vector<16x16x1xf32> to vector<16x16x64xf32>
    %86 = vector.broadcast %84 : vector<1x1x64xf32> to vector<16x16x64xf32>
    %87 = arith.mulf %85, %86 : vector<16x16x64xf32>
    %88 = arith.addf %79, %87 : vector<16x16x64xf32>
    %c0_12 = arith.constant 0 : index
    %c0_13 = arith.constant 0 : index
    %89 = vector.load %arg3[%c0_12, %c0_13] : memref<1x64xf32, #tpu.memory_space<vmem>>, vector<1x64xf32>
    %90 = vector.shape_cast %89 : vector<1x64xf32> to vector<1x1x64xf32>
    %91 = vector.broadcast %90 : vector<1x1x64xf32> to vector<16x16x64xf32>
    %92 = arith.addf %88, %91 : vector<16x16x64xf32>
    %cst_14 = arith.constant 0.000000e+00 : f32
    %93 = vector.broadcast %cst_14 : f32 to vector<16x16x64xf32>
    %94 = arith.maximumf %92, %93 : vector<16x16x64xf32>
    %95 = arith.truncf %94 : vector<16x16x64xf32> to vector<16x16x64xbf16>
    %c1 = arith.constant 1 : index
    %c1_15 = arith.constant 1 : index
    %c0_16 = arith.constant 0 : index
    %96 = vector.load %arg9[%c1, %c1_15, %c0_16] : memref<18x18x64xbf16, #tpu.memory_space<vmem>>, vector<16x16x64xbf16>
    tpu.vector_store %arg9[%c1, %c1_15, %c0_16], %95 {strides = array<i32>} : memref<18x18x64xbf16, #tpu.memory_space<vmem>>, vector<16x16x64xbf16>,
    %c0_17 = arith.constant 0 : index
    %c0_18 = arith.constant 0 : index
    %c0_19 = arith.constant 0 : index
    %97 = vector.load %arg4[%c0_17, %c0_18, %c0_19] : memref<9x64x64xbf16, #tpu.memory_space<vmem>>, vector<9x64x64xbf16>
    %cst_20 = arith.constant 0.000000e+00 : f32
    %98 = vector.broadcast %cst_20 : f32 to vector<256x64xf32>
    %c0_21 = arith.constant 0 : index
    %c0_22 = arith.constant 0 : index
    %c0_23 = arith.constant 0 : index
    %99 = vector.load %arg9[%c0_21, %c0_22, %c0_23] : memref<18x18x64xbf16, #tpu.memory_space<vmem>>, vector<16x16x64xbf16>
    %100 = vector.shape_cast %99 : vector<16x16x64xbf16> to vector<256x64xbf16>
    %101 = vector.extract_strided_slice %97 {offsets = [0, 0, 0], sizes = [1, 64, 64], strides = [1, 1, 1]} : vector<9x64x64xbf16> to vector<1x64x64xbf16>
    %102 = vector.shape_cast %101 : vector<1x64x64xbf16> to vector<64x64xbf16>
    %cst_24 = arith.constant dense<0.000000e+00> : vector<256x64xf32>
    %103 = tpu.matmul %100, %102, %cst_24 {dimension_numbers = #tpu.dot_dimension_numbers<[1], [0], [0], [1], [0, 0, 1, 1], [], []>} : vector<256x64xbf16>, vector<64x64xbf16>, vector<256x64xf32> -> vector<256x64xf32>
    %104 = arith.addf %98, %103 : vector<256x64xf32>
    %c0_25 = arith.constant 0 : index
    %c1_26 = arith.constant 1 : index
    %c0_27 = arith.constant 0 : index
    %105 = vector.load %arg9[%c0_25, %c1_26, %c0_27] : memref<18x18x64xbf16, #tpu.memory_space<vmem>>, vector<16x16x64xbf16>
    %106 = vector.shape_cast %105 : vector<16x16x64xbf16> to vector<256x64xbf16>
    %107 = vector.extract_strided_slice %97 {offsets = [1, 0, 0], sizes = [1, 64, 64], strides = [1, 1, 1]} : vector<9x64x64xbf16> to vector<1x64x64xbf16>
    %108 = vector.shape_cast %107 : vector<1x64x64xbf16> to vector<64x64xbf16>
    %cst_28 = arith.constant dense<0.000000e+00> : vector<256x64xf32>
    %109 = tpu.matmul %106, %108, %cst_28 {dimension_numbers = #tpu.dot_dimension_numbers<[1], [0], [0], [1], [0, 0, 1, 1], [], []>} : vector<256x64xbf16>, vector<64x64xbf16>, vector<256x64xf32> -> vector<256x64xf32>
    %110 = arith.addf %104, %109 : vector<256x64xf32>
    %c0_29 = arith.constant 0 : index
    %c2 = arith.constant 2 : index
    %c0_30 = arith.constant 0 : index
    %111 = vector.load %arg9[%c0_29, %c2, %c0_30] : memref<18x18x64xbf16, #tpu.memory_space<vmem>>, vector<16x16x64xbf16>
    %112 = vector.shape_cast %111 : vector<16x16x64xbf16> to vector<256x64xbf16>
    %113 = vector.extract_strided_slice %97 {offsets = [2, 0, 0], sizes = [1, 64, 64], strides = [1, 1, 1]} : vector<9x64x64xbf16> to vector<1x64x64xbf16>
    %114 = vector.shape_cast %113 : vector<1x64x64xbf16> to vector<64x64xbf16>
    %cst_31 = arith.constant dense<0.000000e+00> : vector<256x64xf32>
    %115 = tpu.matmul %112, %114, %cst_31 {dimension_numbers = #tpu.dot_dimension_numbers<[1], [0], [0], [1], [0, 0, 1, 1], [], []>} : vector<256x64xbf16>, vector<64x64xbf16>, vector<256x64xf32> -> vector<256x64xf32>
    %116 = arith.addf %110, %115 : vector<256x64xf32>
    %c1_32 = arith.constant 1 : index
    %c0_33 = arith.constant 0 : index
    %c0_34 = arith.constant 0 : index
    %117 = vector.load %arg9[%c1_32, %c0_33, %c0_34] : memref<18x18x64xbf16, #tpu.memory_space<vmem>>, vector<16x16x64xbf16>
    %118 = vector.shape_cast %117 : vector<16x16x64xbf16> to vector<256x64xbf16>
    %119 = vector.extract_strided_slice %97 {offsets = [3, 0, 0], sizes = [1, 64, 64], strides = [1, 1, 1]} : vector<9x64x64xbf16> to vector<1x64x64xbf16>
    %120 = vector.shape_cast %119 : vector<1x64x64xbf16> to vector<64x64xbf16>
    %cst_35 = arith.constant dense<0.000000e+00> : vector<256x64xf32>
    %121 = tpu.matmul %118, %120, %cst_35 {dimension_numbers = #tpu.dot_dimension_numbers<[1], [0], [0], [1], [0, 0, 1, 1], [], []>} : vector<256x64xbf16>, vector<64x64xbf16>, vector<256x64xf32> -> vector<256x64xf32>
    %122 = arith.addf %116, %121 : vector<256x64xf32>
    %c1_36 = arith.constant 1 : index
    %c1_37 = arith.constant 1 : index
    %c0_38 = arith.constant 0 : index
    %123 = vector.load %arg9[%c1_36, %c1_37, %c0_38] : memref<18x18x64xbf16, #tpu.memory_space<vmem>>, vector<16x16x64xbf16>
    %124 = vector.shape_cast %123 : vector<16x16x64xbf16> to vector<256x64xbf16>
    %125 = vector.extract_strided_slice %97 {offsets = [4, 0, 0], sizes = [1, 64, 64], strides = [1, 1, 1]} : vector<9x64x64xbf16> to vector<1x64x64xbf16>
    %126 = vector.shape_cast %125 : vector<1x64x64xbf16> to vector<64x64xbf16>
    %cst_39 = arith.constant dense<0.000000e+00> : vector<256x64xf32>
    %127 = tpu.matmul %124, %126, %cst_39 {dimension_numbers = #tpu.dot_dimension_numbers<[1], [0], [0], [1], [0, 0, 1, 1], [], []>} : vector<256x64xbf16>, vector<64x64xbf16>, vector<256x64xf32> -> vector<256x64xf32>
    %128 = arith.addf %122, %127 : vector<256x64xf32>
    %c1_40 = arith.constant 1 : index
    %c2_41 = arith.constant 2 : index
    %c0_42 = arith.constant 0 : index
    %129 = vector.load %arg9[%c1_40, %c2_41, %c0_42] : memref<18x18x64xbf16, #tpu.memory_space<vmem>>, vector<16x16x64xbf16>
    %130 = vector.shape_cast %129 : vector<16x16x64xbf16> to vector<256x64xbf16>
    %131 = vector.extract_strided_slice %97 {offsets = [5, 0, 0], sizes = [1, 64, 64], strides = [1, 1, 1]} : vector<9x64x64xbf16> to vector<1x64x64xbf16>
    %132 = vector.shape_cast %131 : vector<1x64x64xbf16> to vector<64x64xbf16>
    %cst_43 = arith.constant dense<0.000000e+00> : vector<256x64xf32>
    %133 = tpu.matmul %130, %132, %cst_43 {dimension_numbers = #tpu.dot_dimension_numbers<[1], [0], [0], [1], [0, 0, 1, 1], [], []>} : vector<256x64xbf16>, vector<64x64xbf16>, vector<256x64xf32> -> vector<256x64xf32>
    %134 = arith.addf %128, %133 : vector<256x64xf32>
    %c2_44 = arith.constant 2 : index
    %c0_45 = arith.constant 0 : index
    %c0_46 = arith.constant 0 : index
    %135 = vector.load %arg9[%c2_44, %c0_45, %c0_46] : memref<18x18x64xbf16, #tpu.memory_space<vmem>>, vector<16x16x64xbf16>
    %136 = vector.shape_cast %135 : vector<16x16x64xbf16> to vector<256x64xbf16>
    %137 = vector.extract_strided_slice %97 {offsets = [6, 0, 0], sizes = [1, 64, 64], strides = [1, 1, 1]} : vector<9x64x64xbf16> to vector<1x64x64xbf16>
    %138 = vector.shape_cast %137 : vector<1x64x64xbf16> to vector<64x64xbf16>
    %cst_47 = arith.constant dense<0.000000e+00> : vector<256x64xf32>
    %139 = tpu.matmul %136, %138, %cst_47 {dimension_numbers = #tpu.dot_dimension_numbers<[1], [0], [0], [1], [0, 0, 1, 1], [], []>} : vector<256x64xbf16>, vector<64x64xbf16>, vector<256x64xf32> -> vector<256x64xf32>
    %140 = arith.addf %134, %139 : vector<256x64xf32>
    %c2_48 = arith.constant 2 : index
    %c1_49 = arith.constant 1 : index
    %c0_50 = arith.constant 0 : index
    %141 = vector.load %arg9[%c2_48, %c1_49, %c0_50] : memref<18x18x64xbf16, #tpu.memory_space<vmem>>, vector<16x16x64xbf16>
    %142 = vector.shape_cast %141 : vector<16x16x64xbf16> to vector<256x64xbf16>
    %143 = vector.extract_strided_slice %97 {offsets = [7, 0, 0], sizes = [1, 64, 64], strides = [1, 1, 1]} : vector<9x64x64xbf16> to vector<1x64x64xbf16>
    %144 = vector.shape_cast %143 : vector<1x64x64xbf16> to vector<64x64xbf16>
    %cst_51 = arith.constant dense<0.000000e+00> : vector<256x64xf32>
    %145 = tpu.matmul %142, %144, %cst_51 {dimension_numbers = #tpu.dot_dimension_numbers<[1], [0], [0], [1], [0, 0, 1, 1], [], []>} : vector<256x64xbf16>, vector<64x64xbf16>, vector<256x64xf32> -> vector<256x64xf32>
    %146 = arith.addf %140, %145 : vector<256x64xf32>
    %c2_52 = arith.constant 2 : index
    %c2_53 = arith.constant 2 : index
    %c0_54 = arith.constant 0 : index
    %147 = vector.load %arg9[%c2_52, %c2_53, %c0_54] : memref<18x18x64xbf16, #tpu.memory_space<vmem>>, vector<16x16x64xbf16>
    %148 = vector.shape_cast %147 : vector<16x16x64xbf16> to vector<256x64xbf16>
    %149 = vector.extract_strided_slice %97 {offsets = [8, 0, 0], sizes = [1, 64, 64], strides = [1, 1, 1]} : vector<9x64x64xbf16> to vector<1x64x64xbf16>
    %150 = vector.shape_cast %149 : vector<1x64x64xbf16> to vector<64x64xbf16>
    %cst_55 = arith.constant dense<0.000000e+00> : vector<256x64xf32>
    %151 = tpu.matmul %148, %150, %cst_55 {dimension_numbers = #tpu.dot_dimension_numbers<[1], [0], [0], [1], [0, 0, 1, 1], [], []>} : vector<256x64xbf16>, vector<64x64xbf16>, vector<256x64xf32> -> vector<256x64xf32>
    %152 = arith.addf %146, %151 : vector<256x64xf32>
    %c0_56 = arith.constant 0 : index
    %c0_57 = arith.constant 0 : index
    %153 = vector.load %arg5[%c0_56, %c0_57] : memref<1x64xf32, #tpu.memory_space<vmem>>, vector<1x64xf32>
    %154 = vector.broadcast %153 : vector<1x64xf32> to vector<256x64xf32>
    %155 = arith.addf %152, %154 : vector<256x64xf32>
    %cst_58 = arith.constant 0.000000e+00 : f32
    %156 = vector.broadcast %cst_58 : f32 to vector<256x64xf32>
    %157 = arith.maximumf %155, %156 : vector<256x64xf32>
    %158 = vector.shape_cast %157 : vector<256x64xf32> to vector<16x16x64xf32>
    %159 = arith.truncf %158 : vector<16x16x64xf32> to vector<16x16x64xbf16>
    %c1_59 = arith.constant 1 : index
    %c1_60 = arith.constant 1 : index
    %c0_61 = arith.constant 0 : index
    %160 = vector.load %arg10[%c1_59, %c1_60, %c0_61] : memref<18x18x64xbf16, #tpu.memory_space<vmem>>, vector<16x16x64xbf16>
    tpu.vector_store %arg10[%c1_59, %c1_60, %c0_61], %159 {strides = array<i32>} : memref<18x18x64xbf16, #tpu.memory_space<vmem>>, vector<16x16x64xbf16>,
    %c0_62 = arith.constant 0 : index
    %c0_63 = arith.constant 0 : index
    %161 = vector.load %arg6[%c0_62, %c0_63] : memref<9x64xf32, #tpu.memory_space<vmem>>, vector<9x64xf32>
    %cst_64 = arith.constant 0.000000e+00 : f32
    %162 = vector.broadcast %cst_64 : f32 to vector<16x16x64xf32>
    %c0_65 = arith.constant 0 : index
    %c0_66 = arith.constant 0 : index
    %c0_67 = arith.constant 0 : index
    %163 = vector.load %arg10[%c0_65, %c0_66, %c0_67] : memref<18x18x64xbf16, #tpu.memory_space<vmem>>, vector<16x16x64xbf16>
    %164 = arith.extf %163 : vector<16x16x64xbf16> to vector<16x16x64xf32>
    %165 = vector.extract_strided_slice %161 {offsets = [0, 0], sizes = [1, 64], strides = [1, 1]} : vector<9x64xf32> to vector<1x64xf32>
    %166 = vector.shape_cast %165 : vector<1x64xf32> to vector<64xf32>
    %167 = vector.shape_cast %166 : vector<64xf32> to vector<1x1x64xf32>
    %168 = vector.broadcast %167 : vector<1x1x64xf32> to vector<16x16x64xf32>
    %169 = arith.mulf %164, %168 : vector<16x16x64xf32>
    %170 = arith.addf %162, %169 : vector<16x16x64xf32>
    %c0_68 = arith.constant 0 : index
    %c1_69 = arith.constant 1 : index
    %c0_70 = arith.constant 0 : index
    %171 = vector.load %arg10[%c0_68, %c1_69, %c0_70] : memref<18x18x64xbf16, #tpu.memory_space<vmem>>, vector<16x16x64xbf16>
    %172 = arith.extf %171 : vector<16x16x64xbf16> to vector<16x16x64xf32>
    %173 = vector.extract_strided_slice %161 {offsets = [1, 0], sizes = [1, 64], strides = [1, 1]} : vector<9x64xf32> to vector<1x64xf32>
    %174 = vector.shape_cast %173 : vector<1x64xf32> to vector<64xf32>
    %175 = vector.shape_cast %174 : vector<64xf32> to vector<1x1x64xf32>
    %176 = vector.broadcast %175 : vector<1x1x64xf32> to vector<16x16x64xf32>
    %177 = arith.mulf %172, %176 : vector<16x16x64xf32>
    %178 = arith.addf %170, %177 : vector<16x16x64xf32>
    %c0_71 = arith.constant 0 : index
    %c2_72 = arith.constant 2 : index
    %c0_73 = arith.constant 0 : index
    %179 = vector.load %arg10[%c0_71, %c2_72, %c0_73] : memref<18x18x64xbf16, #tpu.memory_space<vmem>>, vector<16x16x64xbf16>
    %180 = arith.extf %179 : vector<16x16x64xbf16> to vector<16x16x64xf32>
    %181 = vector.extract_strided_slice %161 {offsets = [2, 0], sizes = [1, 64], strides = [1, 1]} : vector<9x64xf32> to vector<1x64xf32>
    %182 = vector.shape_cast %181 : vector<1x64xf32> to vector<64xf32>
    %183 = vector.shape_cast %182 : vector<64xf32> to vector<1x1x64xf32>
    %184 = vector.broadcast %183 : vector<1x1x64xf32> to vector<16x16x64xf32>
    %185 = arith.mulf %180, %184 : vector<16x16x64xf32>
    %186 = arith.addf %178, %185 : vector<16x16x64xf32>
    %c1_74 = arith.constant 1 : index
    %c0_75 = arith.constant 0 : index
    %c0_76 = arith.constant 0 : index
    %187 = vector.load %arg10[%c1_74, %c0_75, %c0_76] : memref<18x18x64xbf16, #tpu.memory_space<vmem>>, vector<16x16x64xbf16>
    %188 = arith.extf %187 : vector<16x16x64xbf16> to vector<16x16x64xf32>
    %189 = vector.extract_strided_slice %161 {offsets = [3, 0], sizes = [1, 64], strides = [1, 1]} : vector<9x64xf32> to vector<1x64xf32>
    %190 = vector.shape_cast %189 : vector<1x64xf32> to vector<64xf32>
    %191 = vector.shape_cast %190 : vector<64xf32> to vector<1x1x64xf32>
    %192 = vector.broadcast %191 : vector<1x1x64xf32> to vector<16x16x64xf32>
    %193 = arith.mulf %188, %192 : vector<16x16x64xf32>
    %194 = arith.addf %186, %193 : vector<16x16x64xf32>
    %c1_77 = arith.constant 1 : index
    %c1_78 = arith.constant 1 : index
    %c0_79 = arith.constant 0 : index
    %195 = vector.load %arg10[%c1_77, %c1_78, %c0_79] : memref<18x18x64xbf16, #tpu.memory_space<vmem>>, vector<16x16x64xbf16>
    %196 = arith.extf %195 : vector<16x16x64xbf16> to vector<16x16x64xf32>
    %197 = vector.extract_strided_slice %161 {offsets = [4, 0], sizes = [1, 64], strides = [1, 1]} : vector<9x64xf32> to vector<1x64xf32>
    %198 = vector.shape_cast %197 : vector<1x64xf32> to vector<64xf32>
    %199 = vector.shape_cast %198 : vector<64xf32> to vector<1x1x64xf32>
    %200 = vector.broadcast %199 : vector<1x1x64xf32> to vector<16x16x64xf32>
    %201 = arith.mulf %196, %200 : vector<16x16x64xf32>
    %202 = arith.addf %194, %201 : vector<16x16x64xf32>
    %c1_80 = arith.constant 1 : index
    %c2_81 = arith.constant 2 : index
    %c0_82 = arith.constant 0 : index
    %203 = vector.load %arg10[%c1_80, %c2_81, %c0_82] : memref<18x18x64xbf16, #tpu.memory_space<vmem>>, vector<16x16x64xbf16>
    %204 = arith.extf %203 : vector<16x16x64xbf16> to vector<16x16x64xf32>
    %205 = vector.extract_strided_slice %161 {offsets = [5, 0], sizes = [1, 64], strides = [1, 1]} : vector<9x64xf32> to vector<1x64xf32>
    %206 = vector.shape_cast %205 : vector<1x64xf32> to vector<64xf32>
    %207 = vector.shape_cast %206 : vector<64xf32> to vector<1x1x64xf32>
    %208 = vector.broadcast %207 : vector<1x1x64xf32> to vector<16x16x64xf32>
    %209 = arith.mulf %204, %208 : vector<16x16x64xf32>
    %210 = arith.addf %202, %209 : vector<16x16x64xf32>
    %c2_83 = arith.constant 2 : index
    %c0_84 = arith.constant 0 : index
    %c0_85 = arith.constant 0 : index
    %211 = vector.load %arg10[%c2_83, %c0_84, %c0_85] : memref<18x18x64xbf16, #tpu.memory_space<vmem>>, vector<16x16x64xbf16>
    %212 = arith.extf %211 : vector<16x16x64xbf16> to vector<16x16x64xf32>
    %213 = vector.extract_strided_slice %161 {offsets = [6, 0], sizes = [1, 64], strides = [1, 1]} : vector<9x64xf32> to vector<1x64xf32>
    %214 = vector.shape_cast %213 : vector<1x64xf32> to vector<64xf32>
    %215 = vector.shape_cast %214 : vector<64xf32> to vector<1x1x64xf32>
    %216 = vector.broadcast %215 : vector<1x1x64xf32> to vector<16x16x64xf32>
    %217 = arith.mulf %212, %216 : vector<16x16x64xf32>
    %218 = arith.addf %210, %217 : vector<16x16x64xf32>
    %c2_86 = arith.constant 2 : index
    %c1_87 = arith.constant 1 : index
    %c0_88 = arith.constant 0 : index
    %219 = vector.load %arg10[%c2_86, %c1_87, %c0_88] : memref<18x18x64xbf16, #tpu.memory_space<vmem>>, vector<16x16x64xbf16>
    %220 = arith.extf %219 : vector<16x16x64xbf16> to vector<16x16x64xf32>
    %221 = vector.extract_strided_slice %161 {offsets = [7, 0], sizes = [1, 64], strides = [1, 1]} : vector<9x64xf32> to vector<1x64xf32>
    %222 = vector.shape_cast %221 : vector<1x64xf32> to vector<64xf32>
    %223 = vector.shape_cast %222 : vector<64xf32> to vector<1x1x64xf32>
    %224 = vector.broadcast %223 : vector<1x1x64xf32> to vector<16x16x64xf32>
    %225 = arith.mulf %220, %224 : vector<16x16x64xf32>
    %226 = arith.addf %218, %225 : vector<16x16x64xf32>
    %c2_89 = arith.constant 2 : index
    %c2_90 = arith.constant 2 : index
    %c0_91 = arith.constant 0 : index
    %227 = vector.load %arg10[%c2_89, %c2_90, %c0_91] : memref<18x18x64xbf16, #tpu.memory_space<vmem>>, vector<16x16x64xbf16>
    %228 = arith.extf %227 : vector<16x16x64xbf16> to vector<16x16x64xf32>
    %229 = vector.extract_strided_slice %161 {offsets = [8, 0], sizes = [1, 64], strides = [1, 1]} : vector<9x64xf32> to vector<1x64xf32>
    %230 = vector.shape_cast %229 : vector<1x64xf32> to vector<64xf32>
    %231 = vector.shape_cast %230 : vector<64xf32> to vector<1x1x64xf32>
    %232 = vector.broadcast %231 : vector<1x1x64xf32> to vector<16x16x64xf32>
    %233 = arith.mulf %228, %232 : vector<16x16x64xf32>
    %234 = arith.addf %226, %233 : vector<16x16x64xf32>
    %cst_92 = arith.constant dense<0.000000e+00> : vector<16x16xf32>
    %235 = vector.multi_reduction <add>, %234, %cst_92 [2] : vector<16x16x64xf32> to vector<16x16xf32>
    %c0_93 = arith.constant 0 : index
    %236 = memref.load %arg7[%c0_93] : memref<1xf32, #tpu.memory_space<smem>>
    %237 = vector.broadcast %236 : f32 to vector<16x16xf32>
    %238 = arith.addf %235, %237 : vector<16x16xf32>
    %c0_94 = arith.constant 0 : index
    %c0_95 = arith.constant 0 : index
    %c0_96 = arith.constant 0 : index
    %239 = vector.load %arg8[%c0_94, %c0_95, %c0_96] : memref<1x16x16xf32, #tpu.memory_space<vmem>>, vector<1x16x16xf32>
    %240 = vector.shape_cast %239 : vector<1x16x16xf32> to vector<16x16xf32>
    %241 = vector.shape_cast %238 : vector<16x16xf32> to vector<1x16x16xf32>
    tpu.vector_store %arg8[%c0_94, %c0_95, %c0_96], %241 {strides = array<i32>} : memref<1x16x16xf32, #tpu.memory_space<vmem>>, vector<1x16x16xf32>,
    return
  }
  func.func @transform_0(%arg0: i32) -> (i32, i32, i32) {
    %c0_i32 = arith.constant 0 : i32
    %c0_i32_0 = arith.constant 0 : i32
    %c0_i32_1 = arith.constant 0 : i32
    return %arg0, %c0_i32, %c0_i32_0 : i32, i32, i32
  }
  func.func @transform_1(%arg0: i32) -> (i32, i32) {
    %c0_i32 = arith.constant 0 : i32
    %c0_i32_0 = arith.constant 0 : i32
    %c0_i32_1 = arith.constant 0 : i32
    return %c0_i32, %c0_i32_0 : i32, i32
  }
  func.func @transform_2(%arg0: i32) -> (i32, i32) {
    %c0_i32 = arith.constant 0 : i32
    %c0_i32_0 = arith.constant 0 : i32
    %c0_i32_1 = arith.constant 0 : i32
    return %c0_i32, %c0_i32_0 : i32, i32
  }
  func.func @transform_3(%arg0: i32) -> (i32, i32, i32) {
    %c0_i32 = arith.constant 0 : i32
    %c0_i32_0 = arith.constant 0 : i32
    %c0_i32_1 = arith.constant 0 : i32
    %c0_i32_2 = arith.constant 0 : i32
    return %c0_i32, %c0_i32_0, %c0_i32_1 : i32, i32, i32
  }
  func.func @transform_4(%arg0: i32) -> (i32, i32) {
    %c0_i32 = arith.constant 0 : i32
    %c0_i32_0 = arith.constant 0 : i32
    %c0_i32_1 = arith.constant 0 : i32
    return %c0_i32, %c0_i32_0 : i32, i32
  }
  func.func @transform_5(%arg0: i32) -> (i32, i32) {
    %c0_i32 = arith.constant 0 : i32
    %c0_i32_0 = arith.constant 0 : i32
    %c0_i32_1 = arith.constant 0 : i32
    return %c0_i32, %c0_i32_0 : i32, i32
  }
  func.func @transform_6(%arg0: i32) -> i32 {
    %c0_i32 = arith.constant 0 : i32
    %c0_i32_0 = arith.constant 0 : i32
    return %c0_i32 : i32
  }
  func.func @transform_7(%arg0: i32) -> (i32, i32, i32) {
    %c0_i32 = arith.constant 0 : i32
    %c0_i32_0 = arith.constant 0 : i32
    %c0_i32_1 = arith.constant 0 : i32
    return %arg0, %c0_i32, %c0_i32_0 : i32, i32, i32
  }
}

module attributes {stable_mosaic.version = 11 : i64} {
  func.func @_gram_sq_kernel(%arg0: i32, %arg1: memref<1x36x36xf32, #tpu.memory_space<vmem>>, %arg2: memref<1x36x36xf32, #tpu.memory_space<vmem>>, %arg3: memref<1x1x36xf32, #tpu.memory_space<vmem>>) attributes {dimension_semantics = [#tpu.dimension_semantics<parallel>], iteration_bounds = array<i64: 2>, scalar_prefetch = 0 : i64, scratch_operands = 0 : i64, tpu.core_type = #tpu.core_type<tc>, window_params = [{transform_indices = @transform_0, window_bounds = array<i64: 1, 36, 36>}, {transform_indices = @transform_1, window_bounds = array<i64: 1, 36, 36>}, {transform_indices = @transform_2, window_bounds = array<i64: 1, 1, 36>}]} {
    %c0 = arith.constant 0 : index
    %c0_0 = arith.constant 0 : index
    %c0_1 = arith.constant 0 : index
    %0 = vector.load %arg1[%c0, %c0_0, %c0_1] : memref<1x36x36xf32, #tpu.memory_space<vmem>>, vector<1x36x36xf32>
    %1 = vector.shape_cast %0 : vector<1x36x36xf32> to vector<36x36xf32>
    %cst = arith.constant dense<0.000000e+00> : vector<36x36xf32>
    %2 = tpu.matmul %1, %1, %cst {dimension_numbers = #tpu.dot_dimension_numbers<[1], [1], [0], [0], [0, 0, 1, 0], [], []>} : vector<36x36xf32>, vector<36x36xf32>, vector<36x36xf32> -> vector<36x36xf32>
    %c0_2 = arith.constant 0 : index
    %c0_3 = arith.constant 0 : index
    %c0_4 = arith.constant 0 : index
    %3 = vector.load %arg2[%c0_2, %c0_3, %c0_4] : memref<1x36x36xf32, #tpu.memory_space<vmem>>, vector<1x36x36xf32>
    %4 = vector.shape_cast %3 : vector<1x36x36xf32> to vector<36x36xf32>
    %5 = vector.shape_cast %2 : vector<36x36xf32> to vector<1x36x36xf32>
    tpu.vector_store %arg2[%c0_2, %c0_3, %c0_4], %5 {strides = array<i32>} : memref<1x36x36xf32, #tpu.memory_space<vmem>>, vector<1x36x36xf32>,
    %6 = arith.mulf %1, %1 : vector<36x36xf32>
    %cst_5 = arith.constant dense<0.000000e+00> : vector<36xf32>
    %7 = vector.multi_reduction <add>, %6, %cst_5 [1] : vector<36x36xf32> to vector<36xf32>
    %8 = vector.shape_cast %7 : vector<36xf32> to vector<1x36xf32>
    %c0_6 = arith.constant 0 : index
    %c0_7 = arith.constant 0 : index
    %c0_8 = arith.constant 0 : index
    %9 = vector.load %arg3[%c0_6, %c0_7, %c0_8] : memref<1x1x36xf32, #tpu.memory_space<vmem>>, vector<1x1x36xf32>
    %10 = vector.shape_cast %9 : vector<1x1x36xf32> to vector<1x36xf32>
    %11 = vector.shape_cast %8 : vector<1x36xf32> to vector<1x1x36xf32>
    tpu.vector_store %arg3[%c0_6, %c0_7, %c0_8], %11 {strides = array<i32>} : memref<1x1x36xf32, #tpu.memory_space<vmem>>, vector<1x1x36xf32>,
    return
  }
  func.func @transform_0(%arg0: i32) -> (i32, i32, i32) {
    %c0_i32 = arith.constant 0 : i32
    %c0_i32_0 = arith.constant 0 : i32
    %c0_i32_1 = arith.constant 0 : i32
    return %arg0, %c0_i32, %c0_i32_0 : i32, i32, i32
  }
  func.func @transform_1(%arg0: i32) -> (i32, i32, i32) {
    %c0_i32 = arith.constant 0 : i32
    %c0_i32_0 = arith.constant 0 : i32
    %c0_i32_1 = arith.constant 0 : i32
    return %arg0, %c0_i32, %c0_i32_0 : i32, i32, i32
  }
  func.func @transform_2(%arg0: i32) -> (i32, i32, i32) {
    %c0_i32 = arith.constant 0 : i32
    %c0_i32_0 = arith.constant 0 : i32
    %c0_i32_1 = arith.constant 0 : i32
    return %arg0, %c0_i32, %c0_i32_0 : i32, i32, i32
  }
}

module attributes {stable_mosaic.version = 11 : i64} {
  func.func @_gcn2_kernel(%arg0: i32, %arg1: memref<1x36x36xf32, #tpu.memory_space<vmem>>, %arg2: memref<1x36x36xf32, #tpu.memory_space<vmem>>, %arg3: memref<36x64xf32, #tpu.memory_space<vmem>>, %arg4: memref<1x64xf32, #tpu.memory_space<vmem>>, %arg5: memref<64x36xf32, #tpu.memory_space<vmem>>, %arg6: memref<1x36xf32, #tpu.memory_space<vmem>>, %arg7: memref<1x36x36xf32, #tpu.memory_space<vmem>>) attributes {dimension_semantics = [#tpu.dimension_semantics<parallel>], iteration_bounds = array<i64: 2>, scalar_prefetch = 0 : i64, scratch_operands = 0 : i64, tpu.core_type = #tpu.core_type<tc>, window_params = [{transform_indices = @transform_0, window_bounds = array<i64: 1, 36, 36>}, {transform_indices = @transform_1, window_bounds = array<i64: 1, 36, 36>}, {pipeline_mode = #tpu.pipeline_mode<synchronous>, transform_indices = @transform_2, window_bounds = array<i64: 36, 64>}, {pipeline_mode = #tpu.pipeline_mode<synchronous>, transform_indices = @transform_3, window_bounds = array<i64: 1, 64>}, {pipeline_mode = #tpu.pipeline_mode<synchronous>, transform_indices = @transform_4, window_bounds = array<i64: 64, 36>}, {pipeline_mode = #tpu.pipeline_mode<synchronous>, transform_indices = @transform_5, window_bounds = array<i64: 1, 36>}, {transform_indices = @transform_6, window_bounds = array<i64: 1, 36, 36>}]} {
    %c0 = arith.constant 0 : index
    %c0_0 = arith.constant 0 : index
    %c0_1 = arith.constant 0 : index
    %0 = vector.load %arg1[%c0, %c0_0, %c0_1] : memref<1x36x36xf32, #tpu.memory_space<vmem>>, vector<1x36x36xf32>
    %1 = vector.shape_cast %0 : vector<1x36x36xf32> to vector<36x36xf32>
    %c0_2 = arith.constant 0 : index
    %c0_3 = arith.constant 0 : index
    %c0_4 = arith.constant 0 : index
    %2 = vector.load %arg2[%c0_2, %c0_3, %c0_4] : memref<1x36x36xf32, #tpu.memory_space<vmem>>, vector<1x36x36xf32>
    %3 = vector.shape_cast %2 : vector<1x36x36xf32> to vector<36x36xf32>
    %c0_5 = arith.constant 0 : index
    %c0_6 = arith.constant 0 : index
    %4 = vector.load %arg3[%c0_5, %c0_6] : memref<36x64xf32, #tpu.memory_space<vmem>>, vector<36x64xf32>
    %cst = arith.constant dense<0.000000e+00> : vector<36x64xf32>
    %5 = tpu.matmul %1, %4, %cst {dimension_numbers = #tpu.dot_dimension_numbers<[1], [0], [0], [1], [0, 0, 1, 1], [], []>} : vector<36x36xf32>, vector<36x64xf32>, vector<36x64xf32> -> vector<36x64xf32>
    %cst_7 = arith.constant dense<0.000000e+00> : vector<36x64xf32>
    %6 = tpu.matmul %3, %5, %cst_7 {dimension_numbers = #tpu.dot_dimension_numbers<[1], [0], [0], [1], [0, 0, 1, 1], [], []>} : vector<36x36xf32>, vector<36x64xf32>, vector<36x64xf32> -> vector<36x64xf32>
    %c0_8 = arith.constant 0 : index
    %c0_9 = arith.constant 0 : index
    %7 = vector.load %arg4[%c0_8, %c0_9] : memref<1x64xf32, #tpu.memory_space<vmem>>, vector<1x64xf32>
    %8 = vector.broadcast %7 : vector<1x64xf32> to vector<36x64xf32>
    %9 = arith.addf %6, %8 : vector<36x64xf32>
    %cst_10 = arith.constant 0.000000e+00 : f32
    %10 = vector.broadcast %cst_10 : f32 to vector<36x64xf32>
    %11 = arith.maximumf %9, %10 : vector<36x64xf32>
    %c0_11 = arith.constant 0 : index
    %c0_12 = arith.constant 0 : index
    %12 = vector.load %arg5[%c0_11, %c0_12] : memref<64x36xf32, #tpu.memory_space<vmem>>, vector<64x36xf32>
    %cst_13 = arith.constant dense<0.000000e+00> : vector<36x36xf32>
    %13 = tpu.matmul %11, %12, %cst_13 {dimension_numbers = #tpu.dot_dimension_numbers<[1], [0], [0], [1], [0, 0, 1, 1], [], []>} : vector<36x64xf32>, vector<64x36xf32>, vector<36x36xf32> -> vector<36x36xf32>
    %cst_14 = arith.constant dense<0.000000e+00> : vector<36x36xf32>
    %14 = tpu.matmul %3, %13, %cst_14 {dimension_numbers = #tpu.dot_dimension_numbers<[1], [0], [0], [1], [0, 0, 1, 1], [], []>} : vector<36x36xf32>, vector<36x36xf32>, vector<36x36xf32> -> vector<36x36xf32>
    %c0_15 = arith.constant 0 : index
    %c0_16 = arith.constant 0 : index
    %15 = vector.load %arg6[%c0_15, %c0_16] : memref<1x36xf32, #tpu.memory_space<vmem>>, vector<1x36xf32>
    %16 = vector.broadcast %15 : vector<1x36xf32> to vector<36x36xf32>
    %17 = arith.addf %14, %16 : vector<36x36xf32>
    %c0_17 = arith.constant 0 : index
    %c0_18 = arith.constant 0 : index
    %c0_19 = arith.constant 0 : index
    %18 = vector.load %arg7[%c0_17, %c0_18, %c0_19] : memref<1x36x36xf32, #tpu.memory_space<vmem>>, vector<1x36x36xf32>
    %19 = vector.shape_cast %18 : vector<1x36x36xf32> to vector<36x36xf32>
    %20 = vector.shape_cast %17 : vector<36x36xf32> to vector<1x36x36xf32>
    tpu.vector_store %arg7[%c0_17, %c0_18, %c0_19], %20 {strides = array<i32>} : memref<1x36x36xf32, #tpu.memory_space<vmem>>, vector<1x36x36xf32>,
    return
  }
  func.func @transform_0(%arg0: i32) -> (i32, i32, i32) {
    %c0_i32 = arith.constant 0 : i32
    %c0_i32_0 = arith.constant 0 : i32
    %c0_i32_1 = arith.constant 0 : i32
    return %arg0, %c0_i32, %c0_i32_0 : i32, i32, i32
  }
  func.func @transform_1(%arg0: i32) -> (i32, i32, i32) {
    %c0_i32 = arith.constant 0 : i32
    %c0_i32_0 = arith.constant 0 : i32
    %c0_i32_1 = arith.constant 0 : i32
    return %arg0, %c0_i32, %c0_i32_0 : i32, i32, i32
  }
  func.func @transform_2(%arg0: i32) -> (i32, i32) {
    %c0_i32 = arith.constant 0 : i32
    %c0_i32_0 = arith.constant 0 : i32
    %c0_i32_1 = arith.constant 0 : i32
    return %c0_i32, %c0_i32_0 : i32, i32
  }
  func.func @transform_3(%arg0: i32) -> (i32, i32) {
    %c0_i32 = arith.constant 0 : i32
    %c0_i32_0 = arith.constant 0 : i32
    %c0_i32_1 = arith.constant 0 : i32
    return %c0_i32, %c0_i32_0 : i32, i32
  }
  func.func @transform_4(%arg0: i32) -> (i32, i32) {
    %c0_i32 = arith.constant 0 : i32
    %c0_i32_0 = arith.constant 0 : i32
    %c0_i32_1 = arith.constant 0 : i32
    return %c0_i32, %c0_i32_0 : i32, i32
  }
  func.func @transform_5(%arg0: i32) -> (i32, i32) {
    %c0_i32 = arith.constant 0 : i32
    %c0_i32_0 = arith.constant 0 : i32
    %c0_i32_1 = arith.constant 0 : i32
    return %c0_i32, %c0_i32_0 : i32, i32
  }
  func.func @transform_6(%arg0: i32) -> (i32, i32, i32) {
    %c0_i32 = arith.constant 0 : i32
    %c0_i32_0 = arith.constant 0 : i32
    %c0_i32_1 = arith.constant 0 : i32
    return %arg0, %c0_i32, %c0_i32_0 : i32, i32, i32
  }
}

module attributes {stable_mosaic.version = 11 : i64} {
  func.func @_prj_fuse_kernel(%arg0: i32, %arg1: memref<2x256xf32, #tpu.memory_space<vmem>>, %arg2: memref<2x128xf32, #tpu.memory_space<vmem>>, %arg3: memref<128x256xf32, #tpu.memory_space<vmem>>, %arg4: memref<2x256xf32, #tpu.memory_space<vmem>>, %arg5: memref<2x256xf32, #tpu.memory_space<vmem>>, %arg6: memref<1xf32, #tpu.memory_space<smem>>, %arg7: memref<2x256xf32, #tpu.memory_space<vmem>>) attributes {dimension_semantics = [#tpu.dimension_semantics<arbitrary>], iteration_bounds = array<i64: 1>, scalar_prefetch = 0 : i64, scratch_operands = 0 : i64, tpu.core_type = #tpu.core_type<tc>, window_params = [{pipeline_mode = #tpu.pipeline_mode<synchronous>, transform_indices = @transform_0, window_bounds = array<i64: 2, 256>}, {pipeline_mode = #tpu.pipeline_mode<synchronous>, transform_indices = @transform_1, window_bounds = array<i64: 2, 128>}, {pipeline_mode = #tpu.pipeline_mode<synchronous>, transform_indices = @transform_2, window_bounds = array<i64: 128, 256>}, {pipeline_mode = #tpu.pipeline_mode<synchronous>, transform_indices = @transform_3, window_bounds = array<i64: 2, 256>}, {pipeline_mode = #tpu.pipeline_mode<synchronous>, transform_indices = @transform_4, window_bounds = array<i64: 2, 256>}, {transform_indices = @transform_5, window_bounds = array<i64: 1>}, {pipeline_mode = #tpu.pipeline_mode<synchronous>, transform_indices = @transform_6, window_bounds = array<i64: 2, 256>}]} {
    %c0 = arith.constant 0 : index
    %c0_0 = arith.constant 0 : index
    %0 = vector.load %arg1[%c0, %c0_0] : memref<2x256xf32, #tpu.memory_space<vmem>>, vector<2x256xf32>
    %c0_1 = arith.constant 0 : index
    %c0_2 = arith.constant 0 : index
    %1 = vector.load %arg3[%c0_1, %c0_2] : memref<128x256xf32, #tpu.memory_space<vmem>>, vector<128x256xf32>
    %cst = arith.constant dense<0.000000e+00> : vector<2x128xf32>
    %2 = tpu.matmul %0, %1, %cst {dimension_numbers = #tpu.dot_dimension_numbers<[1], [1], [0], [0], [0, 0, 1, 0], [], []>} : vector<2x256xf32>, vector<128x256xf32>, vector<2x128xf32> -> vector<2x128xf32>
    %c0_3 = arith.constant 0 : index
    %c0_4 = arith.constant 0 : index
    %3 = vector.load %arg2[%c0_3, %c0_4] : memref<2x128xf32, #tpu.memory_space<vmem>>, vector<2x128xf32>
    %4 = arith.subf %2, %3 : vector<2x128xf32>
    %cst_5 = arith.constant dense<0.000000e+00> : vector<2x256xf32>
    %5 = tpu.matmul %4, %1, %cst_5 {dimension_numbers = #tpu.dot_dimension_numbers<[1], [0], [0], [1], [0, 0, 1, 1], [], []>} : vector<2x128xf32>, vector<128x256xf32>, vector<2x256xf32> -> vector<2x256xf32>
    %c0_6 = arith.constant 0 : index
    %6 = memref.load %arg6[%c0_6] : memref<1xf32, #tpu.memory_space<smem>>
    %7 = vector.broadcast %6 : f32 to vector<2x256xf32>
    %8 = arith.mulf %7, %5 : vector<2x256xf32>
    %9 = arith.subf %0, %8 : vector<2x256xf32>
    %c0_7 = arith.constant 0 : index
    %c0_8 = arith.constant 0 : index
    %10 = vector.load %arg4[%c0_7, %c0_8] : memref<2x256xf32, #tpu.memory_space<vmem>>, vector<2x256xf32>
    %11 = arith.addf %9, %10 : vector<2x256xf32>
    %c0_9 = arith.constant 0 : index
    %c0_10 = arith.constant 0 : index
    %12 = vector.load %arg5[%c0_9, %c0_10] : memref<2x256xf32, #tpu.memory_space<vmem>>, vector<2x256xf32>
    %13 = arith.addf %11, %12 : vector<2x256xf32>
    %cst_11 = arith.constant 0.000000e+00 : f32
    %14 = vector.broadcast %cst_11 : f32 to vector<2x256xf32>
    %15 = arith.maximumf %13, %14 : vector<2x256xf32>
    %c0_12 = arith.constant 0 : index
    %c0_13 = arith.constant 0 : index
    %16 = vector.load %arg7[%c0_12, %c0_13] : memref<2x256xf32, #tpu.memory_space<vmem>>, vector<2x256xf32>
    tpu.vector_store %arg7[%c0_12, %c0_13], %15 {strides = array<i32>} : memref<2x256xf32, #tpu.memory_space<vmem>>, vector<2x256xf32>,
    return
  }
  func.func @transform_0(%arg0: i32) -> (i32, i32) {
    %c0_i32 = arith.constant 0 : i32
    %c0_i32_0 = arith.constant 0 : i32
    %c0_i32_1 = arith.constant 0 : i32
    return %c0_i32, %c0_i32_0 : i32, i32
  }
  func.func @transform_1(%arg0: i32) -> (i32, i32) {
    %c0_i32 = arith.constant 0 : i32
    %c0_i32_0 = arith.constant 0 : i32
    %c0_i32_1 = arith.constant 0 : i32
    return %c0_i32, %c0_i32_0 : i32, i32
  }
  func.func @transform_2(%arg0: i32) -> (i32, i32) {
    %c0_i32 = arith.constant 0 : i32
    %c0_i32_0 = arith.constant 0 : i32
    %c0_i32_1 = arith.constant 0 : i32
    return %c0_i32, %c0_i32_0 : i32, i32
  }
  func.func @transform_3(%arg0: i32) -> (i32, i32) {
    %c0_i32 = arith.constant 0 : i32
    %c0_i32_0 = arith.constant 0 : i32
    %c0_i32_1 = arith.constant 0 : i32
    return %c0_i32, %c0_i32_0 : i32, i32
  }
  func.func @transform_4(%arg0: i32) -> (i32, i32) {
    %c0_i32 = arith.constant 0 : i32
    %c0_i32_0 = arith.constant 0 : i32
    %c0_i32_1 = arith.constant 0 : i32
    return %c0_i32, %c0_i32_0 : i32, i32
  }
  func.func @transform_5(%arg0: i32) -> i32 {
    %c0_i32 = arith.constant 0 : i32
    %c0_i32_0 = arith.constant 0 : i32
    return %c0_i32 : i32
  }
  func.func @transform_6(%arg0: i32) -> (i32, i32) {
    %c0_i32 = arith.constant 0 : i32
    %c0_i32_0 = arith.constant 0 : i32
    %c0_i32_1 = arith.constant 0 : i32
    return %c0_i32, %c0_i32_0 : i32, i32
  }
}

</mosaic_0001>

<llo_original>
// kernel: _lambda_.8
$region0: #{_lambda_.8}
  #allocation0 [shape = 'u32[]', space=smem, size = 0x4, offset = 0x4, fixed_abs, tag = 'smem constant byte address 0x4 - core index']
  #allocation1 [shape = 'u32[144,128]{1,0:T(1,128)}', space=vmem, size = 0x12000, scoped, tag = 'internal scratch']
  %s0 = inlined_call_operand.vmem [shape: f32[2,36,36], index: 0, kind: input, shape index: {}]
  %s1 = inlined_call_operand.vmem [shape: f32[2,36,36], index: 1, kind: output, shape index: {0}]
  %s2 = inlined_call_operand.vmem [shape: f32[2,1,36], index: 2, kind: output, shape index: {1}]
  %3 = xla_tuple %s1, %s2
  %s4 = sld [smem:[#allocation0]]
  $region45: #{_lambda_.8} parent=0
    _
  %s6 = ssub.s32 1, %s4
  %s7 = scalar_select 0, %s6, %s4
  loop: start=0, step=1, limit=4
  $region2: #{_lambda_.8} parent=0 // loop_pre_header
    _
  $region3: #{_lambda_.8} parent=0 // loop_header
    %s9 = sphi 0, %s13
    %p10 = scmp.ge.s32.totalorder %s9, 4
    %s19 = sphi 0, %s21
    %s22 = sphi 0, %s19
    %s23 = sphi 0, %s22
    %s39 = sphi 0, %s23
    %s45 = sphi 0, %s47
    %s48 = sphi 0, %s45
    %s49 = sphi 0, %s48
    %s65 = sphi 0, %s49
    %s71 = sphi 0, %s73
    %s74 = sphi 0, %s71
    %s75 = sphi 0, %s74
    %s91 = sphi 0, %s75
  $region4: #{_lambda_.8} parent=0 // loop_header_branch
    %12 = sbr.rel (%p10) target = $region8
  $region5: #{_lambda_.8} parent=0 // loop_body
    %s14 = ssub.s32 %s9, 1
    %s15 = ssub.s32 %s9, 2
    %s16 = sadd.s32 %s9, 1
    %s17 = ssub.s32 %s9, %s16
    %p18 = scmp.eq.s32.totalorder %s17, 0
    %s20 = sadd.s32 %s19, 1
    %s21 = scalar_select %p18, %s19, %s20
    %p24 = pneg %p18
    %p25 = scmp.eq.s32.totalorder %s9, 1
    %p26 = por %p24, %p25
    %p27 = scmp.ne.s32.totalorder %s19, %s22
    %p28 = scmp.eq.s32.totalorder %s9, 0
    %p29 = por %p27, %p28
    %p30 = scmp.ne.s32.totalorder %s19, %s22
    %p31 = scmp.eq.s32.totalorder %s14, 1
    %p32 = por %p30, %p31
    %p33 = scmp.ne.s32.totalorder %s22, %s23
    %p34 = scmp.eq.s32.totalorder %s14, 0
    %p35 = por %p33, %p34
    %p36 = scmp.ne.s32.totalorder %s22, %s23
    %p37 = scmp.eq.s32.totalorder %s15, 1
    %p38 = por %p36, %p37
    %p40 = scmp.ne.s32.totalorder %s23, %s39
    %p41 = scmp.eq.s32.totalorder %s15, 0
    %p42 = por %p40, %p41
    %s43 = ssub.s32 %s9, %s16
    %p44 = scmp.eq.s32.totalorder %s43, 0
    %s46 = sadd.s32 %s45, 1
    %s47 = scalar_select %p44, %s45, %s46
    %p50 = pneg %p44
    %p51 = scmp.eq.s32.totalorder %s9, 1
    %p52 = por %p50, %p51
    %p53 = scmp.ne.s32.totalorder %s45, %s48
    %p54 = scmp.eq.s32.totalorder %s9, 0
    %p55 = por %p53, %p54
    %p56 = scmp.ne.s32.totalorder %s45, %s48
    %p57 = scmp.eq.s32.totalorder %s14, 1
    %p58 = por %p56, %p57
    %p59 = scmp.ne.s32.totalorder %s48, %s49
    %p60 = scmp.eq.s32.totalorder %s14, 0
    %p61 = por %p59, %p60
    %p62 = scmp.ne.s32.totalorder %s48, %s49
    %p63 = scmp.eq.s32.totalorder %s15, 1
    %p64 = por %p62, %p63
    %p66 = scmp.ne.s32.totalorder %s49, %s65
    %p67 = scmp.eq.s32.totalorder %s15, 0
    %p68 = por %p66, %p67
    %s69 = ssub.s32 %s9, %s16
    %p70 = scmp.eq.s32.totalorder %s69, 0
    %s72 = sadd.s32 %s71, 1
    %s73 = scalar_select %p70, %s71, %s72
    %p76 = pneg %p70
    %p77 = scmp.eq.s32.totalorder %s9, 1
    %p78 = por %p76, %p77
    %p79 = scmp.ne.s32.totalorder %s71, %s74
    %p80 = scmp.eq.s32.totalorder %s9, 0
    %p81 = por %p79, %p80
    %p82 = scmp.ne.s32.totalorder %s71, %s74
    %p83 = scmp.eq.s32.totalorder %s14, 1
    %p84 = por %p82, %p83
    %p85 = scmp.ne.s32.totalorder %s74, %s75
    %p86 = scmp.eq.s32.totalorder %s14, 0
    %p87 = por %p85, %p86
    %p88 = scmp.ne.s32.totalorder %s74, %s75
    %p89 = scmp.eq.s32.totalorder %s15, 1
    %p90 = por %p88, %p89
    %p92 = scmp.ne.s32.totalorder %s75, %s91
    %p93 = scmp.eq.s32.totalorder %s15, 0
    %p94 = por %p92, %p93
    %p95 = scmp.le.s32.totalorder 1, %s9
    %p96 = scmp.lt.s32.totalorder %s9, 3
    %p97 = pnand %p95, %p96
    %p98 = pneg %p97
    // Predicated region
    $region9: #{_lambda_.8} parent=5 // pred_check
      _
    $region10: #{_lambda_.8} parent=5 // pred_check_branch
      %100 = sbr.rel (%p97) target = $region12
    $region11: #{_lambda_.8} parent=5 // pred_region
      %s101 = ssub.s32 %s9, 1
    $region12: #{_lambda_.8} parent=5 // pred_fallthru
      _
    %p102 = scmp.lt.s32.totalorder %s9, 2
    // Predicated region
    $region13: #{_lambda_.8} parent=5 // pred_check
      %p103 = pneg %p102
    $region14: #{_lambda_.8} parent=5 // pred_check_branch
      %105 = sbr.rel (%p103) target = $region16
    $region15: #{_lambda_.8} parent=5 // pred_region
      // Predicated region
      $region17: #{_lambda_.8} parent=15 // pred_check
        %p106 = pneg %p29
      $region18: #{_lambda_.8} parent=15 // pred_check_branch
        %108 = sbr.rel (%p106) target = $region20
      $region19: #{_lambda_.8} parent=15 // pred_region
        %p109 = scmp.lt.s32.totalorder %s9, 1
        %s110 = scalar_select %p109, %s9, 1
        %s111 = smul.addr %s110, 5
        %s112 = smul.addr %s111, 8
        %s113 = scalar_lea.vmem %s0, %s112
      $region20: #{_lambda_.8} parent=15 // pred_fallthru
        _
    $region16: #{_lambda_.8} parent=5 // pred_fallthru
      _
    %p114 = scmp.le.s32.totalorder 1, %s9
    %p115 = scmp.lt.s32.totalorder %s9, 3
    %p116 = pnand %p114, %p115
    %p117 = pneg %p116
    // Predicated region
    $region21: #{_lambda_.8} parent=5 // pred_check
      _
    $region22: #{_lambda_.8} parent=5 // pred_check_branch
      %119 = sbr.rel (%p116) target = $region24
    $region23: #{_lambda_.8} parent=5 // pred_region
      %s120 = ssub.s32 %s9, 1
      %p121 = scmp.lt.s32.totalorder %s14, 1
      %s122 = scalar_select %p121, %s14, 1
      %s123 = smul.addr %s122, 5
      %s124 = smul.addr %s123, 8
      %s125 = scalar_lea.vmem %s0, %s124
      %p126 = pneg %p35
      %p127 = pneg %p32
      %p128 = pneg %p61
      %p129 = pneg %p58
      %p130 = scmp.lt.s32.totalorder %s14, 1
      %s131 = scalar_select %p130, %s14, 1
      %s132 = smul.addr %s131, 5
      %s133 = smul.addr %s132, 8
      %s134 = scalar_lea.vmem %s1, %s133
      %p135 = pneg %p87
      %p136 = pneg %p84
      %p137 = scmp.lt.s32.totalorder %s14, 1
      %s138 = scalar_select %p137, %s14, 1
      %s139 = scalar_lea.vmem %s2, %s138
      %p140 = scmp.lt.s32.totalorder %s14, 1
      %s141 = scalar_select %p140, %s14, 1
      %s142 = smul.addr %s141, 5
      %s143 = smul.addr %s142, 8
      %s144 = scalar_lea.vmem %s0, %s143
      %p145 = scmp.lt.s32.totalorder %s14, 1
      %s146 = scalar_select %p145, %s14, 1
      %s147 = smul.addr %s146, 5
      %s148 = smul.addr %s147, 8
      %s149 = scalar_lea.vmem %s1, %s148
      %p150 = scmp.lt.s32.totalorder %s14, 1
      %s151 = scalar_select %p150, %s14, 1
      %s152 = scalar_lea.vmem %s2, %s151
      %v153 = vld [vmem:[%s144] sm:$0xff]
      %v154 = vld [vmem:[%s144 + $0x8] sm:$0xff]
      %v155 = vld [vmem:[%s144 + $0x10] sm:$0xff]
      %v156 = vld [vmem:[%s144 + $0x18] sm:$0xff]
      %v157 = vld [vmem:[%s144 + $0x20] sm:$0xf]
      %vm158 = vcmask 293888
      %v160 = vsel %vm158, %v153, 0
      %v163 = vsel %vm158, %v154, 0
      %v166 = vsel %vm158, %v155, 0
      %v169 = vsel %vm158, %v156, 0
      %v172 = vsel %vm158, %v157, 0
      %174 = vmatprep.subr.mxu0 0.0
      %175 = vmatpush1.xpose.msra.mxu0 %v160
      %176 = vmatprep.subr.mxu0 0.0
      %177 = vmatpush1.xpose.msra.mxu0 %v163
      %178 = vmatprep.subr.mxu0 0.0
      %179 = vmatpush1.xpose.msra.mxu0 %v166
      %180 = vmatprep.subr.mxu0 0.0
      %181 = vmatpush1.xpose.msra.mxu0 %v169
      %182 = vmatprep.subr.mxu0 0.0
      %183 = vmatpush1.xpose.msra.mxu0 %v172
      %184 = vmatprep.subr.mxu0 0.0
      %185 = vmatpush1.xpose.msra.mxu0 0.0
      %186 = vmatprep.subr.mxu0 0.0
      %187 = vmatpush1.xpose.msra.mxu0 0.0
      %188 = vmatprep.subr.mxu0 0.0
      %189 = vmatpush1.xpose.msra.mxu0 0.0
      %190 = vmatprep.subr.mxu0 0.0
      %191 = vmatpush1.xpose.msra.mxu0 0.0
      %192 = vmatprep.subr.mxu0 0.0
      %193 = vmatpush1.xpose.msra.mxu0 0.0
      %194 = vmatprep.subr.mxu0 0.0
      %195 = vmatpush1.xpose.msra.mxu0 0.0
      %196 = vmatprep.subr.mxu0 0.0
      %197 = vmatpush1.xpose.msra.mxu0 0.0
      %198 = vmatprep.subr.mxu0 0.0
      %199 = vmatpush1.xpose.msra.mxu0 0.0
      %200 = vmatprep.subr.mxu0 0.0
      %201 = vmatpush1.xpose.msra.mxu0 0.0
      %202 = vmatprep.subr.mxu0 0.0
      %203 = vmatpush1.xpose.msra.mxu0 0.0
      %204 = vmatprep.subr.mxu0 0.0
      %205 = vmatpush1.xpose.msra.mxu0 0.0
      %206 = vmatprep.subr.mxu0 0.0
      %207 = vmatpush1.xpose.msra.mxu0 0.0
      %208 = vmatprep.subr.mxu0 0.0
      %209 = vmatpush1.xpose.msra.mxu0 0.0
      %210 = vmatprep.subr.mxu0 0.0
      %211 = vmatpush1.xpose.msra.mxu0 0.0
      %212 = vmatprep.subr.mxu0 0.0
      %213 = vmatpush1.xpose.msra.mxu0 0.0
      %214 = vmatprep.subr.mxu0 0.0
      %215 = vmatpush1.xpose.msra.mxu0 0.0
      %216 = vmatprep.subr.mxu0 0.0
      %217 = vmatpush1.xpose.msra.mxu0 0.0
      %218 = vmatprep.subr.mxu0 0.0
      %219 = vmatpush1.xpose.msra.mxu0 0.0
      %220 = vmatprep.subr.mxu0 0.0
      %221 = vmatpush1.xpose.msra.mxu0 0.0
      %222 = vmatprep.subr.mxu0 0.0
      %223 = vmatpush1.xpose.msra.mxu0 0.0
      %224 = vmatprep.subr.mxu0 0.0
      %225 = vmatpush1.xpose.msra.mxu0 0.0
      %226 = vmatprep.subr.mxu0 0.0
      %227 = vmatpush1.xpose.msra.mxu0 0.0
      %228 = vmatprep.subr.mxu0 0.0
      %229 = vmatpush1.xpose.msra.mxu0 0.0
      %230 = vmatprep.subr.mxu0 0.0
      %231 = vmatpush1.xpose.msra.mxu0 0.0
      %232 = vmatprep.subr.mxu0 0.0
      %233 = vmatpush1.xpose.msra.mxu0 0.0
      %234 = vmatprep.subr.mxu0 0.0
      %235 = vmatpush1.xpose.msra.mxu0 0.0
      %236 = vmatprep.subr.mxu0 0.0
      %237 = vmatpush1.xpose.msra.mxu0 0.0
      %238 = vmatprep.mubr.f32.mxu0 0.0
      %239 = vmatmul.mubr.f32.gmra.mrb[0].mxu0 %v160
      %v240 = vpop.f32.mrb[0].mxu0
      %v241 = vadd.f32 0.0, %v240
      %v242 = vpop.f32.mrb[0].mxu0
      %243 = vmatprep.mubr.f32.mxu0 0.0
      %244 = vmatmul.mubr.f32.gmra.mrb[0].mxu0 %v163
      %v245 = vpop.f32.mrb[0].mxu0
      %v246 = vadd.f32 0.0, %v245
      %v247 = vpop.f32.mrb[0].mxu0
      %248 = vmatprep.mubr.f32.mxu0 0.0
      %249 = vmatmul.mubr.f32.gmra.mrb[0].mxu0 %v166
      %v250 = vpop.f32.mrb[0].mxu0
      %v251 = vadd.f32 0.0, %v250
      %v252 = vpop.f32.mrb[0].mxu0
      %253 = vmatprep.mubr.f32.mxu0 0.0
      %254 = vmatmul.mubr.f32.gmra.mrb[0].mxu0 %v169
      %v255 = vpop.f32.mrb[0].mxu0
      %v256 = vadd.f32 0.0, %v255
      %v257 = vpop.f32.mrb[0].mxu0
      %258 = vmatprep.mubr.f32.mxu0 0.0
      %259 = vmatmul.mubr.f32.gmra.mrb[0].mxu0 %v172
      %v260 = vpop.f32.mrb[0].mxu0
      %v261 = vadd.f32 0.0, %v260
      %v262 = vpop.f32.mrb[0].mxu0
      %263 = vdwg.mxu0
      %264 = vst.msk [vmem:[%s149] sm:$0xff] %vm158, %v241
      %265 = vst.msk [vmem:[%s149 + $0x8] sm:$0xff] %vm158, %v246
      %266 = vst.msk [vmem:[%s149 + $0x10] sm:$0xff] %vm158, %v251
      %267 = vst.msk [vmem:[%s149 + $0x18] sm:$0xff] %vm158, %v256
      %vm268 = vcmask 289792
      %269 = vst.msk [vmem:[%s149 + $0x20] sm:$0xf] %vm268, %v261
      %v270 = vmul.f32 %v153, %v153
      %v271 = vmul.f32 %v154, %v154
      %v272 = vmul.f32 %v155, %v155
      %v273 = vmul.f32 %v156, %v156
      %v274 = vmul.f32 %v157, %v157
      %v275 = vsel %vm158, %v270, 0.0
      %276 = vadd.xlane.f32.xlu0 %v275
      %v277 = vpop.xlane.xlu0 %276
      %v278 = vsel %vm158, %v271, 0.0
      %279 = vadd.xlane.f32.xlu0 %v278
      %v280 = vpop.xlane.xlu0 %279
      %v281 = vsel %vm158, %v272, 0.0
      %282 = vadd.xlane.f32.xlu0 %v281
      %v283 = vpop.xlane.xlu0 %282
      %v284 = vsel %vm158, %v273, 0.0
      %285 = vadd.xlane.f32.xlu0 %v284
      %v286 = vpop.xlane.xlu0 %285
      %v287 = vsel %vm268, %v274, 0.0
      %288 = vadd.xlane.f32.xlu0 %v287
      %v289 = vpop.xlane.xlu0 %288
      %v295 = vlaneseq
      %v296 = vand.u32 %v295, 127
      %v297 = vlaneseq
      %v298 = vshrl.u32 %v297, 7
      %v299 = vsub.s32 %v296, %v298
      %v300 = vrot.slane %v277, %v299
      %v301 = vadd.s32 %v296, 4294967288
      %v302 = vlaneseq
      %v303 = vshrl.u32 %v302, 7
      %v304 = vsub.s32 %v301, %v303
      %v305 = vrot.slane %v280, %v304
      %vm306 = vcmask 130112
      %v307 = vsel %vm306, %v305, %v300
      %v308 = vadd.s32 %v296, 4294967280
      %v309 = vlaneseq
      %v310 = vshrl.u32 %v309, 7
      %v311 = vsub.s32 %v308, %v310
      %v312 = vrot.slane %v283, %v311
      %vm313 = vcmask 195712
      %v314 = vsel %vm313, %v312, %v307
      %v315 = vadd.s32 %v296, 4294967272
      %v316 = vlaneseq
      %v317 = vshrl.u32 %v316, 7
      %v318 = vsub.s32 %v315, %v317
      %v319 = vrot.slane %v286, %v318
      %vm320 = vcmask 261312
      %v321 = vsel %vm320, %v319, %v314
      %v322 = vadd.s32 %v296, 4294967264
      %v323 = vlaneseq
      %v324 = vshrl.u32 %v323, 7
      %v325 = vsub.s32 %v322, %v324
      %v326 = vrot.slane %v289, %v325
      %vm327 = vcmask 326912
      %v328 = vsel %vm327, %v326, %v321
      %vm330 = vcmask 286720
      %331 = vst.msk [vmem:[%s152] sm:$0x1] %vm330, %v328
      %p332 = scmp.lt.s32.totalorder %s14, 1
      %s333 = scalar_select %p332, %s14, 1
      %s334 = smul.addr %s333, 5
      %s335 = smul.addr %s334, 8
      %s336 = scalar_lea.vmem %s1, %s335
      %p337 = scmp.lt.s32.totalorder %s14, 1
      %s338 = scalar_select %p337, %s14, 1
      %s339 = scalar_lea.vmem %s2, %s338
      // Predicated region
      $region25: #{_lambda_.8} parent=23 // pred_check
        %p340 = pneg %p58
      $region26: #{_lambda_.8} parent=23 // pred_check_branch
        %342 = sbr.rel (%p340) target = $region28
      $region27: #{_lambda_.8} parent=23 // pred_region
        _
      $region28: #{_lambda_.8} parent=23 // pred_fallthru
        _
      // Predicated region
      $region29: #{_lambda_.8} parent=23 // pred_check
        %p343 = pneg %p84
      $region30: #{_lambda_.8} parent=23 // pred_check_branch
        %345 = sbr.rel (%p343) target = $region32
      $region31: #{_lambda_.8} parent=23 // pred_region
        _
      $region32: #{_lambda_.8} parent=23 // pred_fallthru
        _
    $region24: #{_lambda_.8} parent=5 // pred_fallthru
      _
    %p346 = scmp.le.s32.totalorder 2, %s9
    // Predicated region
    $region33: #{_lambda_.8} parent=5 // pred_check
      %p347 = pneg %p346
    $region34: #{_lambda_.8} parent=5 // pred_check_branch
      %349 = sbr.rel (%p347) target = $region36
    $region35: #{_lambda_.8} parent=5 // pred_region
      %s350 = ssub.s32 %s9, 2
      // Predicated region
      $region37: #{_lambda_.8} parent=35 // pred_check
        %p351 = pneg %p64
      $region38: #{_lambda_.8} parent=35 // pred_check_branch
        %353 = sbr.rel (%p351) target = $region40
      $region39: #{_lambda_.8} parent=35 // pred_region
        %p354 = scmp.lt.s32.totalorder %s15, 1
        %s355 = scalar_select %p354, %s15, 1
        %s356 = smul.addr %s355, 5
        %s357 = smul.addr %s356, 8
        %s358 = scalar_lea.vmem %s1, %s357
      $region40: #{_lambda_.8} parent=35 // pred_fallthru
        _
      // Predicated region
      $region41: #{_lambda_.8} parent=35 // pred_check
        %p359 = pneg %p90
      $region42: #{_lambda_.8} parent=35 // pred_check_branch
        %361 = sbr.rel (%p359) target = $region44
      $region43: #{_lambda_.8} parent=35 // pred_region
        %p362 = scmp.lt.s32.totalorder %s15, 1
        %s363 = scalar_select %p362, %s15, 1
        %s364 = scalar_lea.vmem %s2, %s363
      $region44: #{_lambda_.8} parent=35 // pred_fallthru
        _
    $region36: #{_lambda_.8} parent=5 // pred_fallthru
      _
  $region6: #{_lambda_.8} parent=0 // loop_footer
    %s13 = sadd.s32 1, %s9
  $region7: #{_lambda_.8} parent=0 // loop_footer_branch
    %8 = sbr.rel target = $region3
  $region8: #{_lambda_.8} parent=0 // loop_exit
    _

// kernel: _lambda_.10
$region0: #{_lambda_.10}
  #allocation0 [shape = 'u32[]', space=smem, size = 0x4, offset = 0x4, fixed_abs, tag = 'smem constant byte address 0x4 - core index']
  #allocation1 [shape = 'u32[144,128]{1,0:T(1,128)}', space=vmem, size = 0x12000, scoped, tag = 'internal scratch']
  %s0 = inlined_call_operand.vmem [shape: f32[2,36,36], index: 0, kind: input, shape index: {}]
  %s1 = inlined_call_operand.vmem [shape: f32[2,36,36], index: 1, kind: input, shape index: {}]
  %s2 = inlined_call_operand.vmem [shape: f32[36,64], index: 2, kind: input, shape index: {}]
  %s3 = inlined_call_operand.vmem [shape: f32[1,64], index: 3, kind: input, shape index: {}]
  %s4 = inlined_call_operand.vmem [shape: f32[64,36], index: 4, kind: input, shape index: {}]
  %s5 = inlined_call_operand.vmem [shape: f32[1,36], index: 5, kind: input, shape index: {}]
  %s6 = inlined_call_operand.vmem [shape: f32[2,36,36], index: 6, kind: output, shape index: {}]
  %s7 = sld [smem:[#allocation0]]
  $region57: #{_lambda_.10} parent=0
    _
  %s9 = ssub.s32 1, %s7
  %s10 = scalar_select 0, %s9, %s7
  loop: start=0, step=1, limit=4
  $region2: #{_lambda_.10} parent=0 // loop_pre_header
    _
  $region3: #{_lambda_.10} parent=0 // loop_header
    %s12 = sphi 0, %s16
    %p13 = scmp.ge.s32.totalorder %s12, 4
    %s22 = sphi 0, %s24
    %s25 = sphi 0, %s22
    %s26 = sphi 0, %s25
    %s42 = sphi 0, %s26
    %s48 = sphi 0, %s50
    %s51 = sphi 0, %s48
    %s52 = sphi 0, %s51
    %s68 = sphi 0, %s52
    %s72 = sphi 0, %s72
    %s74 = sphi 0, %s72
    %s75 = sphi 0, %s74
    %s89 = sphi 0, %s75
    %s93 = sphi 0, %s93
    %s95 = sphi 0, %s93
    %s96 = sphi 0, %s95
    %s110 = sphi 0, %s96
    %s114 = sphi 0, %s114
    %s116 = sphi 0, %s114
    %s117 = sphi 0, %s116
    %s131 = sphi 0, %s117
    %s135 = sphi 0, %s135
    %s137 = sphi 0, %s135
    %s138 = sphi 0, %s137
    %s152 = sphi 0, %s138
    %s158 = sphi 0, %s160
    %s161 = sphi 0, %s158
    %s162 = sphi 0, %s161
    %s178 = sphi 0, %s162
  $region4: #{_lambda_.10} parent=0 // loop_header_branch
    %15 = sbr.rel (%p13) target = $region8
  $region5: #{_lambda_.10} parent=0 // loop_body
    %s17 = ssub.s32 %s12, 1
    %s18 = ssub.s32 %s12, 2
    %s19 = sadd.s32 %s12, 1
    %s20 = ssub.s32 %s12, %s19
    %p21 = scmp.eq.s32.totalorder %s20, 0
    %s23 = sadd.s32 %s22, 1
    %s24 = scalar_select %p21, %s22, %s23
    %p27 = pneg %p21
    %p28 = scmp.eq.s32.totalorder %s12, 1
    %p29 = por %p27, %p28
    %p30 = scmp.ne.s32.totalorder %s22, %s25
    %p31 = scmp.eq.s32.totalorder %s12, 0
    %p32 = por %p30, %p31
    %p33 = scmp.ne.s32.totalorder %s22, %s25
    %p34 = scmp.eq.s32.totalorder %s17, 1
    %p35 = por %p33, %p34
    %p36 = scmp.ne.s32.totalorder %s25, %s26
    %p37 = scmp.eq.s32.totalorder %s17, 0
    %p38 = por %p36, %p37
    %p39 = scmp.ne.s32.totalorder %s25, %s26
    %p40 = scmp.eq.s32.totalorder %s18, 1
    %p41 = por %p39, %p40
    %p43 = scmp.ne.s32.totalorder %s26, %s42
    %p44 = scmp.eq.s32.totalorder %s18, 0
    %p45 = por %p43, %p44
    %s46 = ssub.s32 %s12, %s19
    %p47 = scmp.eq.s32.totalorder %s46, 0
    %s49 = sadd.s32 %s48, 1
    %s50 = scalar_select %p47, %s48, %s49
    %p53 = pneg %p47
    %p54 = scmp.eq.s32.totalorder %s12, 1
    %p55 = por %p53, %p54
    %p56 = scmp.ne.s32.totalorder %s48, %s51
    %p57 = scmp.eq.s32.totalorder %s12, 0
    %p58 = por %p56, %p57
    %p59 = scmp.ne.s32.totalorder %s48, %s51
    %p60 = scmp.eq.s32.totalorder %s17, 1
    %p61 = por %p59, %p60
    %p62 = scmp.ne.s32.totalorder %s51, %s52
    %p63 = scmp.eq.s32.totalorder %s17, 0
    %p64 = por %p62, %p63
    %p65 = scmp.ne.s32.totalorder %s51, %s52
    %p66 = scmp.eq.s32.totalorder %s18, 1
    %p67 = por %p65, %p66
    %p69 = scmp.ne.s32.totalorder %s52, %s68
    %p70 = scmp.eq.s32.totalorder %s18, 0
    %p71 = por %p69, %p70
    %s73 = sadd.s32 %s72, 1
    %p76 = scmp.eq.s32.totalorder %s12, 1
    %p77 = scmp.ne.s32.totalorder %s72, %s74
    %p78 = scmp.eq.s32.totalorder %s12, 0
    %p79 = por %p77, %p78
    %p80 = scmp.ne.s32.totalorder %s72, %s74
    %p81 = scmp.eq.s32.totalorder %s17, 1
    %p82 = por %p80, %p81
    %p83 = scmp.ne.s32.totalorder %s74, %s75
    %p84 = scmp.eq.s32.totalorder %s17, 0
    %p85 = por %p83, %p84
    %p86 = scmp.ne.s32.totalorder %s74, %s75
    %p87 = scmp.eq.s32.totalorder %s18, 1
    %p88 = por %p86, %p87
    %p90 = scmp.ne.s32.totalorder %s75, %s89
    %p91 = scmp.eq.s32.totalorder %s18, 0
    %p92 = por %p90, %p91
    %s94 = sadd.s32 %s93, 1
    %p97 = scmp.eq.s32.totalorder %s12, 1
    %p98 = scmp.ne.s32.totalorder %s93, %s95
    %p99 = scmp.eq.s32.totalorder %s12, 0
    %p100 = por %p98, %p99
    %p101 = scmp.ne.s32.totalorder %s93, %s95
    %p102 = scmp.eq.s32.totalorder %s17, 1
    %p103 = por %p101, %p102
    %p104 = scmp.ne.s32.totalorder %s95, %s96
    %p105 = scmp.eq.s32.totalorder %s17, 0
    %p106 = por %p104, %p105
    %p107 = scmp.ne.s32.totalorder %s95, %s96
    %p108 = scmp.eq.s32.totalorder %s18, 1
    %p109 = por %p107, %p108
    %p111 = scmp.ne.s32.totalorder %s96, %s110
    %p112 = scmp.eq.s32.totalorder %s18, 0
    %p113 = por %p111, %p112
    %s115 = sadd.s32 %s114, 1
    %p118 = scmp.eq.s32.totalorder %s12, 1
    %p119 = scmp.ne.s32.totalorder %s114, %s116
    %p120 = scmp.eq.s32.totalorder %s12, 0
    %p121 = por %p119, %p120
    %p122 = scmp.ne.s32.totalorder %s114, %s116
    %p123 = scmp.eq.s32.totalorder %s17, 1
    %p124 = por %p122, %p123
    %p125 = scmp.ne.s32.totalorder %s116, %s117
    %p126 = scmp.eq.s32.totalorder %s17, 0
    %p127 = por %p125, %p126
    %p128 = scmp.ne.s32.totalorder %s116, %s117
    %p129 = scmp.eq.s32.totalorder %s18, 1
    %p130 = por %p128, %p129
    %p132 = scmp.ne.s32.totalorder %s117, %s131
    %p133 = scmp.eq.s32.totalorder %s18, 0
    %p134 = por %p132, %p133
    %s136 = sadd.s32 %s135, 1
    %p139 = scmp.eq.s32.totalorder %s12, 1
    %p140 = scmp.ne.s32.totalorder %s135, %s137
    %p141 = scmp.eq.s32.totalorder %s12, 0
    %p142 = por %p140, %p141
    %p143 = scmp.ne.s32.totalorder %s135, %s137
    %p144 = scmp.eq.s32.totalorder %s17, 1
    %p145 = por %p143, %p144
    %p146 = scmp.ne.s32.totalorder %s137, %s138
    %p147 = scmp.eq.s32.totalorder %s17, 0
    %p148 = por %p146, %p147
    %p149 = scmp.ne.s32.totalorder %s137, %s138
    %p150 = scmp.eq.s32.totalorder %s18, 1
    %p151 = por %p149, %p150
    %p153 = scmp.ne.s32.totalorder %s138, %s152
    %p154 = scmp.eq.s32.totalorder %s18, 0
    %p155 = por %p153, %p154
    %s156 = ssub.s32 %s12, %s19
    %p157 = scmp.eq.s32.totalorder %s156, 0
    %s159 = sadd.s32 %s158, 1
    %s160 = scalar_select %p157, %s158, %s159
    %p163 = pneg %p157
    %p164 = scmp.eq.s32.totalorder %s12, 1
    %p165 = por %p163, %p164
    %p166 = scmp.ne.s32.totalorder %s158, %s161
    %p167 = scmp.eq.s32.totalorder %s12, 0
    %p168 = por %p166, %p167
    %p169 = scmp.ne.s32.totalorder %s158, %s161
    %p170 = scmp.eq.s32.totalorder %s17, 1
    %p171 = por %p169, %p170
    %p172 = scmp.ne.s32.totalorder %s161, %s162
    %p173 = scmp.eq.s32.totalorder %s17, 0
    %p174 = por %p172, %p173
    %p175 = scmp.ne.s32.totalorder %s161, %s162
    %p176 = scmp.eq.s32.totalorder %s18, 1
    %p177 = por %p175, %p176
    %p179 = scmp.ne.s32.totalorder %s162, %s178
    %p180 = scmp.eq.s32.totalorder %s18, 0
    %p181 = por %p179, %p180
    %p182 = scmp.le.s32.totalorder 1, %s12
    %p183 = scmp.lt.s32.totalorder %s12, 3
    %p184 = pnand %p182, %p183
    %p185 = pneg %p184
    // Predicated region
    $region9: #{_lambda_.10} parent=5 // pred_check
      _
    $region10: #{_lambda_.10} parent=5 // pred_check_branch
      %187 = sbr.rel (%p184) target = $region12
    $region11: #{_lambda_.10} parent=5 // pred_region
      %s188 = ssub.s32 %s12, 1
      // Predicated region
      $region13: #{_lambda_.10} parent=11 // pred_check
        %p189 = pneg %p85
      $region14: #{_lambda_.10} parent=11 // pred_check_branch
        %191 = sbr.rel (%p189) target = $region16
      $region15: #{_lambda_.10} parent=11 // pred_region
        _
      $region16: #{_lambda_.10} parent=11 // pred_fallthru
        _
      // Predicated region
      $region17: #{_lambda_.10} parent=11 // pred_check
        %p192 = pneg %p106
      $region18: #{_lambda_.10} parent=11 // pred_check_branch
        %194 = sbr.rel (%p192) target = $region20
      $region19: #{_lambda_.10} parent=11 // pred_region
        _
      $region20: #{_lambda_.10} parent=11 // pred_fallthru
        _
      // Predicated region
      $region21: #{_lambda_.10} parent=11 // pred_check
        %p195 = pneg %p127
      $region22: #{_lambda_.10} parent=11 // pred_check_branch
        %197 = sbr.rel (%p195) target = $region24
      $region23: #{_lambda_.10} parent=11 // pred_region
        _
      $region24: #{_lambda_.10} parent=11 // pred_fallthru
        _
      // Predicated region
      $region25: #{_lambda_.10} parent=11 // pred_check
        %p198 = pneg %p148
      $region26: #{_lambda_.10} parent=11 // pred_check_branch
        %200 = sbr.rel (%p198) target = $region28
      $region27: #{_lambda_.10} parent=11 // pred_region
        _
      $region28: #{_lambda_.10} parent=11 // pred_fallthru
        _
    $region12: #{_lambda_.10} parent=5 // pred_fallthru
      _
    %p201 = scmp.lt.s32.totalorder %s12, 2
    // Predicated region
    $region29: #{_lambda_.10} parent=5 // pred_check
      %p202 = pneg %p201
    $region30: #{_lambda_.10} parent=5 // pred_check_branch
      %204 = sbr.rel (%p202) target = $region32
    $region31: #{_lambda_.10} parent=5 // pred_region
      // Predicated region
      $region33: #{_lambda_.10} parent=31 // pred_check
        %p205 = pneg %p32
      $region34: #{_lambda_.10} parent=31 // pred_check_branch
        %207 = sbr.rel (%p205) target = $region36
      $region35: #{_lambda_.10} parent=31 // pred_region
        %p208 = scmp.lt.s32.totalorder %s12, 1
        %s209 = scalar_select %p208, %s12, 1
        %s210 = smul.addr %s209, 5
        %s211 = smul.addr %s210, 8
        %s212 = scalar_lea.vmem %s0, %s211
      $region36: #{_lambda_.10} parent=31 // pred_fallthru
        _
      // Predicated region
      $region37: #{_lambda_.10} parent=31 // pred_check
        %p213 = pneg %p58
      $region38: #{_lambda_.10} parent=31 // pred_check_branch
        %215 = sbr.rel (%p213) target = $region40
      $region39: #{_lambda_.10} parent=31 // pred_region
        %p216 = scmp.lt.s32.totalorder %s12, 1
        %s217 = scalar_select %p216, %s12, 1
        %s218 = smul.addr %s217, 5
        %s219 = smul.addr %s218, 8
        %s220 = scalar_lea.vmem %s1, %s219
      $region40: #{_lambda_.10} parent=31 // pred_fallthru
        _
    $region32: #{_lambda_.10} parent=5 // pred_fallthru
      _
    %p221 = scmp.le.s32.totalorder 1, %s12
    %p222 = scmp.lt.s32.totalorder %s12, 3
    %p223 = pnand %p221, %p222
    %p224 = pneg %p223
    // Predicated region
    $region41: #{_lambda_.10} parent=5 // pred_check
      _
    $region42: #{_lambda_.10} parent=5 // pred_check_branch
      %226 = sbr.rel (%p223) target = $region44
    $region43: #{_lambda_.10} parent=5 // pred_region
      %s227 = ssub.s32 %s12, 1
      %p228 = scmp.lt.s32.totalorder %s17, 1
      %s229 = scalar_select %p228, %s17, 1
      %s230 = smul.addr %s229, 5
      %s231 = smul.addr %s230, 8
      %s232 = scalar_lea.vmem %s0, %s231
      %p233 = pneg %p38
      %p234 = pneg %p35
      %p235 = scmp.lt.s32.totalorder %s17, 1
      %s236 = scalar_select %p235, %s17, 1
      %s237 = smul.addr %s236, 5
      %s238 = smul.addr %s237, 8
      %s239 = scalar_lea.vmem %s1, %s238
      %p240 = pneg %p64
      %p241 = pneg %p61
      %p242 = pneg %p85
      %p243 = pneg %p82
      %p244 = pneg %p106
      %p245 = pneg %p103
      %p246 = pneg %p127
      %p247 = pneg %p124
      %p248 = pneg %p148
      %p249 = pneg %p145
      %p250 = pneg %p174
      %p251 = pneg %p171
      %p252 = scmp.lt.s32.totalorder %s17, 1
      %s253 = scalar_select %p252, %s17, 1
      %s254 = smul.addr %s253, 5
      %s255 = smul.addr %s254, 8
      %s256 = scalar_lea.vmem %s6, %s255
      %p257 = scmp.lt.s32.totalorder %s17, 1
      %s258 = scalar_select %p257, %s17, 1
      %s259 = smul.addr %s258, 5
      %s260 = smul.addr %s259, 8
      %s261 = scalar_lea.vmem %s0, %s260
      %p262 = scmp.lt.s32.totalorder %s17, 1
      %s263 = scalar_select %p262, %s17, 1
      %s264 = smul.addr %s263, 5
      %s265 = smul.addr %s264, 8
      %s266 = scalar_lea.vmem %s1, %s265
      %p267 = scmp.lt.s32.totalorder %s17, 1
      %s268 = scalar_select %p267, %s17, 1
      %s269 = smul.addr %s268, 5
      %s270 = smul.addr %s269, 8
      %s271 = scalar_lea.vmem %s6, %s270
      %v272 = vld [vmem:[%s261] sm:$0xff]
      %v273 = vld [vmem:[%s261 + $0x8] sm:$0xff]
      %v274 = vld [vmem:[%s261 + $0x10] sm:$0xff]
      %v275 = vld [vmem:[%s261 + $0x18] sm:$0xff]
      %v276 = vld [vmem:[%s261 + $0x20] sm:$0xf]
      %v277 = vld [vmem:[%s266] sm:$0xff]
      %v278 = vld [vmem:[%s266 + $0x8] sm:$0xff]
      %v279 = vld [vmem:[%s266 + $0x10] sm:$0xff]
      %v280 = vld [vmem:[%s266 + $0x18] sm:$0xff]
      %v281 = vld [vmem:[%s266 + $0x20] sm:$0xf]
      %v282 = vld [vmem:[%s2] sm:$0xff]
      %v283 = vld [vmem:[%s2 + $0x8] sm:$0xff]
      %v284 = vld [vmem:[%s2 + $0x10] sm:$0xff]
      %v285 = vld [vmem:[%s2 + $0x18] sm:$0xff]
      %v286 = vld [vmem:[%s2 + $0x20] sm:$0xf]
      %vm287 = vcmask 293888
      %v289 = vsel %vm287, %v272, 0
      %v292 = vsel %vm287, %v273, 0
      %v295 = vsel %vm287, %v274, 0
      %v298 = vsel %vm287, %v275, 0
      %v301 = vsel %vm287, %v276, 0
      %vm303 = vcmask 1043456
      %v305 = vsel %vm303, %v286, 0
      %307 = vmatprep.subr.mxu0 0.0
      %308 = vmatpush1.msra.mxu0 %v282
      %309 = vmatprep.subr.mxu0 0.0
      %310 = vmatpush1.msra.mxu0 %v283
      %311 = vmatprep.subr.mxu0 0.0
      %312 = vmatpush1.msra.mxu0 %v284
      %313 = vmatprep.subr.mxu0 0.0
      %314 = vmatpush1.msra.mxu0 %v285
      %315 = vmatprep.subr.mxu0 0.0
      %316 = vmatpush1.msra.mxu0 %v305
      %317 = vmatprep.subr.mxu0 0.0
      %318 = vmatpush1.msra.mxu0 0.0
      %319 = vmatprep.subr.mxu0 0.0
      %320 = vmatpush1.msra.mxu0 0.0
      %321 = vmatprep.subr.mxu0 0.0
      %322 = vmatpush1.msra.mxu0 0.0
      %323 = vmatprep.subr.mxu0 0.0
      %324 = vmatpush1.msra.mxu0 0.0
      %325 = vmatprep.subr.mxu0 0.0
      %326 = vmatpush1.msra.mxu0 0.0
      %327 = vmatprep.subr.mxu0 0.0
      %328 = vmatpush1.msra.mxu0 0.0
      %329 = vmatprep.subr.mxu0 0.0
      %330 = vmatpush1.msra.mxu0 0.0
      %331 = vmatprep.subr.mxu0 0.0
      %332 = vmatpush1.msra.mxu0 0.0
      %333 = vmatprep.subr.mxu0 0.0
      %334 = vmatpush1.msra.mxu0 0.0
      %335 = vmatprep.subr.mxu0 0.0
      %336 = vmatpush1.msra.mxu0 0.0
      %337 = vmatprep.subr.mxu0 0.0
      %338 = vmatpush1.msra.mxu0 0.0
      %339 = vmatprep.subr.mxu0 0.0
      %340 = vmatpush1.msra.mxu0 0.0
      %341 = vmatprep.subr.mxu0 0.0
      %342 = vmatpush1.msra.mxu0 0.0
      %343 = vmatprep.subr.mxu0 0.0
      %344 = vmatpush1.msra.mxu0 0.0
      %345 = vmatprep.subr.mxu0 0.0
      %346 = vmatpush1.msra.mxu0 0.0
      %347 = vmatprep.subr.mxu0 0.0
      %348 = vmatpush1.msra.mxu0 0.0
      %349 = vmatprep.subr.mxu0 0.0
      %350 = vmatpush1.msra.mxu0 0.0
      %351 = vmatprep.subr.mxu0 0.0
      %352 = vmatpush1.msra.mxu0 0.0
      %353 = vmatprep.subr.mxu0 0.0
      %354 = vmatpush1.msra.mxu0 0.0
      %355 = vmatprep.subr.mxu0 0.0
      %356 = vmatpush1.msra.mxu0 0.0
      %357 = vmatprep.subr.mxu0 0.0
      %358 = vmatpush1.msra.mxu0 0.0
      %359 = vmatprep.subr.mxu0 0.0
      %360 = vmatpush1.msra.mxu0 0.0
      %361 = vmatprep.subr.mxu0 0.0
      %362 = vmatpush1.msra.mxu0 0.0
      %363 = vmatprep.subr.mxu0 0.0
      %364 = vmatpush1.msra.mxu0 0.0
      %365 = vmatprep.subr.mxu0 0.0
      %366 = vmatpush1.msra.mxu0 0.0
      %367 = vmatprep.subr.mxu0 0.0
      %368 = vmatpush1.msra.mxu0 0.0
      %369 = vmatprep.subr.mxu0 0.0
      %370 = vmatpush1.msra.mxu0 0.0
      %371 = vmatprep.mubr.f32.mxu0 0.0
      %372 = vmatmul.mubr.f32.gmra.mrb[0].mxu0 %v289
      %v373 = vpop.f32.mrb[0].mxu0
      %v374 = vadd.f32 0.0, %v373
      %v375 = vpop.f32.mrb[0].mxu0
      %376 = vmatprep.mubr.f32.mxu0 0.0
      %377 = vmatmul.mubr.f32.gmra.mrb[0].mxu0 %v292
      %v378 = vpop.f32.mrb[0].mxu0
      %v379 = vadd.f32 0.0, %v378
      %v380 = vpop.f32.mrb[0].mxu0
      %381 = vmatprep.mubr.f32.mxu0 0.0
      %382 = vmatmul.mubr.f32.gmra.mrb[0].mxu0 %v295
      %v383 = vpop.f32.mrb[0].mxu0
      %v384 = vadd.f32 0.0, %v383
      %v385 = vpop.f32.mrb[0].mxu0
      %386 = vmatprep.mubr.f32.mxu0 0.0
      %387 = vmatmul.mubr.f32.gmra.mrb[0].mxu0 %v298
      %v388 = vpop.f32.mrb[0].mxu0
      %v389 = vadd.f32 0.0, %v388
      %v390 = vpop.f32.mrb[0].mxu0
      %391 = vmatprep.mubr.f32.mxu0 0.0
      %392 = vmatmul.mubr.f32.gmra.mrb[0].mxu0 %v301
      %v393 = vpop.f32.mrb[0].mxu0
      %v394 = vadd.f32 0.0, %v393
      %v395 = vpop.f32.mrb[0].mxu0
      %396 = vdwg.mxu0
      %v397 = vld [vmem:[%s3] sm:$0x1]
      %v399 = vlaneseq
      %v400 = vshrl.u32 %v399, 7
      %v401 = vsub.s32 0, %v400
      %v402 = vrot.slane %v397, %v401
      %v405 = vsel %vm287, %v277, 0
      %v408 = vsel %vm287, %v278, 0
      %v411 = vsel %vm287, %v279, 0
      %v414 = vsel %vm287, %v280, 0
      %v417 = vsel %vm287, %v281, 0
      %v420 = vsel %vm303, %v394, 0
      %422 = vmatprep.subr.mxu0 0.0
      %423 = vmatpush1.msra.mxu0 %v374
      %424 = vmatprep.subr.mxu0 0.0
      %425 = vmatpush1.msra.mxu0 %v379
      %426 = vmatprep.subr.mxu0 0.0
      %427 = vmatpush1.msra.mxu0 %v384
      %428 = vmatprep.subr.mxu0 0.0
      %429 = vmatpush1.msra.mxu0 %v389
      %430 = vmatprep.subr.mxu0 0.0
      %431 = vmatpush1.msra.mxu0 %v420
      %432 = vmatprep.subr.mxu0 0.0
      %433 = vmatpush1.msra.mxu0 0.0
      %434 = vmatprep.subr.mxu0 0.0
      %435 = vmatpush1.msra.mxu0 0.0
      %436 = vmatprep.subr.mxu0 0.0
      %437 = vmatpush1.msra.mxu0 0.0
      %438 = vmatprep.subr.mxu0 0.0
      %439 = vmatpush1.msra.mxu0 0.0
      %440 = vmatprep.subr.mxu0 0.0
      %441 = vmatpush1.msra.mxu0 0.0
      %442 = vmatprep.subr.mxu0 0.0
      %443 = vmatpush1.msra.mxu0 0.0
      %444 = vmatprep.subr.mxu0 0.0
      %445 = vmatpush1.msra.mxu0 0.0
      %446 = vmatprep.subr.mxu0 0.0
      %447 = vmatpush1.msra.mxu0 0.0
      %448 = vmatprep.subr.mxu0 0.0
      %449 = vmatpush1.msra.mxu0 0.0
      %450 = vmatprep.subr.mxu0 0.0
      %451 = vmatpush1.msra.mxu0 0.0
      %452 = vmatprep.subr.mxu0 0.0
      %453 = vmatpush1.msra.mxu0 0.0
      %454 = vmatprep.subr.mxu0 0.0
      %455 = vmatpush1.msra.mxu0 0.0
      %456 = vmatprep.subr.mxu0 0.0
      %457 = vmatpush1.msra.mxu0 0.0
      %458 = vmatprep.subr.mxu0 0.0
      %459 = vmatpush1.msra.mxu0 0.0
      %460 = vmatprep.subr.mxu0 0.0
      %461 = vmatpush1.msra.mxu0 0.0
      %462 = vmatprep.subr.mxu0 0.0
      %463 = vmatpush1.msra.mxu0 0.0
      %464 = vmatprep.subr.mxu0 0.0
      %465 = vmatpush1.msra.mxu0 0.0
      %466 = vmatprep.subr.mxu0 0.0
      %467 = vmatpush1.msra.mxu0 0.0
      %468 = vmatprep.subr.mxu0 0.0
      %469 = vmatpush1.msra.mxu0 0.0
      %470 = vmatprep.subr.mxu0 0.0
      %471 = vmatpush1.msra.mxu0 0.0
      %472 = vmatprep.subr.mxu0 0.0
      %473 = vmatpush1.msra.mxu0 0.0
      %474 = vmatprep.subr.mxu0 0.0
      %475 = vmatpush1.msra.mxu0 0.0
      %476 = vmatprep.subr.mxu0 0.0
      %477 = vmatpush1.msra.mxu0 0.0
      %478 = vmatprep.subr.mxu0 0.0
      %479 = vmatpush1.msra.mxu0 0.0
      %480 = vmatprep.subr.mxu0 0.0
      %481 = vmatpush1.msra.mxu0 0.0
      %482 = vmatprep.subr.mxu0 0.0
      %483 = vmatpush1.msra.mxu0 0.0
      %484 = vmatprep.subr.mxu0 0.0
      %485 = vmatpush1.msra.mxu0 0.0
      %486 = vmatprep.mubr.f32.mxu0 0.0
      %487 = vmatmul.mubr.f32.gmra.mrb[0].mxu0 %v405
      %v488 = vpop.f32.mrb[0].mxu0
      %v489 = vadd.f32 %v402, %v488
      %v490 = vpop.f32.mrb[0].mxu0
      %491 = vmatprep.mubr.f32.mxu0 0.0
      %492 = vmatmul.mubr.f32.gmra.mrb[0].mxu0 %v408
      %v493 = vpop.f32.mrb[0].mxu0
      %v494 = vadd.f32 %v402, %v493
      %v495 = vpop.f32.mrb[0].mxu0
      %496 = vmatprep.mubr.f32.mxu0 0.0
      %497 = vmatmul.mubr.f32.gmra.mrb[0].mxu0 %v411
      %v498 = vpop.f32.mrb[0].mxu0
      %v499 = vadd.f32 %v402, %v498
      %v500 = vpop.f32.mrb[0].mxu0
      %501 = vmatprep.mubr.f32.mxu0 0.0
      %502 = vmatmul.mubr.f32.gmra.mrb[0].mxu0 %v414
      %v503 = vpop.f32.mrb[0].mxu0
      %v504 = vadd.f32 %v402, %v503
      %v505 = vpop.f32.mrb[0].mxu0
      %506 = vmatprep.mubr.f32.mxu0 0.0
      %507 = vmatmul.mubr.f32.gmra.mrb[0].mxu0 %v417
      %v508 = vpop.f32.mrb[0].mxu0
      %v509 = vadd.f32 %v402, %v508
      %v510 = vpop.f32.mrb[0].mxu0
      %511 = vdwg.mxu0
      %v512 = vmax.f32 %v489, 0.0
      %v513 = vmax.f32 %v494, 0.0
      %v514 = vmax.f32 %v499, 0.0
      %v515 = vmax.f32 %v504, 0.0
      %v516 = vmax.f32 %v509, 0.0
      %v517 = vld [vmem:[%s4] sm:$0xff]
      %v518 = vld [vmem:[%s4 + $0x8] sm:$0xff]
      %v519 = vld [vmem:[%s4 + $0x10] sm:$0xff]
      %v520 = vld [vmem:[%s4 + $0x18] sm:$0xff]
      %v521 = vld [vmem:[%s4 + $0x20] sm:$0xff]
      %v522 = vld [vmem:[%s4 + $0x28] sm:$0xff]
      %v523 = vld [vmem:[%s4 + $0x30] sm:$0xff]
      %v524 = vld [vmem:[%s4 + $0x38] sm:$0xff]
      %vm525 = vcmask 523264
      %v527 = vsel %vm525, %v512, 0
      %v530 = vsel %vm525, %v513, 0
      %v533 = vsel %vm525, %v514, 0
      %v536 = vsel %vm525, %v515, 0
      %v539 = vsel %vm525, %v516, 0
      %541 = vmatprep.subr.mxu0 0.0
      %542 = vmatpush1.msra.mxu0 %v517
      %543 = vmatprep.subr.mxu0 0.0
      %544 = vmatpush1.msra.mxu0 %v518
      %545 = vmatprep.subr.mxu0 0.0
      %546 = vmatpush1.msra.mxu0 %v519
      %547 = vmatprep.subr.mxu0 0.0
      %548 = vmatpush1.msra.mxu0 %v520
      %549 = vmatprep.subr.mxu0 0.0
      %550 = vmatpush1.msra.mxu0 %v521
      %551 = vmatprep.subr.mxu0 0.0
      %552 = vmatpush1.msra.mxu0 %v522
      %553 = vmatprep.subr.mxu0 0.0
      %554 = vmatpush1.msra.mxu0 %v523
      %555 = vmatprep.subr.mxu0 0.0
      %556 = vmatpush1.msra.mxu0 %v524
      %557 = vmatprep.subr.mxu0 0.0
      %558 = vmatpush1.msra.mxu0 0.0
      %559 = vmatprep.subr.mxu0 0.0
      %560 = vmatpush1.msra.mxu0 0.0
      %561 = vmatprep.subr.mxu0 0.0
      %562 = vmatpush1.msra.mxu0 0.0
      %563 = vmatprep.subr.mxu0 0.0
      %564 = vmatpush1.msra.mxu0 0.0
      %565 = vmatprep.subr.mxu0 0.0
      %566 = vmatpush1.msra.mxu0 0.0
      %567 = vmatprep.subr.mxu0 0.0
      %568 = vmatpush1.msra.mxu0 0.0
      %569 = vmatprep.subr.mxu0 0.0
      %570 = vmatpush1.msra.mxu0 0.0
      %571 = vmatprep.subr.mxu0 0.0
      %572 = vmatpush1.msra.mxu0 0.0
      %573 = vmatprep.subr.mxu0 0.0
      %574 = vmatpush1.msra.mxu0 0.0
      %575 = vmatprep.subr.mxu0 0.0
      %576 = vmatpush1.msra.mxu0 0.0
      %577 = vmatprep.subr.mxu0 0.0
      %578 = vmatpush1.msra.mxu0 0.0
      %579 = vmatprep.subr.mxu0 0.0
      %580 = vmatpush1.msra.mxu0 0.0
      %581 = vmatprep.subr.mxu0 0.0
      %582 = vmatpush1.msra.mxu0 0.0
      %583 = vmatprep.subr.mxu0 0.0
      %584 = vmatpush1.msra.mxu0 0.0
      %585 = vmatprep.subr.mxu0 0.0
      %586 = vmatpush1.msra.mxu0 0.0
      %587 = vmatprep.subr.mxu0 0.0
      %588 = vmatpush1.msra.mxu0 0.0
      %589 = vmatprep.subr.mxu0 0.0
      %590 = vmatpush1.msra.mxu0 0.0
      %591 = vmatprep.subr.mxu0 0.0
      %592 = vmatpush1.msra.mxu0 0.0
      %593 = vmatprep.subr.mxu0 0.0
      %594 = vmatpush1.msra.mxu0 0.0
      %595 = vmatprep.subr.mxu0 0.0
      %596 = vmatpush1.msra.mxu0 0.0
      %597 = vmatprep.subr.mxu0 0.0
      %598 = vmatpush1.msra.mxu0 0.0
      %599 = vmatprep.subr.mxu0 0.0
      %600 = vmatpush1.msra.mxu0 0.0
      %601 = vmatprep.subr.mxu0 0.0
      %602 = vmatpush1.msra.mxu0 0.0
      %603 = vmatprep.subr.mxu0 0.0
      %604 = vmatpush1.msra.mxu0 0.0
      %605 = vmatprep.mubr.f32.mxu0 0.0
      %606 = vmatmul.mubr.f32.gmra.mrb[0].mxu0 %v527
      %v607 = vpop.f32.mrb[0].mxu0
      %v608 = vadd.f32 0.0, %v607
      %v609 = vpop.f32.mrb[0].mxu0
      %610 = vmatprep.mubr.f32.mxu0 0.0
      %611 = vmatmul.mubr.f32.gmra.mrb[0].mxu0 %v530
      %v612 = vpop.f32.mrb[0].mxu0
      %v613 = vadd.f32 0.0, %v612
      %v614 = vpop.f32.mrb[0].mxu0
      %615 = vmatprep.mubr.f32.mxu0 0.0
      %616 = vmatmul.mubr.f32.gmra.mrb[0].mxu0 %v533
      %v617 = vpop.f32.mrb[0].mxu0
      %v618 = vadd.f32 0.0, %v617
      %v619 = vpop.f32.mrb[0].mxu0
      %620 = vmatprep.mubr.f32.mxu0 0.0
      %621 = vmatmul.mubr.f32.gmra.mrb[0].mxu0 %v536
      %v622 = vpop.f32.mrb[0].mxu0
      %v623 = vadd.f32 0.0, %v622
      %v624 = vpop.f32.mrb[0].mxu0
      %625 = vmatprep.mubr.f32.mxu0 0.0
      %626 = vmatmul.mubr.f32.gmra.mrb[0].mxu0 %v539
      %v627 = vpop.f32.mrb[0].mxu0
      %v628 = vadd.f32 0.0, %v627
      %v629 = vpop.f32.mrb[0].mxu0
      %630 = vdwg.mxu0
      %v631 = vld [vmem:[%s5] sm:$0x1]
      %v633 = vlaneseq
      %v634 = vshrl.u32 %v633, 7
      %v635 = vsub.s32 0, %v634
      %v636 = vrot.slane %v631, %v635
      %v639 = vsel %vm303, %v628, 0
      %641 = vmatprep.subr.mxu0 0.0
      %642 = vmatpush1.msra.mxu0 %v608
      %643 = vmatprep.subr.mxu0 0.0
      %644 = vmatpush1.msra.mxu0 %v613
      %645 = vmatprep.subr.mxu0 0.0
      %646 = vmatpush1.msra.mxu0 %v618
      %647 = vmatprep.subr.mxu0 0.0
      %648 = vmatpush1.msra.mxu0 %v623
      %649 = vmatprep.subr.mxu0 0.0
      %650 = vmatpush1.msra.mxu0 %v639
      %651 = vmatprep.subr.mxu0 0.0
      %652 = vmatpush1.msra.mxu0 0.0
      %653 = vmatprep.subr.mxu0 0.0
      %654 = vmatpush1.msra.mxu0 0.0
      %655 = vmatprep.subr.mxu0 0.0
      %656 = vmatpush1.msra.mxu0 0.0
      %657 = vmatprep.subr.mxu0 0.0
      %658 = vmatpush1.msra.mxu0 0.0
      %659 = vmatprep.subr.mxu0 0.0
      %660 = vmatpush1.msra.mxu0 0.0
      %661 = vmatprep.subr.mxu0 0.0
      %662 = vmatpush1.msra.mxu0 0.0
      %663 = vmatprep.subr.mxu0 0.0
      %664 = vmatpush1.msra.mxu0 0.0
      %665 = vmatprep.subr.mxu0 0.0
      %666 = vmatpush1.msra.mxu0 0.0
      %667 = vmatprep.subr.mxu0 0.0
      %668 = vmatpush1.msra.mxu0 0.0
      %669 = vmatprep.subr.mxu0 0.0
      %670 = vmatpush1.msra.mxu0 0.0
      %671 = vmatprep.subr.mxu0 0.0
      %672 = vmatpush1.msra.mxu0 0.0
      %673 = vmatprep.subr.mxu0 0.0
      %674 = vmatpush1.msra.mxu0 0.0
      %675 = vmatprep.subr.mxu0 0.0
      %676 = vmatpush1.msra.mxu0 0.0
      %677 = vmatprep.subr.mxu0 0.0
      %678 = vmatpush1.msra.mxu0 0.0
      %679 = vmatprep.subr.mxu0 0.0
      %680 = vmatpush1.msra.mxu0 0.0
      %681 = vmatprep.subr.mxu0 0.0
      %682 = vmatpush1.msra.mxu0 0.0
      %683 = vmatprep.subr.mxu0 0.0
      %684 = vmatpush1.msra.mxu0 0.0
      %685 = vmatprep.subr.mxu0 0.0
      %686 = vmatpush1.msra.mxu0 0.0
      %687 = vmatprep.subr.mxu0 0.0
      %688 = vmatpush1.msra.mxu0 0.0
      %689 = vmatprep.subr.mxu0 0.0
      %690 = vmatpush1.msra.mxu0 0.0
      %691 = vmatprep.subr.mxu0 0.0
      %692 = vmatpush1.msra.mxu0 0.0
      %693 = vmatprep.subr.mxu0 0.0
      %694 = vmatpush1.msra.mxu0 0.0
      %695 = vmatprep.subr.mxu0 0.0
      %696 = vmatpush1.msra.mxu0 0.0
      %697 = vmatprep.subr.mxu0 0.0
      %698 = vmatpush1.msra.mxu0 0.0
      %699 = vmatprep.subr.mxu0 0.0
      %700 = vmatpush1.msra.mxu0 0.0
      %701 = vmatprep.subr.mxu0 0.0
      %702 = vmatpush1.msra.mxu0 0.0
      %703 = vmatprep.subr.mxu0 0.0
      %704 = vmatpush1.msra.mxu0 0.0
      %705 = vmatprep.mubr.f32.mxu0 0.0
      %706 = vmatmul.mubr.f32.gmra.mrb[0].mxu0 %v405
      %v707 = vpop.f32.mrb[0].mxu0
      %v708 = vadd.f32 %v636, %v707
      %v709 = vpop.f32.mrb[0].mxu0
      %710 = vmatprep.mubr.f32.mxu0 0.0
      %711 = vmatmul.mubr.f32.gmra.mrb[0].mxu0 %v408
      %v712 = vpop.f32.mrb[0].mxu0
      %v713 = vadd.f32 %v636, %v712
      %v714 = vpop.f32.mrb[0].mxu0
      %715 = vmatprep.mubr.f32.mxu0 0.0
      %716 = vmatmul.mubr.f32.gmra.mrb[0].mxu0 %v411
      %v717 = vpop.f32.mrb[0].mxu0
      %v718 = vadd.f32 %v636, %v717
      %v719 = vpop.f32.mrb[0].mxu0
      %720 = vmatprep.mubr.f32.mxu0 0.0
      %721 = vmatmul.mubr.f32.gmra.mrb[0].mxu0 %v414
      %v722 = vpop.f32.mrb[0].mxu0
      %v723 = vadd.f32 %v636, %v722
      %v724 = vpop.f32.mrb[0].mxu0
      %725 = vmatprep.mubr.f32.mxu0 0.0
      %726 = vmatmul.mubr.f32.gmra.mrb[0].mxu0 %v417
      %v727 = vpop.f32.mrb[0].mxu0
      %v728 = vadd.f32 %v636, %v727
      %v729 = vpop.f32.mrb[0].mxu0
      %730 = vdwg.mxu0
      %731 = vst.msk [vmem:[%s271] sm:$0xff] %vm287, %v708
      %732 = vst.msk [vmem:[%s271 + $0x8] sm:$0xff] %vm287, %v713
      %733 = vst.msk [vmem:[%s271 + $0x10] sm:$0xff] %vm287, %v718
      %734 = vst.msk [vmem:[%s271 + $0x18] sm:$0xff] %vm287, %v723
      %vm735 = vcmask 289792
      %736 = vst.msk [vmem:[%s271 + $0x20] sm:$0xf] %vm735, %v728
      %p737 = scmp.lt.s32.totalorder %s17, 1
      %s738 = scalar_select %p737, %s17, 1
      %s739 = smul.addr %s738, 5
      %s740 = smul.addr %s739, 8
      %s741 = scalar_lea.vmem %s6, %s740
      // Predicated region
      $region45: #{_lambda_.10} parent=43 // pred_check
        %p742 = pneg %p171
      $region46: #{_lambda_.10} parent=43 // pred_check_branch
        %744 = sbr.rel (%p742) target = $region48
      $region47: #{_lambda_.10} parent=43 // pred_region
        _
      $region48: #{_lambda_.10} parent=43 // pred_fallthru
        _
    $region44: #{_lambda_.10} parent=5 // pred_fallthru
      _
    %p745 = scmp.le.s32.totalorder 2, %s12
    // Predicated region
    $region49: #{_lambda_.10} parent=5 // pred_check
      %p746 = pneg %p745
    $region50: #{_lambda_.10} parent=5 // pred_check_branch
      %748 = sbr.rel (%p746) target = $region52
    $region51: #{_lambda_.10} parent=5 // pred_region
      %s749 = ssub.s32 %s12, 2
      // Predicated region
      $region53: #{_lambda_.10} parent=51 // pred_check
        %p750 = pneg %p177
      $region54: #{_lambda_.10} parent=51 // pred_check_branch
        %752 = sbr.rel (%p750) target = $region56
      $region55: #{_lambda_.10} parent=51 // pred_region
        %p753 = scmp.lt.s32.totalorder %s18, 1
        %s754 = scalar_select %p753, %s18, 1
        %s755 = smul.addr %s754, 5
        %s756 = smul.addr %s755, 8
        %s757 = scalar_lea.vmem %s6, %s756
      $region56: #{_lambda_.10} parent=51 // pred_fallthru
        _
    $region52: #{_lambda_.10} parent=5 // pred_fallthru
      _
  $region6: #{_lambda_.10} parent=0 // loop_footer
    %s16 = sadd.s32 1, %s12
  $region7: #{_lambda_.10} parent=0 // loop_footer_branch
    %11 = sbr.rel target = $region3
  $region8: #{_lambda_.10} parent=0 // loop_exit
    _

// kernel: _lambda_.9
$region0: #{_lambda_.9}
  #allocation0 [shape = 'u32[]', space=smem, size = 0x4, offset = 0x4, fixed_abs, tag = 'smem constant byte address 0x4 - core index']
  #allocation1 [shape = 'u32[144,128]{1,0:T(1,128)}', space=vmem, size = 0x12000, scoped, tag = 'internal scratch']
  #allocation2 [shape = 'bf16[18,18,64]{2,1,0:T(8,128)(2,1)}', space=vmem, size = 0x1b000, scoped, tag = 'scratch operand']
  #allocation3 [shape = 'bf16[18,18,64]{2,1,0:T(8,128)(2,1)}', space=vmem, size = 0x1b000, scoped, tag = 'scratch operand']
  #allocation4 [shape = 'f32[1]{0:T(128)S(6)}', space=smem, size = 0x200, scoped, tag = 'scoped memory for _lambda_.9']
  %s0 = inlined_call_operand.vmem [shape: f32[2,18,18], index: 0, kind: input, shape index: {}]
  %s1 = inlined_call_operand.vmem [shape: f32[9,64], index: 1, kind: input, shape index: {}]
  %s2 = inlined_call_operand.vmem [shape: f32[1,64], index: 2, kind: input, shape index: {}]
  %s3 = inlined_call_operand.vmem [shape: bf16[9,64,64], index: 3, kind: input, shape index: {}]
  %s4 = inlined_call_operand.vmem [shape: f32[1,64], index: 4, kind: input, shape index: {}]
  %s5 = inlined_call_operand.vmem [shape: f32[9,64], index: 5, kind: input, shape index: {}]
  %s6 = inlined_call_operand.<no memory space> [shape: f32[1], index: 6, kind: input, shape index: {}]
  %s7 = inlined_call_operand.vmem [shape: f32[2,16,16], index: 7, kind: output, shape index: {}]
  %s8 = sld [smem:[#allocation0]]
  $region61: #{_lambda_.9} parent=0
    _
  %s10 = ssub.s32 1, %s8
  %s11 = scalar_select 0, %s10, %s8
  %12 = sst [smem:[#allocation4]] %s6
  loop: start=0, step=1, limit=4
  $region2: #{_lambda_.9} parent=0 // loop_pre_header
    _
  $region3: #{_lambda_.9} parent=0 // loop_header
    %s14 = sphi 0, %s18
    %p15 = scmp.ge.s32.totalorder %s14, 4
    %s24 = sphi 0, %s26
    %s27 = sphi 0, %s24
    %s28 = sphi 0, %s27
    %s44 = sphi 0, %s28
    %s48 = sphi 0, %s48
    %s50 = sphi 0, %s48
    %s51 = sphi 0, %s50
    %s65 = sphi 0, %s51
    %s69 = sphi 0, %s69
    %s71 = sphi 0, %s69
    %s72 = sphi 0, %s71
    %s86 = sphi 0, %s72
    %s90 = sphi 0, %s90
    %s92 = sphi 0, %s90
    %s93 = sphi 0, %s92
    %s107 = sphi 0, %s93
    %s111 = sphi 0, %s111
    %s113 = sphi 0, %s111
    %s114 = sphi 0, %s113
    %s128 = sphi 0, %s114
    %s132 = sphi 0, %s132
    %s134 = sphi 0, %s132
    %s135 = sphi 0, %s134
    %s149 = sphi 0, %s135
    %s153 = sphi 0, %s153
    %s155 = sphi 0, %s153
    %s156 = sphi 0, %s155
    %s170 = sphi 0, %s156
    %s176 = sphi 0, %s178
    %s179 = sphi 0, %s176
    %s180 = sphi 0, %s179
    %s196 = sphi 0, %s180
  $region4: #{_lambda_.9} parent=0 // loop_header_branch
    %17 = sbr.rel (%p15) target = $region8
  $region5: #{_lambda_.9} parent=0 // loop_body
    %s19 = ssub.s32 %s14, 1
    %s20 = ssub.s32 %s14, 2
    %s21 = sadd.s32 %s14, 1
    %s22 = ssub.s32 %s14, %s21
    %p23 = scmp.eq.s32.totalorder %s22, 0
    %s25 = sadd.s32 %s24, 1
    %s26 = scalar_select %p23, %s24, %s25
    %p29 = pneg %p23
    %p30 = scmp.eq.s32.totalorder %s14, 1
    %p31 = por %p29, %p30
    %p32 = scmp.ne.s32.totalorder %s24, %s27
    %p33 = scmp.eq.s32.totalorder %s14, 0
    %p34 = por %p32, %p33
    %p35 = scmp.ne.s32.totalorder %s24, %s27
    %p36 = scmp.eq.s32.totalorder %s19, 1
    %p37 = por %p35, %p36
    %p38 = scmp.ne.s32.totalorder %s27, %s28
    %p39 = scmp.eq.s32.totalorder %s19, 0
    %p40 = por %p38, %p39
    %p41 = scmp.ne.s32.totalorder %s27, %s28
    %p42 = scmp.eq.s32.totalorder %s20, 1
    %p43 = por %p41, %p42
    %p45 = scmp.ne.s32.totalorder %s28, %s44
    %p46 = scmp.eq.s32.totalorder %s20, 0
    %p47 = por %p45, %p46
    %s49 = sadd.s32 %s48, 1
    %p52 = scmp.eq.s32.totalorder %s14, 1
    %p53 = scmp.ne.s32.totalorder %s48, %s50
    %p54 = scmp.eq.s32.totalorder %s14, 0
    %p55 = por %p53, %p54
    %p56 = scmp.ne.s32.totalorder %s48, %s50
    %p57 = scmp.eq.s32.totalorder %s19, 1
    %p58 = por %p56, %p57
    %p59 = scmp.ne.s32.totalorder %s50, %s51
    %p60 = scmp.eq.s32.totalorder %s19, 0
    %p61 = por %p59, %p60
    %p62 = scmp.ne.s32.totalorder %s50, %s51
    %p63 = scmp.eq.s32.totalorder %s20, 1
    %p64 = por %p62, %p63
    %p66 = scmp.ne.s32.totalorder %s51, %s65
    %p67 = scmp.eq.s32.totalorder %s20, 0
    %p68 = por %p66, %p67
    %s70 = sadd.s32 %s69, 1
    %p73 = scmp.eq.s32.totalorder %s14, 1
    %p74 = scmp.ne.s32.totalorder %s69, %s71
    %p75 = scmp.eq.s32.totalorder %s14, 0
    %p76 = por %p74, %p75
    %p77 = scmp.ne.s32.totalorder %s69, %s71
    %p78 = scmp.eq.s32.totalorder %s19, 1
    %p79 = por %p77, %p78
    %p80 = scmp.ne.s32.totalorder %s71, %s72
    %p81 = scmp.eq.s32.totalorder %s19, 0
    %p82 = por %p80, %p81
    %p83 = scmp.ne.s32.totalorder %s71, %s72
    %p84 = scmp.eq.s32.totalorder %s20, 1
    %p85 = por %p83, %p84
    %p87 = scmp.ne.s32.totalorder %s72, %s86
    %p88 = scmp.eq.s32.totalorder %s20, 0
    %p89 = por %p87, %p88
    %s91 = sadd.s32 %s90, 1
    %p94 = scmp.eq.s32.totalorder %s14, 1
    %p95 = scmp.ne.s32.totalorder %s90, %s92
    %p96 = scmp.eq.s32.totalorder %s14, 0
    %p97 = por %p95, %p96
    %p98 = scmp.ne.s32.totalorder %s90, %s92
    %p99 = scmp.eq.s32.totalorder %s19, 1
    %p100 = por %p98, %p99
    %p101 = scmp.ne.s32.totalorder %s92, %s93
    %p102 = scmp.eq.s32.totalorder %s19, 0
    %p103 = por %p101, %p102
    %p104 = scmp.ne.s32.totalorder %s92, %s93
    %p105 = scmp.eq.s32.totalorder %s20, 1
    %p106 = por %p104, %p105
    %p108 = scmp.ne.s32.totalorder %s93, %s107
    %p109 = scmp.eq.s32.totalorder %s20, 0
    %p110 = por %p108, %p109
    %s112 = sadd.s32 %s111, 1
    %p115 = scmp.eq.s32.totalorder %s14, 1
    %p116 = scmp.ne.s32.totalorder %s111, %s113
    %p117 = scmp.eq.s32.totalorder %s14, 0
    %p118 = por %p116, %p117
    %p119 = scmp.ne.s32.totalorder %s111, %s113
    %p120 = scmp.eq.s32.totalorder %s19, 1
    %p121 = por %p119, %p120
    %p122 = scmp.ne.s32.totalorder %s113, %s114
    %p123 = scmp.eq.s32.totalorder %s19, 0
    %p124 = por %p122, %p123
    %p125 = scmp.ne.s32.totalorder %s113, %s114
    %p126 = scmp.eq.s32.totalorder %s20, 1
    %p127 = por %p125, %p126
    %p129 = scmp.ne.s32.totalorder %s114, %s128
    %p130 = scmp.eq.s32.totalorder %s20, 0
    %p131 = por %p129, %p130
    %s133 = sadd.s32 %s132, 1
    %p136 = scmp.eq.s32.totalorder %s14, 1
    %p137 = scmp.ne.s32.totalorder %s132, %s134
    %p138 = scmp.eq.s32.totalorder %s14, 0
    %p139 = por %p137, %p138
    %p140 = scmp.ne.s32.totalorder %s132, %s134
    %p141 = scmp.eq.s32.totalorder %s19, 1
    %p142 = por %p140, %p141
    %p143 = scmp.ne.s32.totalorder %s134, %s135
    %p144 = scmp.eq.s32.totalorder %s19, 0
    %p145 = por %p143, %p144
    %p146 = scmp.ne.s32.totalorder %s134, %s135
    %p147 = scmp.eq.s32.totalorder %s20, 1
    %p148 = por %p146, %p147
    %p150 = scmp.ne.s32.totalorder %s135, %s149
    %p151 = scmp.eq.s32.totalorder %s20, 0
    %p152 = por %p150, %p151
    %s154 = sadd.s32 %s153, 1
    %p157 = scmp.eq.s32.totalorder %s14, 1
    %p158 = scmp.ne.s32.totalorder %s153, %s155
    %p159 = scmp.eq.s32.totalorder %s14, 0
    %p160 = por %p158, %p159
    %p161 = scmp.ne.s32.totalorder %s153, %s155
    %p162 = scmp.eq.s32.totalorder %s19, 1
    %p163 = por %p161, %p162
    %p164 = scmp.ne.s32.totalorder %s155, %s156
    %p165 = scmp.eq.s32.totalorder %s19, 0
    %p166 = por %p164, %p165
    %p167 = scmp.ne.s32.totalorder %s155, %s156
    %p168 = scmp.eq.s32.totalorder %s20, 1
    %p169 = por %p167, %p168
    %p171 = scmp.ne.s32.totalorder %s156, %s170
    %p172 = scmp.eq.s32.totalorder %s20, 0
    %p173 = por %p171, %p172
    %s174 = ssub.s32 %s14, %s21
    %p175 = scmp.eq.s32.totalorder %s174, 0
    %s177 = sadd.s32 %s176, 1
    %s178 = scalar_select %p175, %s176, %s177
    %p181 = pneg %p175
    %p182 = scmp.eq.s32.totalorder %s14, 1
    %p183 = por %p181, %p182
    %p184 = scmp.ne.s32.totalorder %s176, %s179
    %p185 = scmp.eq.s32.totalorder %s14, 0
    %p186 = por %p184, %p185
    %p187 = scmp.ne.s32.totalorder %s176, %s179
    %p188 = scmp.eq.s32.totalorder %s19, 1
    %p189 = por %p187, %p188
    %p190 = scmp.ne.s32.totalorder %s179, %s180
    %p191 = scmp.eq.s32.totalorder %s19, 0
    %p192 = por %p190, %p191
    %p193 = scmp.ne.s32.totalorder %s179, %s180
    %p194 = scmp.eq.s32.totalorder %s20, 1
    %p195 = por %p193, %p194
    %p197 = scmp.ne.s32.totalorder %s180, %s196
    %p198 = scmp.eq.s32.totalorder %s20, 0
    %p199 = por %p197, %p198
    %p200 = scmp.le.s32.totalorder 1, %s14
    %p201 = scmp.lt.s32.totalorder %s14, 3
    %p202 = pnand %p200, %p201
    %p203 = pneg %p202
    // Predicated region
    $region9: #{_lambda_.9} parent=5 // pred_check
      _
    $region10: #{_lambda_.9} parent=5 // pred_check_branch
      %205 = sbr.rel (%p202) target = $region12
    $region11: #{_lambda_.9} parent=5 // pred_region
      %s206 = ssub.s32 %s14, 1
      // Predicated region
      $region13: #{_lambda_.9} parent=11 // pred_check
        %p207 = pneg %p61
      $region14: #{_lambda_.9} parent=11 // pred_check_branch
        %209 = sbr.rel (%p207) target = $region16
      $region15: #{_lambda_.9} parent=11 // pred_region
        _
      $region16: #{_lambda_.9} parent=11 // pred_fallthru
        _
      // Predicated region
      $region17: #{_lambda_.9} parent=11 // pred_check
        %p210 = pneg %p82
      $region18: #{_lambda_.9} parent=11 // pred_check_branch
        %212 = sbr.rel (%p210) target = $region20
      $region19: #{_lambda_.9} parent=11 // pred_region
        _
      $region20: #{_lambda_.9} parent=11 // pred_fallthru
        _
      // Predicated region
      $region21: #{_lambda_.9} parent=11 // pred_check
        %p213 = pneg %p103
      $region22: #{_lambda_.9} parent=11 // pred_check_branch
        %215 = sbr.rel (%p213) target = $region24
      $region23: #{_lambda_.9} parent=11 // pred_region
        _
      $region24: #{_lambda_.9} parent=11 // pred_fallthru
        _
      // Predicated region
      $region25: #{_lambda_.9} parent=11 // pred_check
        %p216 = pneg %p124
      $region26: #{_lambda_.9} parent=11 // pred_check_branch
        %218 = sbr.rel (%p216) target = $region28
      $region27: #{_lambda_.9} parent=11 // pred_region
        _
      $region28: #{_lambda_.9} parent=11 // pred_fallthru
        _
      // Predicated region
      $region29: #{_lambda_.9} parent=11 // pred_check
        %p219 = pneg %p145
      $region30: #{_lambda_.9} parent=11 // pred_check_branch
        %221 = sbr.rel (%p219) target = $region32
      $region31: #{_lambda_.9} parent=11 // pred_region
        _
      $region32: #{_lambda_.9} parent=11 // pred_fallthru
        _
      // Predicated region
      $region33: #{_lambda_.9} parent=11 // pred_check
        %p222 = pneg %p166
      $region34: #{_lambda_.9} parent=11 // pred_check_branch
        %224 = sbr.rel (%p222) target = $region36
      $region35: #{_lambda_.9} parent=11 // pred_region
        _
      $region36: #{_lambda_.9} parent=11 // pred_fallthru
        _
    $region12: #{_lambda_.9} parent=5 // pred_fallthru
      _
    %p225 = scmp.lt.s32.totalorder %s14, 2
    // Predicated region
    $region37: #{_lambda_.9} parent=5 // pred_check
      %p226 = pneg %p225
    $region38: #{_lambda_.9} parent=5 // pred_check_branch
      %228 = sbr.rel (%p226) target = $region40
    $region39: #{_lambda_.9} parent=5 // pred_region
      // Predicated region
      $region41: #{_lambda_.9} parent=39 // pred_check
        %p229 = pneg %p34
      $region42: #{_lambda_.9} parent=39 // pred_check_branch
        %231 = sbr.rel (%p229) target = $region44
      $region43: #{_lambda_.9} parent=39 // pred_region
        %p232 = scmp.lt.s32.totalorder %s14, 1
        %s233 = scalar_select %p232, %s14, 1
        %s234 = smul.addr %s233, 3
        %s235 = smul.addr %s234, 8
        %s236 = scalar_lea.vmem %s0, %s235
      $region44: #{_lambda_.9} parent=39 // pred_fallthru
        _
    $region40: #{_lambda_.9} parent=5 // pred_fallthru
      _
    %p237 = scmp.le.s32.totalorder 1, %s14
    %p238 = scmp.lt.s32.totalorder %s14, 3
    %p239 = pnand %p237, %p238
    %p240 = pneg %p239
    // Predicated region
    $region45: #{_lambda_.9} parent=5 // pred_check
      _
    $region46: #{_lambda_.9} parent=5 // pred_check_branch
      %242 = sbr.rel (%p239) target = $region48
    $region47: #{_lambda_.9} parent=5 // pred_region
      %s243 = ssub.s32 %s14, 1
      %p244 = scmp.lt.s32.totalorder %s19, 1
      %s245 = scalar_select %p244, %s19, 1
      %s246 = smul.addr %s245, 3
      %s247 = smul.addr %s246, 8
      %s248 = scalar_lea.vmem %s0, %s247
      %p249 = pneg %p40
      %p250 = pneg %p37
      %p251 = pneg %p61
      %p252 = pneg %p58
      %p253 = pneg %p82
      %p254 = pneg %p79
      %p255 = pneg %p103
      %p256 = pneg %p100
      %p257 = pneg %p124
      %p258 = pneg %p121
      %p259 = pneg %p145
      %p260 = pneg %p142
      %p261 = pneg %p166
      %p262 = pneg %p163
      %p263 = pneg %p192
      %p264 = pneg %p189
      %p265 = scmp.lt.s32.totalorder %s19, 1
      %s266 = scalar_select %p265, %s19, 1
      %s267 = smul.addr %s266, 2
      %s268 = smul.addr %s267, 8
      %s269 = scalar_lea.vmem %s7, %s268
      %p270 = scmp.lt.s32.totalorder %s19, 1
      %s271 = scalar_select %p270, %s19, 1
      %s272 = smul.addr %s271, 3
      %s273 = smul.addr %s272, 8
      %s274 = scalar_lea.vmem %s0, %s273
      %p275 = scmp.lt.s32.totalorder %s19, 1
      %s276 = scalar_select %p275, %s19, 1
      %s277 = smul.addr %s276, 2
      %s278 = smul.addr %s277, 8
      %s279 = scalar_lea.vmem %s7, %s278
      %vm281 = vcmask 519168
      %282 = vst.msk [vmem:[#allocation2] sm:$0xf] %vm281, 0
      %283 = vst.msk [vmem:[#allocation2 + $0x4] sm:$0xf] %vm281, 0
      %vm284 = vcmask 516096
      %285 = vst.msk [vmem:[#allocation2 + $0x8] sm:$0x1] %vm284, 0
      %286 = vst.msk [vmem:[#allocation2 + $0xc] sm:$0xf] %vm281, 0
      %287 = vst.msk [vmem:[#allocation2 + $0x10] sm:$0xf] %vm281, 0
      %288 = vst.msk [vmem:[#allocation2 + $0x14] sm:$0x1] %vm284, 0
      %289 = vst.msk [vmem:[#allocation2 + $0x18] sm:$0xf] %vm281, 0
      %290 = vst.msk [vmem:[#allocation2 + $0x1c] sm:$0xf] %vm281, 0
      %291 = vst.msk [vmem:[#allocation2 + $0x20] sm:$0x1] %vm284, 0
      %292 = vst.msk [vmem:[#allocation2 + $0x24] sm:$0xf] %vm281, 0
      %293 = vst.msk [vmem:[#allocation2 + $0x28] sm:$0xf] %vm281, 0
      %294 = vst.msk [vmem:[#allocation2 + $0x2c] sm:$0x1] %vm284, 0
      %295 = vst.msk [vmem:[#allocation2 + $0x30] sm:$0xf] %vm281, 0
      %296 = vst.msk [vmem:[#allocation2 + $0x34] sm:$0xf] %vm281, 0
      %297 = vst.msk [vmem:[#allocation2 + $0x38] sm:$0x1] %vm284, 0
      %298 = vst.msk [vmem:[#allocation2 + $0x3c] sm:$0xf] %vm281, 0
      %299 = vst.msk [vmem:[#allocation2 + $0x40] sm:$0xf] %vm281, 0
      %300 = vst.msk [vmem:[#allocation2 + $0x44] sm:$0x1] %vm284, 0
      %301 = vst.msk [vmem:[#allocation2 + $0x48] sm:$0xf] %vm281, 0
      %302 = vst.msk [vmem:[#allocation2 + $0x4c] sm:$0xf] %vm281, 0
      %303 = vst.msk [vmem:[#allocation2 + $0x50] sm:$0x1] %vm284, 0
      %304 = vst.msk [vmem:[#allocation2 + $0x54] sm:$0xf] %vm281, 0
      %305 = vst.msk [vmem:[#allocation2 + $0x58] sm:$0xf] %vm281, 0
      %306 = vst.msk [vmem:[#allocation2 + $0x5c] sm:$0x1] %vm284, 0
      %307 = vst.msk [vmem:[#allocation2 + $0x60] sm:$0xf] %vm281, 0
      %308 = vst.msk [vmem:[#allocation2 + $0x64] sm:$0xf] %vm281, 0
      %309 = vst.msk [vmem:[#allocation2 + $0x68] sm:$0x1] %vm284, 0
      %310 = vst.msk [vmem:[#allocation2 + $0x6c] sm:$0xf] %vm281, 0
      %311 = vst.msk [vmem:[#allocation2 + $0x70] sm:$0xf] %vm281, 0
      %312 = vst.msk [vmem:[#allocation2 + $0x74] sm:$0x1] %vm284, 0
      %313 = vst.msk [vmem:[#allocation2 + $0x78] sm:$0xf] %vm281, 0
      %314 = vst.msk [vmem:[#allocation2 + $0x7c] sm:$0xf] %vm281, 0
      %315 = vst.msk [vmem:[#allocation2 + $0x80] sm:$0x1] %vm284, 0
      %316 = vst.msk [vmem:[#allocation2 + $0x84] sm:$0xf] %vm281, 0
      %317 = vst.msk [vmem:[#allocation2 + $0x88] sm:$0xf] %vm281, 0
      %318 = vst.msk [vmem:[#allocation2 + $0x8c] sm:$0x1] %vm284, 0
      %319 = vst.msk [vmem:[#allocation2 + $0x90] sm:$0xf] %vm281, 0
      %320 = vst.msk [vmem:[#allocation2 + $0x94] sm:$0xf] %vm281, 0
      %321 = vst.msk [vmem:[#allocation2 + $0x98] sm:$0x1] %vm284, 0
      %322 = vst.msk [vmem:[#allocation2 + $0x9c] sm:$0xf] %vm281, 0
      %323 = vst.msk [vmem:[#allocation2 + $0xa0] sm:$0xf] %vm281, 0
      %324 = vst.msk [vmem:[#allocation2 + $0xa4] sm:$0x1] %vm284, 0
      %325 = vst.msk [vmem:[#allocation2 + $0xa8] sm:$0xf] %vm281, 0
      %326 = vst.msk [vmem:[#allocation2 + $0xac] sm:$0xf] %vm281, 0
      %327 = vst.msk [vmem:[#allocation2 + $0xb0] sm:$0x1] %vm284, 0
      %328 = vst.msk [vmem:[#allocation2 + $0xb4] sm:$0xf] %vm281, 0
      %329 = vst.msk [vmem:[#allocation2 + $0xb8] sm:$0xf] %vm281, 0
      %330 = vst.msk [vmem:[#allocation2 + $0xbc] sm:$0x1] %vm284, 0
      %331 = vst.msk [vmem:[#allocation2 + $0xc0] sm:$0xf] %vm281, 0
      %332 = vst.msk [vmem:[#allocation2 + $0xc4] sm:$0xf] %vm281, 0
      %333 = vst.msk [vmem:[#allocation2 + $0xc8] sm:$0x1] %vm284, 0
      %334 = vst.msk [vmem:[#allocation2 + $0xcc] sm:$0xf] %vm281, 0
      %335 = vst.msk [vmem:[#allocation2 + $0xd0] sm:$0xf] %vm281, 0
      %336 = vst.msk [vmem:[#allocation2 + $0xd4] sm:$0x1] %vm284, 0
      %337 = vst.msk [vmem:[#allocation3] sm:$0xf] %vm281, 0
      %338 = vst.msk [vmem:[#allocation3 + $0x4] sm:$0xf] %vm281, 0
      %339 = vst.msk [vmem:[#allocation3 + $0x8] sm:$0x1] %vm284, 0
      %340 = vst.msk [vmem:[#allocation3 + $0xc] sm:$0xf] %vm281, 0
      %341 = vst.msk [vmem:[#allocation3 + $0x10] sm:$0xf] %vm281, 0
      %342 = vst.msk [vmem:[#allocation3 + $0x14] sm:$0x1] %vm284, 0
      %343 = vst.msk [vmem:[#allocation3 + $0x18] sm:$0xf] %vm281, 0
      %344 = vst.msk [vmem:[#allocation3 + $0x1c] sm:$0xf] %vm281, 0
      %345 = vst.msk [vmem:[#allocation3 + $0x20] sm:$0x1] %vm284, 0
      %346 = vst.msk [vmem:[#allocation3 + $0x24] sm:$0xf] %vm281, 0
      %347 = vst.msk [vmem:[#allocation3 + $0x28] sm:$0xf] %vm281, 0
      %348 = vst.msk [vmem:[#allocation3 + $0x2c] sm:$0x1] %vm284, 0
      %349 = vst.msk [vmem:[#allocation3 + $0x30] sm:$0xf] %vm281, 0
      %350 = vst.msk [vmem:[#allocation3 + $0x34] sm:$0xf] %vm281, 0
      %351 = vst.msk [vmem:[#allocation3 + $0x38] sm:$0x1] %vm284, 0
      %352 = vst.msk [vmem:[#allocation3 + $0x3c] sm:$0xf] %vm281, 0
      %353 = vst.msk [vmem:[#allocation3 + $0x40] sm:$0xf] %vm281, 0
      %354 = vst.msk [vmem:[#allocation3 + $0x44] sm:$0x1] %vm284, 0
      %355 = vst.msk [vmem:[#allocation3 + $0x48] sm:$0xf] %vm281, 0
      %356 = vst.msk [vmem:[#allocation3 + $0x4c] sm:$0xf] %vm281, 0
      %357 = vst.msk [vmem:[#allocation3 + $0x50] sm:$0x1] %vm284, 0
      %358 = vst.msk [vmem:[#allocation3 + $0x54] sm:$0xf] %vm281, 0
      %359 = vst.msk [vmem:[#allocation3 + $0x58] sm:$0xf] %vm281, 0
      %360 = vst.msk [vmem:[#allocation3 + $0x5c] sm:$0x1] %vm284, 0
      %361 = vst.msk [vmem:[#allocation3 + $0x60] sm:$0xf] %vm281, 0
      %362 = vst.msk [vmem:[#allocation3 + $0x64] sm:$0xf] %vm281, 0
      %363 = vst.msk [vmem:[#allocation3 + $0x68] sm:$0x1] %vm284, 0
      %364 = vst.msk [vmem:[#allocation3 + $0x6c] sm:$0xf] %vm281, 0
      %365 = vst.msk [vmem:[#allocation3 + $0x70] sm:$0xf] %vm281, 0
      %366 = vst.msk [vmem:[#allocation3 + $0x74] sm:$0x1] %vm284, 0
      %367 = vst.msk [vmem:[#allocation3 + $0x78] sm:$0xf] %vm281, 0
      %368 = vst.msk [vmem:[#allocation3 + $0x7c] sm:$0xf] %vm281, 0
      %369 = vst.msk [vmem:[#allocation3 + $0x80] sm:$0x1] %vm284, 0
      %370 = vst.msk [vmem:[#allocation3 + $0x84] sm:$0xf] %vm281, 0
      %371 = vst.msk [vmem:[#allocation3 + $0x88] sm:$0xf] %vm281, 0
      %372 = vst.msk [vmem:[#allocation3 + $0x8c] sm:$0x1] %vm284, 0
      %373 = vst.msk [vmem:[#allocation3 + $0x90] sm:$0xf] %vm281, 0
      %374 = vst.msk [vmem:[#allocation3 + $0x94] sm:$0xf] %vm281, 0
      %375 = vst.msk [vmem:[#allocation3 + $0x98] sm:$0x1] %vm284, 0
      %376 = vst.msk [vmem:[#allocation3 + $0x9c] sm:$0xf] %vm281, 0
      %377 = vst.msk [vmem:[#allocation3 + $0xa0] sm:$0xf] %vm281, 0
      %378 = vst.msk [vmem:[#allocation3 + $0xa4] sm:$0x1] %vm284, 0
      %379 = vst.msk [vmem:[#allocation3 + $0xa8] sm:$0xf] %vm281, 0
      %380 = vst.msk [vmem:[#allocation3 + $0xac] sm:$0xf] %vm281, 0
      %381 = vst.msk [vmem:[#allocation3 + $0xb0] sm:$0x1] %vm284, 0
      %382 = vst.msk [vmem:[#allocation3 + $0xb4] sm:$0xf] %vm281, 0
      %383 = vst.msk [vmem:[#allocation3 + $0xb8] sm:$0xf] %vm281, 0
      %384 = vst.msk [vmem:[#allocation3 + $0xbc] sm:$0x1] %vm284, 0
      %385 = vst.msk [vmem:[#allocation3 + $0xc0] sm:$0xf] %vm281, 0
      %386 = vst.msk [vmem:[#allocation3 + $0xc4] sm:$0xf] %vm281, 0
      %387 = vst.msk [vmem:[#allocation3 + $0xc8] sm:$0x1] %vm284, 0
      %388 = vst.msk [vmem:[#allocation3 + $0xcc] sm:$0xf] %vm281, 0
      %389 = vst.msk [vmem:[#allocation3 + $0xd0] sm:$0xf] %vm281, 0
      %390 = vst.msk [vmem:[#allocation3 + $0xd4] sm:$0x1] %vm284, 0
      %v391 = vld [vmem:[%s274] sm:$0xff]
      %v392 = vld [vmem:[%s274 + $0x8] sm:$0xff]
      %v393 = vld [vmem:[%s274 + $0x10] sm:$0x3]
      %v394 = vld [vmem:[%s1] sm:$0xff]
      %v395 = vld [vmem:[%s1 + $0x8] sm:$0x1]
      %v396 = vlaneseq
      %v397 = vshrl.u32 %v396, 7
      %v398 = vsub.s32 0, %v397
      %v399 = vrot.slane %v391, %v398
      %401 = vbcast.lane.b32.xlu0 %v399, 256
      %v402 = vpop.permute.xlu0 %401
      %s404 = sor.u32 256, 8
      %405 = vbcast.lane.b32.xlu0 %v399, %s404
      %v406 = vpop.permute.xlu0 %405
      %v407 = vlaneseq
      %v408 = vshrl.u32 %v407, 7
      %v409 = vsub.s32 1, %v408
      %v410 = vrot.slane %v391, %v409
      %412 = vbcast.lane.b32.xlu0 %v410, 256
      %v413 = vpop.permute.xlu0 %412
      %s415 = sor.u32 256, 8
      %416 = vbcast.lane.b32.xlu0 %v410, %s415
      %v417 = vpop.permute.xlu0 %416
      %v418 = vlaneseq
      %v419 = vshrl.u32 %v418, 7
      %v420 = vsub.s32 2, %v419
      %v421 = vrot.slane %v391, %v420
      %423 = vbcast.lane.b32.xlu0 %v421, 256
      %v424 = vpop.permute.xlu0 %423
      %s426 = sor.u32 256, 8
      %427 = vbcast.lane.b32.xlu0 %v421, %s426
      %v428 = vpop.permute.xlu0 %427
      %v429 = vlaneseq
      %v430 = vshrl.u32 %v429, 7
      %v431 = vsub.s32 3, %v430
      %v432 = vrot.slane %v391, %v431
      %434 = vbcast.lane.b32.xlu0 %v432, 256
      %v435 = vpop.permute.xlu0 %434
      %s437 = sor.u32 256, 8
      %438 = vbcast.lane.b32.xlu0 %v432, %s437
      %v439 = vpop.permute.xlu0 %438
      %v440 = vlaneseq
      %v441 = vshrl.u32 %v440, 7
      %v442 = vsub.s32 4, %v441
      %v443 = vrot.slane %v391, %v442
      %445 = vbcast.lane.b32.xlu0 %v443, 256
      %v446 = vpop.permute.xlu0 %445
      %s448 = sor.u32 256, 8
      %449 = vbcast.lane.b32.xlu0 %v443, %s448
      %v450 = vpop.permute.xlu0 %449
      %v451 = vlaneseq
      %v452 = vshrl.u32 %v451, 7
      %v453 = vsub.s32 5, %v452
      %v454 = vrot.slane %v391, %v453
      %456 = vbcast.lane.b32.xlu0 %v454, 256
      %v457 = vpop.permute.xlu0 %456
      %s459 = sor.u32 256, 8
      %460 = vbcast.lane.b32.xlu0 %v454, %s459
      %v461 = vpop.permute.xlu0 %460
      %v462 = vlaneseq
      %v463 = vshrl.u32 %v462, 7
      %v464 = vsub.s32 6, %v463
      %v465 = vrot.slane %v391, %v464
      %467 = vbcast.lane.b32.xlu0 %v465, 256
      %v468 = vpop.permute.xlu0 %467
      %s470 = sor.u32 256, 8
      %471 = vbcast.lane.b32.xlu0 %v465, %s470
      %v472 = vpop.permute.xlu0 %471
      %v473 = vlaneseq
      %v474 = vshrl.u32 %v473, 7
      %v475 = vsub.s32 7, %v474
      %v476 = vrot.slane %v391, %v475
      %478 = vbcast.lane.b32.xlu0 %v476, 256
      %v479 = vpop.permute.xlu0 %478
      %s481 = sor.u32 256, 8
      %482 = vbcast.lane.b32.xlu0 %v476, %s481
      %v483 = vpop.permute.xlu0 %482
      %v484 = vlaneseq
      %v485 = vshrl.u32 %v484, 7
      %v486 = vsub.s32 0, %v485
      %v487 = vrot.slane %v392, %v486
      %489 = vbcast.lane.b32.xlu0 %v487, 256
      %v490 = vpop.permute.xlu0 %489
      %s492 = sor.u32 256, 8
      %493 = vbcast.lane.b32.xlu0 %v487, %s492
      %v494 = vpop.permute.xlu0 %493
      %v495 = vlaneseq
      %v496 = vshrl.u32 %v495, 7
      %v497 = vsub.s32 1, %v496
      %v498 = vrot.slane %v392, %v497
      %500 = vbcast.lane.b32.xlu0 %v498, 256
      %v501 = vpop.permute.xlu0 %500
      %s503 = sor.u32 256, 8
      %504 = vbcast.lane.b32.xlu0 %v498, %s503
      %v505 = vpop.permute.xlu0 %504
      %v506 = vlaneseq
      %v507 = vshrl.u32 %v506, 7
      %v508 = vsub.s32 2, %v507
      %v509 = vrot.slane %v392, %v508
      %511 = vbcast.lane.b32.xlu0 %v509, 256
      %v512 = vpop.permute.xlu0 %511
      %s514 = sor.u32 256, 8
      %515 = vbcast.lane.b32.xlu0 %v509, %s514
      %v516 = vpop.permute.xlu0 %515
      %v517 = vlaneseq
      %v518 = vshrl.u32 %v517, 7
      %v519 = vsub.s32 3, %v518
      %v520 = vrot.slane %v392, %v519
      %522 = vbcast.lane.b32.xlu0 %v520, 256
      %v523 = vpop.permute.xlu0 %522
      %s525 = sor.u32 256, 8
      %526 = vbcast.lane.b32.xlu0 %v520, %s525
      %v527 = vpop.permute.xlu0 %526
      %v528 = vlaneseq
      %v529 = vshrl.u32 %v528, 7
      %v530 = vsub.s32 4, %v529
      %v531 = vrot.slane %v392, %v530
      %533 = vbcast.lane.b32.xlu0 %v531, 256
      %v534 = vpop.permute.xlu0 %533
      %s536 = sor.u32 256, 8
      %537 = vbcast.lane.b32.xlu0 %v531, %s536
      %v538 = vpop.permute.xlu0 %537
      %v539 = vlaneseq
      %v540 = vshrl.u32 %v539, 7
      %v541 = vsub.s32 5, %v540
      %v542 = vrot.slane %v392, %v541
      %544 = vbcast.lane.b32.xlu0 %v542, 256
      %v545 = vpop.permute.xlu0 %544
      %s547 = sor.u32 256, 8
      %548 = vbcast.lane.b32.xlu0 %v542, %s547
      %v549 = vpop.permute.xlu0 %548
      %v550 = vlaneseq
      %v551 = vshrl.u32 %v550, 7
      %v552 = vsub.s32 6, %v551
      %v553 = vrot.slane %v392, %v552
      %555 = vbcast.lane.b32.xlu0 %v553, 256
      %v556 = vpop.permute.xlu0 %555
      %s558 = sor.u32 256, 8
      %559 = vbcast.lane.b32.xlu0 %v553, %s558
      %v560 = vpop.permute.xlu0 %559
      %v561 = vlaneseq
      %v562 = vshrl.u32 %v561, 7
      %v563 = vsub.s32 7, %v562
      %v564 = vrot.slane %v392, %v563
      %566 = vbcast.lane.b32.xlu0 %v564, 256
      %v567 = vpop.permute.xlu0 %566
      %s569 = sor.u32 256, 8
      %570 = vbcast.lane.b32.xlu0 %v564, %s569
      %v571 = vpop.permute.xlu0 %570
      %v572 = vlaneseq
      %v573 = vshrl.u32 %v572, 7
      %v574 = vsub.s32 0, %v573
      %v575 = vrot.slane %v394, %v574
      %v576 = vmul.f32 %v402, %v575
      %v577 = vmul.f32 %v406, %v575
      %v578 = vmul.f32 %v413, %v575
      %v579 = vmul.f32 %v417, %v575
      %v580 = vmul.f32 %v424, %v575
      %v581 = vmul.f32 %v428, %v575
      %v582 = vmul.f32 %v435, %v575
      %v583 = vmul.f32 %v439, %v575
      %v584 = vmul.f32 %v446, %v575
      %v585 = vmul.f32 %v450, %v575
      %v586 = vmul.f32 %v457, %v575
      %v587 = vmul.f32 %v461, %v575
      %v588 = vmul.f32 %v468, %v575
      %v589 = vmul.f32 %v472, %v575
      %v590 = vmul.f32 %v479, %v575
      %v591 = vmul.f32 %v483, %v575
      %v592 = vmul.f32 %v490, %v575
      %v593 = vmul.f32 %v494, %v575
      %v594 = vmul.f32 %v501, %v575
      %v595 = vmul.f32 %v505, %v575
      %v596 = vmul.f32 %v512, %v575
      %v597 = vmul.f32 %v516, %v575
      %v598 = vmul.f32 %v523, %v575
      %v599 = vmul.f32 %v527, %v575
      %v600 = vmul.f32 %v534, %v575
      %v601 = vmul.f32 %v538, %v575
      %v602 = vmul.f32 %v545, %v575
      %v603 = vmul.f32 %v549, %v575
      %v604 = vmul.f32 %v556, %v575
      %v605 = vmul.f32 %v560, %v575
      %v606 = vmul.f32 %v567, %v575
      %v607 = vmul.f32 %v571, %v575
      %v608 = vadd.f32 %v576, 0.0
      %v609 = vadd.f32 %v577, 0.0
      %v610 = vadd.f32 %v578, 0.0
      %v611 = vadd.f32 %v579, 0.0
      %v612 = vadd.f32 %v580, 0.0
      %v613 = vadd.f32 %v581, 0.0
      %v614 = vadd.f32 %v582, 0.0
      %v615 = vadd.f32 %v583, 0.0
      %v616 = vadd.f32 %v584, 0.0
      %v617 = vadd.f32 %v585, 0.0
      %v618 = vadd.f32 %v586, 0.0
      %v619 = vadd.f32 %v587, 0.0
      %v620 = vadd.f32 %v588, 0.0
      %v621 = vadd.f32 %v589, 0.0
      %v622 = vadd.f32 %v590, 0.0
      %v623 = vadd.f32 %v591, 0.0
      %v624 = vadd.f32 %v592, 0.0
      %v625 = vadd.f32 %v593, 0.0
      %v626 = vadd.f32 %v594, 0.0
      %v627 = vadd.f32 %v595, 0.0
      %v628 = vadd.f32 %v596, 0.0
      %v629 = vadd.f32 %v597, 0.0
      %v630 = vadd.f32 %v598, 0.0
      %v631 = vadd.f32 %v599, 0.0
      %v632 = vadd.f32 %v600, 0.0
      %v633 = vadd.f32 %v601, 0.0
      %v634 = vadd.f32 %v602, 0.0
      %v635 = vadd.f32 %v603, 0.0
      %v636 = vadd.f32 %v604, 0.0
      %v637 = vadd.f32 %v605, 0.0
      %v638 = vadd.f32 %v606, 0.0
      %v639 = vadd.f32 %v607, 0.0
      %s641 = sor.u32 256, 1
      %642 = vbcast.lane.b32.xlu0 %v399, %s641
      %v643 = vpop.permute.xlu0 %642
      %s645 = sor.u32 256, 9
      %646 = vbcast.lane.b32.xlu0 %v399, %s645
      %v647 = vpop.permute.xlu0 %646
      %s649 = sor.u32 256, 1
      %650 = vbcast.lane.b32.xlu0 %v410, %s649
      %v651 = vpop.permute.xlu0 %650
      %s653 = sor.u32 256, 9
      %654 = vbcast.lane.b32.xlu0 %v410, %s653
      %v655 = vpop.permute.xlu0 %654
      %s657 = sor.u32 256, 1
      %658 = vbcast.lane.b32.xlu0 %v421, %s657
      %v659 = vpop.permute.xlu0 %658
      %s661 = sor.u32 256, 9
      %662 = vbcast.lane.b32.xlu0 %v421, %s661
      %v663 = vpop.permute.xlu0 %662
      %s665 = sor.u32 256, 1
      %666 = vbcast.lane.b32.xlu0 %v432, %s665
      %v667 = vpop.permute.xlu0 %666
      %s669 = sor.u32 256, 9
      %670 = vbcast.lane.b32.xlu0 %v432, %s669
      %v671 = vpop.permute.xlu0 %670
      %s673 = sor.u32 256, 1
      %674 = vbcast.lane.b32.xlu0 %v443, %s673
      %v675 = vpop.permute.xlu0 %674
      %s677 = sor.u32 256, 9
      %678 = vbcast.lane.b32.xlu0 %v443, %s677
      %v679 = vpop.permute.xlu0 %678
      %s681 = sor.u32 256, 1
      %682 = vbcast.lane.b32.xlu0 %v454, %s681
      %v683 = vpop.permute.xlu0 %682
      %s685 = sor.u32 256, 9
      %686 = vbcast.lane.b32.xlu0 %v454, %s685
      %v687 = vpop.permute.xlu0 %686
      %s689 = sor.u32 256, 1
      %690 = vbcast.lane.b32.xlu0 %v465, %s689
      %v691 = vpop.permute.xlu0 %690
      %s693 = sor.u32 256, 9
      %694 = vbcast.lane.b32.xlu0 %v465, %s693
      %v695 = vpop.permute.xlu0 %694
      %s697 = sor.u32 256, 1
      %698 = vbcast.lane.b32.xlu0 %v476, %s697
      %v699 = vpop.permute.xlu0 %698
      %s701 = sor.u32 256, 9
      %702 = vbcast.lane.b32.xlu0 %v476, %s701
      %v703 = vpop.permute.xlu0 %702
      %s705 = sor.u32 256, 1
      %706 = vbcast.lane.b32.xlu0 %v487, %s705
      %v707 = vpop.permute.xlu0 %706
      %s709 = sor.u32 256, 9
      %710 = vbcast.lane.b32.xlu0 %v487, %s709
      %v711 = vpop.permute.xlu0 %710
      %s713 = sor.u32 256, 1
      %714 = vbcast.lane.b32.xlu0 %v498, %s713
      %v715 = vpop.permute.xlu0 %714
      %s717 = sor.u32 256, 9
      %718 = vbcast.lane.b32.xlu0 %v498, %s717
      %v719 = vpop.permute.xlu0 %718
      %s721 = sor.u32 256, 1
      %722 = vbcast.lane.b32.xlu0 %v509, %s721
      %v723 = vpop.permute.xlu0 %722
      %s725 = sor.u32 256, 9
      %726 = vbcast.lane.b32.xlu0 %v509, %s725
      %v727 = vpop.permute.xlu0 %726
      %s729 = sor.u32 256, 1
      %730 = vbcast.lane.b32.xlu0 %v520, %s729
      %v731 = vpop.permute.xlu0 %730
      %s733 = sor.u32 256, 9
      %734 = vbcast.lane.b32.xlu0 %v520, %s733
      %v735 = vpop.permute.xlu0 %734
      %s737 = sor.u32 256, 1
      %738 = vbcast.lane.b32.xlu0 %v531, %s737
      %v739 = vpop.permute.xlu0 %738
      %s741 = sor.u32 256, 9
      %742 = vbcast.lane.b32.xlu0 %v531, %s741
      %v743 = vpop.permute.xlu0 %742
      %s745 = sor.u32 256, 1
      %746 = vbcast.lane.b32.xlu0 %v542, %s745
      %v747 = vpop.permute.xlu0 %746
      %s749 = sor.u32 256, 9
      %750 = vbcast.lane.b32.xlu0 %v542, %s749
      %v751 = vpop.permute.xlu0 %750
      %s753 = sor.u32 256, 1
      %754 = vbcast.lane.b32.xlu0 %v553, %s753
      %v755 = vpop.permute.xlu0 %754
      %s757 = sor.u32 256, 9
      %758 = vbcast.lane.b32.xlu0 %v553, %s757
      %v759 = vpop.permute.xlu0 %758
      %s761 = sor.u32 256, 1
      %762 = vbcast.lane.b32.xlu0 %v564, %s761
      %v763 = vpop.permute.xlu0 %762
      %s765 = sor.u32 256, 9
      %766 = vbcast.lane.b32.xlu0 %v564, %s765
      %v767 = vpop.permute.xlu0 %766
      %v768 = vlaneseq
      %v769 = vshrl.u32 %v768, 7
      %v770 = vsub.s32 1, %v769
      %v771 = vrot.slane %v394, %v770
      %v772 = vmul.f32 %v643, %v771
      %v773 = vmul.f32 %v647, %v771
      %v774 = vmul.f32 %v651, %v771
      %v775 = vmul.f32 %v655, %v771
      %v776 = vmul.f32 %v659, %v771
      %v777 = vmul.f32 %v663, %v771
      %v778 = vmul.f32 %v667, %v771
      %v779 = vmul.f32 %v671, %v771
      %v780 = vmul.f32 %v675, %v771
      %v781 = vmul.f32 %v679, %v771
      %v782 = vmul.f32 %v683, %v771
      %v783 = vmul.f32 %v687, %v771
      %v784 = vmul.f32 %v691, %v771
      %v785 = vmul.f32 %v695, %v771
      %v786 = vmul.f32 %v699, %v771
      %v787 = vmul.f32 %v703, %v771
      %v788 = vmul.f32 %v707, %v771
      %v789 = vmul.f32 %v711, %v771
      %v790 = vmul.f32 %v715, %v771
      %v791 = vmul.f32 %v719, %v771
      %v792 = vmul.f32 %v723, %v771
      %v793 = vmul.f32 %v727, %v771
      %v794 = vmul.f32 %v731, %v771
      %v795 = vmul.f32 %v735, %v771
      %v796 = vmul.f32 %v739, %v771
      %v797 = vmul.f32 %v743, %v771
      %v798 = vmul.f32 %v747, %v771
      %v799 = vmul.f32 %v751, %v771
      %v800 = vmul.f32 %v755, %v771
      %v801 = vmul.f32 %v759, %v771
      %v802 = vmul.f32 %v763, %v771
      %v803 = vmul.f32 %v767, %v771
      %v804 = vadd.f32 %v608, %v772
      %v805 = vadd.f32 %v609, %v773
      %v806 = vadd.f32 %v610, %v774
      %v807 = vadd.f32 %v611, %v775
      %v808 = vadd.f32 %v612, %v776
      %v809 = vadd.f32 %v613, %v777
      %v810 = vadd.f32 %v614, %v778
      %v811 = vadd.f32 %v615, %v779
      %v812 = vadd.f32 %v616, %v780
      %v813 = vadd.f32 %v617, %v781
      %v814 = vadd.f32 %v618, %v782
      %v815 = vadd.f32 %v619, %v783
      %v816 = vadd.f32 %v620, %v784
      %v817 = vadd.f32 %v621, %v785
      %v818 = vadd.f32 %v622, %v786
      %v819 = vadd.f32 %v623, %v787
      %v820 = vadd.f32 %v624, %v788
      %v821 = vadd.f32 %v625, %v789
      %v822 = vadd.f32 %v626, %v790
      %v823 = vadd.f32 %v627, %v791
      %v824 = vadd.f32 %v628, %v792
      %v825 = vadd.f32 %v629, %v793
      %v826 = vadd.f32 %v630, %v794
      %v827 = vadd.f32 %v631, %v795
      %v828 = vadd.f32 %v632, %v796
      %v829 = vadd.f32 %v633, %v797
      %v830 = vadd.f32 %v634, %v798
      %v831 = vadd.f32 %v635, %v799
      %v832 = vadd.f32 %v636, %v800
      %v833 = vadd.f32 %v637, %v801
      %v834 = vadd.f32 %v638, %v802
      %v835 = vadd.f32 %v639, %v803
      %s837 = sor.u32 256, 2
      %838 = vbcast.lane.b32.xlu0 %v399, %s837
      %v839 = vpop.permute.xlu0 %838
      %s841 = sor.u32 256, 10
      %842 = vbcast.lane.b32.xlu0 %v399, %s841
      %v843 = vpop.permute.xlu0 %842
      %s845 = sor.u32 256, 2
      %846 = vbcast.lane.b32.xlu0 %v410, %s845
      %v847 = vpop.permute.xlu0 %846
      %s849 = sor.u32 256, 10
      %850 = vbcast.lane.b32.xlu0 %v410, %s849
      %v851 = vpop.permute.xlu0 %850
      %s853 = sor.u32 256, 2
      %854 = vbcast.lane.b32.xlu0 %v421, %s853
      %v855 = vpop.permute.xlu0 %854
      %s857 = sor.u32 256, 10
      %858 = vbcast.lane.b32.xlu0 %v421, %s857
      %v859 = vpop.permute.xlu0 %858
      %s861 = sor.u32 256, 2
      %862 = vbcast.lane.b32.xlu0 %v432, %s861
      %v863 = vpop.permute.xlu0 %862
      %s865 = sor.u32 256, 10
      %866 = vbcast.lane.b32.xlu0 %v432, %s865
      %v867 = vpop.permute.xlu0 %866
      %s869 = sor.u32 256, 2
      %870 = vbcast.lane.b32.xlu0 %v443, %s869
      %v871 = vpop.permute.xlu0 %870
      %s873 = sor.u32 256, 10
      %874 = vbcast.lane.b32.xlu0 %v443, %s873
      %v875 = vpop.permute.xlu0 %874
      %s877 = sor.u32 256, 2
      %878 = vbcast.lane.b32.xlu0 %v454, %s877
      %v879 = vpop.permute.xlu0 %878
      %s881 = sor.u32 256, 10
      %882 = vbcast.lane.b32.xlu0 %v454, %s881
      %v883 = vpop.permute.xlu0 %882
      %s885 = sor.u32 256, 2
      %886 = vbcast.lane.b32.xlu0 %v465, %s885
      %v887 = vpop.permute.xlu0 %886
      %s889 = sor.u32 256, 10
      %890 = vbcast.lane.b32.xlu0 %v465, %s889
      %v891 = vpop.permute.xlu0 %890
      %s893 = sor.u32 256, 2
      %894 = vbcast.lane.b32.xlu0 %v476, %s893
      %v895 = vpop.permute.xlu0 %894
      %s897 = sor.u32 256, 10
      %898 = vbcast.lane.b32.xlu0 %v476, %s897
      %v899 = vpop.permute.xlu0 %898
      %s901 = sor.u32 256, 2
      %902 = vbcast.lane.b32.xlu0 %v487, %s901
      %v903 = vpop.permute.xlu0 %902
      %s905 = sor.u32 256, 10
      %906 = vbcast.lane.b32.xlu0 %v487, %s905
      %v907 = vpop.permute.xlu0 %906
      %s909 = sor.u32 256, 2
      %910 = vbcast.lane.b32.xlu0 %v498, %s909
      %v911 = vpop.permute.xlu0 %910
      %s913 = sor.u32 256, 10
      %914 = vbcast.lane.b32.xlu0 %v498, %s913
      %v915 = vpop.permute.xlu0 %914
      %s917 = sor.u32 256, 2
      %918 = vbcast.lane.b32.xlu0 %v509, %s917
      %v919 = vpop.permute.xlu0 %918
      %s921 = sor.u32 256, 10
      %922 = vbcast.lane.b32.xlu0 %v509, %s921
      %v923 = vpop.permute.xlu0 %922
      %s925 = sor.u32 256, 2
      %926 = vbcast.lane.b32.xlu0 %v520, %s925
      %v927 = vpop.permute.xlu0 %926
      %s929 = sor.u32 256, 10
      %930 = vbcast.lane.b32.xlu0 %v520, %s929
      %v931 = vpop.permute.xlu0 %930
      %s933 = sor.u32 256, 2
      %934 = vbcast.lane.b32.xlu0 %v531, %s933
      %v935 = vpop.permute.xlu0 %934
      %s937 = sor.u32 256, 10
      %938 = vbcast.lane.b32.xlu0 %v531, %s937
      %v939 = vpop.permute.xlu0 %938
      %s941 = sor.u32 256, 2
      %942 = vbcast.lane.b32.xlu0 %v542, %s941
      %v943 = vpop.permute.xlu0 %942
      %s945 = sor.u32 256, 10
      %946 = vbcast.lane.b32.xlu0 %v542, %s945
      %v947 = vpop.permute.xlu0 %946
      %s949 = sor.u32 256, 2
      %950 = vbcast.lane.b32.xlu0 %v553, %s949
      %v951 = vpop.permute.xlu0 %950
      %s953 = sor.u32 256, 10
      %954 = vbcast.lane.b32.xlu0 %v553, %s953
      %v955 = vpop.permute.xlu0 %954
      %s957 = sor.u32 256, 2
      %958 = vbcast.lane.b32.xlu0 %v564, %s957
      %v959 = vpop.permute.xlu0 %958
      %s961 = sor.u32 256, 10
      %962 = vbcast.lane.b32.xlu0 %v564, %s961
      %v963 = vpop.permute.xlu0 %962
      %v964 = vlaneseq
      %v965 = vshrl.u32 %v964, 7
      %v966 = vsub.s32 2, %v965
      %v967 = vrot.slane %v394, %v966
      %v968 = vmul.f32 %v839, %v967
      %v969 = vmul.f32 %v843, %v967
      %v970 = vmul.f32 %v847, %v967
      %v971 = vmul.f32 %v851, %v967
      %v972 = vmul.f32 %v855, %v967
      %v973 = vmul.f32 %v859, %v967
      %v974 = vmul.f32 %v863, %v967
      %v975 = vmul.f32 %v867, %v967
      %v976 = vmul.f32 %v871, %v967
      %v977 = vmul.f32 %v875, %v967
      %v978 = vmul.f32 %v879, %v967
      %v979 = vmul.f32 %v883, %v967
      %v980 = vmul.f32 %v887, %v967
      %v981 = vmul.f32 %v891, %v967
      %v982 = vmul.f32 %v895, %v967
      %v983 = vmul.f32 %v899, %v967
      %v984 = vmul.f32 %v903, %v967
      %v985 = vmul.f32 %v907, %v967
      %v986 = vmul.f32 %v911, %v967
      %v987 = vmul.f32 %v915, %v967
      %v988 = vmul.f32 %v919, %v967
      %v989 = vmul.f32 %v923, %v967
      %v990 = vmul.f32 %v927, %v967
      %v991 = vmul.f32 %v931, %v967
      %v992 = vmul.f32 %v935, %v967
      %v993 = vmul.f32 %v939, %v967
      %v994 = vmul.f32 %v943, %v967
      %v995 = vmul.f32 %v947, %v967
      %v996 = vmul.f32 %v951, %v967
      %v997 = vmul.f32 %v955, %v967
      %v998 = vmul.f32 %v959, %v967
      %v999 = vmul.f32 %v963, %v967
      %v1000 = vadd.f32 %v804, %v968
      %v1001 = vadd.f32 %v805, %v969
      %v1002 = vadd.f32 %v806, %v970
      %v1003 = vadd.f32 %v807, %v971
      %v1004 = vadd.f32 %v808, %v972
      %v1005 = vadd.f32 %v809, %v973
      %v1006 = vadd.f32 %v810, %v974
      %v1007 = vadd.f32 %v811, %v975
      %v1008 = vadd.f32 %v812, %v976
      %v1009 = vadd.f32 %v813, %v977
      %v1010 = vadd.f32 %v814, %v978
      %v1011 = vadd.f32 %v815, %v979
      %v1012 = vadd.f32 %v816, %v980
      %v1013 = vadd.f32 %v817, %v981
      %v1014 = vadd.f32 %v818, %v982
      %v1015 = vadd.f32 %v819, %v983
      %v1016 = vadd.f32 %v820, %v984
      %v1017 = vadd.f32 %v821, %v985
      %v1018 = vadd.f32 %v822, %v986
      %v1019 = vadd.f32 %v823, %v987
      %v1020 = vadd.f32 %v824, %v988
      %v1021 = vadd.f32 %v825, %v989
      %v1022 = vadd.f32 %v826, %v990
      %v1023 = vadd.f32 %v827, %v991
      %v1024 = vadd.f32 %v828, %v992
      %v1025 = vadd.f32 %v829, %v993
      %v1026 = vadd.f32 %v830, %v994
      %v1027 = vadd.f32 %v831, %v995
      %v1028 = vadd.f32 %v832, %v996
      %v1029 = vadd.f32 %v833, %v997
      %v1030 = vadd.f32 %v834, %v998
      %v1031 = vadd.f32 %v835, %v999
      %v1032 = vlaneseq
      %v1033 = vshrl.u32 %v1032, 7
      %v1034 = vsub.s32 0, %v1033
      %v1035 = vrot.slane %v393, %v1034
      %1037 = vbcast.lane.b32.xlu0 %v1035, 256
      %v1038 = vpop.permute.xlu0 %1037
      %s1040 = sor.u32 256, 8
      %1041 = vbcast.lane.b32.xlu0 %v1035, %s1040
      %v1042 = vpop.permute.xlu0 %1041
      %v1043 = vlaneseq
      %v1044 = vshrl.u32 %v1043, 7
      %v1045 = vsub.s32 3, %v1044
      %v1046 = vrot.slane %v394, %v1045
      %v1047 = vmul.f32 %v413, %v1046
      %v1048 = vmul.f32 %v417, %v1046
      %v1049 = vmul.f32 %v424, %v1046
      %v1050 = vmul.f32 %v428, %v1046
      %v1051 = vmul.f32 %v435, %v1046
      %v1052 = vmul.f32 %v439, %v1046
      %v1053 = vmul.f32 %v446, %v1046
      %v1054 = vmul.f32 %v450, %v1046
      %v1055 = vmul.f32 %v457, %v1046
      %v1056 = vmul.f32 %v461, %v1046
      %v1057 = vmul.f32 %v468, %v1046
      %v1058 = vmul.f32 %v472, %v1046
      %v1059 = vmul.f32 %v479, %v1046
      %v1060 = vmul.f32 %v483, %v1046
      %v1061 = vmul.f32 %v490, %v1046
      %v1062 = vmul.f32 %v494, %v1046
      %v1063 = vmul.f32 %v501, %v1046
      %v1064 = vmul.f32 %v505, %v1046
      %v1065 = vmul.f32 %v512, %v1046
      %v1066 = vmul.f32 %v516, %v1046
      %v1067 = vmul.f32 %v523, %v1046
      %v1068 = vmul.f32 %v527, %v1046
      %v1069 = vmul.f32 %v534, %v1046
      %v1070 = vmul.f32 %v538, %v1046
      %v1071 = vmul.f32 %v545, %v1046
      %v1072 = vmul.f32 %v549, %v1046
      %v1073 = vmul.f32 %v556, %v1046
      %v1074 = vmul.f32 %v560, %v1046
      %v1075 = vmul.f32 %v567, %v1046
      %v1076 = vmul.f32 %v571, %v1046
      %v1077 = vmul.f32 %v1038, %v1046
      %v1078 = vmul.f32 %v1042, %v1046
      %v1079 = vadd.f32 %v1000, %v1047
      %v1080 = vadd.f32 %v1001, %v1048
      %v1081 = vadd.f32 %v1002, %v1049
      %v1082 = vadd.f32 %v1003, %v1050
      %v1083 = vadd.f32 %v1004, %v1051
      %v1084 = vadd.f32 %v1005, %v1052
      %v1085 = vadd.f32 %v1006, %v1053
      %v1086 = vadd.f32 %v1007, %v1054
      %v1087 = vadd.f32 %v1008, %v1055
      %v1088 = vadd.f32 %v1009, %v1056
      %v1089 = vadd.f32 %v1010, %v1057
      %v1090 = vadd.f32 %v1011, %v1058
      %v1091 = vadd.f32 %v1012, %v1059
      %v1092 = vadd.f32 %v1013, %v1060
      %v1093 = vadd.f32 %v1014, %v1061
      %v1094 = vadd.f32 %v1015, %v1062
      %v1095 = vadd.f32 %v1016, %v1063
      %v1096 = vadd.f32 %v1017, %v1064
      %v1097 = vadd.f32 %v1018, %v1065
      %v1098 = vadd.f32 %v1019, %v1066
      %v1099 = vadd.f32 %v1020, %v1067
      %v1100 = vadd.f32 %v1021, %v1068
      %v1101 = vadd.f32 %v1022, %v1069
      %v1102 = vadd.f32 %v1023, %v1070
      %v1103 = vadd.f32 %v1024, %v1071
      %v1104 = vadd.f32 %v1025, %v1072
      %v1105 = vadd.f32 %v1026, %v1073
      %v1106 = vadd.f32 %v1027, %v1074
      %v1107 = vadd.f32 %v1028, %v1075
      %v1108 = vadd.f32 %v1029, %v1076
      %v1109 = vadd.f32 %v1030, %v1077
      %v1110 = vadd.f32 %v1031, %v1078
      %s1112 = sor.u32 256, 1
      %1113 = vbcast.lane.b32.xlu0 %v1035, %s1112
      %v1114 = vpop.permute.xlu0 %1113
      %s1116 = sor.u32 256, 9
      %1117 = vbcast.lane.b32.xlu0 %v1035, %s1116
      %v1118 = vpop.permute.xlu0 %1117
      %v1119 = vlaneseq
      %v1120 = vshrl.u32 %v1119, 7
      %v1121 = vsub.s32 4, %v1120
      %v1122 = vrot.slane %v394, %v1121
      %v1123 = vmul.f32 %v651, %v1122
      %v1124 = vmul.f32 %v655, %v1122
      %v1125 = vmul.f32 %v659, %v1122
      %v1126 = vmul.f32 %v663, %v1122
      %v1127 = vmul.f32 %v667, %v1122
      %v1128 = vmul.f32 %v671, %v1122
      %v1129 = vmul.f32 %v675, %v1122
      %v1130 = vmul.f32 %v679, %v1122
      %v1131 = vmul.f32 %v683, %v1122
      %v1132 = vmul.f32 %v687, %v1122
      %v1133 = vmul.f32 %v691, %v1122
      %v1134 = vmul.f32 %v695, %v1122
      %v1135 = vmul.f32 %v699, %v1122
      %v1136 = vmul.f32 %v703, %v1122
      %v1137 = vmul.f32 %v707, %v1122
      %v1138 = vmul.f32 %v711, %v1122
      %v1139 = vmul.f32 %v715, %v1122
      %v1140 = vmul.f32 %v719, %v1122
      %v1141 = vmul.f32 %v723, %v1122
      %v1142 = vmul.f32 %v727, %v1122
      %v1143 = vmul.f32 %v731, %v1122
      %v1144 = vmul.f32 %v735, %v1122
      %v1145 = vmul.f32 %v739, %v1122
      %v1146 = vmul.f32 %v743, %v1122
      %v1147 = vmul.f32 %v747, %v1122
      %v1148 = vmul.f32 %v751, %v1122
      %v1149 = vmul.f32 %v755, %v1122
      %v1150 = vmul.f32 %v759, %v1122
      %v1151 = vmul.f32 %v763, %v1122
      %v1152 = vmul.f32 %v767, %v1122
      %v1153 = vmul.f32 %v1114, %v1122
      %v1154 = vmul.f32 %v1118, %v1122
      %v1155 = vadd.f32 %v1079, %v1123
      %v1156 = vadd.f32 %v1080, %v1124
      %v1157 = vadd.f32 %v1081, %v1125
      %v1158 = vadd.f32 %v1082, %v1126
      %v1159 = vadd.f32 %v1083, %v1127
      %v1160 = vadd.f32 %v1084, %v1128
      %v1161 = vadd.f32 %v1085, %v1129
      %v1162 = vadd.f32 %v1086, %v1130
      %v1163 = vadd.f32 %v1087, %v1131
      %v1164 = vadd.f32 %v1088, %v1132
      %v1165 = vadd.f32 %v1089, %v1133
      %v1166 = vadd.f32 %v1090, %v1134
      %v1167 = vadd.f32 %v1091, %v1135
      %v1168 = vadd.f32 %v1092, %v1136
      %v1169 = vadd.f32 %v1093, %v1137
      %v1170 = vadd.f32 %v1094, %v1138
      %v1171 = vadd.f32 %v1095, %v1139
      %v1172 = vadd.f32 %v1096, %v1140
      %v1173 = vadd.f32 %v1097, %v1141
      %v1174 = vadd.f32 %v1098, %v1142
      %v1175 = vadd.f32 %v1099, %v1143
      %v1176 = vadd.f32 %v1100, %v1144
      %v1177 = vadd.f32 %v1101, %v1145
      %v1178 = vadd.f32 %v1102, %v1146
      %v1179 = vadd.f32 %v1103, %v1147
      %v1180 = vadd.f32 %v1104, %v1148
      %v1181 = vadd.f32 %v1105, %v1149
      %v1182 = vadd.f32 %v1106, %v1150
      %v1183 = vadd.f32 %v1107, %v1151
      %v1184 = vadd.f32 %v1108, %v1152
      %v1185 = vadd.f32 %v1109, %v1153
      %v1186 = vadd.f32 %v1110, %v1154
      %s1188 = sor.u32 256, 2
      %1189 = vbcast.lane.b32.xlu0 %v1035, %s1188
      %v1190 = vpop.permute.xlu0 %1189
      %s1192 = sor.u32 256, 10
      %1193 = vbcast.lane.b32.xlu0 %v1035, %s1192
      %v1194 = vpop.permute.xlu0 %1193
      %v1195 = vlaneseq
      %v1196 = vshrl.u32 %v1195, 7
      %v1197 = vsub.s32 5, %v1196
      %v1198 = vrot.slane %v394, %v1197
      %v1199 = vmul.f32 %v847, %v1198
      %v1200 = vmul.f32 %v851, %v1198
      %v1201 = vmul.f32 %v855, %v1198
      %v1202 = vmul.f32 %v859, %v1198
      %v1203 = vmul.f32 %v863, %v1198
      %v1204 = vmul.f32 %v867, %v1198
      %v1205 = vmul.f32 %v871, %v1198
      %v1206 = vmul.f32 %v875, %v1198
      %v1207 = vmul.f32 %v879, %v1198
      %v1208 = vmul.f32 %v883, %v1198
      %v1209 = vmul.f32 %v887, %v1198
      %v1210 = vmul.f32 %v891, %v1198
      %v1211 = vmul.f32 %v895, %v1198
      %v1212 = vmul.f32 %v899, %v1198
      %v1213 = vmul.f32 %v903, %v1198
      %v1214 = vmul.f32 %v907, %v1198
      %v1215 = vmul.f32 %v911, %v1198
      %v1216 = vmul.f32 %v915, %v1198
      %v1217 = vmul.f32 %v919, %v1198
      %v1218 = vmul.f32 %v923, %v1198
      %v1219 = vmul.f32 %v927, %v1198
      %v1220 = vmul.f32 %v931, %v1198
      %v1221 = vmul.f32 %v935, %v1198
      %v1222 = vmul.f32 %v939, %v1198
      %v1223 = vmul.f32 %v943, %v1198
      %v1224 = vmul.f32 %v947, %v1198
      %v1225 = vmul.f32 %v951, %v1198
      %v1226 = vmul.f32 %v955, %v1198
      %v1227 = vmul.f32 %v959, %v1198
      %v1228 = vmul.f32 %v963, %v1198
      %v1229 = vmul.f32 %v1190, %v1198
      %v1230 = vmul.f32 %v1194, %v1198
      %v1231 = vadd.f32 %v1155, %v1199
      %v1232 = vadd.f32 %v1156, %v1200
      %v1233 = vadd.f32 %v1157, %v1201
      %v1234 = vadd.f32 %v1158, %v1202
      %v1235 = vadd.f32 %v1159, %v1203
      %v1236 = vadd.f32 %v1160, %v1204
      %v1237 = vadd.f32 %v1161, %v1205
      %v1238 = vadd.f32 %v1162, %v1206
      %v1239 = vadd.f32 %v1163, %v1207
      %v1240 = vadd.f32 %v1164, %v1208
      %v1241 = vadd.f32 %v1165, %v1209
      %v1242 = vadd.f32 %v1166, %v1210
      %v1243 = vadd.f32 %v1167, %v1211
      %v1244 = vadd.f32 %v1168, %v1212
      %v1245 = vadd.f32 %v1169, %v1213
      %v1246 = vadd.f32 %v1170, %v1214
      %v1247 = vadd.f32 %v1171, %v1215
      %v1248 = vadd.f32 %v1172, %v1216
      %v1249 = vadd.f32 %v1173, %v1217
      %v1250 = vadd.f32 %v1174, %v1218
      %v1251 = vadd.f32 %v1175, %v1219
      %v1252 = vadd.f32 %v1176, %v1220
      %v1253 = vadd.f32 %v1177, %v1221
      %v1254 = vadd.f32 %v1178, %v1222
      %v1255 = vadd.f32 %v1179, %v1223
      %v1256 = vadd.f32 %v1180, %v1224
      %v1257 = vadd.f32 %v1181, %v1225
      %v1258 = vadd.f32 %v1182, %v1226
      %v1259 = vadd.f32 %v1183, %v1227
      %v1260 = vadd.f32 %v1184, %v1228
      %v1261 = vadd.f32 %v1185, %v1229
      %v1262 = vadd.f32 %v1186, %v1230
      %v1263 = vlaneseq
      %v1264 = vshrl.u32 %v1263, 7
      %v1265 = vsub.s32 1, %v1264
      %v1266 = vrot.slane %v393, %v1265
      %1268 = vbcast.lane.b32.xlu0 %v1266, 256
      %v1269 = vpop.permute.xlu0 %1268
      %s1271 = sor.u32 256, 8
      %1272 = vbcast.lane.b32.xlu0 %v1266, %s1271
      %v1273 = vpop.permute.xlu0 %1272
      %v1274 = vlaneseq
      %v1275 = vshrl.u32 %v1274, 7
      %v1276 = vsub.s32 6, %v1275
      %v1277 = vrot.slane %v394, %v1276
      %v1278 = vmul.f32 %v424, %v1277
      %v1279 = vmul.f32 %v428, %v1277
      %v1280 = vmul.f32 %v435, %v1277
      %v1281 = vmul.f32 %v439, %v1277
      %v1282 = vmul.f32 %v446, %v1277
      %v1283 = vmul.f32 %v450, %v1277
      %v1284 = vmul.f32 %v457, %v1277
      %v1285 = vmul.f32 %v461, %v1277
      %v1286 = vmul.f32 %v468, %v1277
      %v1287 = vmul.f32 %v472, %v1277
      %v1288 = vmul.f32 %v479, %v1277
      %v1289 = vmul.f32 %v483, %v1277
      %v1290 = vmul.f32 %v490, %v1277
      %v1291 = vmul.f32 %v494, %v1277
      %v1292 = vmul.f32 %v501, %v1277
      %v1293 = vmul.f32 %v505, %v1277
      %v1294 = vmul.f32 %v512, %v1277
      %v1295 = vmul.f32 %v516, %v1277
      %v1296 = vmul.f32 %v523, %v1277
      %v1297 = vmul.f32 %v527, %v1277
      %v1298 = vmul.f32 %v534, %v1277
      %v1299 = vmul.f32 %v538, %v1277
      %v1300 = vmul.f32 %v545, %v1277
      %v1301 = vmul.f32 %v549, %v1277
      %v1302 = vmul.f32 %v556, %v1277
      %v1303 = vmul.f32 %v560, %v1277
      %v1304 = vmul.f32 %v567, %v1277
      %v1305 = vmul.f32 %v571, %v1277
      %v1306 = vmul.f32 %v1038, %v1277
      %v1307 = vmul.f32 %v1042, %v1277
      %v1308 = vmul.f32 %v1269, %v1277
      %v1309 = vmul.f32 %v1273, %v1277
      %v1310 = vadd.f32 %v1231, %v1278
      %v1311 = vadd.f32 %v1232, %v1279
      %v1312 = vadd.f32 %v1233, %v1280
      %v1313 = vadd.f32 %v1234, %v1281
      %v1314 = vadd.f32 %v1235, %v1282
      %v1315 = vadd.f32 %v1236, %v1283
      %v1316 = vadd.f32 %v1237, %v1284
      %v1317 = vadd.f32 %v1238, %v1285
      %v1318 = vadd.f32 %v1239, %v1286
      %v1319 = vadd.f32 %v1240, %v1287
      %v1320 = vadd.f32 %v1241, %v1288
      %v1321 = vadd.f32 %v1242, %v1289
      %v1322 = vadd.f32 %v1243, %v1290
      %v1323 = vadd.f32 %v1244, %v1291
      %v1324 = vadd.f32 %v1245, %v1292
      %v1325 = vadd.f32 %v1246, %v1293
      %v1326 = vadd.f32 %v1247, %v1294
      %v1327 = vadd.f32 %v1248, %v1295
      %v1328 = vadd.f32 %v1249, %v1296
      %v1329 = vadd.f32 %v1250, %v1297
      %v1330 = vadd.f32 %v1251, %v1298
      %v1331 = vadd.f32 %v1252, %v1299
      %v1332 = vadd.f32 %v1253, %v1300
      %v1333 = vadd.f32 %v1254, %v1301
      %v1334 = vadd.f32 %v1255, %v1302
      %v1335 = vadd.f32 %v1256, %v1303
      %v1336 = vadd.f32 %v1257, %v1304
      %v1337 = vadd.f32 %v1258, %v1305
      %v1338 = vadd.f32 %v1259, %v1306
      %v1339 = vadd.f32 %v1260, %v1307
      %v1340 = vadd.f32 %v1261, %v1308
      %v1341 = vadd.f32 %v1262, %v1309
      %s1343 = sor.u32 256, 1
      %1344 = vbcast.lane.b32.xlu0 %v1266, %s1343
      %v1345 = vpop.permute.xlu0 %1344
      %s1347 = sor.u32 256, 9
      %1348 = vbcast.lane.b32.xlu0 %v1266, %s1347
      %v1349 = vpop.permute.xlu0 %1348
      %v1350 = vlaneseq
      %v1351 = vshrl.u32 %v1350, 7
      %v1352 = vsub.s32 7, %v1351
      %v1353 = vrot.slane %v394, %v1352
      %v1354 = vmul.f32 %v659, %v1353
      %v1355 = vmul.f32 %v663, %v1353
      %v1356 = vmul.f32 %v667, %v1353
      %v1357 = vmul.f32 %v671, %v1353
      %v1358 = vmul.f32 %v675, %v1353
      %v1359 = vmul.f32 %v679, %v1353
      %v1360 = vmul.f32 %v683, %v1353
      %v1361 = vmul.f32 %v687, %v1353
      %v1362 = vmul.f32 %v691, %v1353
      %v1363 = vmul.f32 %v695, %v1353
      %v1364 = vmul.f32 %v699, %v1353
      %v1365 = vmul.f32 %v703, %v1353
      %v1366 = vmul.f32 %v707, %v1353
      %v1367 = vmul.f32 %v711, %v1353
      %v1368 = vmul.f32 %v715, %v1353
      %v1369 = vmul.f32 %v719, %v1353
      %v1370 = vmul.f32 %v723, %v1353
      %v1371 = vmul.f32 %v727, %v1353
      %v1372 = vmul.f32 %v731, %v1353
      %v1373 = vmul.f32 %v735, %v1353
      %v1374 = vmul.f32 %v739, %v1353
      %v1375 = vmul.f32 %v743, %v1353
      %v1376 = vmul.f32 %v747, %v1353
      %v1377 = vmul.f32 %v751, %v1353
      %v1378 = vmul.f32 %v755, %v1353
      %v1379 = vmul.f32 %v759, %v1353
      %v1380 = vmul.f32 %v763, %v1353
      %v1381 = vmul.f32 %v767, %v1353
      %v1382 = vmul.f32 %v1114, %v1353
      %v1383 = vmul.f32 %v1118, %v1353
      %v1384 = vmul.f32 %v1345, %v1353
      %v1385 = vmul.f32 %v1349, %v1353
      %v1386 = vadd.f32 %v1310, %v1354
      %v1387 = vadd.f32 %v1311, %v1355
      %v1388 = vadd.f32 %v1312, %v1356
      %v1389 = vadd.f32 %v1313, %v1357
      %v1390 = vadd.f32 %v1314, %v1358
      %v1391 = vadd.f32 %v1315, %v1359
      %v1392 = vadd.f32 %v1316, %v1360
      %v1393 = vadd.f32 %v1317, %v1361
      %v1394 = vadd.f32 %v1318, %v1362
      %v1395 = vadd.f32 %v1319, %v1363
      %v1396 = vadd.f32 %v1320, %v1364
      %v1397 = vadd.f32 %v1321, %v1365
      %v1398 = vadd.f32 %v1322, %v1366
      %v1399 = vadd.f32 %v1323, %v1367
      %v1400 = vadd.f32 %v1324, %v1368
      %v1401 = vadd.f32 %v1325, %v1369
      %v1402 = vadd.f32 %v1326, %v1370
      %v1403 = vadd.f32 %v1327, %v1371
      %v1404 = vadd.f32 %v1328, %v1372
      %v1405 = vadd.f32 %v1329, %v1373
      %v1406 = vadd.f32 %v1330, %v1374
      %v1407 = vadd.f32 %v1331, %v1375
      %v1408 = vadd.f32 %v1332, %v1376
      %v1409 = vadd.f32 %v1333, %v1377
      %v1410 = vadd.f32 %v1334, %v1378
      %v1411 = vadd.f32 %v1335, %v1379
      %v1412 = vadd.f32 %v1336, %v1380
      %v1413 = vadd.f32 %v1337, %v1381
      %v1414 = vadd.f32 %v1338, %v1382
      %v1415 = vadd.f32 %v1339, %v1383
      %v1416 = vadd.f32 %v1340, %v1384
      %v1417 = vadd.f32 %v1341, %v1385
      %s1419 = sor.u32 256, 2
      %1420 = vbcast.lane.b32.xlu0 %v1266, %s1419
      %v1421 = vpop.permute.xlu0 %1420
      %s1423 = sor.u32 256, 10
      %1424 = vbcast.lane.b32.xlu0 %v1266, %s1423
      %v1425 = vpop.permute.xlu0 %1424
      %v1426 = vlaneseq
      %v1427 = vshrl.u32 %v1426, 7
      %v1428 = vsub.s32 0, %v1427
      %v1429 = vrot.slane %v395, %v1428
      %v1430 = vmul.f32 %v855, %v1429
      %v1431 = vmul.f32 %v859, %v1429
      %v1432 = vmul.f32 %v863, %v1429
      %v1433 = vmul.f32 %v867, %v1429
      %v1434 = vmul.f32 %v871, %v1429
      %v1435 = vmul.f32 %v875, %v1429
      %v1436 = vmul.f32 %v879, %v1429
      %v1437 = vmul.f32 %v883, %v1429
      %v1438 = vmul.f32 %v887, %v1429
      %v1439 = vmul.f32 %v891, %v1429
      %v1440 = vmul.f32 %v895, %v1429
      %v1441 = vmul.f32 %v899, %v1429
      %v1442 = vmul.f32 %v903, %v1429
      %v1443 = vmul.f32 %v907, %v1429
      %v1444 = vmul.f32 %v911, %v1429
      %v1445 = vmul.f32 %v915, %v1429
      %v1446 = vmul.f32 %v919, %v1429
      %v1447 = vmul.f32 %v923, %v1429
      %v1448 = vmul.f32 %v927, %v1429
      %v1449 = vmul.f32 %v931, %v1429
      %v1450 = vmul.f32 %v935, %v1429
      %v1451 = vmul.f32 %v939, %v1429
      %v1452 = vmul.f32 %v943, %v1429
      %v1453 = vmul.f32 %v947, %v1429
      %v1454 = vmul.f32 %v951, %v1429
      %v1455 = vmul.f32 %v955, %v1429
      %v1456 = vmul.f32 %v959, %v1429
      %v1457 = vmul.f32 %v963, %v1429
      %v1458 = vmul.f32 %v1190, %v1429
      %v1459 = vmul.f32 %v1194, %v1429
      %v1460 = vmul.f32 %v1421, %v1429
      %v1461 = vmul.f32 %v1425, %v1429
      %v1462 = vadd.f32 %v1386, %v1430
      %v1463 = vadd.f32 %v1387, %v1431
      %v1464 = vadd.f32 %v1388, %v1432
      %v1465 = vadd.f32 %v1389, %v1433
      %v1466 = vadd.f32 %v1390, %v1434
      %v1467 = vadd.f32 %v1391, %v1435
      %v1468 = vadd.f32 %v1392, %v1436
      %v1469 = vadd.f32 %v1393, %v1437
      %v1470 = vadd.f32 %v1394, %v1438
      %v1471 = vadd.f32 %v1395, %v1439
      %v1472 = vadd.f32 %v1396, %v1440
      %v1473 = vadd.f32 %v1397, %v1441
      %v1474 = vadd.f32 %v1398, %v1442
      %v1475 = vadd.f32 %v1399, %v1443
      %v1476 = vadd.f32 %v1400, %v1444
      %v1477 = vadd.f32 %v1401, %v1445
      %v1478 = vadd.f32 %v1402, %v1446
      %v1479 = vadd.f32 %v1403, %v1447
      %v1480 = vadd.f32 %v1404, %v1448
      %v1481 = vadd.f32 %v1405, %v1449
      %v1482 = vadd.f32 %v1406, %v1450
      %v1483 = vadd.f32 %v1407, %v1451
      %v1484 = vadd.f32 %v1408, %v1452
      %v1485 = vadd.f32 %v1409, %v1453
      %v1486 = vadd.f32 %v1410, %v1454
      %v1487 = vadd.f32 %v1411, %v1455
      %v1488 = vadd.f32 %v1412, %v1456
      %v1489 = vadd.f32 %v1413, %v1457
      %v1490 = vadd.f32 %v1414, %v1458
      %v1491 = vadd.f32 %v1415, %v1459
      %v1492 = vadd.f32 %v1416, %v1460
      %v1493 = vadd.f32 %v1417, %v1461
      %v1494 = vld [vmem:[%s2] sm:$0x1]
      %v1496 = vlaneseq
      %v1497 = vshrl.u32 %v1496, 7
      %v1498 = vsub.s32 0, %v1497
      %v1499 = vrot.slane %v1494, %v1498
      %v1501 = vadd.f32 %v1462, %v1499
      %v1502 = vadd.f32 %v1463, %v1499
      %v1503 = vadd.f32 %v1464, %v1499
      %v1504 = vadd.f32 %v1465, %v1499
      %v1505 = vadd.f32 %v1466, %v1499
      %v1506 = vadd.f32 %v1467, %v1499
      %v1507 = vadd.f32 %v1468, %v1499
      %v1508 = vadd.f32 %v1469, %v1499
      %v1509 = vadd.f32 %v1470, %v1499
      %v1510 = vadd.f32 %v1471, %v1499
      %v1511 = vadd.f32 %v1472, %v1499
      %v1512 = vadd.f32 %v1473, %v1499
      %v1513 = vadd.f32 %v1474, %v1499
      %v1514 = vadd.f32 %v1475, %v1499
      %v1515 = vadd.f32 %v1476, %v1499
      %v1516 = vadd.f32 %v1477, %v1499
      %v1517 = vadd.f32 %v1478, %v1499
      %v1518 = vadd.f32 %v1479, %v1499
      %v1519 = vadd.f32 %v1480, %v1499
      %v1520 = vadd.f32 %v1481, %v1499
      %v1521 = vadd.f32 %v1482, %v1499
      %v1522 = vadd.f32 %v1483, %v1499
      %v1523 = vadd.f32 %v1484, %v1499
      %v1524 = vadd.f32 %v1485, %v1499
      %v1525 = vadd.f32 %v1486, %v1499
      %v1526 = vadd.f32 %v1487, %v1499
      %v1527 = vadd.f32 %v1488, %v1499
      %v1528 = vadd.f32 %v1489, %v1499
      %v1529 = vadd.f32 %v1490, %v1499
      %v1530 = vadd.f32 %v1491, %v1499
      %v1531 = vadd.f32 %v1492, %v1499
      %v1532 = vadd.f32 %v1493, %v1499
      %v1533 = vmax.f32 %v1501, 0.0
      %v1534 = vmax.f32 %v1502, 0.0
      %v1535 = vmax.f32 %v1503, 0.0
      %v1536 = vmax.f32 %v1504, 0.0
      %v1537 = vmax.f32 %v1505, 0.0
      %v1538 = vmax.f32 %v1506, 0.0
      %v1539 = vmax.f32 %v1507, 0.0
      %v1540 = vmax.f32 %v1508, 0.0
      %v1541 = vmax.f32 %v1509, 0.0
      %v1542 = vmax.f32 %v1510, 0.0
      %v1543 = vmax.f32 %v1511, 0.0
      %v1544 = vmax.f32 %v1512, 0.0
      %v1545 = vmax.f32 %v1513, 0.0
      %v1546 = vmax.f32 %v1514, 0.0
      %v1547 = vmax.f32 %v1515, 0.0
      %v1548 = vmax.f32 %v1516, 0.0
      %v1549 = vmax.f32 %v1517, 0.0
      %v1550 = vmax.f32 %v1518, 0.0
      %v1551 = vmax.f32 %v1519, 0.0
      %v1552 = vmax.f32 %v1520, 0.0
      %v1553 = vmax.f32 %v1521, 0.0
      %v1554 = vmax.f32 %v1522, 0.0
      %v1555 = vmax.f32 %v1523, 0.0
      %v1556 = vmax.f32 %v1524, 0.0
      %v1557 = vmax.f32 %v1525, 0.0
      %v1558 = vmax.f32 %v1526, 0.0
      %v1559 = vmax.f32 %v1527, 0.0
      %v1560 = vmax.f32 %v1528, 0.0
      %v1561 = vmax.f32 %v1529, 0.0
      %v1562 = vmax.f32 %v1530, 0.0
      %v1563 = vmax.f32 %v1531, 0.0
      %v1564 = vmax.f32 %v1532, 0.0
      %v1565 = vpack.c.bf16 %v1534, %v1533
      %v1566 = vpack.c.bf16 %v1536, %v1535
      %v1567 = vpack.c.bf16 %v1538, %v1537
      %v1568 = vpack.c.bf16 %v1540, %v1539
      %v1569 = vpack.c.bf16 %v1542, %v1541
      %v1570 = vpack.c.bf16 %v1544, %v1543
      %v1571 = vpack.c.bf16 %v1546, %v1545
      %v1572 = vpack.c.bf16 %v1548, %v1547
      %v1573 = vpack.c.bf16 %v1550, %v1549
      %v1574 = vpack.c.bf16 %v1552, %v1551
      %v1575 = vpack.c.bf16 %v1554, %v1553
      %v1576 = vpack.c.bf16 %v1556, %v1555
      %v1577 = vpack.c.bf16 %v1558, %v1557
      %v1578 = vpack.c.bf16 %v1560, %v1559
      %v1579 = vpack.c.bf16 %v1562, %v1561
      %v1580 = vpack.c.bf16 %v1564, %v1563
      %v1597 = vunpack.c.l.b16 %v1565
      %v1598 = vunpack.c.h.b16 %v1565
      %v1599 = vunpack.c.l.b16 %v1566
      %v1600 = vunpack.c.h.b16 %v1566
      %v1601 = vunpack.c.l.b16 %v1567
      %v1602 = vunpack.c.h.b16 %v1567
      %v1603 = vunpack.c.l.b16 %v1568
      %v1604 = vunpack.c.h.b16 %v1568
      %v1605 = vunpack.c.l.b16 %v1569
      %v1606 = vunpack.c.h.b16 %v1569
      %v1607 = vunpack.c.l.b16 %v1570
      %v1608 = vunpack.c.h.b16 %v1570
      %v1609 = vunpack.c.l.b16 %v1571
      %v1610 = vunpack.c.h.b16 %v1571
      %v1611 = vunpack.c.l.b16 %v1572
      %v1612 = vunpack.c.h.b16 %v1572
      %v1613 = vunpack.c.l.b16 %v1573
      %v1614 = vunpack.c.h.b16 %v1573
      %v1615 = vunpack.c.l.b16 %v1574
      %v1616 = vunpack.c.h.b16 %v1574
      %v1617 = vunpack.c.l.b16 %v1575
      %v1618 = vunpack.c.h.b16 %v1575
      %v1619 = vunpack.c.l.b16 %v1576
      %v1620 = vunpack.c.h.b16 %v1576
      %v1621 = vunpack.c.l.b16 %v1577
      %v1622 = vunpack.c.h.b16 %v1577
      %v1623 = vunpack.c.l.b16 %v1578
      %v1624 = vunpack.c.h.b16 %v1578
      %v1625 = vunpack.c.l.b16 %v1579
      %v1626 = vunpack.c.h.b16 %v1579
      %v1627 = vunpack.c.l.b16 %v1580
      %v1628 = vunpack.c.h.b16 %v1580
      %v1629 = vpack.c.b16 %v1597, %v1597
      %v1630 = vpack.c.b16 %v1598, %v1598
      %v1631 = vpack.c.b16 %v1599, %v1599
      %v1632 = vpack.c.b16 %v1600, %v1600
      %v1633 = vpack.c.b16 %v1601, %v1601
      %v1634 = vpack.c.b16 %v1602, %v1602
      %v1635 = vpack.c.b16 %v1603, %v1603
      %v1636 = vpack.c.b16 %v1604, %v1604
      %v1637 = vpack.c.b16 %v1605, %v1605
      %v1638 = vpack.c.b16 %v1606, %v1606
      %v1639 = vpack.c.b16 %v1607, %v1607
      %v1640 = vpack.c.b16 %v1608, %v1608
      %v1641 = vpack.c.b16 %v1609, %v1609
      %v1642 = vpack.c.b16 %v1610, %v1610
      %v1643 = vpack.c.b16 %v1611, %v1611
      %v1644 = vpack.c.b16 %v1612, %v1612
      %v1645 = vpack.c.b16 %v1613, %v1613
      %v1646 = vpack.c.b16 %v1614, %v1614
      %v1647 = vpack.c.b16 %v1615, %v1615
      %v1648 = vpack.c.b16 %v1616, %v1616
      %v1649 = vpack.c.b16 %v1617, %v1617
      %v1650 = vpack.c.b16 %v1618, %v1618
      %v1651 = vpack.c.b16 %v1619, %v1619
      %v1652 = vpack.c.b16 %v1620, %v1620
      %v1653 = vpack.c.b16 %v1621, %v1621
      %v1654 = vpack.c.b16 %v1622, %v1622
      %v1655 = vpack.c.b16 %v1623, %v1623
      %v1656 = vpack.c.b16 %v1624, %v1624
      %v1657 = vpack.c.b16 %v1625, %v1625
      %v1658 = vpack.c.b16 %v1626, %v1626
      %v1659 = vpack.c.b16 %v1627, %v1627
      %v1660 = vpack.c.b16 %v1628, %v1628
      %vm1661 = vsmask.f32 256
      %vm1662 = vsmask.f32 4368
      %vm1663 = vmor %vm1661, %vm1662
      %v1665 = vshrl.u32 %v1629, 16
      %v1667 = vrot.slane %v1665, 7
      %v1668 = vshll.u32 %v1629, 16
      %v1670 = vor.u32 %v1667, %v1668
      %v1671 = vrot.slane %v1667, 4
      %v1673 = vshrl.u32 %v1630, 16
      %v1675 = vrot.slane %v1673, 7
      %v1676 = vshll.u32 %v1630, 16
      %v1678 = vor.u32 %v1675, %v1676
      %v1679 = vsel %vm1663, %v1671, %v1678
      %v1680 = vrot.slane %v1675, 4
      %v1682 = vshrl.u32 %v1631, 16
      %v1684 = vrot.slane %v1682, 7
      %v1685 = vshll.u32 %v1631, 16
      %v1687 = vor.u32 %v1684, %v1685
      %v1688 = vrot.slane %v1684, 4
      %v1690 = vshrl.u32 %v1632, 16
      %v1692 = vrot.slane %v1690, 7
      %v1693 = vshll.u32 %v1632, 16
      %v1695 = vor.u32 %v1692, %v1693
      %v1696 = vsel %vm1663, %v1688, %v1695
      %v1697 = vrot.slane %v1692, 4
      %v1699 = vshrl.u32 %v1633, 16
      %v1701 = vrot.slane %v1699, 7
      %v1702 = vshll.u32 %v1633, 16
      %v1704 = vor.u32 %v1701, %v1702
      %v1705 = vrot.slane %v1701, 4
      %v1707 = vshrl.u32 %v1634, 16
      %v1709 = vrot.slane %v1707, 7
      %v1710 = vshll.u32 %v1634, 16
      %v1712 = vor.u32 %v1709, %v1710
      %v1713 = vsel %vm1663, %v1705, %v1712
      %v1714 = vrot.slane %v1709, 4
      %v1716 = vshrl.u32 %v1635, 16
      %v1718 = vrot.slane %v1716, 7
      %v1719 = vshll.u32 %v1635, 16
      %v1721 = vor.u32 %v1718, %v1719
      %v1722 = vrot.slane %v1718, 4
      %v1724 = vshrl.u32 %v1636, 16
      %v1726 = vrot.slane %v1724, 7
      %v1727 = vshll.u32 %v1636, 16
      %v1729 = vor.u32 %v1726, %v1727
      %v1730 = vsel %vm1663, %v1722, %v1729
      %v1731 = vrot.slane %v1726, 4
      %v1733 = vshrl.u32 %v1637, 16
      %v1735 = vrot.slane %v1733, 7
      %v1736 = vshll.u32 %v1637, 16
      %v1738 = vor.u32 %v1735, %v1736
      %v1739 = vrot.slane %v1735, 4
      %v1741 = vshrl.u32 %v1638, 16
      %v1743 = vrot.slane %v1741, 7
      %v1744 = vshll.u32 %v1638, 16
      %v1746 = vor.u32 %v1743, %v1744
      %v1747 = vsel %vm1663, %v1739, %v1746
      %v1748 = vrot.slane %v1743, 4
      %v1750 = vshrl.u32 %v1639, 16
      %v1752 = vrot.slane %v1750, 7
      %v1753 = vshll.u32 %v1639, 16
      %v1755 = vor.u32 %v1752, %v1753
      %v1756 = vrot.slane %v1752, 4
      %v1758 = vshrl.u32 %v1640, 16
      %v1760 = vrot.slane %v1758, 7
      %v1761 = vshll.u32 %v1640, 16
      %v1763 = vor.u32 %v1760, %v1761
      %v1764 = vsel %vm1663, %v1756, %v1763
      %v1765 = vrot.slane %v1760, 4
      %v1767 = vshrl.u32 %v1641, 16
      %v1769 = vrot.slane %v1767, 7
      %v1770 = vshll.u32 %v1641, 16
      %v1772 = vor.u32 %v1769, %v1770
      %v1773 = vrot.slane %v1769, 4
      %v1775 = vshrl.u32 %v1642, 16
      %v1777 = vrot.slane %v1775, 7
      %v1778 = vshll.u32 %v1642, 16
      %v1780 = vor.u32 %v1777, %v1778
      %v1781 = vsel %vm1663, %v1773, %v1780
      %v1782 = vrot.slane %v1777, 4
      %v1784 = vshrl.u32 %v1643, 16
      %v1786 = vrot.slane %v1784, 7
      %v1787 = vshll.u32 %v1643, 16
      %v1789 = vor.u32 %v1786, %v1787
      %v1790 = vrot.slane %v1786, 4
      %v1792 = vshrl.u32 %v1644, 16
      %v1794 = vrot.slane %v1792, 7
      %v1795 = vshll.u32 %v1644, 16
      %v1797 = vor.u32 %v1794, %v1795
      %v1798 = vsel %vm1663, %v1790, %v1797
      %v1799 = vrot.slane %v1794, 4
      %v1801 = vshrl.u32 %v1645, 16
      %v1803 = vrot.slane %v1801, 7
      %v1804 = vshll.u32 %v1645, 16
      %v1806 = vor.u32 %v1803, %v1804
      %v1807 = vrot.slane %v1803, 4
      %v1809 = vshrl.u32 %v1646, 16
      %v1811 = vrot.slane %v1809, 7
      %v1812 = vshll.u32 %v1646, 16
      %v1814 = vor.u32 %v1811, %v1812
      %v1815 = vsel %vm1663, %v1807, %v1814
      %v1816 = vrot.slane %v1811, 4
      %v1818 = vshrl.u32 %v1647, 16
      %v1820 = vrot.slane %v1818, 7
      %v1821 = vshll.u32 %v1647, 16
      %v1823 = vor.u32 %v1820, %v1821
      %v1824 = vrot.slane %v1820, 4
      %v1826 = vshrl.u32 %v1648, 16
      %v1828 = vrot.slane %v1826, 7
      %v1829 = vshll.u32 %v1648, 16
      %v1831 = vor.u32 %v1828, %v1829
      %v1832 = vsel %vm1663, %v1824, %v1831
      %v1833 = vrot.slane %v1828, 4
      %v1835 = vshrl.u32 %v1649, 16
      %v1837 = vrot.slane %v1835, 7
      %v1838 = vshll.u32 %v1649, 16
      %v1840 = vor.u32 %v1837, %v1838
      %v1841 = vrot.slane %v1837, 4
      %v1843 = vshrl.u32 %v1650, 16
      %v1845 = vrot.slane %v1843, 7
      %v1846 = vshll.u32 %v1650, 16
      %v1848 = vor.u32 %v1845, %v1846
      %v1849 = vsel %vm1663, %v1841, %v1848
      %v1850 = vrot.slane %v1845, 4
      %v1852 = vshrl.u32 %v1651, 16
      %v1854 = vrot.slane %v1852, 7
      %v1855 = vshll.u32 %v1651, 16
      %v1857 = vor.u32 %v1854, %v1855
      %v1858 = vrot.slane %v1854, 4
      %v1860 = vshrl.u32 %v1652, 16
      %v1862 = vrot.slane %v1860, 7
      %v1863 = vshll.u32 %v1652, 16
      %v1865 = vor.u32 %v1862, %v1863
      %v1866 = vsel %vm1663, %v1858, %v1865
      %v1867 = vrot.slane %v1862, 4
      %v1869 = vshrl.u32 %v1653, 16
      %v1871 = vrot.slane %v1869, 7
      %v1872 = vshll.u32 %v1653, 16
      %v1874 = vor.u32 %v1871, %v1872
      %v1875 = vrot.slane %v1871, 4
      %v1877 = vshrl.u32 %v1654, 16
      %v1879 = vrot.slane %v1877, 7
      %v1880 = vshll.u32 %v1654, 16
      %v1882 = vor.u32 %v1879, %v1880
      %v1883 = vsel %vm1663, %v1875, %v1882
      %v1884 = vrot.slane %v1879, 4
      %v1886 = vshrl.u32 %v1655, 16
      %v1888 = vrot.slane %v1886, 7
      %v1889 = vshll.u32 %v1655, 16
      %v1891 = vor.u32 %v1888, %v1889
      %v1892 = vrot.slane %v1888, 4
      %v1894 = vshrl.u32 %v1656, 16
      %v1896 = vrot.slane %v1894, 7
      %v1897 = vshll.u32 %v1656, 16
      %v1899 = vor.u32 %v1896, %v1897
      %v1900 = vsel %vm1663, %v1892, %v1899
      %v1901 = vrot.slane %v1896, 4
      %v1903 = vshrl.u32 %v1657, 16
      %v1905 = vrot.slane %v1903, 7
      %v1906 = vshll.u32 %v1657, 16
      %v1908 = vor.u32 %v1905, %v1906
      %v1909 = vrot.slane %v1905, 4
      %v1911 = vshrl.u32 %v1658, 16
      %v1913 = vrot.slane %v1911, 7
      %v1914 = vshll.u32 %v1658, 16
      %v1916 = vor.u32 %v1913, %v1914
      %v1917 = vsel %vm1663, %v1909, %v1916
      %v1918 = vrot.slane %v1913, 4
      %v1920 = vshrl.u32 %v1659, 16
      %v1922 = vrot.slane %v1920, 7
      %v1923 = vshll.u32 %v1659, 16
      %v1925 = vor.u32 %v1922, %v1923
      %v1926 = vrot.slane %v1922, 4
      %v1928 = vshrl.u32 %v1660, 16
      %v1930 = vrot.slane %v1928, 7
      %v1931 = vshll.u32 %v1660, 16
      %v1933 = vor.u32 %v1930, %v1931
      %v1934 = vsel %vm1663, %v1926, %v1933
      %v1935 = vrot.slane %v1930, 4
      %s1984 = scalar_lea.vmem [#allocation2], 12
      %vm1985 = vcmask 519168
      %vm1986 = vsmask.f32 7938
      %vm1987 = vmand %vm1985, %vm1986
      %v1988 = vld [vmem:[%s1984] sm:$0xf]
      %v1989 = vsel %vm1987, %v1670, %v1988
      %1990 = vst [vmem:[%s1984] sm:$0xf] %v1989
      %1991 = vst.msk [vmem:[%s1984 + $0x4] sm:$0xf] %vm281, %v1679
      %vm1992 = vcmask 516096
      %vm1993 = vmand %vm1992, %vm1661
      %v1994 = vld [vmem:[%s1984 + $0x8] sm:$0x1]
      %v1995 = vsel %vm1993, %v1680, %v1994
      %1996 = vst [vmem:[%s1984 + $0x8] sm:$0x1] %v1995
      %v1997 = vld [vmem:[%s1984 + $0xc] sm:$0xf]
      %v1998 = vsel %vm1987, %v1687, %v1997
      %1999 = vst [vmem:[%s1984 + $0xc] sm:$0xf] %v1998
      %2000 = vst.msk [vmem:[%s1984 + $0x10] sm:$0xf] %vm281, %v1696
      %v2001 = vld [vmem:[%s1984 + $0x14] sm:$0x1]
      %v2002 = vsel %vm1993, %v1697, %v2001
      %2003 = vst [vmem:[%s1984 + $0x14] sm:$0x1] %v2002
      %v2004 = vld [vmem:[%s1984 + $0x18] sm:$0xf]
      %v2005 = vsel %vm1987, %v1704, %v2004
      %2006 = vst [vmem:[%s1984 + $0x18] sm:$0xf] %v2005
      %2007 = vst.msk [vmem:[%s1984 + $0x1c] sm:$0xf] %vm281, %v1713
      %v2008 = vld [vmem:[%s1984 + $0x20] sm:$0x1]
      %v2009 = vsel %vm1993, %v1714, %v2008
      %2010 = vst [vmem:[%s1984 + $0x20] sm:$0x1] %v2009
      %v2011 = vld [vmem:[%s1984 + $0x24] sm:$0xf]
      %v2012 = vsel %vm1987, %v1721, %v2011
      %2013 = vst [vmem:[%s1984 + $0x24] sm:$0xf] %v2012
      %2014 = vst.msk [vmem:[%s1984 + $0x28] sm:$0xf] %vm281, %v1730
      %v2015 = vld [vmem:[%s1984 + $0x2c] sm:$0x1]
      %v2016 = vsel %vm1993, %v1731, %v2015
      %2017 = vst [vmem:[%s1984 + $0x2c] sm:$0x1] %v2016
      %v2018 = vld [vmem:[%s1984 + $0x30] sm:$0xf]
      %v2019 = vsel %vm1987, %v1738, %v2018
      %2020 = vst [vmem:[%s1984 + $0x30] sm:$0xf] %v2019
      %2021 = vst.msk [vmem:[%s1984 + $0x34] sm:$0xf] %vm281, %v1747
      %v2022 = vld [vmem:[%s1984 + $0x38] sm:$0x1]
      %v2023 = vsel %vm1993, %v1748, %v2022
      %2024 = vst [vmem:[%s1984 + $0x38] sm:$0x1] %v2023
      %v2025 = vld [vmem:[%s1984 + $0x3c] sm:$0xf]
      %v2026 = vsel %vm1987, %v1755, %v2025
      %2027 = vst [vmem:[%s1984 + $0x3c] sm:$0xf] %v2026
      %2028 = vst.msk [vmem:[%s1984 + $0x40] sm:$0xf] %vm281, %v1764
      %v2029 = vld [vmem:[%s1984 + $0x44] sm:$0x1]
      %v2030 = vsel %vm1993, %v1765, %v2029
      %2031 = vst [vmem:[%s1984 + $0x44] sm:$0x1] %v2030
      %v2032 = vld [vmem:[%s1984 + $0x48] sm:$0xf]
      %v2033 = vsel %vm1987, %v1772, %v2032
      %2034 = vst [vmem:[%s1984 + $0x48] sm:$0xf] %v2033
      %2035 = vst.msk [vmem:[%s1984 + $0x4c] sm:$0xf] %vm281, %v1781
      %v2036 = vld [vmem:[%s1984 + $0x50] sm:$0x1]
      %v2037 = vsel %vm1993, %v1782, %v2036
      %2038 = vst [vmem:[%s1984 + $0x50] sm:$0x1] %v2037
      %v2039 = vld [vmem:[%s1984 + $0x54] sm:$0xf]
      %v2040 = vsel %vm1987, %v1789, %v2039
      %2041 = vst [vmem:[%s1984 + $0x54] sm:$0xf] %v2040
      %2042 = vst.msk [vmem:[%s1984 + $0x58] sm:$0xf] %vm281, %v1798
      %v2043 = vld [vmem:[%s1984 + $0x5c] sm:$0x1]
      %v2044 = vsel %vm1993, %v1799, %v2043
      %2045 = vst [vmem:[%s1984 + $0x5c] sm:$0x1] %v2044
      %v2046 = vld [vmem:[%s1984 + $0x60] sm:$0xf]
      %v2047 = vsel %vm1987, %v1806, %v2046
      %2048 = vst [vmem:[%s1984 + $0x60] sm:$0xf] %v2047
      %2049 = vst.msk [vmem:[%s1984 + $0x64] sm:$0xf] %vm281, %v1815
      %v2050 = vld [vmem:[%s1984 + $0x68] sm:$0x1]
      %v2051 = vsel %vm1993, %v1816, %v2050
      %2052 = vst [vmem:[%s1984 + $0x68] sm:$0x1] %v2051
      %v2053 = vld [vmem:[%s1984 + $0x6c] sm:$0xf]
      %v2054 = vsel %vm1987, %v1823, %v2053
      %2055 = vst [vmem:[%s1984 + $0x6c] sm:$0xf] %v2054
      %2056 = vst.msk [vmem:[%s1984 + $0x70] sm:$0xf] %vm281, %v1832
      %v2057 = vld [vmem:[%s1984 + $0x74] sm:$0x1]
      %v2058 = vsel %vm1993, %v1833, %v2057
      %2059 = vst [vmem:[%s1984 + $0x74] sm:$0x1] %v2058
      %v2060 = vld [vmem:[%s1984 + $0x78] sm:$0xf]
      %v2061 = vsel %vm1987, %v1840, %v2060
      %2062 = vst [vmem:[%s1984 + $0x78] sm:$0xf] %v2061
      %2063 = vst.msk [vmem:[%s1984 + $0x7c] sm:$0xf] %vm281, %v1849
      %v2064 = vld [vmem:[%s1984 + $0x80] sm:$0x1]
      %v2065 = vsel %vm1993, %v1850, %v2064
      %2066 = vst [vmem:[%s1984 + $0x80] sm:$0x1] %v2065
      %v2067 = vld [vmem:[%s1984 + $0x84] sm:$0xf]
      %v2068 = vsel %vm1987, %v1857, %v2067
      %2069 = vst [vmem:[%s1984 + $0x84] sm:$0xf] %v2068
      %2070 = vst.msk [vmem:[%s1984 + $0x88] sm:$0xf] %vm281, %v1866
      %v2071 = vld [vmem:[%s1984 + $0x8c] sm:$0x1]
      %v2072 = vsel %vm1993, %v1867, %v2071
      %2073 = vst [vmem:[%s1984 + $0x8c] sm:$0x1] %v2072
      %v2074 = vld [vmem:[%s1984 + $0x90] sm:$0xf]
      %v2075 = vsel %vm1987, %v1874, %v2074
      %2076 = vst [vmem:[%s1984 + $0x90] sm:$0xf] %v2075
      %2077 = vst.msk [vmem:[%s1984 + $0x94] sm:$0xf] %vm281, %v1883
      %v2078 = vld [vmem:[%s1984 + $0x98] sm:$0x1]
      %v2079 = vsel %vm1993, %v1884, %v2078
      %2080 = vst [vmem:[%s1984 + $0x98] sm:$0x1] %v2079
      %v2081 = vld [vmem:[%s1984 + $0x9c] sm:$0xf]
      %v2082 = vsel %vm1987, %v1891, %v2081
      %2083 = vst [vmem:[%s1984 + $0x9c] sm:$0xf] %v2082
      %2084 = vst.msk [vmem:[%s1984 + $0xa0] sm:$0xf] %vm281, %v1900
      %v2085 = vld [vmem:[%s1984 + $0xa4] sm:$0x1]
      %v2086 = vsel %vm1993, %v1901, %v2085
      %2087 = vst [vmem:[%s1984 + $0xa4] sm:$0x1] %v2086
      %v2088 = vld [vmem:[%s1984 + $0xa8] sm:$0xf]
      %v2089 = vsel %vm1987, %v1908, %v2088
      %2090 = vst [vmem:[%s1984 + $0xa8] sm:$0xf] %v2089
      %2091 = vst.msk [vmem:[%s1984 + $0xac] sm:$0xf] %vm281, %v1917
      %v2092 = vld [vmem:[%s1984 + $0xb0] sm:$0x1]
      %v2093 = vsel %vm1993, %v1918, %v2092
      %2094 = vst [vmem:[%s1984 + $0xb0] sm:$0x1] %v2093
      %v2095 = vld [vmem:[%s1984 + $0xb4] sm:$0xf]
      %v2096 = vsel %vm1987, %v1925, %v2095
      %2097 = vst [vmem:[%s1984 + $0xb4] sm:$0xf] %v2096
      %2098 = vst.msk [vmem:[%s1984 + $0xb8] sm:$0xf] %vm281, %v1934
      %v2099 = vld [vmem:[%s1984 + $0xbc] sm:$0x1]
      %v2100 = vsel %vm1993, %v1935, %v2099
      %2101 = vst [vmem:[%s1984 + $0xbc] sm:$0x1] %v2100
      %v2102 = vld [vmem:[%s3] sm:$0xf]
      %v2103 = vld [vmem:[%s3 + $0x4] sm:$0xf]
      %v2104 = vld [vmem:[%s3 + $0x8] sm:$0xf]
      %v2105 = vld [vmem:[%s3 + $0xc] sm:$0xf]
      %v2106 = vld [vmem:[%s3 + $0x10] sm:$0xf]
      %v2107 = vld [vmem:[%s3 + $0x14] sm:$0xf]
      %v2108 = vld [vmem:[%s3 + $0x18] sm:$0xf]
      %v2109 = vld [vmem:[%s3 + $0x1c] sm:$0xf]
      %v2110 = vld [vmem:[%s3 + $0x20] sm:$0xf]
      %v2111 = vld [vmem:[%s3 + $0x24] sm:$0xf]
      %v2112 = vld [vmem:[%s3 + $0x28] sm:$0xf]
      %v2113 = vld [vmem:[%s3 + $0x2c] sm:$0xf]
      %v2114 = vld [vmem:[%s3 + $0x30] sm:$0xf]
      %v2115 = vld [vmem:[%s3 + $0x34] sm:$0xf]
      %v2116 = vld [vmem:[%s3 + $0x38] sm:$0xf]
      %v2117 = vld [vmem:[%s3 + $0x3c] sm:$0xf]
      %v2118 = vld [vmem:[%s3 + $0x40] sm:$0xf]
      %v2119 = vld [vmem:[%s3 + $0x44] sm:$0xf]
      %v2120 = vld [vmem:[%s3 + $0x48] sm:$0xf]
      %v2121 = vld [vmem:[%s3 + $0x4c] sm:$0xf]
      %v2122 = vld [vmem:[%s3 + $0x50] sm:$0xf]
      %v2123 = vld [vmem:[%s3 + $0x54] sm:$0xf]
      %v2124 = vld [vmem:[%s3 + $0x58] sm:$0xf]
      %v2125 = vld [vmem:[%s3 + $0x5c] sm:$0xf]
      %v2126 = vld [vmem:[%s3 + $0x60] sm:$0xf]
      %v2127 = vld [vmem:[%s3 + $0x64] sm:$0xf]
      %v2128 = vld [vmem:[%s3 + $0x68] sm:$0xf]
      %v2129 = vld [vmem:[%s3 + $0x6c] sm:$0xf]
      %v2130 = vld [vmem:[%s3 + $0x70] sm:$0xf]
      %v2131 = vld [vmem:[%s3 + $0x74] sm:$0xf]
      %v2132 = vld [vmem:[%s3 + $0x78] sm:$0xf]
      %v2133 = vld [vmem:[%s3 + $0x7c] sm:$0xf]
      %v2134 = vld [vmem:[%s3 + $0x80] sm:$0xf]
      %v2135 = vld [vmem:[%s3 + $0x84] sm:$0xf]
      %v2136 = vld [vmem:[%s3 + $0x88] sm:$0xf]
      %v2137 = vld [vmem:[%s3 + $0x8c] sm:$0xf]
      %v2138 = vld [vmem:[%s3 + $0x90] sm:$0xf]
      %v2139 = vld [vmem:[%s3 + $0x94] sm:$0xf]
      %v2140 = vld [vmem:[%s3 + $0x98] sm:$0xf]
      %v2141 = vld [vmem:[%s3 + $0x9c] sm:$0xf]
      %v2142 = vld [vmem:[%s3 + $0xa0] sm:$0xf]
      %v2143 = vld [vmem:[%s3 + $0xa4] sm:$0xf]
      %v2144 = vld [vmem:[%s3 + $0xa8] sm:$0xf]
      %v2145 = vld [vmem:[%s3 + $0xac] sm:$0xf]
      %v2146 = vld [vmem:[%s3 + $0xb0] sm:$0xf]
      %v2147 = vld [vmem:[%s3 + $0xb4] sm:$0xf]
      %v2148 = vld [vmem:[%s3 + $0xb8] sm:$0xf]
      %v2149 = vld [vmem:[%s3 + $0xbc] sm:$0xf]
      %v2150 = vld [vmem:[%s3 + $0xc0] sm:$0xf]
      %v2151 = vld [vmem:[%s3 + $0xc4] sm:$0xf]
      %v2152 = vld [vmem:[%s3 + $0xc8] sm:$0xf]
      %v2153 = vld [vmem:[%s3 + $0xcc] sm:$0xf]
      %v2154 = vld [vmem:[%s3 + $0xd0] sm:$0xf]
      %v2155 = vld [vmem:[%s3 + $0xd4] sm:$0xf]
      %v2156 = vld [vmem:[%s3 + $0xd8] sm:$0xf]
      %v2157 = vld [vmem:[%s3 + $0xdc] sm:$0xf]
      %v2158 = vld [vmem:[%s3 + $0xe0] sm:$0xf]
      %v2159 = vld [vmem:[%s3 + $0xe4] sm:$0xf]
      %v2160 = vld [vmem:[%s3 + $0xe8] sm:$0xf]
      %v2161 = vld [vmem:[%s3 + $0xec] sm:$0xf]
      %v2162 = vld [vmem:[%s3 + $0xf0] sm:$0xf]
      %v2163 = vld [vmem:[%s3 + $0xf4] sm:$0xf]
      %v2164 = vld [vmem:[%s3 + $0xf8] sm:$0xf]
      %v2165 = vld [vmem:[%s3 + $0xfc] sm:$0xf]
      %v2166 = vld [vmem:[%s3 + $0x100] sm:$0xf]
      %v2167 = vld [vmem:[%s3 + $0x104] sm:$0xf]
      %v2168 = vld [vmem:[%s3 + $0x108] sm:$0xf]
      %v2169 = vld [vmem:[%s3 + $0x10c] sm:$0xf]
      %v2170 = vld [vmem:[%s3 + $0x110] sm:$0xf]
      %v2171 = vld [vmem:[%s3 + $0x114] sm:$0xf]
      %v2172 = vld [vmem:[%s3 + $0x118] sm:$0xf]
      %v2173 = vld [vmem:[%s3 + $0x11c] sm:$0xf]
      %v2174 = vld [vmem:[#allocation2] sm:$0xf]
      %v2175 = vld [vmem:[#allocation2 + $0x4] sm:$0xf]
      %v2176 = vld [vmem:[#allocation2 + $0xc] sm:$0xf]
      %v2177 = vld [vmem:[#allocation2 + $0x10] sm:$0xf]
      %v2178 = vld [vmem:[#allocation2 + $0x18] sm:$0xf]
      %v2179 = vld [vmem:[#allocation2 + $0x1c] sm:$0xf]
      %v2180 = vld [vmem:[#allocation2 + $0x24] sm:$0xf]
      %v2181 = vld [vmem:[#allocation2 + $0x28] sm:$0xf]
      %v2182 = vld [vmem:[#allocation2 + $0x30] sm:$0xf]
      %v2183 = vld [vmem:[#allocation2 + $0x34] sm:$0xf]
      %v2184 = vld [vmem:[#allocation2 + $0x3c] sm:$0xf]
      %v2185 = vld [vmem:[#allocation2 + $0x40] sm:$0xf]
      %v2186 = vld [vmem:[#allocation2 + $0x48] sm:$0xf]
      %v2187 = vld [vmem:[#allocation2 + $0x4c] sm:$0xf]
      %v2188 = vld [vmem:[#allocation2 + $0x54] sm:$0xf]
      %v2189 = vld [vmem:[#allocation2 + $0x58] sm:$0xf]
      %v2190 = vld [vmem:[#allocation2 + $0x60] sm:$0xf]
      %v2191 = vld [vmem:[#allocation2 + $0x64] sm:$0xf]
      %v2192 = vld [vmem:[#allocation2 + $0x6c] sm:$0xf]
      %v2193 = vld [vmem:[#allocation2 + $0x70] sm:$0xf]
      %v2194 = vld [vmem:[#allocation2 + $0x78] sm:$0xf]
      %v2195 = vld [vmem:[#allocation2 + $0x7c] sm:$0xf]
      %v2196 = vld [vmem:[#allocation2 + $0x84] sm:$0xf]
      %v2197 = vld [vmem:[#allocation2 + $0x88] sm:$0xf]
      %v2198 = vld [vmem:[#allocation2 + $0x90] sm:$0xf]
      %v2199 = vld [vmem:[#allocation2 + $0x94] sm:$0xf]
      %v2200 = vld [vmem:[#allocation2 + $0x9c] sm:$0xf]
      %v2201 = vld [vmem:[#allocation2 + $0xa0] sm:$0xf]
      %v2202 = vld [vmem:[#allocation2 + $0xa8] sm:$0xf]
      %v2203 = vld [vmem:[#allocation2 + $0xac] sm:$0xf]
      %v2204 = vld [vmem:[#allocation2 + $0xb4] sm:$0xf]
      %v2205 = vld [vmem:[#allocation2 + $0xb8] sm:$0xf]
      %v2206 = vld [vmem:[#allocation2 + $0x8] sm:$0x1]
      %v2207 = vld [vmem:[#allocation2 + $0x14] sm:$0x1]
      %v2208 = vld [vmem:[#allocation2 + $0x20] sm:$0x1]
      %v2209 = vld [vmem:[#allocation2 + $0x2c] sm:$0x1]
      %v2210 = vld [vmem:[#allocation2 + $0x38] sm:$0x1]
      %v2211 = vld [vmem:[#allocation2 + $0x44] sm:$0x1]
      %v2212 = vld [vmem:[#allocation2 + $0x50] sm:$0x1]
      %v2213 = vld [vmem:[#allocation2 + $0x5c] sm:$0x1]
      %v2214 = vld [vmem:[#allocation2 + $0x68] sm:$0x1]
      %v2215 = vld [vmem:[#allocation2 + $0x74] sm:$0x1]
      %v2216 = vld [vmem:[#allocation2 + $0x80] sm:$0x1]
      %v2217 = vld [vmem:[#allocation2 + $0x8c] sm:$0x1]
      %v2218 = vld [vmem:[#allocation2 + $0x98] sm:$0x1]
      %v2219 = vld [vmem:[#allocation2 + $0xa4] sm:$0x1]
      %v2220 = vld [vmem:[#allocation2 + $0xb0] sm:$0x1]
      %v2221 = vld [vmem:[#allocation2 + $0xbc] sm:$0x1]
      %vm2222 = vsmask.f32 3328
      %vm2223 = vsmask.f32 7440
      %vm2224 = vmor %vm2222, %vm2223
      %v2226 = vshrl.u32 %v2174, 16
      %v2228 = vrot.slane %v2226, 4
      %v2229 = vshll.u32 %v2174, 16
      %v2231 = vrot.slane %v2229, 5
      %v2232 = vor.u32 %v2228, %v2231
      %v2233 = vrot.slane %v2232, 4
      %v2235 = vshll.u32 %v2175, 16
      %v2237 = vrot.slane %v2235, 5
      %v2238 = vsel %vm2224, %v2233, %v2237
      %v2239 = vshrl.u32 %v2175, 16
      %v2241 = vrot.slane %v2239, 4
      %v2242 = vor.u32 %v2241, %v2237
      %v2243 = vrot.slane %v2242, 4
      %v2245 = vshll.u32 %v2206, 16
      %v2247 = vrot.slane %v2245, 5
      %v2248 = vsel %vm2224, %v2243, %v2247
      %v2250 = vshrl.u32 %v2176, 16
      %v2252 = vrot.slane %v2250, 4
      %v2253 = vshll.u32 %v2176, 16
      %v2255 = vrot.slane %v2253, 5
      %v2256 = vor.u32 %v2252, %v2255
      %v2257 = vrot.slane %v2256, 4
      %v2259 = vshll.u32 %v2177, 16
      %v2261 = vrot.slane %v2259, 5
      %v2262 = vsel %vm2224, %v2257, %v2261
      %v2263 = vshrl.u32 %v2177, 16
      %v2265 = vrot.slane %v2263, 4
      %v2266 = vor.u32 %v2265, %v2261
      %v2267 = vrot.slane %v2266, 4
      %v2269 = vshll.u32 %v2207, 16
      %v2271 = vrot.slane %v2269, 5
      %v2272 = vsel %vm2224, %v2267, %v2271
      %v2274 = vshrl.u32 %v2178, 16
      %v2276 = vrot.slane %v2274, 4
      %v2277 = vshll.u32 %v2178, 16
      %v2279 = vrot.slane %v2277, 5
      %v2280 = vor.u32 %v2276, %v2279
      %v2281 = vrot.slane %v2280, 4
      %v2283 = vshll.u32 %v2179, 16
      %v2285 = vrot.slane %v2283, 5
      %v2286 = vsel %vm2224, %v2281, %v2285
      %v2287 = vshrl.u32 %v2179, 16
      %v2289 = vrot.slane %v2287, 4
      %v2290 = vor.u32 %v2289, %v2285
      %v2291 = vrot.slane %v2290, 4
      %v2293 = vshll.u32 %v2208, 16
      %v2295 = vrot.slane %v2293, 5
      %v2296 = vsel %vm2224, %v2291, %v2295
      %v2298 = vshrl.u32 %v2180, 16
      %v2300 = vrot.slane %v2298, 4
      %v2301 = vshll.u32 %v2180, 16
      %v2303 = vrot.slane %v2301, 5
      %v2304 = vor.u32 %v2300, %v2303
      %v2305 = vrot.slane %v2304, 4
      %v2307 = vshll.u32 %v2181, 16
      %v2309 = vrot.slane %v2307, 5
      %v2310 = vsel %vm2224, %v2305, %v2309
      %v2311 = vshrl.u32 %v2181, 16
      %v2313 = vrot.slane %v2311, 4
      %v2314 = vor.u32 %v2313, %v2309
      %v2315 = vrot.slane %v2314, 4
      %v2317 = vshll.u32 %v2209, 16
      %v2319 = vrot.slane %v2317, 5
      %v2320 = vsel %vm2224, %v2315, %v2319
      %v2322 = vshrl.u32 %v2182, 16
      %v2324 = vrot.slane %v2322, 4
      %v2325 = vshll.u32 %v2182, 16
      %v2327 = vrot.slane %v2325, 5
      %v2328 = vor.u32 %v2324, %v2327
      %v2329 = vrot.slane %v2328, 4
      %v2331 = vshll.u32 %v2183, 16
      %v2333 = vrot.slane %v2331, 5
      %v2334 = vsel %vm2224, %v2329, %v2333
      %v2335 = vshrl.u32 %v2183, 16
      %v2337 = vrot.slane %v2335, 4
      %v2338 = vor.u32 %v2337, %v2333
      %v2339 = vrot.slane %v2338, 4
      %v2341 = vshll.u32 %v2210, 16
      %v2343 = vrot.slane %v2341, 5
      %v2344 = vsel %vm2224, %v2339, %v2343
      %v2346 = vshrl.u32 %v2184, 16
      %v2348 = vrot.slane %v2346, 4
      %v2349 = vshll.u32 %v2184, 16
      %v2351 = vrot.slane %v2349, 5
      %v2352 = vor.u32 %v2348, %v2351
      %v2353 = vrot.slane %v2352, 4
      %v2355 = vshll.u32 %v2185, 16
      %v2357 = vrot.slane %v2355, 5
      %v2358 = vsel %vm2224, %v2353, %v2357
      %v2359 = vshrl.u32 %v2185, 16
      %v2361 = vrot.slane %v2359, 4
      %v2362 = vor.u32 %v2361, %v2357
      %v2363 = vrot.slane %v2362, 4
      %v2365 = vshll.u32 %v2211, 16
      %v2367 = vrot.slane %v2365, 5
      %v2368 = vsel %vm2224, %v2363, %v2367
      %v2370 = vshrl.u32 %v2186, 16
      %v2372 = vrot.slane %v2370, 4
      %v2373 = vshll.u32 %v2186, 16
      %v2375 = vrot.slane %v2373, 5
      %v2376 = vor.u32 %v2372, %v2375
      %v2377 = vrot.slane %v2376, 4
      %v2379 = vshll.u32 %v2187, 16
      %v2381 = vrot.slane %v2379, 5
      %v2382 = vsel %vm2224, %v2377, %v2381
      %v2383 = vshrl.u32 %v2187, 16
      %v2385 = vrot.slane %v2383, 4
      %v2386 = vor.u32 %v2385, %v2381
      %v2387 = vrot.slane %v2386, 4
      %v2389 = vshll.u32 %v2212, 16
      %v2391 = vrot.slane %v2389, 5
      %v2392 = vsel %vm2224, %v2387, %v2391
      %v2394 = vshrl.u32 %v2188, 16
      %v2396 = vrot.slane %v2394, 4
      %v2397 = vshll.u32 %v2188, 16
      %v2399 = vrot.slane %v2397, 5
      %v2400 = vor.u32 %v2396, %v2399
      %v2401 = vrot.slane %v2400, 4
      %v2403 = vshll.u32 %v2189, 16
      %v2405 = vrot.slane %v2403, 5
      %v2406 = vsel %vm2224, %v2401, %v2405
      %v2407 = vshrl.u32 %v2189, 16
      %v2409 = vrot.slane %v2407, 4
      %v2410 = vor.u32 %v2409, %v2405
      %v2411 = vrot.slane %v2410, 4
      %v2413 = vshll.u32 %v2213, 16
      %v2415 = vrot.slane %v2413, 5
      %v2416 = vsel %vm2224, %v2411, %v2415
      %v2418 = vshrl.u32 %v2190, 16
      %v2420 = vrot.slane %v2418, 4
      %v2421 = vshll.u32 %v2190, 16
      %v2423 = vrot.slane %v2421, 5
      %v2424 = vor.u32 %v2420, %v2423
      %v2425 = vrot.slane %v2424, 4
      %v2427 = vshll.u32 %v2191, 16
      %v2429 = vrot.slane %v2427, 5
      %v2430 = vsel %vm2224, %v2425, %v2429
      %v2431 = vshrl.u32 %v2191, 16
      %v2433 = vrot.slane %v2431, 4
      %v2434 = vor.u32 %v2433, %v2429
      %v2435 = vrot.slane %v2434, 4
      %v2437 = vshll.u32 %v2214, 16
      %v2439 = vrot.slane %v2437, 5
      %v2440 = vsel %vm2224, %v2435, %v2439
      %v2442 = vshrl.u32 %v2192, 16
      %v2444 = vrot.slane %v2442, 4
      %v2445 = vshll.u32 %v2192, 16
      %v2447 = vrot.slane %v2445, 5
      %v2448 = vor.u32 %v2444, %v2447
      %v2449 = vrot.slane %v2448, 4
      %v2451 = vshll.u32 %v2193, 16
      %v2453 = vrot.slane %v2451, 5
      %v2454 = vsel %vm2224, %v2449, %v2453
      %v2455 = vshrl.u32 %v2193, 16
      %v2457 = vrot.slane %v2455, 4
      %v2458 = vor.u32 %v2457, %v2453
      %v2459 = vrot.slane %v2458, 4
      %v2461 = vshll.u32 %v2215, 16
      %v2463 = vrot.slane %v2461, 5
      %v2464 = vsel %vm2224, %v2459, %v2463
      %v2466 = vshrl.u32 %v2194, 16
      %v2468 = vrot.slane %v2466, 4
      %v2469 = vshll.u32 %v2194, 16
      %v2471 = vrot.slane %v2469, 5
      %v2472 = vor.u32 %v2468, %v2471
      %v2473 = vrot.slane %v2472, 4
      %v2475 = vshll.u32 %v2195, 16
      %v2477 = vrot.slane %v2475, 5
      %v2478 = vsel %vm2224, %v2473, %v2477
      %v2479 = vshrl.u32 %v2195, 16
      %v2481 = vrot.slane %v2479, 4
      %v2482 = vor.u32 %v2481, %v2477
      %v2483 = vrot.slane %v2482, 4
      %v2485 = vshll.u32 %v2216, 16
      %v2487 = vrot.slane %v2485, 5
      %v2488 = vsel %vm2224, %v2483, %v2487
      %v2490 = vshrl.u32 %v2196, 16
      %v2492 = vrot.slane %v2490, 4
      %v2493 = vshll.u32 %v2196, 16
      %v2495 = vrot.slane %v2493, 5
      %v2496 = vor.u32 %v2492, %v2495
      %v2497 = vrot.slane %v2496, 4
      %v2499 = vshll.u32 %v2197, 16
      %v2501 = vrot.slane %v2499, 5
      %v2502 = vsel %vm2224, %v2497, %v2501
      %v2503 = vshrl.u32 %v2197, 16
      %v2505 = vrot.slane %v2503, 4
      %v2506 = vor.u32 %v2505, %v2501
      %v2507 = vrot.slane %v2506, 4
      %v2509 = vshll.u32 %v2217, 16
      %v2511 = vrot.slane %v2509, 5
      %v2512 = vsel %vm2224, %v2507, %v2511
      %v2514 = vshrl.u32 %v2198, 16
      %v2516 = vrot.slane %v2514, 4
      %v2517 = vshll.u32 %v2198, 16
      %v2519 = vrot.slane %v2517, 5
      %v2520 = vor.u32 %v2516, %v2519
      %v2521 = vrot.slane %v2520, 4
      %v2523 = vshll.u32 %v2199, 16
      %v2525 = vrot.slane %v2523, 5
      %v2526 = vsel %vm2224, %v2521, %v2525
      %v2527 = vshrl.u32 %v2199, 16
      %v2529 = vrot.slane %v2527, 4
      %v2530 = vor.u32 %v2529, %v2525
      %v2531 = vrot.slane %v2530, 4
      %v2533 = vshll.u32 %v2218, 16
      %v2535 = vrot.slane %v2533, 5
      %v2536 = vsel %vm2224, %v2531, %v2535
      %v2538 = vshrl.u32 %v2200, 16
      %v2540 = vrot.slane %v2538, 4
      %v2541 = vshll.u32 %v2200, 16
      %v2543 = vrot.slane %v2541, 5
      %v2544 = vor.u32 %v2540, %v2543
      %v2545 = vrot.slane %v2544, 4
      %v2547 = vshll.u32 %v2201, 16
      %v2549 = vrot.slane %v2547, 5
      %v2550 = vsel %vm2224, %v2545, %v2549
      %v2551 = vshrl.u32 %v2201, 16
      %v2553 = vrot.slane %v2551, 4
      %v2554 = vor.u32 %v2553, %v2549
      %v2555 = vrot.slane %v2554, 4
      %v2557 = vshll.u32 %v2219, 16
      %v2559 = vrot.slane %v2557, 5
      %v2560 = vsel %vm2224, %v2555, %v2559
      %v2562 = vshrl.u32 %v2202, 16
      %v2564 = vrot.slane %v2562, 4
      %v2565 = vshll.u32 %v2202, 16
      %v2567 = vrot.slane %v2565, 5
      %v2568 = vor.u32 %v2564, %v2567
      %v2569 = vrot.slane %v2568, 4
      %v2571 = vshll.u32 %v2203, 16
      %v2573 = vrot.slane %v2571, 5
      %v2574 = vsel %vm2224, %v2569, %v2573
      %v2575 = vshrl.u32 %v2203, 16
      %v2577 = vrot.slane %v2575, 4
      %v2578 = vor.u32 %v2577, %v2573
      %v2579 = vrot.slane %v2578, 4
      %v2581 = vshll.u32 %v2220, 16
      %v2583 = vrot.slane %v2581, 5
      %v2584 = vsel %vm2224, %v2579, %v2583
      %v2586 = vshrl.u32 %v2204, 16
      %v2588 = vrot.slane %v2586, 4
      %v2589 = vshll.u32 %v2204, 16
      %v2591 = vrot.slane %v2589, 5
      %v2592 = vor.u32 %v2588, %v2591
      %v2593 = vrot.slane %v2592, 4
      %v2595 = vshll.u32 %v2205, 16
      %v2597 = vrot.slane %v2595, 5
      %v2598 = vsel %vm2224, %v2593, %v2597
      %v2599 = vshrl.u32 %v2205, 16
      %v2601 = vrot.slane %v2599, 4
      %v2602 = vor.u32 %v2601, %v2597
      %v2603 = vrot.slane %v2602, 4
      %v2605 = vshll.u32 %v2221, 16
      %v2607 = vrot.slane %v2605, 5
      %v2608 = vsel %vm2224, %v2603, %v2607
      %v2609 = vunpack.c.l.b16 %v2238
      %v2610 = vunpack.c.l.b16 %v2248
      %v2611 = vunpack.c.l.b16 %v2262
      %v2612 = vunpack.c.l.b16 %v2272
      %v2613 = vunpack.c.l.b16 %v2286
      %v2614 = vunpack.c.l.b16 %v2296
      %v2615 = vunpack.c.l.b16 %v2310
      %v2616 = vunpack.c.l.b16 %v2320
      %v2617 = vunpack.c.l.b16 %v2334
      %v2618 = vunpack.c.l.b16 %v2344
      %v2619 = vunpack.c.l.b16 %v2358
      %v2620 = vunpack.c.l.b16 %v2368
      %v2621 = vunpack.c.l.b16 %v2382
      %v2622 = vunpack.c.l.b16 %v2392
      %v2623 = vunpack.c.l.b16 %v2406
      %v2624 = vunpack.c.l.b16 %v2416
      %v2625 = vunpack.c.l.b16 %v2430
      %v2626 = vunpack.c.l.b16 %v2440
      %v2627 = vunpack.c.l.b16 %v2454
      %v2628 = vunpack.c.l.b16 %v2464
      %v2629 = vunpack.c.l.b16 %v2478
      %v2630 = vunpack.c.l.b16 %v2488
      %v2631 = vunpack.c.l.b16 %v2502
      %v2632 = vunpack.c.l.b16 %v2512
      %v2633 = vunpack.c.l.b16 %v2526
      %v2634 = vunpack.c.l.b16 %v2536
      %v2635 = vunpack.c.l.b16 %v2550
      %v2636 = vunpack.c.l.b16 %v2560
      %v2637 = vunpack.c.l.b16 %v2574
      %v2638 = vunpack.c.l.b16 %v2584
      %v2639 = vunpack.c.l.b16 %v2598
      %v2640 = vunpack.c.l.b16 %v2608
      %v2641 = vpack.c.b16 %v2610, %v2609
      %v2642 = vpack.c.b16 %v2612, %v2611
      %v2643 = vpack.c.b16 %v2614, %v2613
      %v2644 = vpack.c.b16 %v2616, %v2615
      %v2645 = vpack.c.b16 %v2618, %v2617
      %v2646 = vpack.c.b16 %v2620, %v2619
      %v2647 = vpack.c.b16 %v2622, %v2621
      %v2648 = vpack.c.b16 %v2624, %v2623
      %v2649 = vpack.c.b16 %v2626, %v2625
      %v2650 = vpack.c.b16 %v2628, %v2627
      %v2651 = vpack.c.b16 %v2630, %v2629
      %v2652 = vpack.c.b16 %v2632, %v2631
      %v2653 = vpack.c.b16 %v2634, %v2633
      %v2654 = vpack.c.b16 %v2636, %v2635
      %v2655 = vpack.c.b16 %v2638, %v2637
      %v2656 = vpack.c.b16 %v2640, %v2639
      %v2665 = vunpack.c.l.b16 %v2110
      %v2666 = vunpack.c.l.b16 %v2111
      %v2667 = vunpack.c.l.b16 %v2112
      %v2668 = vunpack.c.l.b16 %v2113
      %v2669 = vunpack.c.l.b16 %v2114
      %v2670 = vunpack.c.l.b16 %v2115
      %v2671 = vunpack.c.l.b16 %v2116
      %v2672 = vunpack.c.l.b16 %v2117
      %v2673 = vpack.c.b16 %v2666, %v2665
      %v2674 = vpack.c.b16 %v2668, %v2667
      %v2675 = vpack.c.b16 %v2670, %v2669
      %v2676 = vpack.c.b16 %v2672, %v2671
      %vm2681 = vcmask 523264
      %v2683 = vsel %vm2681, %v2641, 0
      %v2686 = vsel %vm2681, %v2642, 0
      %v2689 = vsel %vm2681, %v2643, 0
      %v2692 = vsel %vm2681, %v2644, 0
      %v2695 = vsel %vm2681, %v2645, 0
      %v2698 = vsel %vm2681, %v2646, 0
      %v2701 = vsel %vm2681, %v2647, 0
      %v2704 = vsel %vm2681, %v2648, 0
      %v2707 = vsel %vm2681, %v2649, 0
      %v2710 = vsel %vm2681, %v2650, 0
      %v2713 = vsel %vm2681, %v2651, 0
      %v2716 = vsel %vm2681, %v2652, 0
      %v2719 = vsel %vm2681, %v2653, 0
      %v2722 = vsel %vm2681, %v2654, 0
      %v2725 = vsel %vm2681, %v2655, 0
      %v2728 = vsel %vm2681, %v2656, 0
      %2730 = vmatprep.subr.bf16.mxu0 0
      %2731 = vmatpush1.bf16.msra.mxu0 %v2673
      %2732 = vmatprep.subr.bf16.mxu0 0
      %2733 = vmatpush1.bf16.msra.mxu0 %v2674
      %2734 = vmatprep.subr.bf16.mxu0 0
      %2735 = vmatpush1.bf16.msra.mxu0 %v2675
      %2736 = vmatprep.subr.bf16.mxu0 0
      %2737 = vmatpush1.bf16.msra.mxu0 %v2676
      %2738 = vmatprep.subr.bf16.mxu0 0
      %2739 = vmatpush1.bf16.msra.mxu0 0
      %2740 = vmatprep.subr.bf16.mxu0 0
      %2741 = vmatpush1.bf16.msra.mxu0 0
      %2742 = vmatprep.subr.bf16.mxu0 0
      %2743 = vmatpush1.bf16.msra.mxu0 0
      %2744 = vmatprep.subr.bf16.mxu0 0
      %2745 = vmatpush1.bf16.msra.mxu0 0
      %2746 = vmatprep.subr.bf16.mxu0 0
      %2747 = vmatpush1.bf16.msra.mxu0 0
      %2748 = vmatprep.subr.bf16.mxu0 0
      %2749 = vmatpush1.bf16.msra.mxu0 0
      %2750 = vmatprep.subr.bf16.mxu0 0
      %2751 = vmatpush1.bf16.msra.mxu0 0
      %2752 = vmatprep.subr.bf16.mxu0 0
      %2753 = vmatpush1.bf16.msra.mxu0 0
      %2754 = vmatprep.subr.bf16.mxu0 0
      %2755 = vmatpush1.bf16.msra.mxu0 0
      %2756 = vmatprep.subr.bf16.mxu0 0
      %2757 = vmatpush1.bf16.msra.mxu0 0
      %2758 = vmatprep.subr.bf16.mxu0 0
      %2759 = vmatpush1.bf16.msra.mxu0 0
      %2760 = vmatprep.subr.bf16.mxu0 0
      %2761 = vmatpush1.bf16.msra.mxu0 0
      %2762 = vmatprep.mubr.bf16.mxu0 0
      %2763 = vmatmul.mubr.bf16.gmra.mrb[0].mxu0 %v2683
      %v2764 = vpop.f32.mrb[0].mxu0
      %v2765 = vadd.f32 0.0, %v2764
      %v2766 = vpop.f32.mrb[0].mxu0
      %v2767 = vpop.f32.mrb[0].mxu0
      %v2768 = vadd.f32 0.0, %v2767
      %v2769 = vpop.f32.mrb[0].mxu0
      %2770 = vmatprep.mubr.bf16.mxu0 0
      %2771 = vmatmul.mubr.bf16.gmra.mrb[0].mxu0 %v2686
      %v2772 = vpop.f32.mrb[0].mxu0
      %v2773 = vadd.f32 0.0, %v2772
      %v2774 = vpop.f32.mrb[0].mxu0
      %v2775 = vpop.f32.mrb[0].mxu0
      %v2776 = vadd.f32 0.0, %v2775
      %v2777 = vpop.f32.mrb[0].mxu0
      %2778 = vmatprep.mubr.bf16.mxu0 0
      %2779 = vmatmul.mubr.bf16.gmra.mrb[0].mxu0 %v2689
      %v2780 = vpop.f32.mrb[0].mxu0
      %v2781 = vadd.f32 0.0, %v2780
      %v2782 = vpop.f32.mrb[0].mxu0
      %v2783 = vpop.f32.mrb[0].mxu0
      %v2784 = vadd.f32 0.0, %v2783
      %v2785 = vpop.f32.mrb[0].mxu0
      %2786 = vmatprep.mubr.bf16.mxu0 0
      %2787 = vmatmul.mubr.bf16.gmra.mrb[0].mxu0 %v2692
      %v2788 = vpop.f32.mrb[0].mxu0
      %v2789 = vadd.f32 0.0, %v2788
      %v2790 = vpop.f32.mrb[0].mxu0
      %v2791 = vpop.f32.mrb[0].mxu0
      %v2792 = vadd.f32 0.0, %v2791
      %v2793 = vpop.f32.mrb[0].mxu0
      %2794 = vmatprep.mubr.bf16.mxu0 0
      %2795 = vmatmul.mubr.bf16.gmra.mrb[0].mxu0 %v2695
      %v2796 = vpop.f32.mrb[0].mxu0
      %v2797 = vadd.f32 0.0, %v2796
      %v2798 = vpop.f32.mrb[0].mxu0
      %v2799 = vpop.f32.mrb[0].mxu0
      %v2800 = vadd.f32 0.0, %v2799
      %v2801 = vpop.f32.mrb[0].mxu0
      %2802 = vmatprep.mubr.bf16.mxu0 0
      %2803 = vmatmul.mubr.bf16.gmra.mrb[0].mxu0 %v2698
      %v2804 = vpop.f32.mrb[0].mxu0
      %v2805 = vadd.f32 0.0, %v2804
      %v2806 = vpop.f32.mrb[0].mxu0
      %v2807 = vpop.f32.mrb[0].mxu0
      %v2808 = vadd.f32 0.0, %v2807
      %v2809 = vpop.f32.mrb[0].mxu0
      %2810 = vmatprep.mubr.bf16.mxu0 0
      %2811 = vmatmul.mubr.bf16.gmra.mrb[0].mxu0 %v2701
      %v2812 = vpop.f32.mrb[0].mxu0
      %v2813 = vadd.f32 0.0, %v2812
      %v2814 = vpop.f32.mrb[0].mxu0
      %v2815 = vpop.f32.mrb[0].mxu0
      %v2816 = vadd.f32 0.0, %v2815
      %v2817 = vpop.f32.mrb[0].mxu0
      %2818 = vmatprep.mubr.bf16.mxu0 0
      %2819 = vmatmul.mubr.bf16.gmra.mrb[0].mxu0 %v2704
      %v2820 = vpop.f32.mrb[0].mxu0
      %v2821 = vadd.f32 0.0, %v2820
      %v2822 = vpop.f32.mrb[0].mxu0
      %v2823 = vpop.f32.mrb[0].mxu0
      %v2824 = vadd.f32 0.0, %v2823
      %v2825 = vpop.f32.mrb[0].mxu0
      %2826 = vmatprep.mubr.bf16.mxu0 0
      %2827 = vmatmul.mubr.bf16.gmra.mrb[0].mxu0 %v2707
      %v2828 = vpop.f32.mrb[0].mxu0
      %v2829 = vadd.f32 0.0, %v2828
      %v2830 = vpop.f32.mrb[0].mxu0
      %v2831 = vpop.f32.mrb[0].mxu0
      %v2832 = vadd.f32 0.0, %v2831
      %v2833 = vpop.f32.mrb[0].mxu0
      %2834 = vmatprep.mubr.bf16.mxu0 0
      %2835 = vmatmul.mubr.bf16.gmra.mrb[0].mxu0 %v2710
      %v2836 = vpop.f32.mrb[0].mxu0
      %v2837 = vadd.f32 0.0, %v2836
      %v2838 = vpop.f32.mrb[0].mxu0
      %v2839 = vpop.f32.mrb[0].mxu0
      %v2840 = vadd.f32 0.0, %v2839
      %v2841 = vpop.f32.mrb[0].mxu0
      %2842 = vmatprep.mubr.bf16.mxu0 0
      %2843 = vmatmul.mubr.bf16.gmra.mrb[0].mxu0 %v2713
      %v2844 = vpop.f32.mrb[0].mxu0
      %v2845 = vadd.f32 0.0, %v2844
      %v2846 = vpop.f32.mrb[0].mxu0
      %v2847 = vpop.f32.mrb[0].mxu0
      %v2848 = vadd.f32 0.0, %v2847
      %v2849 = vpop.f32.mrb[0].mxu0
      %2850 = vmatprep.mubr.bf16.mxu0 0
      %2851 = vmatmul.mubr.bf16.gmra.mrb[0].mxu0 %v2716
      %v2852 = vpop.f32.mrb[0].mxu0
      %v2853 = vadd.f32 0.0, %v2852
      %v2854 = vpop.f32.mrb[0].mxu0
      %v2855 = vpop.f32.mrb[0].mxu0
      %v2856 = vadd.f32 0.0, %v2855
      %v2857 = vpop.f32.mrb[0].mxu0
      %2858 = vmatprep.mubr.bf16.mxu0 0
      %2859 = vmatmul.mubr.bf16.gmra.mrb[0].mxu0 %v2719
      %v2860 = vpop.f32.mrb[0].mxu0
      %v2861 = vadd.f32 0.0, %v2860
      %v2862 = vpop.f32.mrb[0].mxu0
      %v2863 = vpop.f32.mrb[0].mxu0
      %v2864 = vadd.f32 0.0, %v2863
      %v2865 = vpop.f32.mrb[0].mxu0
      %2866 = vmatprep.mubr.bf16.mxu0 0
      %2867 = vmatmul.mubr.bf16.gmra.mrb[0].mxu0 %v2722
      %v2868 = vpop.f32.mrb[0].mxu0
      %v2869 = vadd.f32 0.0, %v2868
      %v2870 = vpop.f32.mrb[0].mxu0
      %v2871 = vpop.f32.mrb[0].mxu0
      %v2872 = vadd.f32 0.0, %v2871
      %v2873 = vpop.f32.mrb[0].mxu0
      %2874 = vmatprep.mubr.bf16.mxu0 0
      %2875 = vmatmul.mubr.bf16.gmra.mrb[0].mxu0 %v2725
      %v2876 = vpop.f32.mrb[0].mxu0
      %v2877 = vadd.f32 0.0, %v2876
      %v2878 = vpop.f32.mrb[0].mxu0
      %v2879 = vpop.f32.mrb[0].mxu0
      %v2880 = vadd.f32 0.0, %v2879
      %v2881 = vpop.f32.mrb[0].mxu0
      %2882 = vmatprep.mubr.bf16.mxu0 0
      %2883 = vmatmul.mubr.bf16.gmra.mrb[0].mxu0 %v2728
      %v2884 = vpop.f32.mrb[0].mxu0
      %v2885 = vadd.f32 0.0, %v2884
      %v2886 = vpop.f32.mrb[0].mxu0
      %v2887 = vpop.f32.mrb[0].mxu0
      %v2888 = vadd.f32 0.0, %v2887
      %v2889 = vpop.f32.mrb[0].mxu0
      %2890 = vdwg.mxu0
      %v2923 = vunpack.c.l.b16 %v2174
      %v2924 = vunpack.c.l.b16 %v2175
      %v2925 = vunpack.c.l.b16 %v2176
      %v2926 = vunpack.c.l.b16 %v2177
      %v2927 = vunpack.c.l.b16 %v2178
      %v2928 = vunpack.c.l.b16 %v2179
      %v2929 = vunpack.c.l.b16 %v2180
      %v2930 = vunpack.c.l.b16 %v2181
      %v2931 = vunpack.c.l.b16 %v2182
      %v2932 = vunpack.c.l.b16 %v2183
      %v2933 = vunpack.c.l.b16 %v2184
      %v2934 = vunpack.c.l.b16 %v2185
      %v2935 = vunpack.c.l.b16 %v2186
      %v2936 = vunpack.c.l.b16 %v2187
      %v2937 = vunpack.c.l.b16 %v2188
      %v2938 = vunpack.c.l.b16 %v2189
      %v2939 = vunpack.c.l.b16 %v2190
      %v2940 = vunpack.c.l.b16 %v2191
      %v2941 = vunpack.c.l.b16 %v2192
      %v2942 = vunpack.c.l.b16 %v2193
      %v2943 = vunpack.c.l.b16 %v2194
      %v2944 = vunpack.c.l.b16 %v2195
      %v2945 = vunpack.c.l.b16 %v2196
      %v2946 = vunpack.c.l.b16 %v2197
      %v2947 = vunpack.c.l.b16 %v2198
      %v2948 = vunpack.c.l.b16 %v2199
      %v2949 = vunpack.c.l.b16 %v2200
      %v2950 = vunpack.c.l.b16 %v2201
      %v2951 = vunpack.c.l.b16 %v2202
      %v2952 = vunpack.c.l.b16 %v2203
      %v2953 = vunpack.c.l.b16 %v2204
      %v2954 = vunpack.c.l.b16 %v2205
      %v2955 = vpack.c.b16 %v2924, %v2923
      %v2956 = vpack.c.b16 %v2926, %v2925
      %v2957 = vpack.c.b16 %v2928, %v2927
      %v2958 = vpack.c.b16 %v2930, %v2929
      %v2959 = vpack.c.b16 %v2932, %v2931
      %v2960 = vpack.c.b16 %v2934, %v2933
      %v2961 = vpack.c.b16 %v2936, %v2935
      %v2962 = vpack.c.b16 %v2938, %v2937
      %v2963 = vpack.c.b16 %v2940, %v2939
      %v2964 = vpack.c.b16 %v2942, %v2941
      %v2965 = vpack.c.b16 %v2944, %v2943
      %v2966 = vpack.c.b16 %v2946, %v2945
      %v2967 = vpack.c.b16 %v2948, %v2947
      %v2968 = vpack.c.b16 %v2950, %v2949
      %v2969 = vpack.c.b16 %v2952, %v2951
      %v2970 = vpack.c.b16 %v2954, %v2953
      %v2979 = vunpack.c.l.b16 %v2102
      %v2980 = vunpack.c.l.b16 %v2103
      %v2981 = vunpack.c.l.b16 %v2104
      %v2982 = vunpack.c.l.b16 %v2105
      %v2983 = vunpack.c.l.b16 %v2106
      %v2984 = vunpack.c.l.b16 %v2107
      %v2985 = vunpack.c.l.b16 %v2108
      %v2986 = vunpack.c.l.b16 %v2109
      %v2987 = vpack.c.b16 %v2980, %v2979
      %v2988 = vpack.c.b16 %v2982, %v2981
      %v2989 = vpack.c.b16 %v2984, %v2983
      %v2990 = vpack.c.b16 %v2986, %v2985
      %v2996 = vsel %vm2681, %v2955, 0
      %v2999 = vsel %vm2681, %v2956, 0
      %v3002 = vsel %vm2681, %v2957, 0
      %v3005 = vsel %vm2681, %v2958, 0
      %v3008 = vsel %vm2681, %v2959, 0
      %v3011 = vsel %vm2681, %v2960, 0
      %v3014 = vsel %vm2681, %v2961, 0
      %v3017 = vsel %vm2681, %v2962, 0
      %v3020 = vsel %vm2681, %v2963, 0
      %v3023 = vsel %vm2681, %v2964, 0
      %v3026 = vsel %vm2681, %v2965, 0
      %v3029 = vsel %vm2681, %v2966, 0
      %v3032 = vsel %vm2681, %v2967, 0
      %v3035 = vsel %vm2681, %v2968, 0
      %v3038 = vsel %vm2681, %v2969, 0
      %v3041 = vsel %vm2681, %v2970, 0
      %3043 = vmatprep.subr.bf16.mxu0 0
      %3044 = vmatpush1.bf16.msra.mxu0 %v2987
      %3045 = vmatprep.subr.bf16.mxu0 0
      %3046 = vmatpush1.bf16.msra.mxu0 %v2988
      %3047 = vmatprep.subr.bf16.mxu0 0
      %3048 = vmatpush1.bf16.msra.mxu0 %v2989
      %3049 = vmatprep.subr.bf16.mxu0 0
      %3050 = vmatpush1.bf16.msra.mxu0 %v2990
      %3051 = vmatprep.subr.bf16.mxu0 0
      %3052 = vmatpush1.bf16.msra.mxu0 0
      %3053 = vmatprep.subr.bf16.mxu0 0
      %3054 = vmatpush1.bf16.msra.mxu0 0
      %3055 = vmatprep.subr.bf16.mxu0 0
      %3056 = vmatpush1.bf16.msra.mxu0 0
      %3057 = vmatprep.subr.bf16.mxu0 0
      %3058 = vmatpush1.bf16.msra.mxu0 0
      %3059 = vmatprep.subr.bf16.mxu0 0
      %3060 = vmatpush1.bf16.msra.mxu0 0
      %3061 = vmatprep.subr.bf16.mxu0 0
      %3062 = vmatpush1.bf16.msra.mxu0 0
      %3063 = vmatprep.subr.bf16.mxu0 0
      %3064 = vmatpush1.bf16.msra.mxu0 0
      %3065 = vmatprep.subr.bf16.mxu0 0
      %3066 = vmatpush1.bf16.msra.mxu0 0
      %3067 = vmatprep.subr.bf16.mxu0 0
      %3068 = vmatpush1.bf16.msra.mxu0 0
      %3069 = vmatprep.subr.bf16.mxu0 0
      %3070 = vmatpush1.bf16.msra.mxu0 0
      %3071 = vmatprep.subr.bf16.mxu0 0
      %3072 = vmatpush1.bf16.msra.mxu0 0
      %3073 = vmatprep.subr.bf16.mxu0 0
      %3074 = vmatpush1.bf16.msra.mxu0 0
      %3075 = vmatprep.mubr.bf16.mxu0 0
      %3076 = vmatmul.mubr.bf16.gmra.mrb[0].mxu0 %v2996
      %v3077 = vpop.f32.mrb[0].mxu0
      %v3078 = vadd.f32 %v2765, %v3077
      %v3079 = vpop.f32.mrb[0].mxu0
      %v3080 = vpop.f32.mrb[0].mxu0
      %v3081 = vadd.f32 %v2768, %v3080
      %v3082 = vpop.f32.mrb[0].mxu0
      %3083 = vmatprep.mubr.bf16.mxu0 0
      %3084 = vmatmul.mubr.bf16.gmra.mrb[0].mxu0 %v2999
      %v3085 = vpop.f32.mrb[0].mxu0
      %v3086 = vadd.f32 %v2773, %v3085
      %v3087 = vpop.f32.mrb[0].mxu0
      %v3088 = vpop.f32.mrb[0].mxu0
      %v3089 = vadd.f32 %v2776, %v3088
      %v3090 = vpop.f32.mrb[0].mxu0
      %3091 = vmatprep.mubr.bf16.mxu0 0
      %3092 = vmatmul.mubr.bf16.gmra.mrb[0].mxu0 %v3002
      %v3093 = vpop.f32.mrb[0].mxu0
      %v3094 = vadd.f32 %v2781, %v3093
      %v3095 = vpop.f32.mrb[0].mxu0
      %v3096 = vpop.f32.mrb[0].mxu0
      %v3097 = vadd.f32 %v2784, %v3096
      %v3098 = vpop.f32.mrb[0].mxu0
      %3099 = vmatprep.mubr.bf16.mxu0 0
      %3100 = vmatmul.mubr.bf16.gmra.mrb[0].mxu0 %v3005
      %v3101 = vpop.f32.mrb[0].mxu0
      %v3102 = vadd.f32 %v2789, %v3101
      %v3103 = vpop.f32.mrb[0].mxu0
      %v3104 = vpop.f32.mrb[0].mxu0
      %v3105 = vadd.f32 %v2792, %v3104
      %v3106 = vpop.f32.mrb[0].mxu0
      %3107 = vmatprep.mubr.bf16.mxu0 0
      %3108 = vmatmul.mubr.bf16.gmra.mrb[0].mxu0 %v3008
      %v3109 = vpop.f32.mrb[0].mxu0
      %v3110 = vadd.f32 %v2797, %v3109
      %v3111 = vpop.f32.mrb[0].mxu0
      %v3112 = vpop.f32.mrb[0].mxu0
      %v3113 = vadd.f32 %v2800, %v3112
      %v3114 = vpop.f32.mrb[0].mxu0
      %3115 = vmatprep.mubr.bf16.mxu0 0
      %3116 = vmatmul.mubr.bf16.gmra.mrb[0].mxu0 %v3011
      %v3117 = vpop.f32.mrb[0].mxu0
      %v3118 = vadd.f32 %v2805, %v3117
      %v3119 = vpop.f32.mrb[0].mxu0
      %v3120 = vpop.f32.mrb[0].mxu0
      %v3121 = vadd.f32 %v2808, %v3120
      %v3122 = vpop.f32.mrb[0].mxu0
      %3123 = vmatprep.mubr.bf16.mxu0 0
      %3124 = vmatmul.mubr.bf16.gmra.mrb[0].mxu0 %v3014
      %v3125 = vpop.f32.mrb[0].mxu0
      %v3126 = vadd.f32 %v2813, %v3125
      %v3127 = vpop.f32.mrb[0].mxu0
      %v3128 = vpop.f32.mrb[0].mxu0
      %v3129 = vadd.f32 %v2816, %v3128
      %v3130 = vpop.f32.mrb[0].mxu0
      %3131 = vmatprep.mubr.bf16.mxu0 0
      %3132 = vmatmul.mubr.bf16.gmra.mrb[0].mxu0 %v3017
      %v3133 = vpop.f32.mrb[0].mxu0
      %v3134 = vadd.f32 %v2821, %v3133
      %v3135 = vpop.f32.mrb[0].mxu0
      %v3136 = vpop.f32.mrb[0].mxu0
      %v3137 = vadd.f32 %v2824, %v3136
      %v3138 = vpop.f32.mrb[0].mxu0
      %3139 = vmatprep.mubr.bf16.mxu0 0
      %3140 = vmatmul.mubr.bf16.gmra.mrb[0].mxu0 %v3020
      %v3141 = vpop.f32.mrb[0].mxu0
      %v3142 = vadd.f32 %v2829, %v3141
      %v3143 = vpop.f32.mrb[0].mxu0
      %v3144 = vpop.f32.mrb[0].mxu0
      %v3145 = vadd.f32 %v2832, %v3144
      %v3146 = vpop.f32.mrb[0].mxu0
      %3147 = vmatprep.mubr.bf16.mxu0 0
      %3148 = vmatmul.mubr.bf16.gmra.mrb[0].mxu0 %v3023
      %v3149 = vpop.f32.mrb[0].mxu0
      %v3150 = vadd.f32 %v2837, %v3149
      %v3151 = vpop.f32.mrb[0].mxu0
      %v3152 = vpop.f32.mrb[0].mxu0
      %v3153 = vadd.f32 %v2840, %v3152
      %v3154 = vpop.f32.mrb[0].mxu0
      %3155 = vmatprep.mubr.bf16.mxu0 0
      %3156 = vmatmul.mubr.bf16.gmra.mrb[0].mxu0 %v3026
      %v3157 = vpop.f32.mrb[0].mxu0
      %v3158 = vadd.f32 %v2845, %v3157
      %v3159 = vpop.f32.mrb[0].mxu0
      %v3160 = vpop.f32.mrb[0].mxu0
      %v3161 = vadd.f32 %v2848, %v3160
      %v3162 = vpop.f32.mrb[0].mxu0
      %3163 = vmatprep.mubr.bf16.mxu0 0
      %3164 = vmatmul.mubr.bf16.gmra.mrb[0].mxu0 %v3029
      %v3165 = vpop.f32.mrb[0].mxu0
      %v3166 = vadd.f32 %v2853, %v3165
      %v3167 = vpop.f32.mrb[0].mxu0
      %v3168 = vpop.f32.mrb[0].mxu0
      %v3169 = vadd.f32 %v2856, %v3168
      %v3170 = vpop.f32.mrb[0].mxu0
      %3171 = vmatprep.mubr.bf16.mxu0 0
      %3172 = vmatmul.mubr.bf16.gmra.mrb[0].mxu0 %v3032
      %v3173 = vpop.f32.mrb[0].mxu0
      %v3174 = vadd.f32 %v2861, %v3173
      %v3175 = vpop.f32.mrb[0].mxu0
      %v3176 = vpop.f32.mrb[0].mxu0
      %v3177 = vadd.f32 %v2864, %v3176
      %v3178 = vpop.f32.mrb[0].mxu0
      %3179 = vmatprep.mubr.bf16.mxu0 0
      %3180 = vmatmul.mubr.bf16.gmra.mrb[0].mxu0 %v3035
      %v3181 = vpop.f32.mrb[0].mxu0
      %v3182 = vadd.f32 %v2869, %v3181
      %v3183 = vpop.f32.mrb[0].mxu0
      %v3184 = vpop.f32.mrb[0].mxu0
      %v3185 = vadd.f32 %v2872, %v3184
      %v3186 = vpop.f32.mrb[0].mxu0
      %3187 = vmatprep.mubr.bf16.mxu0 0
      %3188 = vmatmul.mubr.bf16.gmra.mrb[0].mxu0 %v3038
      %v3189 = vpop.f32.mrb[0].mxu0
      %v3190 = vadd.f32 %v2877, %v3189
      %v3191 = vpop.f32.mrb[0].mxu0
      %v3192 = vpop.f32.mrb[0].mxu0
      %v3193 = vadd.f32 %v2880, %v3192
      %v3194 = vpop.f32.mrb[0].mxu0
      %3195 = vmatprep.mubr.bf16.mxu0 0
      %3196 = vmatmul.mubr.bf16.gmra.mrb[0].mxu0 %v3041
      %v3197 = vpop.f32.mrb[0].mxu0
      %v3198 = vadd.f32 %v2885, %v3197
      %v3199 = vpop.f32.mrb[0].mxu0
      %v3200 = vpop.f32.mrb[0].mxu0
      %v3201 = vadd.f32 %v2888, %v3200
      %v3202 = vpop.f32.mrb[0].mxu0
      %3203 = vdwg.mxu0
      %v3204 = vld [vmem:[#allocation2] sm:$0xe]
      %v3205 = vld [vmem:[#allocation2 + $0xc] sm:$0xe]
      %v3206 = vld [vmem:[#allocation2 + $0x18] sm:$0xe]
      %v3207 = vld [vmem:[#allocation2 + $0x24] sm:$0xe]
      %v3208 = vld [vmem:[#allocation2 + $0x30] sm:$0xe]
      %v3209 = vld [vmem:[#allocation2 + $0x3c] sm:$0xe]
      %v3210 = vld [vmem:[#allocation2 + $0x48] sm:$0xe]
      %v3211 = vld [vmem:[#allocation2 + $0x54] sm:$0xe]
      %v3212 = vld [vmem:[#allocation2 + $0x60] sm:$0xe]
      %v3213 = vld [vmem:[#allocation2 + $0x6c] sm:$0xe]
      %v3214 = vld [vmem:[#allocation2 + $0x78] sm:$0xe]
      %v3215 = vld [vmem:[#allocation2 + $0x84] sm:$0xe]
      %v3216 = vld [vmem:[#allocation2 + $0x90] sm:$0xe]
      %v3217 = vld [vmem:[#allocation2 + $0x9c] sm:$0xe]
      %v3218 = vld [vmem:[#allocation2 + $0xa8] sm:$0xe]
      %v3219 = vld [vmem:[#allocation2 + $0xb4] sm:$0xe]
      %vm3252 = vcmask 1042432
      %vm3253 = vcmask 1046532
      %vm3254 = vmor %vm3252, %vm3253
      %v3255 = vrot.slane %v3204, 5
      %v3256 = vrot.slane %v3255, 4
      %v3257 = vrot.slane %v2175, 5
      %v3258 = vsel %vm3254, %v3256, %v3257
      %v3259 = vrot.slane %v3257, 4
      %v3260 = vrot.slane %v2206, 5
      %v3261 = vsel %vm3254, %v3259, %v3260
      %v3262 = vrot.slane %v3205, 5
      %v3263 = vrot.slane %v3262, 4
      %v3264 = vrot.slane %v2177, 5
      %v3265 = vsel %vm3254, %v3263, %v3264
      %v3266 = vrot.slane %v3264, 4
      %v3267 = vrot.slane %v2207, 5
      %v3268 = vsel %vm3254, %v3266, %v3267
      %v3269 = vrot.slane %v3206, 5
      %v3270 = vrot.slane %v3269, 4
      %v3271 = vrot.slane %v2179, 5
      %v3272 = vsel %vm3254, %v3270, %v3271
      %v3273 = vrot.slane %v3271, 4
      %v3274 = vrot.slane %v2208, 5
      %v3275 = vsel %vm3254, %v3273, %v3274
      %v3276 = vrot.slane %v3207, 5
      %v3277 = vrot.slane %v3276, 4
      %v3278 = vrot.slane %v2181, 5
      %v3279 = vsel %vm3254, %v3277, %v3278
      %v3280 = vrot.slane %v3278, 4
      %v3281 = vrot.slane %v2209, 5
      %v3282 = vsel %vm3254, %v3280, %v3281
      %v3283 = vrot.slane %v3208, 5
      %v3284 = vrot.slane %v3283, 4
      %v3285 = vrot.slane %v2183, 5
      %v3286 = vsel %vm3254, %v3284, %v3285
      %v3287 = vrot.slane %v3285, 4
      %v3288 = vrot.slane %v2210, 5
      %v3289 = vsel %vm3254, %v3287, %v3288
      %v3290 = vrot.slane %v3209, 5
      %v3291 = vrot.slane %v3290, 4
      %v3292 = vrot.slane %v2185, 5
      %v3293 = vsel %vm3254, %v3291, %v3292
      %v3294 = vrot.slane %v3292, 4
      %v3295 = vrot.slane %v2211, 5
      %v3296 = vsel %vm3254, %v3294, %v3295
      %v3297 = vrot.slane %v3210, 5
      %v3298 = vrot.slane %v3297, 4
      %v3299 = vrot.slane %v2187, 5
      %v3300 = vsel %vm3254, %v3298, %v3299
      %v3301 = vrot.slane %v3299, 4
      %v3302 = vrot.slane %v2212, 5
      %v3303 = vsel %vm3254, %v3301, %v3302
      %v3304 = vrot.slane %v3211, 5
      %v3305 = vrot.slane %v3304, 4
      %v3306 = vrot.slane %v2189, 5
      %v3307 = vsel %vm3254, %v3305, %v3306
      %v3308 = vrot.slane %v3306, 4
      %v3309 = vrot.slane %v2213, 5
      %v3310 = vsel %vm3254, %v3308, %v3309
      %v3311 = vrot.slane %v3212, 5
      %v3312 = vrot.slane %v3311, 4
      %v3313 = vrot.slane %v2191, 5
      %v3314 = vsel %vm3254, %v3312, %v3313
      %v3315 = vrot.slane %v3313, 4
      %v3316 = vrot.slane %v2214, 5
      %v3317 = vsel %vm3254, %v3315, %v3316
      %v3318 = vrot.slane %v3213, 5
      %v3319 = vrot.slane %v3318, 4
      %v3320 = vrot.slane %v2193, 5
      %v3321 = vsel %vm3254, %v3319, %v3320
      %v3322 = vrot.slane %v3320, 4
      %v3323 = vrot.slane %v2215, 5
      %v3324 = vsel %vm3254, %v3322, %v3323
      %v3325 = vrot.slane %v3214, 5
      %v3326 = vrot.slane %v3325, 4
      %v3327 = vrot.slane %v2195, 5
      %v3328 = vsel %vm3254, %v3326, %v3327
      %v3329 = vrot.slane %v3327, 4
      %v3330 = vrot.slane %v2216, 5
      %v3331 = vsel %vm3254, %v3329, %v3330
      %v3332 = vrot.slane %v3215, 5
      %v3333 = vrot.slane %v3332, 4
      %v3334 = vrot.slane %v2197, 5
      %v3335 = vsel %vm3254, %v3333, %v3334
      %v3336 = vrot.slane %v3334, 4
      %v3337 = vrot.slane %v2217, 5
      %v3338 = vsel %vm3254, %v3336, %v3337
      %v3339 = vrot.slane %v3216, 5
      %v3340 = vrot.slane %v3339, 4
      %v3341 = vrot.slane %v2199, 5
      %v3342 = vsel %vm3254, %v3340, %v3341
      %v3343 = vrot.slane %v3341, 4
      %v3344 = vrot.slane %v2218, 5
      %v3345 = vsel %vm3254, %v3343, %v3344
      %v3346 = vrot.slane %v3217, 5
      %v3347 = vrot.slane %v3346, 4
      %v3348 = vrot.slane %v2201, 5
      %v3349 = vsel %vm3254, %v3347, %v3348
      %v3350 = vrot.slane %v3348, 4
      %v3351 = vrot.slane %v2219, 5
      %v3352 = vsel %vm3254, %v3350, %v3351
      %v3353 = vrot.slane %v3218, 5
      %v3354 = vrot.slane %v3353, 4
      %v3355 = vrot.slane %v2203, 5
      %v3356 = vsel %vm3254, %v3354, %v3355
      %v3357 = vrot.slane %v3355, 4
      %v3358 = vrot.slane %v2220, 5
      %v3359 = vsel %vm3254, %v3357, %v3358
      %v3360 = vrot.slane %v3219, 5
      %v3361 = vrot.slane %v3360, 4
      %v3362 = vrot.slane %v2205, 5
      %v3363 = vsel %vm3254, %v3361, %v3362
      %v3364 = vrot.slane %v3362, 4
      %v3365 = vrot.slane %v2221, 5
      %v3366 = vsel %vm3254, %v3364, %v3365
      %v3367 = vunpack.c.l.b16 %v3258
      %v3368 = vunpack.c.l.b16 %v3261
      %v3369 = vunpack.c.l.b16 %v3265
      %v3370 = vunpack.c.l.b16 %v3268
      %v3371 = vunpack.c.l.b16 %v3272
      %v3372 = vunpack.c.l.b16 %v3275
      %v3373 = vunpack.c.l.b16 %v3279
      %v3374 = vunpack.c.l.b16 %v3282
      %v3375 = vunpack.c.l.b16 %v3286
      %v3376 = vunpack.c.l.b16 %v3289
      %v3377 = vunpack.c.l.b16 %v3293
      %v3378 = vunpack.c.l.b16 %v3296
      %v3379 = vunpack.c.l.b16 %v3300
      %v3380 = vunpack.c.l.b16 %v3303
      %v3381 = vunpack.c.l.b16 %v3307
      %v3382 = vunpack.c.l.b16 %v3310
      %v3383 = vunpack.c.l.b16 %v3314
      %v3384 = vunpack.c.l.b16 %v3317
      %v3385 = vunpack.c.l.b16 %v3321
      %v3386 = vunpack.c.l.b16 %v3324
      %v3387 = vunpack.c.l.b16 %v3328
      %v3388 = vunpack.c.l.b16 %v3331
      %v3389 = vunpack.c.l.b16 %v3335
      %v3390 = vunpack.c.l.b16 %v3338
      %v3391 = vunpack.c.l.b16 %v3342
      %v3392 = vunpack.c.l.b16 %v3345
      %v3393 = vunpack.c.l.b16 %v3349
      %v3394 = vunpack.c.l.b16 %v3352
      %v3395 = vunpack.c.l.b16 %v3356
      %v3396 = vunpack.c.l.b16 %v3359
      %v3397 = vunpack.c.l.b16 %v3363
      %v3398 = vunpack.c.l.b16 %v3366
      %v3399 = vpack.c.b16 %v3368, %v3367
      %v3400 = vpack.c.b16 %v3370, %v3369
      %v3401 = vpack.c.b16 %v3372, %v3371
      %v3402 = vpack.c.b16 %v3374, %v3373
      %v3403 = vpack.c.b16 %v3376, %v3375
      %v3404 = vpack.c.b16 %v3378, %v3377
      %v3405 = vpack.c.b16 %v3380, %v3379
      %v3406 = vpack.c.b16 %v3382, %v3381
      %v3407 = vpack.c.b16 %v3384, %v3383
      %v3408 = vpack.c.b16 %v3386, %v3385
      %v3409 = vpack.c.b16 %v3388, %v3387
      %v3410 = vpack.c.b16 %v3390, %v3389
      %v3411 = vpack.c.b16 %v3392, %v3391
      %v3412 = vpack.c.b16 %v3394, %v3393
      %v3413 = vpack.c.b16 %v3396, %v3395
      %v3414 = vpack.c.b16 %v3398, %v3397
      %v3423 = vunpack.c.l.b16 %v2118
      %v3424 = vunpack.c.l.b16 %v2119
      %v3425 = vunpack.c.l.b16 %v2120
      %v3426 = vunpack.c.l.b16 %v2121
      %v3427 = vunpack.c.l.b16 %v2122
      %v3428 = vunpack.c.l.b16 %v2123
      %v3429 = vunpack.c.l.b16 %v2124
      %v3430 = vunpack.c.l.b16 %v2125
      %v3431 = vpack.c.b16 %v3424, %v3423
      %v3432 = vpack.c.b16 %v3426, %v3425
      %v3433 = vpack.c.b16 %v3428, %v3427
      %v3434 = vpack.c.b16 %v3430, %v3429
      %v3440 = vsel %vm2681, %v3399, 0
      %v3443 = vsel %vm2681, %v3400, 0
      %v3446 = vsel %vm2681, %v3401, 0
      %v3449 = vsel %vm2681, %v3402, 0
      %v3452 = vsel %vm2681, %v3403, 0
      %v3455 = vsel %vm2681, %v3404, 0
      %v3458 = vsel %vm2681, %v3405, 0
      %v3461 = vsel %vm2681, %v3406, 0
      %v3464 = vsel %vm2681, %v3407, 0
      %v3467 = vsel %vm2681, %v3408, 0
      %v3470 = vsel %vm2681, %v3409, 0
      %v3473 = vsel %vm2681, %v3410, 0
      %v3476 = vsel %vm2681, %v3411, 0
      %v3479 = vsel %vm2681, %v3412, 0
      %v3482 = vsel %vm2681, %v3413, 0
      %v3485 = vsel %vm2681, %v3414, 0
      %3487 = vmatprep.subr.bf16.mxu0 0
      %3488 = vmatpush1.bf16.msra.mxu0 %v3431
      %3489 = vmatprep.subr.bf16.mxu0 0
      %3490 = vmatpush1.bf16.msra.mxu0 %v3432
      %3491 = vmatprep.subr.bf16.mxu0 0
      %3492 = vmatpush1.bf16.msra.mxu0 %v3433
      %3493 = vmatprep.subr.bf16.mxu0 0
      %3494 = vmatpush1.bf16.msra.mxu0 %v3434
      %3495 = vmatprep.subr.bf16.mxu0 0
      %3496 = vmatpush1.bf16.msra.mxu0 0
      %3497 = vmatprep.subr.bf16.mxu0 0
      %3498 = vmatpush1.bf16.msra.mxu0 0
      %3499 = vmatprep.subr.bf16.mxu0 0
      %3500 = vmatpush1.bf16.msra.mxu0 0
      %3501 = vmatprep.subr.bf16.mxu0 0
      %3502 = vmatpush1.bf16.msra.mxu0 0
      %3503 = vmatprep.subr.bf16.mxu0 0
      %3504 = vmatpush1.bf16.msra.mxu0 0
      %3505 = vmatprep.subr.bf16.mxu0 0
      %3506 = vmatpush1.bf16.msra.mxu0 0
      %3507 = vmatprep.subr.bf16.mxu0 0
      %3508 = vmatpush1.bf16.msra.mxu0 0
      %3509 = vmatprep.subr.bf16.mxu0 0
      %3510 = vmatpush1.bf16.msra.mxu0 0
      %3511 = vmatprep.subr.bf16.mxu0 0
      %3512 = vmatpush1.bf16.msra.mxu0 0
      %3513 = vmatprep.subr.bf16.mxu0 0
      %3514 = vmatpush1.bf16.msra.mxu0 0
      %3515 = vmatprep.subr.bf16.mxu0 0
      %3516 = vmatpush1.bf16.msra.mxu0 0
      %3517 = vmatprep.subr.bf16.mxu0 0
      %3518 = vmatpush1.bf16.msra.mxu0 0
      %3519 = vmatprep.mubr.bf16.mxu0 0
      %3520 = vmatmul.mubr.bf16.gmra.mrb[0].mxu0 %v3440
      %v3521 = vpop.f32.mrb[0].mxu0
      %v3522 = vadd.f32 0.0, %v3521
      %v3523 = vpop.f32.mrb[0].mxu0
      %v3524 = vpop.f32.mrb[0].mxu0
      %v3525 = vadd.f32 0.0, %v3524
      %v3526 = vpop.f32.mrb[0].mxu0
      %3527 = vmatprep.mubr.bf16.mxu0 0
      %3528 = vmatmul.mubr.bf16.gmra.mrb[0].mxu0 %v3443
      %v3529 = vpop.f32.mrb[0].mxu0
      %v3530 = vadd.f32 0.0, %v3529
      %v3531 = vpop.f32.mrb[0].mxu0
      %v3532 = vpop.f32.mrb[0].mxu0
      %v3533 = vadd.f32 0.0, %v3532
      %v3534 = vpop.f32.mrb[0].mxu0
      %3535 = vmatprep.mubr.bf16.mxu0 0
      %3536 = vmatmul.mubr.bf16.gmra.mrb[0].mxu0 %v3446
      %v3537 = vpop.f32.mrb[0].mxu0
      %v3538 = vadd.f32 0.0, %v3537
      %v3539 = vpop.f32.mrb[0].mxu0
      %v3540 = vpop.f32.mrb[0].mxu0
      %v3541 = vadd.f32 0.0, %v3540
      %v3542 = vpop.f32.mrb[0].mxu0
      %3543 = vmatprep.mubr.bf16.mxu0 0
      %3544 = vmatmul.mubr.bf16.gmra.mrb[0].mxu0 %v3449
      %v3545 = vpop.f32.mrb[0].mxu0
      %v3546 = vadd.f32 0.0, %v3545
      %v3547 = vpop.f32.mrb[0].mxu0
      %v3548 = vpop.f32.mrb[0].mxu0
      %v3549 = vadd.f32 0.0, %v3548
      %v3550 = vpop.f32.mrb[0].mxu0
      %3551 = vmatprep.mubr.bf16.mxu0 0
      %3552 = vmatmul.mubr.bf16.gmra.mrb[0].mxu0 %v3452
      %v3553 = vpop.f32.mrb[0].mxu0
      %v3554 = vadd.f32 0.0, %v3553
      %v3555 = vpop.f32.mrb[0].mxu0
      %v3556 = vpop.f32.mrb[0].mxu0
      %v3557 = vadd.f32 0.0, %v3556
      %v3558 = vpop.f32.mrb[0].mxu0
      %3559 = vmatprep.mubr.bf16.mxu0 0
      %3560 = vmatmul.mubr.bf16.gmra.mrb[0].mxu0 %v3455
      %v3561 = vpop.f32.mrb[0].mxu0
      %v3562 = vadd.f32 0.0, %v3561
      %v3563 = vpop.f32.mrb[0].mxu0
      %v3564 = vpop.f32.mrb[0].mxu0
      %v3565 = vadd.f32 0.0, %v3564
      %v3566 = vpop.f32.mrb[0].mxu0
      %3567 = vmatprep.mubr.bf16.mxu0 0
      %3568 = vmatmul.mubr.bf16.gmra.mrb[0].mxu0 %v3458
      %v3569 = vpop.f32.mrb[0].mxu0
      %v3570 = vadd.f32 0.0, %v3569
      %v3571 = vpop.f32.mrb[0].mxu0
      %v3572 = vpop.f32.mrb[0].mxu0
      %v3573 = vadd.f32 0.0, %v3572
      %v3574 = vpop.f32.mrb[0].mxu0
      %3575 = vmatprep.mubr.bf16.mxu0 0
      %3576 = vmatmul.mubr.bf16.gmra.mrb[0].mxu0 %v3461
      %v3577 = vpop.f32.mrb[0].mxu0
      %v3578 = vadd.f32 0.0, %v3577
      %v3579 = vpop.f32.mrb[0].mxu0
      %v3580 = vpop.f32.mrb[0].mxu0
      %v3581 = vadd.f32 0.0, %v3580
      %v3582 = vpop.f32.mrb[0].mxu0
      %3583 = vmatprep.mubr.bf16.mxu0 0
      %3584 = vmatmul.mubr.bf16.gmra.mrb[0].mxu0 %v3464
      %v3585 = vpop.f32.mrb[0].mxu0
      %v3586 = vadd.f32 0.0, %v3585
      %v3587 = vpop.f32.mrb[0].mxu0
      %v3588 = vpop.f32.mrb[0].mxu0
      %v3589 = vadd.f32 0.0, %v3588
      %v3590 = vpop.f32.mrb[0].mxu0
      %3591 = vmatprep.mubr.bf16.mxu0 0
      %3592 = vmatmul.mubr.bf16.gmra.mrb[0].mxu0 %v3467
      %v3593 = vpop.f32.mrb[0].mxu0
      %v3594 = vadd.f32 0.0, %v3593
      %v3595 = vpop.f32.mrb[0].mxu0
      %v3596 = vpop.f32.mrb[0].mxu0
      %v3597 = vadd.f32 0.0, %v3596
      %v3598 = vpop.f32.mrb[0].mxu0
      %3599 = vmatprep.mubr.bf16.mxu0 0
      %3600 = vmatmul.mubr.bf16.gmra.mrb[0].mxu0 %v3470
      %v3601 = vpop.f32.mrb[0].mxu0
      %v3602 = vadd.f32 0.0, %v3601
      %v3603 = vpop.f32.mrb[0].mxu0
      %v3604 = vpop.f32.mrb[0].mxu0
      %v3605 = vadd.f32 0.0, %v3604
      %v3606 = vpop.f32.mrb[0].mxu0
      %3607 = vmatprep.mubr.bf16.mxu0 0
      %3608 = vmatmul.mubr.bf16.gmra.mrb[0].mxu0 %v3473
      %v3609 = vpop.f32.mrb[0].mxu0
      %v3610 = vadd.f32 0.0, %v3609
      %v3611 = vpop.f32.mrb[0].mxu0
      %v3612 = vpop.f32.mrb[0].mxu0
      %v3613 = vadd.f32 0.0, %v3612
      %v3614 = vpop.f32.mrb[0].mxu0
      %3615 = vmatprep.mubr.bf16.mxu0 0
      %3616 = vmatmul.mubr.bf16.gmra.mrb[0].mxu0 %v3476
      %v3617 = vpop.f32.mrb[0].mxu0
      %v3618 = vadd.f32 0.0, %v3617
      %v3619 = vpop.f32.mrb[0].mxu0
      %v3620 = vpop.f32.mrb[0].mxu0
      %v3621 = vadd.f32 0.0, %v3620
      %v3622 = vpop.f32.mrb[0].mxu0
      %3623 = vmatprep.mubr.bf16.mxu0 0
      %3624 = vmatmul.mubr.bf16.gmra.mrb[0].mxu0 %v3479
      %v3625 = vpop.f32.mrb[0].mxu0
      %v3626 = vadd.f32 0.0, %v3625
      %v3627 = vpop.f32.mrb[0].mxu0
      %v3628 = vpop.f32.mrb[0].mxu0
      %v3629 = vadd.f32 0.0, %v3628
      %v3630 = vpop.f32.mrb[0].mxu0
      %3631 = vmatprep.mubr.bf16.mxu0 0
      %3632 = vmatmul.mubr.bf16.gmra.mrb[0].mxu0 %v3482
      %v3633 = vpop.f32.mrb[0].mxu0
      %v3634 = vadd.f32 0.0, %v3633
      %v3635 = vpop.f32.mrb[0].mxu0
      %v3636 = vpop.f32.mrb[0].mxu0
      %v3637 = vadd.f32 0.0, %v3636
      %v3638 = vpop.f32.mrb[0].mxu0
      %3639 = vmatprep.mubr.bf16.mxu0 0
      %3640 = vmatmul.mubr.bf16.gmra.mrb[0].mxu0 %v3485
      %v3641 = vpop.f32.mrb[0].mxu0
      %v3642 = vadd.f32 0.0, %v3641
      %v3643 = vpop.f32.mrb[0].mxu0
      %v3644 = vpop.f32.mrb[0].mxu0
      %v3645 = vadd.f32 0.0, %v3644
      %v3646 = vpop.f32.mrb[0].mxu0
      %3647 = vdwg.mxu0
      %v3648 = vadd.f32 %v3078, %v3522
      %v3649 = vadd.f32 %v3081, %v3525
      %v3650 = vadd.f32 %v3086, %v3530
      %v3651 = vadd.f32 %v3089, %v3533
      %v3652 = vadd.f32 %v3094, %v3538
      %v3653 = vadd.f32 %v3097, %v3541
      %v3654 = vadd.f32 %v3102, %v3546
      %v3655 = vadd.f32 %v3105, %v3549
      %v3656 = vadd.f32 %v3110, %v3554
      %v3657 = vadd.f32 %v3113, %v3557
      %v3658 = vadd.f32 %v3118, %v3562
      %v3659 = vadd.f32 %v3121, %v3565
      %v3660 = vadd.f32 %v3126, %v3570
      %v3661 = vadd.f32 %v3129, %v3573
      %v3662 = vadd.f32 %v3134, %v3578
      %v3663 = vadd.f32 %v3137, %v3581
      %v3664 = vadd.f32 %v3142, %v3586
      %v3665 = vadd.f32 %v3145, %v3589
      %v3666 = vadd.f32 %v3150, %v3594
      %v3667 = vadd.f32 %v3153, %v3597
      %v3668 = vadd.f32 %v3158, %v3602
      %v3669 = vadd.f32 %v3161, %v3605
      %v3670 = vadd.f32 %v3166, %v3610
      %v3671 = vadd.f32 %v3169, %v3613
      %v3672 = vadd.f32 %v3174, %v3618
      %v3673 = vadd.f32 %v3177, %v3621
      %v3674 = vadd.f32 %v3182, %v3626
      %v3675 = vadd.f32 %v3185, %v3629
      %v3676 = vadd.f32 %v3190, %v3634
      %v3677 = vadd.f32 %v3193, %v3637
      %v3678 = vadd.f32 %v3198, %v3642
      %v3679 = vadd.f32 %v3201, %v3645
      %v3680 = vld [vmem:[%s1984] sm:$0xf]
      %v3681 = vld [vmem:[%s1984 + $0x4] sm:$0xf]
      %v3682 = vld [vmem:[%s1984 + $0xc] sm:$0xf]
      %v3683 = vld [vmem:[%s1984 + $0x10] sm:$0xf]
      %v3684 = vld [vmem:[%s1984 + $0x18] sm:$0xf]
      %v3685 = vld [vmem:[%s1984 + $0x1c] sm:$0xf]
      %v3686 = vld [vmem:[%s1984 + $0x24] sm:$0xf]
      %v3687 = vld [vmem:[%s1984 + $0x28] sm:$0xf]
      %v3688 = vld [vmem:[%s1984 + $0x30] sm:$0xf]
      %v3689 = vld [vmem:[%s1984 + $0x34] sm:$0xf]
      %v3690 = vld [vmem:[%s1984 + $0x3c] sm:$0xf]
      %v3691 = vld [vmem:[%s1984 + $0x40] sm:$0xf]
      %v3692 = vld [vmem:[%s1984 + $0x48] sm:$0xf]
      %v3693 = vld [vmem:[%s1984 + $0x4c] sm:$0xf]
      %v3694 = vld [vmem:[%s1984 + $0x54] sm:$0xf]
      %v3695 = vld [vmem:[%s1984 + $0x58] sm:$0xf]
      %v3696 = vld [vmem:[%s1984 + $0x60] sm:$0xf]
      %v3697 = vld [vmem:[%s1984 + $0x64] sm:$0xf]
      %v3698 = vld [vmem:[%s1984 + $0x6c] sm:$0xf]
      %v3699 = vld [vmem:[%s1984 + $0x70] sm:$0xf]
      %v3700 = vld [vmem:[%s1984 + $0x78] sm:$0xf]
      %v3701 = vld [vmem:[%s1984 + $0x7c] sm:$0xf]
      %v3702 = vld [vmem:[%s1984 + $0x84] sm:$0xf]
      %v3703 = vld [vmem:[%s1984 + $0x88] sm:$0xf]
      %v3704 = vld [vmem:[%s1984 + $0x90] sm:$0xf]
      %v3705 = vld [vmem:[%s1984 + $0x94] sm:$0xf]
      %v3706 = vld [vmem:[%s1984 + $0x9c] sm:$0xf]
      %v3707 = vld [vmem:[%s1984 + $0xa0] sm:$0xf]
      %v3708 = vld [vmem:[%s1984 + $0xa8] sm:$0xf]
      %v3709 = vld [vmem:[%s1984 + $0xac] sm:$0xf]
      %v3710 = vld [vmem:[%s1984 + $0xb4] sm:$0xf]
      %v3711 = vld [vmem:[%s1984 + $0xb8] sm:$0xf]
      %v3744 = vunpack.c.l.b16 %v3680
      %v3745 = vunpack.c.l.b16 %v3681
      %v3746 = vunpack.c.l.b16 %v3682
      %v3747 = vunpack.c.l.b16 %v3683
      %v3748 = vunpack.c.l.b16 %v3684
      %v3749 = vunpack.c.l.b16 %v3685
      %v3750 = vunpack.c.l.b16 %v3686
      %v3751 = vunpack.c.l.b16 %v3687
      %v3752 = vunpack.c.l.b16 %v3688
      %v3753 = vunpack.c.l.b16 %v3689
      %v3754 = vunpack.c.l.b16 %v3690
      %v3755 = vunpack.c.l.b16 %v3691
      %v3756 = vunpack.c.l.b16 %v3692
      %v3757 = vunpack.c.l.b16 %v3693
      %v3758 = vunpack.c.l.b16 %v3694
      %v3759 = vunpack.c.l.b16 %v3695
      %v3760 = vunpack.c.l.b16 %v3696
      %v3761 = vunpack.c.l.b16 %v3697
      %v3762 = vunpack.c.l.b16 %v3698
      %v3763 = vunpack.c.l.b16 %v3699
      %v3764 = vunpack.c.l.b16 %v3700
      %v3765 = vunpack.c.l.b16 %v3701
      %v3766 = vunpack.c.l.b16 %v3702
      %v3767 = vunpack.c.l.b16 %v3703
      %v3768 = vunpack.c.l.b16 %v3704
      %v3769 = vunpack.c.l.b16 %v3705
      %v3770 = vunpack.c.l.b16 %v3706
      %v3771 = vunpack.c.l.b16 %v3707
      %v3772 = vunpack.c.l.b16 %v3708
      %v3773 = vunpack.c.l.b16 %v3709
      %v3774 = vunpack.c.l.b16 %v3710
      %v3775 = vunpack.c.l.b16 %v3711
      %v3776 = vpack.c.b16 %v3745, %v3744
      %v3777 = vpack.c.b16 %v3747, %v3746
      %v3778 = vpack.c.b16 %v3749, %v3748
      %v3779 = vpack.c.b16 %v3751, %v3750
      %v3780 = vpack.c.b16 %v3753, %v3752
      %v3781 = vpack.c.b16 %v3755, %v3754
      %v3782 = vpack.c.b16 %v3757, %v3756
      %v3783 = vpack.c.b16 %v3759, %v3758
      %v3784 = vpack.c.b16 %v3761, %v3760
      %v3785 = vpack.c.b16 %v3763, %v3762
      %v3786 = vpack.c.b16 %v3765, %v3764
      %v3787 = vpack.c.b16 %v3767, %v3766
      %v3788 = vpack.c.b16 %v3769, %v3768
      %v3789 = vpack.c.b16 %v3771, %v3770
      %v3790 = vpack.c.b16 %v3773, %v3772
      %v3791 = vpack.c.b16 %v3775, %v3774
      %v3800 = vunpack.c.l.b16 %v2126
      %v3801 = vunpack.c.l.b16 %v2127
      %v3802 = vunpack.c.l.b16 %v2128
      %v3803 = vunpack.c.l.b16 %v2129
      %v3804 = vunpack.c.l.b16 %v2130
      %v3805 = vunpack.c.l.b16 %v2131
      %v3806 = vunpack.c.l.b16 %v2132
      %v3807 = vunpack.c.l.b16 %v2133
      %v3808 = vpack.c.b16 %v3801, %v3800
      %v3809 = vpack.c.b16 %v3803, %v3802
      %v3810 = vpack.c.b16 %v3805, %v3804
      %v3811 = vpack.c.b16 %v3807, %v3806
      %v3817 = vsel %vm2681, %v3776, 0
      %v3820 = vsel %vm2681, %v3777, 0
      %v3823 = vsel %vm2681, %v3778, 0
      %v3826 = vsel %vm2681, %v3779, 0
      %v3829 = vsel %vm2681, %v3780, 0
      %v3832 = vsel %vm2681, %v3781, 0
      %v3835 = vsel %vm2681, %v3782, 0
      %v3838 = vsel %vm2681, %v3783, 0
      %v3841 = vsel %vm2681, %v3784, 0
      %v3844 = vsel %vm2681, %v3785, 0
      %v3847 = vsel %vm2681, %v3786, 0
      %v3850 = vsel %vm2681, %v3787, 0
      %v3853 = vsel %vm2681, %v3788, 0
      %v3856 = vsel %vm2681, %v3789, 0
      %v3859 = vsel %vm2681, %v3790, 0
      %v3862 = vsel %vm2681, %v3791, 0
      %3864 = vmatprep.subr.bf16.mxu0 0
      %3865 = vmatpush1.bf16.msra.mxu0 %v3808
      %3866 = vmatprep.subr.bf16.mxu0 0
      %3867 = vmatpush1.bf16.msra.mxu0 %v3809
      %3868 = vmatprep.subr.bf16.mxu0 0
      %3869 = vmatpush1.bf16.msra.mxu0 %v3810
      %3870 = vmatprep.subr.bf16.mxu0 0
      %3871 = vmatpush1.bf16.msra.mxu0 %v3811
      %3872 = vmatprep.subr.bf16.mxu0 0
      %3873 = vmatpush1.bf16.msra.mxu0 0
      %3874 = vmatprep.subr.bf16.mxu0 0
      %3875 = vmatpush1.bf16.msra.mxu0 0
      %3876 = vmatprep.subr.bf16.mxu0 0
      %3877 = vmatpush1.bf16.msra.mxu0 0
      %3878 = vmatprep.subr.bf16.mxu0 0
      %3879 = vmatpush1.bf16.msra.mxu0 0
      %3880 = vmatprep.subr.bf16.mxu0 0
      %3881 = vmatpush1.bf16.msra.mxu0 0
      %3882 = vmatprep.subr.bf16.mxu0 0
      %3883 = vmatpush1.bf16.msra.mxu0 0
      %3884 = vmatprep.subr.bf16.mxu0 0
      %3885 = vmatpush1.bf16.msra.mxu0 0
      %3886 = vmatprep.subr.bf16.mxu0 0
      %3887 = vmatpush1.bf16.msra.mxu0 0
      %3888 = vmatprep.subr.bf16.mxu0 0
      %3889 = vmatpush1.bf16.msra.mxu0 0
      %3890 = vmatprep.subr.bf16.mxu0 0
      %3891 = vmatpush1.bf16.msra.mxu0 0
      %3892 = vmatprep.subr.bf16.mxu0 0
      %3893 = vmatpush1.bf16.msra.mxu0 0
      %3894 = vmatprep.subr.bf16.mxu0 0
      %3895 = vmatpush1.bf16.msra.mxu0 0
      %3896 = vmatprep.mubr.bf16.mxu0 0
      %3897 = vmatmul.mubr.bf16.gmra.mrb[0].mxu0 %v3817
      %v3898 = vpop.f32.mrb[0].mxu0
      %v3899 = vadd.f32 0.0, %v3898
      %v3900 = vpop.f32.mrb[0].mxu0
      %v3901 = vpop.f32.mrb[0].mxu0
      %v3902 = vadd.f32 0.0, %v3901
      %v3903 = vpop.f32.mrb[0].mxu0
      %3904 = vmatprep.mubr.bf16.mxu0 0
      %3905 = vmatmul.mubr.bf16.gmra.mrb[0].mxu0 %v3820
      %v3906 = vpop.f32.mrb[0].mxu0
      %v3907 = vadd.f32 0.0, %v3906
      %v3908 = vpop.f32.mrb[0].mxu0
      %v3909 = vpop.f32.mrb[0].mxu0
      %v3910 = vadd.f32 0.0, %v3909
      %v3911 = vpop.f32.mrb[0].mxu0
      %3912 = vmatprep.mubr.bf16.mxu0 0
      %3913 = vmatmul.mubr.bf16.gmra.mrb[0].mxu0 %v3823
      %v3914 = vpop.f32.mrb[0].mxu0
      %v3915 = vadd.f32 0.0, %v3914
      %v3916 = vpop.f32.mrb[0].mxu0
      %v3917 = vpop.f32.mrb[0].mxu0
      %v3918 = vadd.f32 0.0, %v3917
      %v3919 = vpop.f32.mrb[0].mxu0
      %3920 = vmatprep.mubr.bf16.mxu0 0
      %3921 = vmatmul.mubr.bf16.gmra.mrb[0].mxu0 %v3826
      %v3922 = vpop.f32.mrb[0].mxu0
      %v3923 = vadd.f32 0.0, %v3922
      %v3924 = vpop.f32.mrb[0].mxu0
      %v3925 = vpop.f32.mrb[0].mxu0
      %v3926 = vadd.f32 0.0, %v3925
      %v3927 = vpop.f32.mrb[0].mxu0
      %3928 = vmatprep.mubr.bf16.mxu0 0
      %3929 = vmatmul.mubr.bf16.gmra.mrb[0].mxu0 %v3829
      %v3930 = vpop.f32.mrb[0].mxu0
      %v3931 = vadd.f32 0.0, %v3930
      %v3932 = vpop.f32.mrb[0].mxu0
      %v3933 = vpop.f32.mrb[0].mxu0
      %v3934 = vadd.f32 0.0, %v3933
      %v3935 = vpop.f32.mrb[0].mxu0
      %3936 = vmatprep.mubr.bf16.mxu0 0
      %3937 = vmatmul.mubr.bf16.gmra.mrb[0].mxu0 %v3832
      %v3938 = vpop.f32.mrb[0].mxu0
      %v3939 = vadd.f32 0.0, %v3938
      %v3940 = vpop.f32.mrb[0].mxu0
      %v3941 = vpop.f32.mrb[0].mxu0
      %v3942 = vadd.f32 0.0, %v3941
      %v3943 = vpop.f32.mrb[0].mxu0
      %3944 = vmatprep.mubr.bf16.mxu0 0
      %3945 = vmatmul.mubr.bf16.gmra.mrb[0].mxu0 %v3835
      %v3946 = vpop.f32.mrb[0].mxu0
      %v3947 = vadd.f32 0.0, %v3946
      %v3948 = vpop.f32.mrb[0].mxu0
      %v3949 = vpop.f32.mrb[0].mxu0
      %v3950 = vadd.f32 0.0, %v3949
      %v3951 = vpop.f32.mrb[0].mxu0
      %3952 = vmatprep.mubr.bf16.mxu0 0
      %3953 = vmatmul.mubr.bf16.gmra.mrb[0].mxu0 %v3838
      %v3954 = vpop.f32.mrb[0].mxu0
      %v3955 = vadd.f32 0.0, %v3954
      %v3956 = vpop.f32.mrb[0].mxu0
      %v3957 = vpop.f32.mrb[0].mxu0
      %v3958 = vadd.f32 0.0, %v3957
      %v3959 = vpop.f32.mrb[0].mxu0
      %3960 = vmatprep.mubr.bf16.mxu0 0
      %3961 = vmatmul.mubr.bf16.gmra.mrb[0].mxu0 %v3841
      %v3962 = vpop.f32.mrb[0].mxu0
      %v3963 = vadd.f32 0.0, %v3962
      %v3964 = vpop.f32.mrb[0].mxu0
      %v3965 = vpop.f32.mrb[0].mxu0
      %v3966 = vadd.f32 0.0, %v3965
      %v3967 = vpop.f32.mrb[0].mxu0
      %3968 = vmatprep.mubr.bf16.mxu0 0
      %3969 = vmatmul.mubr.bf16.gmra.mrb[0].mxu0 %v3844
      %v3970 = vpop.f32.mrb[0].mxu0
      %v3971 = vadd.f32 0.0, %v3970
      %v3972 = vpop.f32.mrb[0].mxu0
      %v3973 = vpop.f32.mrb[0].mxu0
      %v3974 = vadd.f32 0.0, %v3973
      %v3975 = vpop.f32.mrb[0].mxu0
      %3976 = vmatprep.mubr.bf16.mxu0 0
      %3977 = vmatmul.mubr.bf16.gmra.mrb[0].mxu0 %v3847
      %v3978 = vpop.f32.mrb[0].mxu0
      %v3979 = vadd.f32 0.0, %v3978
      %v3980 = vpop.f32.mrb[0].mxu0
      %v3981 = vpop.f32.mrb[0].mxu0
      %v3982 = vadd.f32 0.0, %v3981
      %v3983 = vpop.f32.mrb[0].mxu0
      %3984 = vmatprep.mubr.bf16.mxu0 0
      %3985 = vmatmul.mubr.bf16.gmra.mrb[0].mxu0 %v3850
      %v3986 = vpop.f32.mrb[0].mxu0
      %v3987 = vadd.f32 0.0, %v3986
      %v3988 = vpop.f32.mrb[0].mxu0
      %v3989 = vpop.f32.mrb[0].mxu0
      %v3990 = vadd.f32 0.0, %v3989
      %v3991 = vpop.f32.mrb[0].mxu0
      %3992 = vmatprep.mubr.bf16.mxu0 0
      %3993 = vmatmul.mubr.bf16.gmra.mrb[0].mxu0 %v3853
      %v3994 = vpop.f32.mrb[0].mxu0
      %v3995 = vadd.f32 0.0, %v3994
      %v3996 = vpop.f32.mrb[0].mxu0
      %v3997 = vpop.f32.mrb[0].mxu0
      %v3998 = vadd.f32 0.0, %v3997
      %v3999 = vpop.f32.mrb[0].mxu0
      %4000 = vmatprep.mubr.bf16.mxu0 0
      %4001 = vmatmul.mubr.bf16.gmra.mrb[0].mxu0 %v3856
      %v4002 = vpop.f32.mrb[0].mxu0
      %v4003 = vadd.f32 0.0, %v4002
      %v4004 = vpop.f32.mrb[0].mxu0
      %v4005 = vpop.f32.mrb[0].mxu0
      %v4006 = vadd.f32 0.0, %v4005
      %v4007 = vpop.f32.mrb[0].mxu0
      %4008 = vmatprep.mubr.bf16.mxu0 0
      %4009 = vmatmul.mubr.bf16.gmra.mrb[0].mxu0 %v3859
      %v4010 = vpop.f32.mrb[0].mxu0
      %v4011 = vadd.f32 0.0, %v4010
      %v4012 = vpop.f32.mrb[0].mxu0
      %v4013 = vpop.f32.mrb[0].mxu0
      %v4014 = vadd.f32 0.0, %v4013
      %v4015 = vpop.f32.mrb[0].mxu0
      %4016 = vmatprep.mubr.bf16.mxu0 0
      %4017 = vmatmul.mubr.bf16.gmra.mrb[0].mxu0 %v3862
      %v4018 = vpop.f32.mrb[0].mxu0
      %v4019 = vadd.f32 0.0, %v4018
      %v4020 = vpop.f32.mrb[0].mxu0
      %v4021 = vpop.f32.mrb[0].mxu0
      %v4022 = vadd.f32 0.0, %v4021
      %v4023 = vpop.f32.mrb[0].mxu0
      %4024 = vdwg.mxu0
      %v4025 = vadd.f32 %v3648, %v3899
      %v4026 = vadd.f32 %v3649, %v3902
      %v4027 = vadd.f32 %v3650, %v3907
      %v4028 = vadd.f32 %v3651, %v3910
      %v4029 = vadd.f32 %v3652, %v3915
      %v4030 = vadd.f32 %v3653, %v3918
      %v4031 = vadd.f32 %v3654, %v3923
      %v4032 = vadd.f32 %v3655, %v3926
      %v4033 = vadd.f32 %v3656, %v3931
      %v4034 = vadd.f32 %v3657, %v3934
      %v4035 = vadd.f32 %v3658, %v3939
      %v4036 = vadd.f32 %v3659, %v3942
      %v4037 = vadd.f32 %v3660, %v3947
      %v4038 = vadd.f32 %v3661, %v3950
      %v4039 = vadd.f32 %v3662, %v3955
      %v4040 = vadd.f32 %v3663, %v3958
      %v4041 = vadd.f32 %v3664, %v3963
      %v4042 = vadd.f32 %v3665, %v3966
      %v4043 = vadd.f32 %v3666, %v3971
      %v4044 = vadd.f32 %v3667, %v3974
      %v4045 = vadd.f32 %v3668, %v3979
      %v4046 = vadd.f32 %v3669, %v3982
      %v4047 = vadd.f32 %v3670, %v3987
      %v4048 = vadd.f32 %v3671, %v3990
      %v4049 = vadd.f32 %v3672, %v3995
      %v4050 = vadd.f32 %v3673, %v3998
      %v4051 = vadd.f32 %v3674, %v4003
      %v4052 = vadd.f32 %v3675, %v4006
      %v4053 = vadd.f32 %v3676, %v4011
      %v4054 = vadd.f32 %v3677, %v4014
      %v4055 = vadd.f32 %v3678, %v4019
      %v4056 = vadd.f32 %v3679, %v4022
      %v4057 = vld [vmem:[%s1984] sm:$0xf]
      %v4058 = vld [vmem:[%s1984 + $0x4] sm:$0xf]
      %v4059 = vld [vmem:[%s1984 + $0x8] sm:$0x1]
      %v4060 = vld [vmem:[%s1984 + $0xc] sm:$0xf]
      %v4061 = vld [vmem:[%s1984 + $0x10] sm:$0xf]
      %v4062 = vld [vmem:[%s1984 + $0x14] sm:$0x1]
      %v4063 = vld [vmem:[%s1984 + $0x18] sm:$0xf]
      %v4064 = vld [vmem:[%s1984 + $0x1c] sm:$0xf]
      %v4065 = vld [vmem:[%s1984 + $0x20] sm:$0x1]
      %v4066 = vld [vmem:[%s1984 + $0x24] sm:$0xf]
      %v4067 = vld [vmem:[%s1984 + $0x28] sm:$0xf]
      %v4068 = vld [vmem:[%s1984 + $0x2c] sm:$0x1]
      %v4069 = vld [vmem:[%s1984 + $0x30] sm:$0xf]
      %v4070 = vld [vmem:[%s1984 + $0x34] sm:$0xf]
      %v4071 = vld [vmem:[%s1984 + $0x38] sm:$0x1]
      %v4072 = vld [vmem:[%s1984 + $0x3c] sm:$0xf]
      %v4073 = vld [vmem:[%s1984 + $0x40] sm:$0xf]
      %v4074 = vld [vmem:[%s1984 + $0x44] sm:$0x1]
      %v4075 = vld [vmem:[%s1984 + $0x48] sm:$0xf]
      %v4076 = vld [vmem:[%s1984 + $0x4c] sm:$0xf]
      %v4077 = vld [vmem:[%s1984 + $0x50] sm:$0x1]
      %v4078 = vld [vmem:[%s1984 + $0x54] sm:$0xf]
      %v4079 = vld [vmem:[%s1984 + $0x58] sm:$0xf]
      %v4080 = vld [vmem:[%s1984 + $0x5c] sm:$0x1]
      %v4081 = vld [vmem:[%s1984 + $0x60] sm:$0xf]
      %v4082 = vld [vmem:[%s1984 + $0x64] sm:$0xf]
      %v4083 = vld [vmem:[%s1984 + $0x68] sm:$0x1]
      %v4084 = vld [vmem:[%s1984 + $0x6c] sm:$0xf]
      %v4085 = vld [vmem:[%s1984 + $0x70] sm:$0xf]
      %v4086 = vld [vmem:[%s1984 + $0x74] sm:$0x1]
      %v4087 = vld [vmem:[%s1984 + $0x78] sm:$0xf]
      %v4088 = vld [vmem:[%s1984 + $0x7c] sm:$0xf]
      %v4089 = vld [vmem:[%s1984 + $0x80] sm:$0x1]
      %v4090 = vld [vmem:[%s1984 + $0x84] sm:$0xf]
      %v4091 = vld [vmem:[%s1984 + $0x88] sm:$0xf]
      %v4092 = vld [vmem:[%s1984 + $0x8c] sm:$0x1]
      %v4093 = vld [vmem:[%s1984 + $0x90] sm:$0xf]
      %v4094 = vld [vmem:[%s1984 + $0x94] sm:$0xf]
      %v4095 = vld [vmem:[%s1984 + $0x98] sm:$0x1]
      %v4096 = vld [vmem:[%s1984 + $0x9c] sm:$0xf]
      %v4097 = vld [vmem:[%s1984 + $0xa0] sm:$0xf]
      %v4098 = vld [vmem:[%s1984 + $0xa4] sm:$0x1]
      %v4099 = vld [vmem:[%s1984 + $0xa8] sm:$0xf]
      %v4100 = vld [vmem:[%s1984 + $0xac] sm:$0xf]
      %v4101 = vld [vmem:[%s1984 + $0xb0] sm:$0x1]
      %v4102 = vld [vmem:[%s1984 + $0xb4] sm:$0xf]
      %v4103 = vld [vmem:[%s1984 + $0xb8] sm:$0xf]
      %v4104 = vld [vmem:[%s1984 + $0xbc] sm:$0x1]
      %v4106 = vshrl.u32 %v4057, 16
      %v4108 = vrot.slane %v4106, 4
      %v4109 = vshll.u32 %v4057, 16
      %v4111 = vrot.slane %v4109, 5
      %v4112 = vor.u32 %v4108, %v4111
      %v4113 = vrot.slane %v4112, 4
      %v4115 = vshll.u32 %v4058, 16
      %v4117 = vrot.slane %v4115, 5
      %v4118 = vsel %vm2224, %v4113, %v4117
      %v4119 = vshrl.u32 %v4058, 16
      %v4121 = vrot.slane %v4119, 4
      %v4122 = vor.u32 %v4121, %v4117
      %v4123 = vrot.slane %v4122, 4
      %v4125 = vshll.u32 %v4059, 16
      %v4127 = vrot.slane %v4125, 5
      %v4128 = vsel %vm2224, %v4123, %v4127
      %v4130 = vshrl.u32 %v4060, 16
      %v4132 = vrot.slane %v4130, 4
      %v4133 = vshll.u32 %v4060, 16
      %v4135 = vrot.slane %v4133, 5
      %v4136 = vor.u32 %v4132, %v4135
      %v4137 = vrot.slane %v4136, 4
      %v4139 = vshll.u32 %v4061, 16
      %v4141 = vrot.slane %v4139, 5
      %v4142 = vsel %vm2224, %v4137, %v4141
      %v4143 = vshrl.u32 %v4061, 16
      %v4145 = vrot.slane %v4143, 4
      %v4146 = vor.u32 %v4145, %v4141
      %v4147 = vrot.slane %v4146, 4
      %v4149 = vshll.u32 %v4062, 16
      %v4151 = vrot.slane %v4149, 5
      %v4152 = vsel %vm2224, %v4147, %v4151
      %v4154 = vshrl.u32 %v4063, 16
      %v4156 = vrot.slane %v4154, 4
      %v4157 = vshll.u32 %v4063, 16
      %v4159 = vrot.slane %v4157, 5
      %v4160 = vor.u32 %v4156, %v4159
      %v4161 = vrot.slane %v4160, 4
      %v4163 = vshll.u32 %v4064, 16
      %v4165 = vrot.slane %v4163, 5
      %v4166 = vsel %vm2224, %v4161, %v4165
      %v4167 = vshrl.u32 %v4064, 16
      %v4169 = vrot.slane %v4167, 4
      %v4170 = vor.u32 %v4169, %v4165
      %v4171 = vrot.slane %v4170, 4
      %v4173 = vshll.u32 %v4065, 16
      %v4175 = vrot.slane %v4173, 5
      %v4176 = vsel %vm2224, %v4171, %v4175
      %v4178 = vshrl.u32 %v4066, 16
      %v4180 = vrot.slane %v4178, 4
      %v4181 = vshll.u32 %v4066, 16
      %v4183 = vrot.slane %v4181, 5
      %v4184 = vor.u32 %v4180, %v4183
      %v4185 = vrot.slane %v4184, 4
      %v4187 = vshll.u32 %v4067, 16
      %v4189 = vrot.slane %v4187, 5
      %v4190 = vsel %vm2224, %v4185, %v4189
      %v4191 = vshrl.u32 %v4067, 16
      %v4193 = vrot.slane %v4191, 4
      %v4194 = vor.u32 %v4193, %v4189
      %v4195 = vrot.slane %v4194, 4
      %v4197 = vshll.u32 %v4068, 16
      %v4199 = vrot.slane %v4197, 5
      %v4200 = vsel %vm2224, %v4195, %v4199
      %v4202 = vshrl.u32 %v4069, 16
      %v4204 = vrot.slane %v4202, 4
      %v4205 = vshll.u32 %v4069, 16
      %v4207 = vrot.slane %v4205, 5
      %v4208 = vor.u32 %v4204, %v4207
      %v4209 = vrot.slane %v4208, 4
      %v4211 = vshll.u32 %v4070, 16
      %v4213 = vrot.slane %v4211, 5
      %v4214 = vsel %vm2224, %v4209, %v4213
      %v4215 = vshrl.u32 %v4070, 16
      %v4217 = vrot.slane %v4215, 4
      %v4218 = vor.u32 %v4217, %v4213
      %v4219 = vrot.slane %v4218, 4
      %v4221 = vshll.u32 %v4071, 16
      %v4223 = vrot.slane %v4221, 5
      %v4224 = vsel %vm2224, %v4219, %v4223
      %v4226 = vshrl.u32 %v4072, 16
      %v4228 = vrot.slane %v4226, 4
      %v4229 = vshll.u32 %v4072, 16
      %v4231 = vrot.slane %v4229, 5
      %v4232 = vor.u32 %v4228, %v4231
      %v4233 = vrot.slane %v4232, 4
      %v4235 = vshll.u32 %v4073, 16
      %v4237 = vrot.slane %v4235, 5
      %v4238 = vsel %vm2224, %v4233, %v4237
      %v4239 = vshrl.u32 %v4073, 16
      %v4241 = vrot.slane %v4239, 4
      %v4242 = vor.u32 %v4241, %v4237
      %v4243 = vrot.slane %v4242, 4
      %v4245 = vshll.u32 %v4074, 16
      %v4247 = vrot.slane %v4245, 5
      %v4248 = vsel %vm2224, %v4243, %v4247
      %v4250 = vshrl.u32 %v4075, 16
      %v4252 = vrot.slane %v4250, 4
      %v4253 = vshll.u32 %v4075, 16
      %v4255 = vrot.slane %v4253, 5
      %v4256 = vor.u32 %v4252, %v4255
      %v4257 = vrot.slane %v4256, 4
      %v4259 = vshll.u32 %v4076, 16
      %v4261 = vrot.slane %v4259, 5
      %v4262 = vsel %vm2224, %v4257, %v4261
      %v4263 = vshrl.u32 %v4076, 16
      %v4265 = vrot.slane %v4263, 4
      %v4266 = vor.u32 %v4265, %v4261
      %v4267 = vrot.slane %v4266, 4
      %v4269 = vshll.u32 %v4077, 16
      %v4271 = vrot.slane %v4269, 5
      %v4272 = vsel %vm2224, %v4267, %v4271
      %v4274 = vshrl.u32 %v4078, 16
      %v4276 = vrot.slane %v4274, 4
      %v4277 = vshll.u32 %v4078, 16
      %v4279 = vrot.slane %v4277, 5
      %v4280 = vor.u32 %v4276, %v4279
      %v4281 = vrot.slane %v4280, 4
      %v4283 = vshll.u32 %v4079, 16
      %v4285 = vrot.slane %v4283, 5
      %v4286 = vsel %vm2224, %v4281, %v4285
      %v4287 = vshrl.u32 %v4079, 16
      %v4289 = vrot.slane %v4287, 4
      %v4290 = vor.u32 %v4289, %v4285
      %v4291 = vrot.slane %v4290, 4
      %v4293 = vshll.u32 %v4080, 16
      %v4295 = vrot.slane %v4293, 5
      %v4296 = vsel %vm2224, %v4291, %v4295
      %v4298 = vshrl.u32 %v4081, 16
      %v4300 = vrot.slane %v4298, 4
      %v4301 = vshll.u32 %v4081, 16
      %v4303 = vrot.slane %v4301, 5
      %v4304 = vor.u32 %v4300, %v4303
      %v4305 = vrot.slane %v4304, 4
      %v4307 = vshll.u32 %v4082, 16
      %v4309 = vrot.slane %v4307, 5
      %v4310 = vsel %vm2224, %v4305, %v4309
      %v4311 = vshrl.u32 %v4082, 16
      %v4313 = vrot.slane %v4311, 4
      %v4314 = vor.u32 %v4313, %v4309
      %v4315 = vrot.slane %v4314, 4
      %v4317 = vshll.u32 %v4083, 16
      %v4319 = vrot.slane %v4317, 5
      %v4320 = vsel %vm2224, %v4315, %v4319
      %v4322 = vshrl.u32 %v4084, 16
      %v4324 = vrot.slane %v4322, 4
      %v4325 = vshll.u32 %v4084, 16
      %v4327 = vrot.slane %v4325, 5
      %v4328 = vor.u32 %v4324, %v4327
      %v4329 = vrot.slane %v4328, 4
      %v4331 = vshll.u32 %v4085, 16
      %v4333 = vrot.slane %v4331, 5
      %v4334 = vsel %vm2224, %v4329, %v4333
      %v4335 = vshrl.u32 %v4085, 16
      %v4337 = vrot.slane %v4335, 4
      %v4338 = vor.u32 %v4337, %v4333
      %v4339 = vrot.slane %v4338, 4
      %v4341 = vshll.u32 %v4086, 16
      %v4343 = vrot.slane %v4341, 5
      %v4344 = vsel %vm2224, %v4339, %v4343
      %v4346 = vshrl.u32 %v4087, 16
      %v4348 = vrot.slane %v4346, 4
      %v4349 = vshll.u32 %v4087, 16
      %v4351 = vrot.slane %v4349, 5
      %v4352 = vor.u32 %v4348, %v4351
      %v4353 = vrot.slane %v4352, 4
      %v4355 = vshll.u32 %v4088, 16
      %v4357 = vrot.slane %v4355, 5
      %v4358 = vsel %vm2224, %v4353, %v4357
      %v4359 = vshrl.u32 %v4088, 16
      %v4361 = vrot.slane %v4359, 4
      %v4362 = vor.u32 %v4361, %v4357
      %v4363 = vrot.slane %v4362, 4
      %v4365 = vshll.u32 %v4089, 16
      %v4367 = vrot.slane %v4365, 5
      %v4368 = vsel %vm2224, %v4363, %v4367
      %v4370 = vshrl.u32 %v4090, 16
      %v4372 = vrot.slane %v4370, 4
      %v4373 = vshll.u32 %v4090, 16
      %v4375 = vrot.slane %v4373, 5
      %v4376 = vor.u32 %v4372, %v4375
      %v4377 = vrot.slane %v4376, 4
      %v4379 = vshll.u32 %v4091, 16
      %v4381 = vrot.slane %v4379, 5
      %v4382 = vsel %vm2224, %v4377, %v4381
      %v4383 = vshrl.u32 %v4091, 16
      %v4385 = vrot.slane %v4383, 4
      %v4386 = vor.u32 %v4385, %v4381
      %v4387 = vrot.slane %v4386, 4
      %v4389 = vshll.u32 %v4092, 16
      %v4391 = vrot.slane %v4389, 5
      %v4392 = vsel %vm2224, %v4387, %v4391
      %v4394 = vshrl.u32 %v4093, 16
      %v4396 = vrot.slane %v4394, 4
      %v4397 = vshll.u32 %v4093, 16
      %v4399 = vrot.slane %v4397, 5
      %v4400 = vor.u32 %v4396, %v4399
      %v4401 = vrot.slane %v4400, 4
      %v4403 = vshll.u32 %v4094, 16
      %v4405 = vrot.slane %v4403, 5
      %v4406 = vsel %vm2224, %v4401, %v4405
      %v4407 = vshrl.u32 %v4094, 16
      %v4409 = vrot.slane %v4407, 4
      %v4410 = vor.u32 %v4409, %v4405
      %v4411 = vrot.slane %v4410, 4
      %v4413 = vshll.u32 %v4095, 16
      %v4415 = vrot.slane %v4413, 5
      %v4416 = vsel %vm2224, %v4411, %v4415
      %v4418 = vshrl.u32 %v4096, 16
      %v4420 = vrot.slane %v4418, 4
      %v4421 = vshll.u32 %v4096, 16
      %v4423 = vrot.slane %v4421, 5
      %v4424 = vor.u32 %v4420, %v4423
      %v4425 = vrot.slane %v4424, 4
      %v4427 = vshll.u32 %v4097, 16
      %v4429 = vrot.slane %v4427, 5
      %v4430 = vsel %vm2224, %v4425, %v4429
      %v4431 = vshrl.u32 %v4097, 16
      %v4433 = vrot.slane %v4431, 4
      %v4434 = vor.u32 %v4433, %v4429
      %v4435 = vrot.slane %v4434, 4
      %v4437 = vshll.u32 %v4098, 16
      %v4439 = vrot.slane %v4437, 5
      %v4440 = vsel %vm2224, %v4435, %v4439
      %v4442 = vshrl.u32 %v4099, 16
      %v4444 = vrot.slane %v4442, 4
      %v4445 = vshll.u32 %v4099, 16
      %v4447 = vrot.slane %v4445, 5
      %v4448 = vor.u32 %v4444, %v4447
      %v4449 = vrot.slane %v4448, 4
      %v4451 = vshll.u32 %v4100, 16
      %v4453 = vrot.slane %v4451, 5
      %v4454 = vsel %vm2224, %v4449, %v4453
      %v4455 = vshrl.u32 %v4100, 16
      %v4457 = vrot.slane %v4455, 4
      %v4458 = vor.u32 %v4457, %v4453
      %v4459 = vrot.slane %v4458, 4
      %v4461 = vshll.u32 %v4101, 16
      %v4463 = vrot.slane %v4461, 5
      %v4464 = vsel %vm2224, %v4459, %v4463
      %v4466 = vshrl.u32 %v4102, 16
      %v4468 = vrot.slane %v4466, 4
      %v4469 = vshll.u32 %v4102, 16
      %v4471 = vrot.slane %v4469, 5
      %v4472 = vor.u32 %v4468, %v4471
      %v4473 = vrot.slane %v4472, 4
      %v4475 = vshll.u32 %v4103, 16
      %v4477 = vrot.slane %v4475, 5
      %v4478 = vsel %vm2224, %v4473, %v4477
      %v4479 = vshrl.u32 %v4103, 16
      %v4481 = vrot.slane %v4479, 4
      %v4482 = vor.u32 %v4481, %v4477
      %v4483 = vrot.slane %v4482, 4
      %v4485 = vshll.u32 %v4104, 16
      %v4487 = vrot.slane %v4485, 5
      %v4488 = vsel %vm2224, %v4483, %v4487
      %v4489 = vunpack.c.l.b16 %v4118
      %v4490 = vunpack.c.l.b16 %v4128
      %v4491 = vunpack.c.l.b16 %v4142
      %v4492 = vunpack.c.l.b16 %v4152
      %v4493 = vunpack.c.l.b16 %v4166
      %v4494 = vunpack.c.l.b16 %v4176
      %v4495 = vunpack.c.l.b16 %v4190
      %v4496 = vunpack.c.l.b16 %v4200
      %v4497 = vunpack.c.l.b16 %v4214
      %v4498 = vunpack.c.l.b16 %v4224
      %v4499 = vunpack.c.l.b16 %v4238
      %v4500 = vunpack.c.l.b16 %v4248
      %v4501 = vunpack.c.l.b16 %v4262
      %v4502 = vunpack.c.l.b16 %v4272
      %v4503 = vunpack.c.l.b16 %v4286
      %v4504 = vunpack.c.l.b16 %v4296
      %v4505 = vunpack.c.l.b16 %v4310
      %v4506 = vunpack.c.l.b16 %v4320
      %v4507 = vunpack.c.l.b16 %v4334
      %v4508 = vunpack.c.l.b16 %v4344
      %v4509 = vunpack.c.l.b16 %v4358
      %v4510 = vunpack.c.l.b16 %v4368
      %v4511 = vunpack.c.l.b16 %v4382
      %v4512 = vunpack.c.l.b16 %v4392
      %v4513 = vunpack.c.l.b16 %v4406
      %v4514 = vunpack.c.l.b16 %v4416
      %v4515 = vunpack.c.l.b16 %v4430
      %v4516 = vunpack.c.l.b16 %v4440
      %v4517 = vunpack.c.l.b16 %v4454
      %v4518 = vunpack.c.l.b16 %v4464
      %v4519 = vunpack.c.l.b16 %v4478
      %v4520 = vunpack.c.l.b16 %v4488
      %v4521 = vpack.c.b16 %v4490, %v4489
      %v4522 = vpack.c.b16 %v4492, %v4491
      %v4523 = vpack.c.b16 %v4494, %v4493
      %v4524 = vpack.c.b16 %v4496, %v4495
      %v4525 = vpack.c.b16 %v4498, %v4497
      %v4526 = vpack.c.b16 %v4500, %v4499
      %v4527 = vpack.c.b16 %v4502, %v4501
      %v4528 = vpack.c.b16 %v4504, %v4503
      %v4529 = vpack.c.b16 %v4506, %v4505
      %v4530 = vpack.c.b16 %v4508, %v4507
      %v4531 = vpack.c.b16 %v4510, %v4509
      %v4532 = vpack.c.b16 %v4512, %v4511
      %v4533 = vpack.c.b16 %v4514, %v4513
      %v4534 = vpack.c.b16 %v4516, %v4515
      %v4535 = vpack.c.b16 %v4518, %v4517
      %v4536 = vpack.c.b16 %v4520, %v4519
      %v4545 = vunpack.c.l.b16 %v2134
      %v4546 = vunpack.c.l.b16 %v2135
      %v4547 = vunpack.c.l.b16 %v2136
      %v4548 = vunpack.c.l.b16 %v2137
      %v4549 = vunpack.c.l.b16 %v2138
      %v4550 = vunpack.c.l.b16 %v2139
      %v4551 = vunpack.c.l.b16 %v2140
      %v4552 = vunpack.c.l.b16 %v2141
      %v4553 = vpack.c.b16 %v4546, %v4545
      %v4554 = vpack.c.b16 %v4548, %v4547
      %v4555 = vpack.c.b16 %v4550, %v4549
      %v4556 = vpack.c.b16 %v4552, %v4551
      %v4562 = vsel %vm2681, %v4521, 0
      %v4565 = vsel %vm2681, %v4522, 0
      %v4568 = vsel %vm2681, %v4523, 0
      %v4571 = vsel %vm2681, %v4524, 0
      %v4574 = vsel %vm2681, %v4525, 0
      %v4577 = vsel %vm2681, %v4526, 0
      %v4580 = vsel %vm2681, %v4527, 0
      %v4583 = vsel %vm2681, %v4528, 0
      %v4586 = vsel %vm2681, %v4529, 0
      %v4589 = vsel %vm2681, %v4530, 0
      %v4592 = vsel %vm2681, %v4531, 0
      %v4595 = vsel %vm2681, %v4532, 0
      %v4598 = vsel %vm2681, %v4533, 0
      %v4601 = vsel %vm2681, %v4534, 0
      %v4604 = vsel %vm2681, %v4535, 0
      %v4607 = vsel %vm2681, %v4536, 0
      %4609 = vmatprep.subr.bf16.mxu0 0
      %4610 = vmatpush1.bf16.msra.mxu0 %v4553
      %4611 = vmatprep.subr.bf16.mxu0 0
      %4612 = vmatpush1.bf16.msra.mxu0 %v4554
      %4613 = vmatprep.subr.bf16.mxu0 0
      %4614 = vmatpush1.bf16.msra.mxu0 %v4555
      %4615 = vmatprep.subr.bf16.mxu0 0
      %4616 = vmatpush1.bf16.msra.mxu0 %v4556
      %4617 = vmatprep.subr.bf16.mxu0 0
      %4618 = vmatpush1.bf16.msra.mxu0 0
      %4619 = vmatprep.subr.bf16.mxu0 0
      %4620 = vmatpush1.bf16.msra.mxu0 0
      %4621 = vmatprep.subr.bf16.mxu0 0
      %4622 = vmatpush1.bf16.msra.mxu0 0
      %4623 = vmatprep.subr.bf16.mxu0 0
      %4624 = vmatpush1.bf16.msra.mxu0 0
      %4625 = vmatprep.subr.bf16.mxu0 0
      %4626 = vmatpush1.bf16.msra.mxu0 0
      %4627 = vmatprep.subr.bf16.mxu0 0
      %4628 = vmatpush1.bf16.msra.mxu0 0
      %4629 = vmatprep.subr.bf16.mxu0 0
      %4630 = vmatpush1.bf16.msra.mxu0 0
      %4631 = vmatprep.subr.bf16.mxu0 0
      %4632 = vmatpush1.bf16.msra.mxu0 0
      %4633 = vmatprep.subr.bf16.mxu0 0
      %4634 = vmatpush1.bf16.msra.mxu0 0
      %4635 = vmatprep.subr.bf16.mxu0 0
      %4636 = vmatpush1.bf16.msra.mxu0 0
      %4637 = vmatprep.subr.bf16.mxu0 0
      %4638 = vmatpush1.bf16.msra.mxu0 0
      %4639 = vmatprep.subr.bf16.mxu0 0
      %4640 = vmatpush1.bf16.msra.mxu0 0
      %4641 = vmatprep.mubr.bf16.mxu0 0
      %4642 = vmatmul.mubr.bf16.gmra.mrb[0].mxu0 %v4562
      %v4643 = vpop.f32.mrb[0].mxu0
      %v4644 = vadd.f32 0.0, %v4643
      %v4645 = vpop.f32.mrb[0].mxu0
      %v4646 = vpop.f32.mrb[0].mxu0
      %v4647 = vadd.f32 0.0, %v4646
      %v4648 = vpop.f32.mrb[0].mxu0
      %4649 = vmatprep.mubr.bf16.mxu0 0
      %4650 = vmatmul.mubr.bf16.gmra.mrb[0].mxu0 %v4565
      %v4651 = vpop.f32.mrb[0].mxu0
      %v4652 = vadd.f32 0.0, %v4651
      %v4653 = vpop.f32.mrb[0].mxu0
      %v4654 = vpop.f32.mrb[0].mxu0
      %v4655 = vadd.f32 0.0, %v4654
      %v4656 = vpop.f32.mrb[0].mxu0
      %4657 = vmatprep.mubr.bf16.mxu0 0
      %4658 = vmatmul.mubr.bf16.gmra.mrb[0].mxu0 %v4568
      %v4659 = vpop.f32.mrb[0].mxu0
      %v4660 = vadd.f32 0.0, %v4659
      %v4661 = vpop.f32.mrb[0].mxu0
      %v4662 = vpop.f32.mrb[0].mxu0
      %v4663 = vadd.f32 0.0, %v4662
      %v4664 = vpop.f32.mrb[0].mxu0
      %4665 = vmatprep.mubr.bf16.mxu0 0
      %4666 = vmatmul.mubr.bf16.gmra.mrb[0].mxu0 %v4571
      %v4667 = vpop.f32.mrb[0].mxu0
      %v4668 = vadd.f32 0.0, %v4667
      %v4669 = vpop.f32.mrb[0].mxu0
      %v4670 = vpop.f32.mrb[0].mxu0
      %v4671 = vadd.f32 0.0, %v4670
      %v4672 = vpop.f32.mrb[0].mxu0
      %4673 = vmatprep.mubr.bf16.mxu0 0
      %4674 = vmatmul.mubr.bf16.gmra.mrb[0].mxu0 %v4574
      %v4675 = vpop.f32.mrb[0].mxu0
      %v4676 = vadd.f32 0.0, %v4675
      %v4677 = vpop.f32.mrb[0].mxu0
      %v4678 = vpop.f32.mrb[0].mxu0
      %v4679 = vadd.f32 0.0, %v4678
      %v4680 = vpop.f32.mrb[0].mxu0
      %4681 = vmatprep.mubr.bf16.mxu0 0
      %4682 = vmatmul.mubr.bf16.gmra.mrb[0].mxu0 %v4577
      %v4683 = vpop.f32.mrb[0].mxu0
      %v4684 = vadd.f32 0.0, %v4683
      %v4685 = vpop.f32.mrb[0].mxu0
      %v4686 = vpop.f32.mrb[0].mxu0
      %v4687 = vadd.f32 0.0, %v4686
      %v4688 = vpop.f32.mrb[0].mxu0
      %4689 = vmatprep.mubr.bf16.mxu0 0
      %4690 = vmatmul.mubr.bf16.gmra.mrb[0].mxu0 %v4580
      %v4691 = vpop.f32.mrb[0].mxu0
      %v4692 = vadd.f32 0.0, %v4691
      %v4693 = vpop.f32.mrb[0].mxu0
      %v4694 = vpop.f32.mrb[0].mxu0
      %v4695 = vadd.f32 0.0, %v4694
      %v4696 = vpop.f32.mrb[0].mxu0
      %4697 = vmatprep.mubr.bf16.mxu0 0
      %4698 = vmatmul.mubr.bf16.gmra.mrb[0].mxu0 %v4583
      %v4699 = vpop.f32.mrb[0].mxu0
      %v4700 = vadd.f32 0.0, %v4699
      %v4701 = vpop.f32.mrb[0].mxu0
      %v4702 = vpop.f32.mrb[0].mxu0
      %v4703 = vadd.f32 0.0, %v4702
      %v4704 = vpop.f32.mrb[0].mxu0
      %4705 = vmatprep.mubr.bf16.mxu0 0
      %4706 = vmatmul.mubr.bf16.gmra.mrb[0].mxu0 %v4586
      %v4707 = vpop.f32.mrb[0].mxu0
      %v4708 = vadd.f32 0.0, %v4707
      %v4709 = vpop.f32.mrb[0].mxu0
      %v4710 = vpop.f32.mrb[0].mxu0
      %v4711 = vadd.f32 0.0, %v4710
      %v4712 = vpop.f32.mrb[0].mxu0
      %4713 = vmatprep.mubr.bf16.mxu0 0
      %4714 = vmatmul.mubr.bf16.gmra.mrb[0].mxu0 %v4589
      %v4715 = vpop.f32.mrb[0].mxu0
      %v4716 = vadd.f32 0.0, %v4715
      %v4717 = vpop.f32.mrb[0].mxu0
      %v4718 = vpop.f32.mrb[0].mxu0
      %v4719 = vadd.f32 0.0, %v4718
      %v4720 = vpop.f32.mrb[0].mxu0
      %4721 = vmatprep.mubr.bf16.mxu0 0
      %4722 = vmatmul.mubr.bf16.gmra.mrb[0].mxu0 %v4592
      %v4723 = vpop.f32.mrb[0].mxu0
      %v4724 = vadd.f32 0.0, %v4723
      %v4725 = vpop.f32.mrb[0].mxu0
      %v4726 = vpop.f32.mrb[0].mxu0
      %v4727 = vadd.f32 0.0, %v4726
      %v4728 = vpop.f32.mrb[0].mxu0
      %4729 = vmatprep.mubr.bf16.mxu0 0
      %4730 = vmatmul.mubr.bf16.gmra.mrb[0].mxu0 %v4595
      %v4731 = vpop.f32.mrb[0].mxu0
      %v4732 = vadd.f32 0.0, %v4731
      %v4733 = vpop.f32.mrb[0].mxu0
      %v4734 = vpop.f32.mrb[0].mxu0
      %v4735 = vadd.f32 0.0, %v4734
      %v4736 = vpop.f32.mrb[0].mxu0
      %4737 = vmatprep.mubr.bf16.mxu0 0
      %4738 = vmatmul.mubr.bf16.gmra.mrb[0].mxu0 %v4598
      %v4739 = vpop.f32.mrb[0].mxu0
      %v4740 = vadd.f32 0.0, %v4739
      %v4741 = vpop.f32.mrb[0].mxu0
      %v4742 = vpop.f32.mrb[0].mxu0
      %v4743 = vadd.f32 0.0, %v4742
      %v4744 = vpop.f32.mrb[0].mxu0
      %4745 = vmatprep.mubr.bf16.mxu0 0
      %4746 = vmatmul.mubr.bf16.gmra.mrb[0].mxu0 %v4601
      %v4747 = vpop.f32.mrb[0].mxu0
      %v4748 = vadd.f32 0.0, %v4747
      %v4749 = vpop.f32.mrb[0].mxu0
      %v4750 = vpop.f32.mrb[0].mxu0
      %v4751 = vadd.f32 0.0, %v4750
      %v4752 = vpop.f32.mrb[0].mxu0
      %4753 = vmatprep.mubr.bf16.mxu0 0
      %4754 = vmatmul.mubr.bf16.gmra.mrb[0].mxu0 %v4604
      %v4755 = vpop.f32.mrb[0].mxu0
      %v4756 = vadd.f32 0.0, %v4755
      %v4757 = vpop.f32.mrb[0].mxu0
      %v4758 = vpop.f32.mrb[0].mxu0
      %v4759 = vadd.f32 0.0, %v4758
      %v4760 = vpop.f32.mrb[0].mxu0
      %4761 = vmatprep.mubr.bf16.mxu0 0
      %4762 = vmatmul.mubr.bf16.gmra.mrb[0].mxu0 %v4607
      %v4763 = vpop.f32.mrb[0].mxu0
      %v4764 = vadd.f32 0.0, %v4763
      %v4765 = vpop.f32.mrb[0].mxu0
      %v4766 = vpop.f32.mrb[0].mxu0
      %v4767 = vadd.f32 0.0, %v4766
      %v4768 = vpop.f32.mrb[0].mxu0
      %4769 = vdwg.mxu0
      %v4770 = vadd.f32 %v4025, %v4644
      %v4771 = vadd.f32 %v4026, %v4647
      %v4772 = vadd.f32 %v4027, %v4652
      %v4773 = vadd.f32 %v4028, %v4655
      %v4774 = vadd.f32 %v4029, %v4660
      %v4775 = vadd.f32 %v4030, %v4663
      %v4776 = vadd.f32 %v4031, %v4668
      %v4777 = vadd.f32 %v4032, %v4671
      %v4778 = vadd.f32 %v4033, %v4676
      %v4779 = vadd.f32 %v4034, %v4679
      %v4780 = vadd.f32 %v4035, %v4684
      %v4781 = vadd.f32 %v4036, %v4687
      %v4782 = vadd.f32 %v4037, %v4692
      %v4783 = vadd.f32 %v4038, %v4695
      %v4784 = vadd.f32 %v4039, %v4700
      %v4785 = vadd.f32 %v4040, %v4703
      %v4786 = vadd.f32 %v4041, %v4708
      %v4787 = vadd.f32 %v4042, %v4711
      %v4788 = vadd.f32 %v4043, %v4716
      %v4789 = vadd.f32 %v4044, %v4719
      %v4790 = vadd.f32 %v4045, %v4724
      %v4791 = vadd.f32 %v4046, %v4727
      %v4792 = vadd.f32 %v4047, %v4732
      %v4793 = vadd.f32 %v4048, %v4735
      %v4794 = vadd.f32 %v4049, %v4740
      %v4795 = vadd.f32 %v4050, %v4743
      %v4796 = vadd.f32 %v4051, %v4748
      %v4797 = vadd.f32 %v4052, %v4751
      %v4798 = vadd.f32 %v4053, %v4756
      %v4799 = vadd.f32 %v4054, %v4759
      %v4800 = vadd.f32 %v4055, %v4764
      %v4801 = vadd.f32 %v4056, %v4767
      %v4802 = vld [vmem:[%s1984] sm:$0xe]
      %v4803 = vld [vmem:[%s1984 + $0xc] sm:$0xe]
      %v4804 = vld [vmem:[%s1984 + $0x18] sm:$0xe]
      %v4805 = vld [vmem:[%s1984 + $0x24] sm:$0xe]
      %v4806 = vld [vmem:[%s1984 + $0x30] sm:$0xe]
      %v4807 = vld [vmem:[%s1984 + $0x3c] sm:$0xe]
      %v4808 = vld [vmem:[%s1984 + $0x48] sm:$0xe]
      %v4809 = vld [vmem:[%s1984 + $0x54] sm:$0xe]
      %v4810 = vld [vmem:[%s1984 + $0x60] sm:$0xe]
      %v4811 = vld [vmem:[%s1984 + $0x6c] sm:$0xe]
      %v4812 = vld [vmem:[%s1984 + $0x78] sm:$0xe]
      %v4813 = vld [vmem:[%s1984 + $0x84] sm:$0xe]
      %v4814 = vld [vmem:[%s1984 + $0x90] sm:$0xe]
      %v4815 = vld [vmem:[%s1984 + $0x9c] sm:$0xe]
      %v4816 = vld [vmem:[%s1984 + $0xa8] sm:$0xe]
      %v4817 = vld [vmem:[%s1984 + $0xb4] sm:$0xe]
      %v4866 = vrot.slane %v4802, 5
      %v4867 = vrot.slane %v4866, 4
      %v4868 = vrot.slane %v4058, 5
      %v4869 = vsel %vm3254, %v4867, %v4868
      %v4870 = vrot.slane %v4868, 4
      %v4871 = vrot.slane %v4059, 5
      %v4872 = vsel %vm3254, %v4870, %v4871
      %v4873 = vrot.slane %v4803, 5
      %v4874 = vrot.slane %v4873, 4
      %v4875 = vrot.slane %v4061, 5
      %v4876 = vsel %vm3254, %v4874, %v4875
      %v4877 = vrot.slane %v4875, 4
      %v4878 = vrot.slane %v4062, 5
      %v4879 = vsel %vm3254, %v4877, %v4878
      %v4880 = vrot.slane %v4804, 5
      %v4881 = vrot.slane %v4880, 4
      %v4882 = vrot.slane %v4064, 5
      %v4883 = vsel %vm3254, %v4881, %v4882
      %v4884 = vrot.slane %v4882, 4
      %v4885 = vrot.slane %v4065, 5
      %v4886 = vsel %vm3254, %v4884, %v4885
      %v4887 = vrot.slane %v4805, 5
      %v4888 = vrot.slane %v4887, 4
      %v4889 = vrot.slane %v4067, 5
      %v4890 = vsel %vm3254, %v4888, %v4889
      %v4891 = vrot.slane %v4889, 4
      %v4892 = vrot.slane %v4068, 5
      %v4893 = vsel %vm3254, %v4891, %v4892
      %v4894 = vrot.slane %v4806, 5
      %v4895 = vrot.slane %v4894, 4
      %v4896 = vrot.slane %v4070, 5
      %v4897 = vsel %vm3254, %v4895, %v4896
      %v4898 = vrot.slane %v4896, 4
      %v4899 = vrot.slane %v4071, 5
      %v4900 = vsel %vm3254, %v4898, %v4899
      %v4901 = vrot.slane %v4807, 5
      %v4902 = vrot.slane %v4901, 4
      %v4903 = vrot.slane %v4073, 5
      %v4904 = vsel %vm3254, %v4902, %v4903
      %v4905 = vrot.slane %v4903, 4
      %v4906 = vrot.slane %v4074, 5
      %v4907 = vsel %vm3254, %v4905, %v4906
      %v4908 = vrot.slane %v4808, 5
      %v4909 = vrot.slane %v4908, 4
      %v4910 = vrot.slane %v4076, 5
      %v4911 = vsel %vm3254, %v4909, %v4910
      %v4912 = vrot.slane %v4910, 4
      %v4913 = vrot.slane %v4077, 5
      %v4914 = vsel %vm3254, %v4912, %v4913
      %v4915 = vrot.slane %v4809, 5
      %v4916 = vrot.slane %v4915, 4
      %v4917 = vrot.slane %v4079, 5
      %v4918 = vsel %vm3254, %v4916, %v4917
      %v4919 = vrot.slane %v4917, 4
      %v4920 = vrot.slane %v4080, 5
      %v4921 = vsel %vm3254, %v4919, %v4920
      %v4922 = vrot.slane %v4810, 5
      %v4923 = vrot.slane %v4922, 4
      %v4924 = vrot.slane %v4082, 5
      %v4925 = vsel %vm3254, %v4923, %v4924
      %v4926 = vrot.slane %v4924, 4
      %v4927 = vrot.slane %v4083, 5
      %v4928 = vsel %vm3254, %v4926, %v4927
      %v4929 = vrot.slane %v4811, 5
      %v4930 = vrot.slane %v4929, 4
      %v4931 = vrot.slane %v4085, 5
      %v4932 = vsel %vm3254, %v4930, %v4931
      %v4933 = vrot.slane %v4931, 4
      %v4934 = vrot.slane %v4086, 5
      %v4935 = vsel %vm3254, %v4933, %v4934
      %v4936 = vrot.slane %v4812, 5
      %v4937 = vrot.slane %v4936, 4
      %v4938 = vrot.slane %v4088, 5
      %v4939 = vsel %vm3254, %v4937, %v4938
      %v4940 = vrot.slane %v4938, 4
      %v4941 = vrot.slane %v4089, 5
      %v4942 = vsel %vm3254, %v4940, %v4941
      %v4943 = vrot.slane %v4813, 5
      %v4944 = vrot.slane %v4943, 4
      %v4945 = vrot.slane %v4091, 5
      %v4946 = vsel %vm3254, %v4944, %v4945
      %v4947 = vrot.slane %v4945, 4
      %v4948 = vrot.slane %v4092, 5
      %v4949 = vsel %vm3254, %v4947, %v4948
      %v4950 = vrot.slane %v4814, 5
      %v4951 = vrot.slane %v4950, 4
      %v4952 = vrot.slane %v4094, 5
      %v4953 = vsel %vm3254, %v4951, %v4952
      %v4954 = vrot.slane %v4952, 4
      %v4955 = vrot.slane %v4095, 5
      %v4956 = vsel %vm3254, %v4954, %v4955
      %v4957 = vrot.slane %v4815, 5
      %v4958 = vrot.slane %v4957, 4
      %v4959 = vrot.slane %v4097, 5
      %v4960 = vsel %vm3254, %v4958, %v4959
      %v4961 = vrot.slane %v4959, 4
      %v4962 = vrot.slane %v4098, 5
      %v4963 = vsel %vm3254, %v4961, %v4962
      %v4964 = vrot.slane %v4816, 5
      %v4965 = vrot.slane %v4964, 4
      %v4966 = vrot.slane %v4100, 5
      %v4967 = vsel %vm3254, %v4965, %v4966
      %v4968 = vrot.slane %v4966, 4
      %v4969 = vrot.slane %v4101, 5
      %v4970 = vsel %vm3254, %v4968, %v4969
      %v4971 = vrot.slane %v4817, 5
      %v4972 = vrot.slane %v4971, 4
      %v4973 = vrot.slane %v4103, 5
      %v4974 = vsel %vm3254, %v4972, %v4973
      %v4975 = vrot.slane %v4973, 4
      %v4976 = vrot.slane %v4104, 5
      %v4977 = vsel %vm3254, %v4975, %v4976
      %v4978 = vunpack.c.l.b16 %v4869
      %v4979 = vunpack.c.l.b16 %v4872
      %v4980 = vunpack.c.l.b16 %v4876
      %v4981 = vunpack.c.l.b16 %v4879
      %v4982 = vunpack.c.l.b16 %v4883
      %v4983 = vunpack.c.l.b16 %v4886
      %v4984 = vunpack.c.l.b16 %v4890
      %v4985 = vunpack.c.l.b16 %v4893
      %v4986 = vunpack.c.l.b16 %v4897
      %v4987 = vunpack.c.l.b16 %v4900
      %v4988 = vunpack.c.l.b16 %v4904
      %v4989 = vunpack.c.l.b16 %v4907
      %v4990 = vunpack.c.l.b16 %v4911
      %v4991 = vunpack.c.l.b16 %v4914
      %v4992 = vunpack.c.l.b16 %v4918
      %v4993 = vunpack.c.l.b16 %v4921
      %v4994 = vunpack.c.l.b16 %v4925
      %v4995 = vunpack.c.l.b16 %v4928
      %v4996 = vunpack.c.l.b16 %v4932
      %v4997 = vunpack.c.l.b16 %v4935
      %v4998 = vunpack.c.l.b16 %v4939
      %v4999 = vunpack.c.l.b16 %v4942
      %v5000 = vunpack.c.l.b16 %v4946
      %v5001 = vunpack.c.l.b16 %v4949
      %v5002 = vunpack.c.l.b16 %v4953
      %v5003 = vunpack.c.l.b16 %v4956
      %v5004 = vunpack.c.l.b16 %v4960
      %v5005 = vunpack.c.l.b16 %v4963
      %v5006 = vunpack.c.l.b16 %v4967
      %v5007 = vunpack.c.l.b16 %v4970
      %v5008 = vunpack.c.l.b16 %v4974
      %v5009 = vunpack.c.l.b16 %v4977
      %v5010 = vpack.c.b16 %v4979, %v4978
      %v5011 = vpack.c.b16 %v4981, %v4980
      %v5012 = vpack.c.b16 %v4983, %v4982
      %v5013 = vpack.c.b16 %v4985, %v4984
      %v5014 = vpack.c.b16 %v4987, %v4986
      %v5015 = vpack.c.b16 %v4989, %v4988
      %v5016 = vpack.c.b16 %v4991, %v4990
      %v5017 = vpack.c.b16 %v4993, %v4992
      %v5018 = vpack.c.b16 %v4995, %v4994
      %v5019 = vpack.c.b16 %v4997, %v4996
      %v5020 = vpack.c.b16 %v4999, %v4998
      %v5021 = vpack.c.b16 %v5001, %v5000
      %v5022 = vpack.c.b16 %v5003, %v5002
      %v5023 = vpack.c.b16 %v5005, %v5004
      %v5024 = vpack.c.b16 %v5007, %v5006
      %v5025 = vpack.c.b16 %v5009, %v5008
      %v5034 = vunpack.c.l.b16 %v2142
      %v5035 = vunpack.c.l.b16 %v2143
      %v5036 = vunpack.c.l.b16 %v2144
      %v5037 = vunpack.c.l.b16 %v2145
      %v5038 = vunpack.c.l.b16 %v2146
      %v5039 = vunpack.c.l.b16 %v2147
      %v5040 = vunpack.c.l.b16 %v2148
      %v5041 = vunpack.c.l.b16 %v2149
      %v5042 = vpack.c.b16 %v5035, %v5034
      %v5043 = vpack.c.b16 %v5037, %v5036
      %v5044 = vpack.c.b16 %v5039, %v5038
      %v5045 = vpack.c.b16 %v5041, %v5040
      %v5051 = vsel %vm2681, %v5010, 0
      %v5054 = vsel %vm2681, %v5011, 0
      %v5057 = vsel %vm2681, %v5012, 0
      %v5060 = vsel %vm2681, %v5013, 0
      %v5063 = vsel %vm2681, %v5014, 0
      %v5066 = vsel %vm2681, %v5015, 0
      %v5069 = vsel %vm2681, %v5016, 0
      %v5072 = vsel %vm2681, %v5017, 0
      %v5075 = vsel %vm2681, %v5018, 0
      %v5078 = vsel %vm2681, %v5019, 0
      %v5081 = vsel %vm2681, %v5020, 0
      %v5084 = vsel %vm2681, %v5021, 0
      %v5087 = vsel %vm2681, %v5022, 0
      %v5090 = vsel %vm2681, %v5023, 0
      %v5093 = vsel %vm2681, %v5024, 0
      %v5096 = vsel %vm2681, %v5025, 0
      %5098 = vmatprep.subr.bf16.mxu0 0
      %5099 = vmatpush1.bf16.msra.mxu0 %v5042
      %5100 = vmatprep.subr.bf16.mxu0 0
      %5101 = vmatpush1.bf16.msra.mxu0 %v5043
      %5102 = vmatprep.subr.bf16.mxu0 0
      %5103 = vmatpush1.bf16.msra.mxu0 %v5044
      %5104 = vmatprep.subr.bf16.mxu0 0
      %5105 = vmatpush1.bf16.msra.mxu0 %v5045
      %5106 = vmatprep.subr.bf16.mxu0 0
      %5107 = vmatpush1.bf16.msra.mxu0 0
      %5108 = vmatprep.subr.bf16.mxu0 0
      %5109 = vmatpush1.bf16.msra.mxu0 0
      %5110 = vmatprep.subr.bf16.mxu0 0
      %5111 = vmatpush1.bf16.msra.mxu0 0
      %5112 = vmatprep.subr.bf16.mxu0 0
      %5113 = vmatpush1.bf16.msra.mxu0 0
      %5114 = vmatprep.subr.bf16.mxu0 0
      %5115 = vmatpush1.bf16.msra.mxu0 0
      %5116 = vmatprep.subr.bf16.mxu0 0
      %5117 = vmatpush1.bf16.msra.mxu0 0
      %5118 = vmatprep.subr.bf16.mxu0 0
      %5119 = vmatpush1.bf16.msra.mxu0 0
      %5120 = vmatprep.subr.bf16.mxu0 0
      %5121 = vmatpush1.bf16.msra.mxu0 0
      %5122 = vmatprep.subr.bf16.mxu0 0
      %5123 = vmatpush1.bf16.msra.mxu0 0
      %5124 = vmatprep.subr.bf16.mxu0 0
      %5125 = vmatpush1.bf16.msra.mxu0 0
      %5126 = vmatprep.subr.bf16.mxu0 0
      %5127 = vmatpush1.bf16.msra.mxu0 0
      %5128 = vmatprep.subr.bf16.mxu0 0
      %5129 = vmatpush1.bf16.msra.mxu0 0
      %5130 = vmatprep.mubr.bf16.mxu0 0
      %5131 = vmatmul.mubr.bf16.gmra.mrb[0].mxu0 %v5051
      %v5132 = vpop.f32.mrb[0].mxu0
      %v5133 = vadd.f32 0.0, %v5132
      %v5134 = vpop.f32.mrb[0].mxu0
      %v5135 = vpop.f32.mrb[0].mxu0
      %v5136 = vadd.f32 0.0, %v5135
      %v5137 = vpop.f32.mrb[0].mxu0
      %5138 = vmatprep.mubr.bf16.mxu0 0
      %5139 = vmatmul.mubr.bf16.gmra.mrb[0].mxu0 %v5054
      %v5140 = vpop.f32.mrb[0].mxu0
      %v5141 = vadd.f32 0.0, %v5140
      %v5142 = vpop.f32.mrb[0].mxu0
      %v5143 = vpop.f32.mrb[0].mxu0
      %v5144 = vadd.f32 0.0, %v5143
      %v5145 = vpop.f32.mrb[0].mxu0
      %5146 = vmatprep.mubr.bf16.mxu0 0
      %5147 = vmatmul.mubr.bf16.gmra.mrb[0].mxu0 %v5057
      %v5148 = vpop.f32.mrb[0].mxu0
      %v5149 = vadd.f32 0.0, %v5148
      %v5150 = vpop.f32.mrb[0].mxu0
      %v5151 = vpop.f32.mrb[0].mxu0
      %v5152 = vadd.f32 0.0, %v5151
      %v5153 = vpop.f32.mrb[0].mxu0
      %5154 = vmatprep.mubr.bf16.mxu0 0
      %5155 = vmatmul.mubr.bf16.gmra.mrb[0].mxu0 %v5060
      %v5156 = vpop.f32.mrb[0].mxu0
      %v5157 = vadd.f32 0.0, %v5156
      %v5158 = vpop.f32.mrb[0].mxu0
      %v5159 = vpop.f32.mrb[0].mxu0
      %v5160 = vadd.f32 0.0, %v5159
      %v5161 = vpop.f32.mrb[0].mxu0
      %5162 = vmatprep.mubr.bf16.mxu0 0
      %5163 = vmatmul.mubr.bf16.gmra.mrb[0].mxu0 %v5063
      %v5164 = vpop.f32.mrb[0].mxu0
      %v5165 = vadd.f32 0.0, %v5164
      %v5166 = vpop.f32.mrb[0].mxu0
      %v5167 = vpop.f32.mrb[0].mxu0
      %v5168 = vadd.f32 0.0, %v5167
      %v5169 = vpop.f32.mrb[0].mxu0
      %5170 = vmatprep.mubr.bf16.mxu0 0
      %5171 = vmatmul.mubr.bf16.gmra.mrb[0].mxu0 %v5066
      %v5172 = vpop.f32.mrb[0].mxu0
      %v5173 = vadd.f32 0.0, %v5172
      %v5174 = vpop.f32.mrb[0].mxu0
      %v5175 = vpop.f32.mrb[0].mxu0
      %v5176 = vadd.f32 0.0, %v5175
      %v5177 = vpop.f32.mrb[0].mxu0
      %5178 = vmatprep.mubr.bf16.mxu0 0
      %5179 = vmatmul.mubr.bf16.gmra.mrb[0].mxu0 %v5069
      %v5180 = vpop.f32.mrb[0].mxu0
      %v5181 = vadd.f32 0.0, %v5180
      %v5182 = vpop.f32.mrb[0].mxu0
      %v5183 = vpop.f32.mrb[0].mxu0
      %v5184 = vadd.f32 0.0, %v5183
      %v5185 = vpop.f32.mrb[0].mxu0
      %5186 = vmatprep.mubr.bf16.mxu0 0
      %5187 = vmatmul.mubr.bf16.gmra.mrb[0].mxu0 %v5072
      %v5188 = vpop.f32.mrb[0].mxu0
      %v5189 = vadd.f32 0.0, %v5188
      %v5190 = vpop.f32.mrb[0].mxu0
      %v5191 = vpop.f32.mrb[0].mxu0
      %v5192 = vadd.f32 0.0, %v5191
      %v5193 = vpop.f32.mrb[0].mxu0
      %5194 = vmatprep.mubr.bf16.mxu0 0
      %5195 = vmatmul.mubr.bf16.gmra.mrb[0].mxu0 %v5075
      %v5196 = vpop.f32.mrb[0].mxu0
      %v5197 = vadd.f32 0.0, %v5196
      %v5198 = vpop.f32.mrb[0].mxu0
      %v5199 = vpop.f32.mrb[0].mxu0
      %v5200 = vadd.f32 0.0, %v5199
      %v5201 = vpop.f32.mrb[0].mxu0
      %5202 = vmatprep.mubr.bf16.mxu0 0
      %5203 = vmatmul.mubr.bf16.gmra.mrb[0].mxu0 %v5078
      %v5204 = vpop.f32.mrb[0].mxu0
      %v5205 = vadd.f32 0.0, %v5204
      %v5206 = vpop.f32.mrb[0].mxu0
      %v5207 = vpop.f32.mrb[0].mxu0
      %v5208 = vadd.f32 0.0, %v5207
      %v5209 = vpop.f32.mrb[0].mxu0
      %5210 = vmatprep.mubr.bf16.mxu0 0
      %5211 = vmatmul.mubr.bf16.gmra.mrb[0].mxu0 %v5081
      %v5212 = vpop.f32.mrb[0].mxu0
      %v5213 = vadd.f32 0.0, %v5212
      %v5214 = vpop.f32.mrb[0].mxu0
      %v5215 = vpop.f32.mrb[0].mxu0
      %v5216 = vadd.f32 0.0, %v5215
      %v5217 = vpop.f32.mrb[0].mxu0
      %5218 = vmatprep.mubr.bf16.mxu0 0
      %5219 = vmatmul.mubr.bf16.gmra.mrb[0].mxu0 %v5084
      %v5220 = vpop.f32.mrb[0].mxu0
      %v5221 = vadd.f32 0.0, %v5220
      %v5222 = vpop.f32.mrb[0].mxu0
      %v5223 = vpop.f32.mrb[0].mxu0
      %v5224 = vadd.f32 0.0, %v5223
      %v5225 = vpop.f32.mrb[0].mxu0
      %5226 = vmatprep.mubr.bf16.mxu0 0
      %5227 = vmatmul.mubr.bf16.gmra.mrb[0].mxu0 %v5087
      %v5228 = vpop.f32.mrb[0].mxu0
      %v5229 = vadd.f32 0.0, %v5228
      %v5230 = vpop.f32.mrb[0].mxu0
      %v5231 = vpop.f32.mrb[0].mxu0
      %v5232 = vadd.f32 0.0, %v5231
      %v5233 = vpop.f32.mrb[0].mxu0
      %5234 = vmatprep.mubr.bf16.mxu0 0
      %5235 = vmatmul.mubr.bf16.gmra.mrb[0].mxu0 %v5090
      %v5236 = vpop.f32.mrb[0].mxu0
      %v5237 = vadd.f32 0.0, %v5236
      %v5238 = vpop.f32.mrb[0].mxu0
      %v5239 = vpop.f32.mrb[0].mxu0
      %v5240 = vadd.f32 0.0, %v5239
      %v5241 = vpop.f32.mrb[0].mxu0
      %5242 = vmatprep.mubr.bf16.mxu0 0
      %5243 = vmatmul.mubr.bf16.gmra.mrb[0].mxu0 %v5093
      %v5244 = vpop.f32.mrb[0].mxu0
      %v5245 = vadd.f32 0.0, %v5244
      %v5246 = vpop.f32.mrb[0].mxu0
      %v5247 = vpop.f32.mrb[0].mxu0
      %v5248 = vadd.f32 0.0, %v5247
      %v5249 = vpop.f32.mrb[0].mxu0
      %5250 = vmatprep.mubr.bf16.mxu0 0
      %5251 = vmatmul.mubr.bf16.gmra.mrb[0].mxu0 %v5096
      %v5252 = vpop.f32.mrb[0].mxu0
      %v5253 = vadd.f32 0.0, %v5252
      %v5254 = vpop.f32.mrb[0].mxu0
      %v5255 = vpop.f32.mrb[0].mxu0
      %v5256 = vadd.f32 0.0, %v5255
      %v5257 = vpop.f32.mrb[0].mxu0
      %5258 = vdwg.mxu0
      %v5259 = vadd.f32 %v4770, %v5133
      %v5260 = vadd.f32 %v4771, %v5136
      %v5261 = vadd.f32 %v4772, %v5141
      %v5262 = vadd.f32 %v4773, %v5144
      %v5263 = vadd.f32 %v4774, %v5149
      %v5264 = vadd.f32 %v4775, %v5152
      %v5265 = vadd.f32 %v4776, %v5157
      %v5266 = vadd.f32 %v4777, %v5160
      %v5267 = vadd.f32 %v4778, %v5165
      %v5268 = vadd.f32 %v4779, %v5168
      %v5269 = vadd.f32 %v4780, %v5173
      %v5270 = vadd.f32 %v4781, %v5176
      %v5271 = vadd.f32 %v4782, %v5181
      %v5272 = vadd.f32 %v4783, %v5184
      %v5273 = vadd.f32 %v4784, %v5189
      %v5274 = vadd.f32 %v4785, %v5192
      %v5275 = vadd.f32 %v4786, %v5197
      %v5276 = vadd.f32 %v4787, %v5200
      %v5277 = vadd.f32 %v4788, %v5205
      %v5278 = vadd.f32 %v4789, %v5208
      %v5279 = vadd.f32 %v4790, %v5213
      %v5280 = vadd.f32 %v4791, %v5216
      %v5281 = vadd.f32 %v4792, %v5221
      %v5282 = vadd.f32 %v4793, %v5224
      %v5283 = vadd.f32 %v4794, %v5229
      %v5284 = vadd.f32 %v4795, %v5232
      %v5285 = vadd.f32 %v4796, %v5237
      %v5286 = vadd.f32 %v4797, %v5240
      %v5287 = vadd.f32 %v4798, %v5245
      %v5288 = vadd.f32 %v4799, %v5248
      %v5289 = vadd.f32 %v4800, %v5253
      %v5290 = vadd.f32 %v4801, %v5256
      %s5291 = scalar_lea.vmem [#allocation2], 24
      %v5292 = vld [vmem:[%s5291] sm:$0xf]
      %v5293 = vld [vmem:[%s5291 + $0x4] sm:$0xf]
      %v5294 = vld [vmem:[%s5291 + $0xc] sm:$0xf]
      %v5295 = vld [vmem:[%s5291 + $0x10] sm:$0xf]
      %v5296 = vld [vmem:[%s5291 + $0x18] sm:$0xf]
      %v5297 = vld [vmem:[%s5291 + $0x1c] sm:$0xf]
      %v5298 = vld [vmem:[%s5291 + $0x24] sm:$0xf]
      %v5299 = vld [vmem:[%s5291 + $0x28] sm:$0xf]
      %v5300 = vld [vmem:[%s5291 + $0x30] sm:$0xf]
      %v5301 = vld [vmem:[%s5291 + $0x34] sm:$0xf]
      %v5302 = vld [vmem:[%s5291 + $0x3c] sm:$0xf]
      %v5303 = vld [vmem:[%s5291 + $0x40] sm:$0xf]
      %v5304 = vld [vmem:[%s5291 + $0x48] sm:$0xf]
      %v5305 = vld [vmem:[%s5291 + $0x4c] sm:$0xf]
      %v5306 = vld [vmem:[%s5291 + $0x54] sm:$0xf]
      %v5307 = vld [vmem:[%s5291 + $0x58] sm:$0xf]
      %v5308 = vld [vmem:[%s5291 + $0x60] sm:$0xf]
      %v5309 = vld [vmem:[%s5291 + $0x64] sm:$0xf]
      %v5310 = vld [vmem:[%s5291 + $0x6c] sm:$0xf]
      %v5311 = vld [vmem:[%s5291 + $0x70] sm:$0xf]
      %v5312 = vld [vmem:[%s5291 + $0x78] sm:$0xf]
      %v5313 = vld [vmem:[%s5291 + $0x7c] sm:$0xf]
      %v5314 = vld [vmem:[%s5291 + $0x84] sm:$0xf]
      %v5315 = vld [vmem:[%s5291 + $0x88] sm:$0xf]
      %v5316 = vld [vmem:[%s5291 + $0x90] sm:$0xf]
      %v5317 = vld [vmem:[%s5291 + $0x94] sm:$0xf]
      %v5318 = vld [vmem:[%s5291 + $0x9c] sm:$0xf]
      %v5319 = vld [vmem:[%s5291 + $0xa0] sm:$0xf]
      %v5320 = vld [vmem:[%s5291 + $0xa8] sm:$0xf]
      %v5321 = vld [vmem:[%s5291 + $0xac] sm:$0xf]
      %v5322 = vld [vmem:[%s5291 + $0xb4] sm:$0xf]
      %v5323 = vld [vmem:[%s5291 + $0xb8] sm:$0xf]
      %v5356 = vunpack.c.l.b16 %v5292
      %v5357 = vunpack.c.l.b16 %v5293
      %v5358 = vunpack.c.l.b16 %v5294
      %v5359 = vunpack.c.l.b16 %v5295
      %v5360 = vunpack.c.l.b16 %v5296
      %v5361 = vunpack.c.l.b16 %v5297
      %v5362 = vunpack.c.l.b16 %v5298
      %v5363 = vunpack.c.l.b16 %v5299
      %v5364 = vunpack.c.l.b16 %v5300
      %v5365 = vunpack.c.l.b16 %v5301
      %v5366 = vunpack.c.l.b16 %v5302
      %v5367 = vunpack.c.l.b16 %v5303
      %v5368 = vunpack.c.l.b16 %v5304
      %v5369 = vunpack.c.l.b16 %v5305
      %v5370 = vunpack.c.l.b16 %v5306
      %v5371 = vunpack.c.l.b16 %v5307
      %v5372 = vunpack.c.l.b16 %v5308
      %v5373 = vunpack.c.l.b16 %v5309
      %v5374 = vunpack.c.l.b16 %v5310
      %v5375 = vunpack.c.l.b16 %v5311
      %v5376 = vunpack.c.l.b16 %v5312
      %v5377 = vunpack.c.l.b16 %v5313
      %v5378 = vunpack.c.l.b16 %v5314
      %v5379 = vunpack.c.l.b16 %v5315
      %v5380 = vunpack.c.l.b16 %v5316
      %v5381 = vunpack.c.l.b16 %v5317
      %v5382 = vunpack.c.l.b16 %v5318
      %v5383 = vunpack.c.l.b16 %v5319
      %v5384 = vunpack.c.l.b16 %v5320
      %v5385 = vunpack.c.l.b16 %v5321
      %v5386 = vunpack.c.l.b16 %v5322
      %v5387 = vunpack.c.l.b16 %v5323
      %v5388 = vpack.c.b16 %v5357, %v5356
      %v5389 = vpack.c.b16 %v5359, %v5358
      %v5390 = vpack.c.b16 %v5361, %v5360
      %v5391 = vpack.c.b16 %v5363, %v5362
      %v5392 = vpack.c.b16 %v5365, %v5364
      %v5393 = vpack.c.b16 %v5367, %v5366
      %v5394 = vpack.c.b16 %v5369, %v5368
      %v5395 = vpack.c.b16 %v5371, %v5370
      %v5396 = vpack.c.b16 %v5373, %v5372
      %v5397 = vpack.c.b16 %v5375, %v5374
      %v5398 = vpack.c.b16 %v5377, %v5376
      %v5399 = vpack.c.b16 %v5379, %v5378
      %v5400 = vpack.c.b16 %v5381, %v5380
      %v5401 = vpack.c.b16 %v5383, %v5382
      %v5402 = vpack.c.b16 %v5385, %v5384
      %v5403 = vpack.c.b16 %v5387, %v5386
      %v5412 = vunpack.c.l.b16 %v2150
      %v5413 = vunpack.c.l.b16 %v2151
      %v5414 = vunpack.c.l.b16 %v2152
      %v5415 = vunpack.c.l.b16 %v2153
      %v5416 = vunpack.c.l.b16 %v2154
      %v5417 = vunpack.c.l.b16 %v2155
      %v5418 = vunpack.c.l.b16 %v2156
      %v5419 = vunpack.c.l.b16 %v2157
      %v5420 = vpack.c.b16 %v5413, %v5412
      %v5421 = vpack.c.b16 %v5415, %v5414
      %v5422 = vpack.c.b16 %v5417, %v5416
      %v5423 = vpack.c.b16 %v5419, %v5418
      %v5429 = vsel %vm2681, %v5388, 0
      %v5432 = vsel %vm2681, %v5389, 0
      %v5435 = vsel %vm2681, %v5390, 0
      %v5438 = vsel %vm2681, %v5391, 0
      %v5441 = vsel %vm2681, %v5392, 0
      %v5444 = vsel %vm2681, %v5393, 0
      %v5447 = vsel %vm2681, %v5394, 0
      %v5450 = vsel %vm2681, %v5395, 0
      %v5453 = vsel %vm2681, %v5396, 0
      %v5456 = vsel %vm2681, %v5397, 0
      %v5459 = vsel %vm2681, %v5398, 0
      %v5462 = vsel %vm2681, %v5399, 0
      %v5465 = vsel %vm2681, %v5400, 0
      %v5468 = vsel %vm2681, %v5401, 0
      %v5471 = vsel %vm2681, %v5402, 0
      %v5474 = vsel %vm2681, %v5403, 0
      %5476 = vmatprep.subr.bf16.mxu0 0
      %5477 = vmatpush1.bf16.msra.mxu0 %v5420
      %5478 = vmatprep.subr.bf16.mxu0 0
      %5479 = vmatpush1.bf16.msra.mxu0 %v5421
      %5480 = vmatprep.subr.bf16.mxu0 0
      %5481 = vmatpush1.bf16.msra.mxu0 %v5422
      %5482 = vmatprep.subr.bf16.mxu0 0
      %5483 = vmatpush1.bf16.msra.mxu0 %v5423
      %5484 = vmatprep.subr.bf16.mxu0 0
      %5485 = vmatpush1.bf16.msra.mxu0 0
      %5486 = vmatprep.subr.bf16.mxu0 0
      %5487 = vmatpush1.bf16.msra.mxu0 0
      %5488 = vmatprep.subr.bf16.mxu0 0
      %5489 = vmatpush1.bf16.msra.mxu0 0
      %5490 = vmatprep.subr.bf16.mxu0 0
      %5491 = vmatpush1.bf16.msra.mxu0 0
      %5492 = vmatprep.subr.bf16.mxu0 0
      %5493 = vmatpush1.bf16.msra.mxu0 0
      %5494 = vmatprep.subr.bf16.mxu0 0
      %5495 = vmatpush1.bf16.msra.mxu0 0
      %5496 = vmatprep.subr.bf16.mxu0 0
      %5497 = vmatpush1.bf16.msra.mxu0 0
      %5498 = vmatprep.subr.bf16.mxu0 0
      %5499 = vmatpush1.bf16.msra.mxu0 0
      %5500 = vmatprep.subr.bf16.mxu0 0
      %5501 = vmatpush1.bf16.msra.mxu0 0
      %5502 = vmatprep.subr.bf16.mxu0 0
      %5503 = vmatpush1.bf16.msra.mxu0 0
      %5504 = vmatprep.subr.bf16.mxu0 0
      %5505 = vmatpush1.bf16.msra.mxu0 0
      %5506 = vmatprep.subr.bf16.mxu0 0
      %5507 = vmatpush1.bf16.msra.mxu0 0
      %5508 = vmatprep.mubr.bf16.mxu0 0
      %5509 = vmatmul.mubr.bf16.gmra.mrb[0].mxu0 %v5429
      %v5510 = vpop.f32.mrb[0].mxu0
      %v5511 = vadd.f32 0.0, %v5510
      %v5512 = vpop.f32.mrb[0].mxu0
      %v5513 = vpop.f32.mrb[0].mxu0
      %v5514 = vadd.f32 0.0, %v5513
      %v5515 = vpop.f32.mrb[0].mxu0
      %5516 = vmatprep.mubr.bf16.mxu0 0
      %5517 = vmatmul.mubr.bf16.gmra.mrb[0].mxu0 %v5432
      %v5518 = vpop.f32.mrb[0].mxu0
      %v5519 = vadd.f32 0.0, %v5518
      %v5520 = vpop.f32.mrb[0].mxu0
      %v5521 = vpop.f32.mrb[0].mxu0
      %v5522 = vadd.f32 0.0, %v5521
      %v5523 = vpop.f32.mrb[0].mxu0
      %5524 = vmatprep.mubr.bf16.mxu0 0
      %5525 = vmatmul.mubr.bf16.gmra.mrb[0].mxu0 %v5435
      %v5526 = vpop.f32.mrb[0].mxu0
      %v5527 = vadd.f32 0.0, %v5526
      %v5528 = vpop.f32.mrb[0].mxu0
      %v5529 = vpop.f32.mrb[0].mxu0
      %v5530 = vadd.f32 0.0, %v5529
      %v5531 = vpop.f32.mrb[0].mxu0
      %5532 = vmatprep.mubr.bf16.mxu0 0
      %5533 = vmatmul.mubr.bf16.gmra.mrb[0].mxu0 %v5438
      %v5534 = vpop.f32.mrb[0].mxu0
      %v5535 = vadd.f32 0.0, %v5534
      %v5536 = vpop.f32.mrb[0].mxu0
      %v5537 = vpop.f32.mrb[0].mxu0
      %v5538 = vadd.f32 0.0, %v5537
      %v5539 = vpop.f32.mrb[0].mxu0
      %5540 = vmatprep.mubr.bf16.mxu0 0
      %5541 = vmatmul.mubr.bf16.gmra.mrb[0].mxu0 %v5441
      %v5542 = vpop.f32.mrb[0].mxu0
      %v5543 = vadd.f32 0.0, %v5542
      %v5544 = vpop.f32.mrb[0].mxu0
      %v5545 = vpop.f32.mrb[0].mxu0
      %v5546 = vadd.f32 0.0, %v5545
      %v5547 = vpop.f32.mrb[0].mxu0
      %5548 = vmatprep.mubr.bf16.mxu0 0
      %5549 = vmatmul.mubr.bf16.gmra.mrb[0].mxu0 %v5444
      %v5550 = vpop.f32.mrb[0].mxu0
      %v5551 = vadd.f32 0.0, %v5550
      %v5552 = vpop.f32.mrb[0].mxu0
      %v5553 = vpop.f32.mrb[0].mxu0
      %v5554 = vadd.f32 0.0, %v5553
      %v5555 = vpop.f32.mrb[0].mxu0
      %5556 = vmatprep.mubr.bf16.mxu0 0
      %5557 = vmatmul.mubr.bf16.gmra.mrb[0].mxu0 %v5447
      %v5558 = vpop.f32.mrb[0].mxu0
      %v5559 = vadd.f32 0.0, %v5558
      %v5560 = vpop.f32.mrb[0].mxu0
      %v5561 = vpop.f32.mrb[0].mxu0
      %v5562 = vadd.f32 0.0, %v5561
      %v5563 = vpop.f32.mrb[0].mxu0
      %5564 = vmatprep.mubr.bf16.mxu0 0
      %5565 = vmatmul.mubr.bf16.gmra.mrb[0].mxu0 %v5450
      %v5566 = vpop.f32.mrb[0].mxu0
      %v5567 = vadd.f32 0.0, %v5566
      %v5568 = vpop.f32.mrb[0].mxu0
      %v5569 = vpop.f32.mrb[0].mxu0
      %v5570 = vadd.f32 0.0, %v5569
      %v5571 = vpop.f32.mrb[0].mxu0
      %5572 = vmatprep.mubr.bf16.mxu0 0
      %5573 = vmatmul.mubr.bf16.gmra.mrb[0].mxu0 %v5453
      %v5574 = vpop.f32.mrb[0].mxu0
      %v5575 = vadd.f32 0.0, %v5574
      %v5576 = vpop.f32.mrb[0].mxu0
      %v5577 = vpop.f32.mrb[0].mxu0
      %v5578 = vadd.f32 0.0, %v5577
      %v5579 = vpop.f32.mrb[0].mxu0
      %5580 = vmatprep.mubr.bf16.mxu0 0
      %5581 = vmatmul.mubr.bf16.gmra.mrb[0].mxu0 %v5456
      %v5582 = vpop.f32.mrb[0].mxu0
      %v5583 = vadd.f32 0.0, %v5582
      %v5584 = vpop.f32.mrb[0].mxu0
      %v5585 = vpop.f32.mrb[0].mxu0
      %v5586 = vadd.f32 0.0, %v5585
      %v5587 = vpop.f32.mrb[0].mxu0
      %5588 = vmatprep.mubr.bf16.mxu0 0
      %5589 = vmatmul.mubr.bf16.gmra.mrb[0].mxu0 %v5459
      %v5590 = vpop.f32.mrb[0].mxu0
      %v5591 = vadd.f32 0.0, %v5590
      %v5592 = vpop.f32.mrb[0].mxu0
      %v5593 = vpop.f32.mrb[0].mxu0
      %v5594 = vadd.f32 0.0, %v5593
      %v5595 = vpop.f32.mrb[0].mxu0
      %5596 = vmatprep.mubr.bf16.mxu0 0
      %5597 = vmatmul.mubr.bf16.gmra.mrb[0].mxu0 %v5462
      %v5598 = vpop.f32.mrb[0].mxu0
      %v5599 = vadd.f32 0.0, %v5598
      %v5600 = vpop.f32.mrb[0].mxu0
      %v5601 = vpop.f32.mrb[0].mxu0
      %v5602 = vadd.f32 0.0, %v5601
      %v5603 = vpop.f32.mrb[0].mxu0
      %5604 = vmatprep.mubr.bf16.mxu0 0
      %5605 = vmatmul.mubr.bf16.gmra.mrb[0].mxu0 %v5465
      %v5606 = vpop.f32.mrb[0].mxu0
      %v5607 = vadd.f32 0.0, %v5606
      %v5608 = vpop.f32.mrb[0].mxu0
      %v5609 = vpop.f32.mrb[0].mxu0
      %v5610 = vadd.f32 0.0, %v5609
      %v5611 = vpop.f32.mrb[0].mxu0
      %5612 = vmatprep.mubr.bf16.mxu0 0
      %5613 = vmatmul.mubr.bf16.gmra.mrb[0].mxu0 %v5468
      %v5614 = vpop.f32.mrb[0].mxu0
      %v5615 = vadd.f32 0.0, %v5614
      %v5616 = vpop.f32.mrb[0].mxu0
      %v5617 = vpop.f32.mrb[0].mxu0
      %v5618 = vadd.f32 0.0, %v5617
      %v5619 = vpop.f32.mrb[0].mxu0
      %5620 = vmatprep.mubr.bf16.mxu0 0
      %5621 = vmatmul.mubr.bf16.gmra.mrb[0].mxu0 %v5471
      %v5622 = vpop.f32.mrb[0].mxu0
      %v5623 = vadd.f32 0.0, %v5622
      %v5624 = vpop.f32.mrb[0].mxu0
      %v5625 = vpop.f32.mrb[0].mxu0
      %v5626 = vadd.f32 0.0, %v5625
      %v5627 = vpop.f32.mrb[0].mxu0
      %5628 = vmatprep.mubr.bf16.mxu0 0
      %5629 = vmatmul.mubr.bf16.gmra.mrb[0].mxu0 %v5474
      %v5630 = vpop.f32.mrb[0].mxu0
      %v5631 = vadd.f32 0.0, %v5630
      %v5632 = vpop.f32.mrb[0].mxu0
      %v5633 = vpop.f32.mrb[0].mxu0
      %v5634 = vadd.f32 0.0, %v5633
      %v5635 = vpop.f32.mrb[0].mxu0
      %5636 = vdwg.mxu0
      %v5637 = vadd.f32 %v5259, %v5511
      %v5638 = vadd.f32 %v5260, %v5514
      %v5639 = vadd.f32 %v5261, %v5519
      %v5640 = vadd.f32 %v5262, %v5522
      %v5641 = vadd.f32 %v5263, %v5527
      %v5642 = vadd.f32 %v5264, %v5530
      %v5643 = vadd.f32 %v5265, %v5535
      %v5644 = vadd.f32 %v5266, %v5538
      %v5645 = vadd.f32 %v5267, %v5543
      %v5646 = vadd.f32 %v5268, %v5546
      %v5647 = vadd.f32 %v5269, %v5551
      %v5648 = vadd.f32 %v5270, %v5554
      %v5649 = vadd.f32 %v5271, %v5559
      %v5650 = vadd.f32 %v5272, %v5562
      %v5651 = vadd.f32 %v5273, %v5567
      %v5652 = vadd.f32 %v5274, %v5570
      %v5653 = vadd.f32 %v5275, %v5575
      %v5654 = vadd.f32 %v5276, %v5578
      %v5655 = vadd.f32 %v5277, %v5583
      %v5656 = vadd.f32 %v5278, %v5586
      %v5657 = vadd.f32 %v5279, %v5591
      %v5658 = vadd.f32 %v5280, %v5594
      %v5659 = vadd.f32 %v5281, %v5599
      %v5660 = vadd.f32 %v5282, %v5602
      %v5661 = vadd.f32 %v5283, %v5607
      %v5662 = vadd.f32 %v5284, %v5610
      %v5663 = vadd.f32 %v5285, %v5615
      %v5664 = vadd.f32 %v5286, %v5618
      %v5665 = vadd.f32 %v5287, %v5623
      %v5666 = vadd.f32 %v5288, %v5626
      %v5667 = vadd.f32 %v5289, %v5631
      %v5668 = vadd.f32 %v5290, %v5634
      %v5669 = vld [vmem:[%s5291] sm:$0xf]
      %v5670 = vld [vmem:[%s5291 + $0x4] sm:$0xf]
      %v5671 = vld [vmem:[%s5291 + $0x8] sm:$0x1]
      %v5672 = vld [vmem:[%s5291 + $0xc] sm:$0xf]
      %v5673 = vld [vmem:[%s5291 + $0x10] sm:$0xf]
      %v5674 = vld [vmem:[%s5291 + $0x14] sm:$0x1]
      %v5675 = vld [vmem:[%s5291 + $0x18] sm:$0xf]
      %v5676 = vld [vmem:[%s5291 + $0x1c] sm:$0xf]
      %v5677 = vld [vmem:[%s5291 + $0x20] sm:$0x1]
      %v5678 = vld [vmem:[%s5291 + $0x24] sm:$0xf]
      %v5679 = vld [vmem:[%s5291 + $0x28] sm:$0xf]
      %v5680 = vld [vmem:[%s5291 + $0x2c] sm:$0x1]
      %v5681 = vld [vmem:[%s5291 + $0x30] sm:$0xf]
      %v5682 = vld [vmem:[%s5291 + $0x34] sm:$0xf]
      %v5683 = vld [vmem:[%s5291 + $0x38] sm:$0x1]
      %v5684 = vld [vmem:[%s5291 + $0x3c] sm:$0xf]
      %v5685 = vld [vmem:[%s5291 + $0x40] sm:$0xf]
      %v5686 = vld [vmem:[%s5291 + $0x44] sm:$0x1]
      %v5687 = vld [vmem:[%s5291 + $0x48] sm:$0xf]
      %v5688 = vld [vmem:[%s5291 + $0x4c] sm:$0xf]
      %v5689 = vld [vmem:[%s5291 + $0x50] sm:$0x1]
      %v5690 = vld [vmem:[%s5291 + $0x54] sm:$0xf]
      %v5691 = vld [vmem:[%s5291 + $0x58] sm:$0xf]
      %v5692 = vld [vmem:[%s5291 + $0x5c] sm:$0x1]
      %v5693 = vld [vmem:[%s5291 + $0x60] sm:$0xf]
      %v5694 = vld [vmem:[%s5291 + $0x64] sm:$0xf]
      %v5695 = vld [vmem:[%s5291 + $0x68] sm:$0x1]
      %v5696 = vld [vmem:[%s5291 + $0x6c] sm:$0xf]
      %v5697 = vld [vmem:[%s5291 + $0x70] sm:$0xf]
      %v5698 = vld [vmem:[%s5291 + $0x74] sm:$0x1]
      %v5699 = vld [vmem:[%s5291 + $0x78] sm:$0xf]
      %v5700 = vld [vmem:[%s5291 + $0x7c] sm:$0xf]
      %v5701 = vld [vmem:[%s5291 + $0x80] sm:$0x1]
      %v5702 = vld [vmem:[%s5291 + $0x84] sm:$0xf]
      %v5703 = vld [vmem:[%s5291 + $0x88] sm:$0xf]
      %v5704 = vld [vmem:[%s5291 + $0x8c] sm:$0x1]
      %v5705 = vld [vmem:[%s5291 + $0x90] sm:$0xf]
      %v5706 = vld [vmem:[%s5291 + $0x94] sm:$0xf]
      %v5707 = vld [vmem:[%s5291 + $0x98] sm:$0x1]
      %v5708 = vld [vmem:[%s5291 + $0x9c] sm:$0xf]
      %v5709 = vld [vmem:[%s5291 + $0xa0] sm:$0xf]
      %v5710 = vld [vmem:[%s5291 + $0xa4] sm:$0x1]
      %v5711 = vld [vmem:[%s5291 + $0xa8] sm:$0xf]
      %v5712 = vld [vmem:[%s5291 + $0xac] sm:$0xf]
      %v5713 = vld [vmem:[%s5291 + $0xb0] sm:$0x1]
      %v5714 = vld [vmem:[%s5291 + $0xb4] sm:$0xf]
      %v5715 = vld [vmem:[%s5291 + $0xb8] sm:$0xf]
      %v5716 = vld [vmem:[%s5291 + $0xbc] sm:$0x1]
      %v5718 = vshrl.u32 %v5669, 16
      %v5720 = vrot.slane %v5718, 4
      %v5721 = vshll.u32 %v5669, 16
      %v5723 = vrot.slane %v5721, 5
      %v5724 = vor.u32 %v5720, %v5723
      %v5725 = vrot.slane %v5724, 4
      %v5727 = vshll.u32 %v5670, 16
      %v5729 = vrot.slane %v5727, 5
      %v5730 = vsel %vm2224, %v5725, %v5729
      %v5731 = vshrl.u32 %v5670, 16
      %v5733 = vrot.slane %v5731, 4
      %v5734 = vor.u32 %v5733, %v5729
      %v5735 = vrot.slane %v5734, 4
      %v5737 = vshll.u32 %v5671, 16
      %v5739 = vrot.slane %v5737, 5
      %v5740 = vsel %vm2224, %v5735, %v5739
      %v5742 = vshrl.u32 %v5672, 16
      %v5744 = vrot.slane %v5742, 4
      %v5745 = vshll.u32 %v5672, 16
      %v5747 = vrot.slane %v5745, 5
      %v5748 = vor.u32 %v5744, %v5747
      %v5749 = vrot.slane %v5748, 4
      %v5751 = vshll.u32 %v5673, 16
      %v5753 = vrot.slane %v5751, 5
      %v5754 = vsel %vm2224, %v5749, %v5753
      %v5755 = vshrl.u32 %v5673, 16
      %v5757 = vrot.slane %v5755, 4
      %v5758 = vor.u32 %v5757, %v5753
      %v5759 = vrot.slane %v5758, 4
      %v5761 = vshll.u32 %v5674, 16
      %v5763 = vrot.slane %v5761, 5
      %v5764 = vsel %vm2224, %v5759, %v5763
      %v5766 = vshrl.u32 %v5675, 16
      %v5768 = vrot.slane %v5766, 4
      %v5769 = vshll.u32 %v5675, 16
      %v5771 = vrot.slane %v5769, 5
      %v5772 = vor.u32 %v5768, %v5771
      %v5773 = vrot.slane %v5772, 4
      %v5775 = vshll.u32 %v5676, 16
      %v5777 = vrot.slane %v5775, 5
      %v5778 = vsel %vm2224, %v5773, %v5777
      %v5779 = vshrl.u32 %v5676, 16
      %v5781 = vrot.slane %v5779, 4
      %v5782 = vor.u32 %v5781, %v5777
      %v5783 = vrot.slane %v5782, 4
      %v5785 = vshll.u32 %v5677, 16
      %v5787 = vrot.slane %v5785, 5
      %v5788 = vsel %vm2224, %v5783, %v5787
      %v5790 = vshrl.u32 %v5678, 16
      %v5792 = vrot.slane %v5790, 4
      %v5793 = vshll.u32 %v5678, 16
      %v5795 = vrot.slane %v5793, 5
      %v5796 = vor.u32 %v5792, %v5795
      %v5797 = vrot.slane %v5796, 4
      %v5799 = vshll.u32 %v5679, 16
      %v5801 = vrot.slane %v5799, 5
      %v5802 = vsel %vm2224, %v5797, %v5801
      %v5803 = vshrl.u32 %v5679, 16
      %v5805 = vrot.slane %v5803, 4
      %v5806 = vor.u32 %v5805, %v5801
      %v5807 = vrot.slane %v5806, 4
      %v5809 = vshll.u32 %v5680, 16
      %v5811 = vrot.slane %v5809, 5
      %v5812 = vsel %vm2224, %v5807, %v5811
      %v5814 = vshrl.u32 %v5681, 16
      %v5816 = vrot.slane %v5814, 4
      %v5817 = vshll.u32 %v5681, 16
      %v5819 = vrot.slane %v5817, 5
      %v5820 = vor.u32 %v5816, %v5819
      %v5821 = vrot.slane %v5820, 4
      %v5823 = vshll.u32 %v5682, 16
      %v5825 = vrot.slane %v5823, 5
      %v5826 = vsel %vm2224, %v5821, %v5825
      %v5827 = vshrl.u32 %v5682, 16
      %v5829 = vrot.slane %v5827, 4
      %v5830 = vor.u32 %v5829, %v5825
      %v5831 = vrot.slane %v5830, 4
      %v5833 = vshll.u32 %v5683, 16
      %v5835 = vrot.slane %v5833, 5
      %v5836 = vsel %vm2224, %v5831, %v5835
      %v5838 = vshrl.u32 %v5684, 16
      %v5840 = vrot.slane %v5838, 4
      %v5841 = vshll.u32 %v5684, 16
      %v5843 = vrot.slane %v5841, 5
      %v5844 = vor.u32 %v5840, %v5843
      %v5845 = vrot.slane %v5844, 4
      %v5847 = vshll.u32 %v5685, 16
      %v5849 = vrot.slane %v5847, 5
      %v5850 = vsel %vm2224, %v5845, %v5849
      %v5851 = vshrl.u32 %v5685, 16
      %v5853 = vrot.slane %v5851, 4
      %v5854 = vor.u32 %v5853, %v5849
      %v5855 = vrot.slane %v5854, 4
      %v5857 = vshll.u32 %v5686, 16
      %v5859 = vrot.slane %v5857, 5
      %v5860 = vsel %vm2224, %v5855, %v5859
      %v5862 = vshrl.u32 %v5687, 16
      %v5864 = vrot.slane %v5862, 4
      %v5865 = vshll.u32 %v5687, 16
      %v5867 = vrot.slane %v5865, 5
      %v5868 = vor.u32 %v5864, %v5867
      %v5869 = vrot.slane %v5868, 4
      %v5871 = vshll.u32 %v5688, 16
      %v5873 = vrot.slane %v5871, 5
      %v5874 = vsel %vm2224, %v5869, %v5873
      %v5875 = vshrl.u32 %v5688, 16
      %v5877 = vrot.slane %v5875, 4
      %v5878 = vor.u32 %v5877, %v5873
      %v5879 = vrot.slane %v5878, 4
      %v5881 = vshll.u32 %v5689, 16
      %v5883 = vrot.slane %v5881, 5
      %v5884 = vsel %vm2224, %v5879, %v5883
      %v5886 = vshrl.u32 %v5690, 16
      %v5888 = vrot.slane %v5886, 4
      %v5889 = vshll.u32 %v5690, 16
      %v5891 = vrot.slane %v5889, 5
      %v5892 = vor.u32 %v5888, %v5891
      %v5893 = vrot.slane %v5892, 4
      %v5895 = vshll.u32 %v5691, 16
      %v5897 = vrot.slane %v5895, 5
      %v5898 = vsel %vm2224, %v5893, %v5897
      %v5899 = vshrl.u32 %v5691, 16
      %v5901 = vrot.slane %v5899, 4
      %v5902 = vor.u32 %v5901, %v5897
      %v5903 = vrot.slane %v5902, 4
      %v5905 = vshll.u32 %v5692, 16
      %v5907 = vrot.slane %v5905, 5
      %v5908 = vsel %vm2224, %v5903, %v5907
      %v5910 = vshrl.u32 %v5693, 16
      %v5912 = vrot.slane %v5910, 4
      %v5913 = vshll.u32 %v5693, 16
      %v5915 = vrot.slane %v5913, 5
      %v5916 = vor.u32 %v5912, %v5915
      %v5917 = vrot.slane %v5916, 4
      %v5919 = vshll.u32 %v5694, 16
      %v5921 = vrot.slane %v5919, 5
      %v5922 = vsel %vm2224, %v5917, %v5921
      %v5923 = vshrl.u32 %v5694, 16
      %v5925 = vrot.slane %v5923, 4
      %v5926 = vor.u32 %v5925, %v5921
      %v5927 = vrot.slane %v5926, 4
      %v5929 = vshll.u32 %v5695, 16
      %v5931 = vrot.slane %v5929, 5
      %v5932 = vsel %vm2224, %v5927, %v5931
      %v5934 = vshrl.u32 %v5696, 16
      %v5936 = vrot.slane %v5934, 4
      %v5937 = vshll.u32 %v5696, 16
      %v5939 = vrot.slane %v5937, 5
      %v5940 = vor.u32 %v5936, %v5939
      %v5941 = vrot.slane %v5940, 4
      %v5943 = vshll.u32 %v5697, 16
      %v5945 = vrot.slane %v5943, 5
      %v5946 = vsel %vm2224, %v5941, %v5945
      %v5947 = vshrl.u32 %v5697, 16
      %v5949 = vrot.slane %v5947, 4
      %v5950 = vor.u32 %v5949, %v5945
      %v5951 = vrot.slane %v5950, 4
      %v5953 = vshll.u32 %v5698, 16
      %v5955 = vrot.slane %v5953, 5
      %v5956 = vsel %vm2224, %v5951, %v5955
      %v5958 = vshrl.u32 %v5699, 16
      %v5960 = vrot.slane %v5958, 4
      %v5961 = vshll.u32 %v5699, 16
      %v5963 = vrot.slane %v5961, 5
      %v5964 = vor.u32 %v5960, %v5963
      %v5965 = vrot.slane %v5964, 4
      %v5967 = vshll.u32 %v5700, 16
      %v5969 = vrot.slane %v5967, 5
      %v5970 = vsel %vm2224, %v5965, %v5969
      %v5971 = vshrl.u32 %v5700, 16
      %v5973 = vrot.slane %v5971, 4
      %v5974 = vor.u32 %v5973, %v5969
      %v5975 = vrot.slane %v5974, 4
      %v5977 = vshll.u32 %v5701, 16
      %v5979 = vrot.slane %v5977, 5
      %v5980 = vsel %vm2224, %v5975, %v5979
      %v5982 = vshrl.u32 %v5702, 16
      %v5984 = vrot.slane %v5982, 4
      %v5985 = vshll.u32 %v5702, 16
      %v5987 = vrot.slane %v5985, 5
      %v5988 = vor.u32 %v5984, %v5987
      %v5989 = vrot.slane %v5988, 4
      %v5991 = vshll.u32 %v5703, 16
      %v5993 = vrot.slane %v5991, 5
      %v5994 = vsel %vm2224, %v5989, %v5993
      %v5995 = vshrl.u32 %v5703, 16
      %v5997 = vrot.slane %v5995, 4
      %v5998 = vor.u32 %v5997, %v5993
      %v5999 = vrot.slane %v5998, 4
      %v6001 = vshll.u32 %v5704, 16
      %v6003 = vrot.slane %v6001, 5
      %v6004 = vsel %vm2224, %v5999, %v6003
      %v6006 = vshrl.u32 %v5705, 16
      %v6008 = vrot.slane %v6006, 4
      %v6009 = vshll.u32 %v5705, 16
      %v6011 = vrot.slane %v6009, 5
      %v6012 = vor.u32 %v6008, %v6011
      %v6013 = vrot.slane %v6012, 4
      %v6015 = vshll.u32 %v5706, 16
      %v6017 = vrot.slane %v6015, 5
      %v6018 = vsel %vm2224, %v6013, %v6017
      %v6019 = vshrl.u32 %v5706, 16
      %v6021 = vrot.slane %v6019, 4
      %v6022 = vor.u32 %v6021, %v6017
      %v6023 = vrot.slane %v6022, 4
      %v6025 = vshll.u32 %v5707, 16
      %v6027 = vrot.slane %v6025, 5
      %v6028 = vsel %vm2224, %v6023, %v6027
      %v6030 = vshrl.u32 %v5708, 16
      %v6032 = vrot.slane %v6030, 4
      %v6033 = vshll.u32 %v5708, 16
      %v6035 = vrot.slane %v6033, 5
      %v6036 = vor.u32 %v6032, %v6035
      %v6037 = vrot.slane %v6036, 4
      %v6039 = vshll.u32 %v5709, 16
      %v6041 = vrot.slane %v6039, 5
      %v6042 = vsel %vm2224, %v6037, %v6041
      %v6043 = vshrl.u32 %v5709, 16
      %v6045 = vrot.slane %v6043, 4
      %v6046 = vor.u32 %v6045, %v6041
      %v6047 = vrot.slane %v6046, 4
      %v6049 = vshll.u32 %v5710, 16
      %v6051 = vrot.slane %v6049, 5
      %v6052 = vsel %vm2224, %v6047, %v6051
      %v6054 = vshrl.u32 %v5711, 16
      %v6056 = vrot.slane %v6054, 4
      %v6057 = vshll.u32 %v5711, 16
      %v6059 = vrot.slane %v6057, 5
      %v6060 = vor.u32 %v6056, %v6059
      %v6061 = vrot.slane %v6060, 4
      %v6063 = vshll.u32 %v5712, 16
      %v6065 = vrot.slane %v6063, 5
      %v6066 = vsel %vm2224, %v6061, %v6065
      %v6067 = vshrl.u32 %v5712, 16
      %v6069 = vrot.slane %v6067, 4
      %v6070 = vor.u32 %v6069, %v6065
      %v6071 = vrot.slane %v6070, 4
      %v6073 = vshll.u32 %v5713, 16
      %v6075 = vrot.slane %v6073, 5
      %v6076 = vsel %vm2224, %v6071, %v6075
      %v6078 = vshrl.u32 %v5714, 16
      %v6080 = vrot.slane %v6078, 4
      %v6081 = vshll.u32 %v5714, 16
      %v6083 = vrot.slane %v6081, 5
      %v6084 = vor.u32 %v6080, %v6083
      %v6085 = vrot.slane %v6084, 4
      %v6087 = vshll.u32 %v5715, 16
      %v6089 = vrot.slane %v6087, 5
      %v6090 = vsel %vm2224, %v6085, %v6089
      %v6091 = vshrl.u32 %v5715, 16
      %v6093 = vrot.slane %v6091, 4
      %v6094 = vor.u32 %v6093, %v6089
      %v6095 = vrot.slane %v6094, 4
      %v6097 = vshll.u32 %v5716, 16
      %v6099 = vrot.slane %v6097, 5
      %v6100 = vsel %vm2224, %v6095, %v6099
      %v6101 = vunpack.c.l.b16 %v5730
      %v6102 = vunpack.c.l.b16 %v5740
      %v6103 = vunpack.c.l.b16 %v5754
      %v6104 = vunpack.c.l.b16 %v5764
      %v6105 = vunpack.c.l.b16 %v5778
      %v6106 = vunpack.c.l.b16 %v5788
      %v6107 = vunpack.c.l.b16 %v5802
      %v6108 = vunpack.c.l.b16 %v5812
      %v6109 = vunpack.c.l.b16 %v5826
      %v6110 = vunpack.c.l.b16 %v5836
      %v6111 = vunpack.c.l.b16 %v5850
      %v6112 = vunpack.c.l.b16 %v5860
      %v6113 = vunpack.c.l.b16 %v5874
      %v6114 = vunpack.c.l.b16 %v5884
      %v6115 = vunpack.c.l.b16 %v5898
      %v6116 = vunpack.c.l.b16 %v5908
      %v6117 = vunpack.c.l.b16 %v5922
      %v6118 = vunpack.c.l.b16 %v5932
      %v6119 = vunpack.c.l.b16 %v5946
      %v6120 = vunpack.c.l.b16 %v5956
      %v6121 = vunpack.c.l.b16 %v5970
      %v6122 = vunpack.c.l.b16 %v5980
      %v6123 = vunpack.c.l.b16 %v5994
      %v6124 = vunpack.c.l.b16 %v6004
      %v6125 = vunpack.c.l.b16 %v6018
      %v6126 = vunpack.c.l.b16 %v6028
      %v6127 = vunpack.c.l.b16 %v6042
      %v6128 = vunpack.c.l.b16 %v6052
      %v6129 = vunpack.c.l.b16 %v6066
      %v6130 = vunpack.c.l.b16 %v6076
      %v6131 = vunpack.c.l.b16 %v6090
      %v6132 = vunpack.c.l.b16 %v6100
      %v6133 = vpack.c.b16 %v6102, %v6101
      %v6134 = vpack.c.b16 %v6104, %v6103
      %v6135 = vpack.c.b16 %v6106, %v6105
      %v6136 = vpack.c.b16 %v6108, %v6107
      %v6137 = vpack.c.b16 %v6110, %v6109
      %v6138 = vpack.c.b16 %v6112, %v6111
      %v6139 = vpack.c.b16 %v6114, %v6113
      %v6140 = vpack.c.b16 %v6116, %v6115
      %v6141 = vpack.c.b16 %v6118, %v6117
      %v6142 = vpack.c.b16 %v6120, %v6119
      %v6143 = vpack.c.b16 %v6122, %v6121
      %v6144 = vpack.c.b16 %v6124, %v6123
      %v6145 = vpack.c.b16 %v6126, %v6125
      %v6146 = vpack.c.b16 %v6128, %v6127
      %v6147 = vpack.c.b16 %v6130, %v6129
      %v6148 = vpack.c.b16 %v6132, %v6131
      %v6157 = vunpack.c.l.b16 %v2158
      %v6158 = vunpack.c.l.b16 %v2159
      %v6159 = vunpack.c.l.b16 %v2160
      %v6160 = vunpack.c.l.b16 %v2161
      %v6161 = vunpack.c.l.b16 %v2162
      %v6162 = vunpack.c.l.b16 %v2163
      %v6163 = vunpack.c.l.b16 %v2164
      %v6164 = vunpack.c.l.b16 %v2165
      %v6165 = vpack.c.b16 %v6158, %v6157
      %v6166 = vpack.c.b16 %v6160, %v6159
      %v6167 = vpack.c.b16 %v6162, %v6161
      %v6168 = vpack.c.b16 %v6164, %v6163
      %v6174 = vsel %vm2681, %v6133, 0
      %v6177 = vsel %vm2681, %v6134, 0
      %v6180 = vsel %vm2681, %v6135, 0
      %v6183 = vsel %vm2681, %v6136, 0
      %v6186 = vsel %vm2681, %v6137, 0
      %v6189 = vsel %vm2681, %v6138, 0
      %v6192 = vsel %vm2681, %v6139, 0
      %v6195 = vsel %vm2681, %v6140, 0
      %v6198 = vsel %vm2681, %v6141, 0
      %v6201 = vsel %vm2681, %v6142, 0
      %v6204 = vsel %vm2681, %v6143, 0
      %v6207 = vsel %vm2681, %v6144, 0
      %v6210 = vsel %vm2681, %v6145, 0
      %v6213 = vsel %vm2681, %v6146, 0
      %v6216 = vsel %vm2681, %v6147, 0
      %v6219 = vsel %vm2681, %v6148, 0
      %6221 = vmatprep.subr.bf16.mxu0 0
      %6222 = vmatpush1.bf16.msra.mxu0 %v6165
      %6223 = vmatprep.subr.bf16.mxu0 0
      %6224 = vmatpush1.bf16.msra.mxu0 %v6166
      %6225 = vmatprep.subr.bf16.mxu0 0
      %6226 = vmatpush1.bf16.msra.mxu0 %v6167
      %6227 = vmatprep.subr.bf16.mxu0 0
      %6228 = vmatpush1.bf16.msra.mxu0 %v6168
      %6229 = vmatprep.subr.bf16.mxu0 0
      %6230 = vmatpush1.bf16.msra.mxu0 0
      %6231 = vmatprep.subr.bf16.mxu0 0
      %6232 = vmatpush1.bf16.msra.mxu0 0
      %6233 = vmatprep.subr.bf16.mxu0 0
      %6234 = vmatpush1.bf16.msra.mxu0 0
      %6235 = vmatprep.subr.bf16.mxu0 0
      %6236 = vmatpush1.bf16.msra.mxu0 0
      %6237 = vmatprep.subr.bf16.mxu0 0
      %6238 = vmatpush1.bf16.msra.mxu0 0
      %6239 = vmatprep.subr.bf16.mxu0 0
      %6240 = vmatpush1.bf16.msra.mxu0 0
      %6241 = vmatprep.subr.bf16.mxu0 0
      %6242 = vmatpush1.bf16.msra.mxu0 0
      %6243 = vmatprep.subr.bf16.mxu0 0
      %6244 = vmatpush1.bf16.msra.mxu0 0
      %6245 = vmatprep.subr.bf16.mxu0 0
      %6246 = vmatpush1.bf16.msra.mxu0 0
      %6247 = vmatprep.subr.bf16.mxu0 0
      %6248 = vmatpush1.bf16.msra.mxu0 0
      %6249 = vmatprep.subr.bf16.mxu0 0
      %6250 = vmatpush1.bf16.msra.mxu0 0
      %6251 = vmatprep.subr.bf16.mxu0 0
      %6252 = vmatpush1.bf16.msra.mxu0 0
      %6253 = vmatprep.mubr.bf16.mxu0 0
      %6254 = vmatmul.mubr.bf16.gmra.mrb[0].mxu0 %v6174
      %v6255 = vpop.f32.mrb[0].mxu0
      %v6256 = vadd.f32 0.0, %v6255
      %v6257 = vpop.f32.mrb[0].mxu0
      %v6258 = vpop.f32.mrb[0].mxu0
      %v6259 = vadd.f32 0.0, %v6258
      %v6260 = vpop.f32.mrb[0].mxu0
      %6261 = vmatprep.mubr.bf16.mxu0 0
      %6262 = vmatmul.mubr.bf16.gmra.mrb[0].mxu0 %v6177
      %v6263 = vpop.f32.mrb[0].mxu0
      %v6264 = vadd.f32 0.0, %v6263
      %v6265 = vpop.f32.mrb[0].mxu0
      %v6266 = vpop.f32.mrb[0].mxu0
      %v6267 = vadd.f32 0.0, %v6266
      %v6268 = vpop.f32.mrb[0].mxu0
      %6269 = vmatprep.mubr.bf16.mxu0 0
      %6270 = vmatmul.mubr.bf16.gmra.mrb[0].mxu0 %v6180
      %v6271 = vpop.f32.mrb[0].mxu0
      %v6272 = vadd.f32 0.0, %v6271
      %v6273 = vpop.f32.mrb[0].mxu0
      %v6274 = vpop.f32.mrb[0].mxu0
      %v6275 = vadd.f32 0.0, %v6274
      %v6276 = vpop.f32.mrb[0].mxu0
      %6277 = vmatprep.mubr.bf16.mxu0 0
      %6278 = vmatmul.mubr.bf16.gmra.mrb[0].mxu0 %v6183
      %v6279 = vpop.f32.mrb[0].mxu0
      %v6280 = vadd.f32 0.0, %v6279
      %v6281 = vpop.f32.mrb[0].mxu0
      %v6282 = vpop.f32.mrb[0].mxu0
      %v6283 = vadd.f32 0.0, %v6282
      %v6284 = vpop.f32.mrb[0].mxu0
      %6285 = vmatprep.mubr.bf16.mxu0 0
      %6286 = vmatmul.mubr.bf16.gmra.mrb[0].mxu0 %v6186
      %v6287 = vpop.f32.mrb[0].mxu0
      %v6288 = vadd.f32 0.0, %v6287
      %v6289 = vpop.f32.mrb[0].mxu0
      %v6290 = vpop.f32.mrb[0].mxu0
      %v6291 = vadd.f32 0.0, %v6290
      %v6292 = vpop.f32.mrb[0].mxu0
      %6293 = vmatprep.mubr.bf16.mxu0 0
      %6294 = vmatmul.mubr.bf16.gmra.mrb[0].mxu0 %v6189
      %v6295 = vpop.f32.mrb[0].mxu0
      %v6296 = vadd.f32 0.0, %v6295
      %v6297 = vpop.f32.mrb[0].mxu0
      %v6298 = vpop.f32.mrb[0].mxu0
      %v6299 = vadd.f32 0.0, %v6298
      %v6300 = vpop.f32.mrb[0].mxu0
      %6301 = vmatprep.mubr.bf16.mxu0 0
      %6302 = vmatmul.mubr.bf16.gmra.mrb[0].mxu0 %v6192
      %v6303 = vpop.f32.mrb[0].mxu0
      %v6304 = vadd.f32 0.0, %v6303
      %v6305 = vpop.f32.mrb[0].mxu0
      %v6306 = vpop.f32.mrb[0].mxu0
      %v6307 = vadd.f32 0.0, %v6306
      %v6308 = vpop.f32.mrb[0].mxu0
      %6309 = vmatprep.mubr.bf16.mxu0 0
      %6310 = vmatmul.mubr.bf16.gmra.mrb[0].mxu0 %v6195
      %v6311 = vpop.f32.mrb[0].mxu0
      %v6312 = vadd.f32 0.0, %v6311
      %v6313 = vpop.f32.mrb[0].mxu0
      %v6314 = vpop.f32.mrb[0].mxu0
      %v6315 = vadd.f32 0.0, %v6314
      %v6316 = vpop.f32.mrb[0].mxu0
      %6317 = vmatprep.mubr.bf16.mxu0 0
      %6318 = vmatmul.mubr.bf16.gmra.mrb[0].mxu0 %v6198
      %v6319 = vpop.f32.mrb[0].mxu0
      %v6320 = vadd.f32 0.0, %v6319
      %v6321 = vpop.f32.mrb[0].mxu0
      %v6322 = vpop.f32.mrb[0].mxu0
      %v6323 = vadd.f32 0.0, %v6322
      %v6324 = vpop.f32.mrb[0].mxu0
      %6325 = vmatprep.mubr.bf16.mxu0 0
      %6326 = vmatmul.mubr.bf16.gmra.mrb[0].mxu0 %v6201
      %v6327 = vpop.f32.mrb[0].mxu0
      %v6328 = vadd.f32 0.0, %v6327
      %v6329 = vpop.f32.mrb[0].mxu0
      %v6330 = vpop.f32.mrb[0].mxu0
      %v6331 = vadd.f32 0.0, %v6330
      %v6332 = vpop.f32.mrb[0].mxu0
      %6333 = vmatprep.mubr.bf16.mxu0 0
      %6334 = vmatmul.mubr.bf16.gmra.mrb[0].mxu0 %v6204
      %v6335 = vpop.f32.mrb[0].mxu0
      %v6336 = vadd.f32 0.0, %v6335
      %v6337 = vpop.f32.mrb[0].mxu0
      %v6338 = vpop.f32.mrb[0].mxu0
      %v6339 = vadd.f32 0.0, %v6338
      %v6340 = vpop.f32.mrb[0].mxu0
      %6341 = vmatprep.mubr.bf16.mxu0 0
      %6342 = vmatmul.mubr.bf16.gmra.mrb[0].mxu0 %v6207
      %v6343 = vpop.f32.mrb[0].mxu0
      %v6344 = vadd.f32 0.0, %v6343
      %v6345 = vpop.f32.mrb[0].mxu0
      %v6346 = vpop.f32.mrb[0].mxu0
      %v6347 = vadd.f32 0.0, %v6346
      %v6348 = vpop.f32.mrb[0].mxu0
      %6349 = vmatprep.mubr.bf16.mxu0 0
      %6350 = vmatmul.mubr.bf16.gmra.mrb[0].mxu0 %v6210
      %v6351 = vpop.f32.mrb[0].mxu0
      %v6352 = vadd.f32 0.0, %v6351
      %v6353 = vpop.f32.mrb[0].mxu0
      %v6354 = vpop.f32.mrb[0].mxu0
      %v6355 = vadd.f32 0.0, %v6354
      %v6356 = vpop.f32.mrb[0].mxu0
      %6357 = vmatprep.mubr.bf16.mxu0 0
      %6358 = vmatmul.mubr.bf16.gmra.mrb[0].mxu0 %v6213
      %v6359 = vpop.f32.mrb[0].mxu0
      %v6360 = vadd.f32 0.0, %v6359
      %v6361 = vpop.f32.mrb[0].mxu0
      %v6362 = vpop.f32.mrb[0].mxu0
      %v6363 = vadd.f32 0.0, %v6362
      %v6364 = vpop.f32.mrb[0].mxu0
      %6365 = vmatprep.mubr.bf16.mxu0 0
      %6366 = vmatmul.mubr.bf16.gmra.mrb[0].mxu0 %v6216
      %v6367 = vpop.f32.mrb[0].mxu0
      %v6368 = vadd.f32 0.0, %v6367
      %v6369 = vpop.f32.mrb[0].mxu0
      %v6370 = vpop.f32.mrb[0].mxu0
      %v6371 = vadd.f32 0.0, %v6370
      %v6372 = vpop.f32.mrb[0].mxu0
      %6373 = vmatprep.mubr.bf16.mxu0 0
      %6374 = vmatmul.mubr.bf16.gmra.mrb[0].mxu0 %v6219
      %v6375 = vpop.f32.mrb[0].mxu0
      %v6376 = vadd.f32 0.0, %v6375
      %v6377 = vpop.f32.mrb[0].mxu0
      %v6378 = vpop.f32.mrb[0].mxu0
      %v6379 = vadd.f32 0.0, %v6378
      %v6380 = vpop.f32.mrb[0].mxu0
      %6381 = vdwg.mxu0
      %v6382 = vadd.f32 %v5637, %v6256
      %v6383 = vadd.f32 %v5638, %v6259
      %v6384 = vadd.f32 %v5639, %v6264
      %v6385 = vadd.f32 %v5640, %v6267
      %v6386 = vadd.f32 %v5641, %v6272
      %v6387 = vadd.f32 %v5642, %v6275
      %v6388 = vadd.f32 %v5643, %v6280
      %v6389 = vadd.f32 %v5644, %v6283
      %v6390 = vadd.f32 %v5645, %v6288
      %v6391 = vadd.f32 %v5646, %v6291
      %v6392 = vadd.f32 %v5647, %v6296
      %v6393 = vadd.f32 %v5648, %v6299
      %v6394 = vadd.f32 %v5649, %v6304
      %v6395 = vadd.f32 %v5650, %v6307
      %v6396 = vadd.f32 %v5651, %v6312
      %v6397 = vadd.f32 %v5652, %v6315
      %v6398 = vadd.f32 %v5653, %v6320
      %v6399 = vadd.f32 %v5654, %v6323
      %v6400 = vadd.f32 %v5655, %v6328
      %v6401 = vadd.f32 %v5656, %v6331
      %v6402 = vadd.f32 %v5657, %v6336
      %v6403 = vadd.f32 %v5658, %v6339
      %v6404 = vadd.f32 %v5659, %v6344
      %v6405 = vadd.f32 %v5660, %v6347
      %v6406 = vadd.f32 %v5661, %v6352
      %v6407 = vadd.f32 %v5662, %v6355
      %v6408 = vadd.f32 %v5663, %v6360
      %v6409 = vadd.f32 %v5664, %v6363
      %v6410 = vadd.f32 %v5665, %v6368
      %v6411 = vadd.f32 %v5666, %v6371
      %v6412 = vadd.f32 %v5667, %v6376
      %v6413 = vadd.f32 %v5668, %v6379
      %v6414 = vld [vmem:[%s5291] sm:$0xe]
      %v6415 = vld [vmem:[%s5291 + $0xc] sm:$0xe]
      %v6416 = vld [vmem:[%s5291 + $0x18] sm:$0xe]
      %v6417 = vld [vmem:[%s5291 + $0x24] sm:$0xe]
      %v6418 = vld [vmem:[%s5291 + $0x30] sm:$0xe]
      %v6419 = vld [vmem:[%s5291 + $0x3c] sm:$0xe]
      %v6420 = vld [vmem:[%s5291 + $0x48] sm:$0xe]
      %v6421 = vld [vmem:[%s5291 + $0x54] sm:$0xe]
      %v6422 = vld [vmem:[%s5291 + $0x60] sm:$0xe]
      %v6423 = vld [vmem:[%s5291 + $0x6c] sm:$0xe]
      %v6424 = vld [vmem:[%s5291 + $0x78] sm:$0xe]
      %v6425 = vld [vmem:[%s5291 + $0x84] sm:$0xe]
      %v6426 = vld [vmem:[%s5291 + $0x90] sm:$0xe]
      %v6427 = vld [vmem:[%s5291 + $0x9c] sm:$0xe]
      %v6428 = vld [vmem:[%s5291 + $0xa8] sm:$0xe]
      %v6429 = vld [vmem:[%s5291 + $0xb4] sm:$0xe]
      %v6478 = vrot.slane %v6414, 5
      %v6479 = vrot.slane %v6478, 4
      %v6480 = vrot.slane %v5670, 5
      %v6481 = vsel %vm3254, %v6479, %v6480
      %v6482 = vrot.slane %v6480, 4
      %v6483 = vrot.slane %v5671, 5
      %v6484 = vsel %vm3254, %v6482, %v6483
      %v6485 = vrot.slane %v6415, 5
      %v6486 = vrot.slane %v6485, 4
      %v6487 = vrot.slane %v5673, 5
      %v6488 = vsel %vm3254, %v6486, %v6487
      %v6489 = vrot.slane %v6487, 4
      %v6490 = vrot.slane %v5674, 5
      %v6491 = vsel %vm3254, %v6489, %v6490
      %v6492 = vrot.slane %v6416, 5
      %v6493 = vrot.slane %v6492, 4
      %v6494 = vrot.slane %v5676, 5
      %v6495 = vsel %vm3254, %v6493, %v6494
      %v6496 = vrot.slane %v6494, 4
      %v6497 = vrot.slane %v5677, 5
      %v6498 = vsel %vm3254, %v6496, %v6497
      %v6499 = vrot.slane %v6417, 5
      %v6500 = vrot.slane %v6499, 4
      %v6501 = vrot.slane %v5679, 5
      %v6502 = vsel %vm3254, %v6500, %v6501
      %v6503 = vrot.slane %v6501, 4
      %v6504 = vrot.slane %v5680, 5
      %v6505 = vsel %vm3254, %v6503, %v6504
      %v6506 = vrot.slane %v6418, 5
      %v6507 = vrot.slane %v6506, 4
      %v6508 = vrot.slane %v5682, 5
      %v6509 = vsel %vm3254, %v6507, %v6508
      %v6510 = vrot.slane %v6508, 4
      %v6511 = vrot.slane %v5683, 5
      %v6512 = vsel %vm3254, %v6510, %v6511
      %v6513 = vrot.slane %v6419, 5
      %v6514 = vrot.slane %v6513, 4
      %v6515 = vrot.slane %v5685, 5
      %v6516 = vsel %vm3254, %v6514, %v6515
      %v6517 = vrot.slane %v6515, 4
      %v6518 = vrot.slane %v5686, 5
      %v6519 = vsel %vm3254, %v6517, %v6518
      %v6520 = vrot.slane %v6420, 5
      %v6521 = vrot.slane %v6520, 4
      %v6522 = vrot.slane %v5688, 5
      %v6523 = vsel %vm3254, %v6521, %v6522
      %v6524 = vrot.slane %v6522, 4
      %v6525 = vrot.slane %v5689, 5
      %v6526 = vsel %vm3254, %v6524, %v6525
      %v6527 = vrot.slane %v6421, 5
      %v6528 = vrot.slane %v6527, 4
      %v6529 = vrot.slane %v5691, 5
      %v6530 = vsel %vm3254, %v6528, %v6529
      %v6531 = vrot.slane %v6529, 4
      %v6532 = vrot.slane %v5692, 5
      %v6533 = vsel %vm3254, %v6531, %v6532
      %v6534 = vrot.slane %v6422, 5
      %v6535 = vrot.slane %v6534, 4
      %v6536 = vrot.slane %v5694, 5
      %v6537 = vsel %vm3254, %v6535, %v6536
      %v6538 = vrot.slane %v6536, 4
      %v6539 = vrot.slane %v5695, 5
      %v6540 = vsel %vm3254, %v6538, %v6539
      %v6541 = vrot.slane %v6423, 5
      %v6542 = vrot.slane %v6541, 4
      %v6543 = vrot.slane %v5697, 5
      %v6544 = vsel %vm3254, %v6542, %v6543
      %v6545 = vrot.slane %v6543, 4
      %v6546 = vrot.slane %v5698, 5
      %v6547 = vsel %vm3254, %v6545, %v6546
      %v6548 = vrot.slane %v6424, 5
      %v6549 = vrot.slane %v6548, 4
      %v6550 = vrot.slane %v5700, 5
      %v6551 = vsel %vm3254, %v6549, %v6550
      %v6552 = vrot.slane %v6550, 4
      %v6553 = vrot.slane %v5701, 5
      %v6554 = vsel %vm3254, %v6552, %v6553
      %v6555 = vrot.slane %v6425, 5
      %v6556 = vrot.slane %v6555, 4
      %v6557 = vrot.slane %v5703, 5
      %v6558 = vsel %vm3254, %v6556, %v6557
      %v6559 = vrot.slane %v6557, 4
      %v6560 = vrot.slane %v5704, 5
      %v6561 = vsel %vm3254, %v6559, %v6560
      %v6562 = vrot.slane %v6426, 5
      %v6563 = vrot.slane %v6562, 4
      %v6564 = vrot.slane %v5706, 5
      %v6565 = vsel %vm3254, %v6563, %v6564
      %v6566 = vrot.slane %v6564, 4
      %v6567 = vrot.slane %v5707, 5
      %v6568 = vsel %vm3254, %v6566, %v6567
      %v6569 = vrot.slane %v6427, 5
      %v6570 = vrot.slane %v6569, 4
      %v6571 = vrot.slane %v5709, 5
      %v6572 = vsel %vm3254, %v6570, %v6571
      %v6573 = vrot.slane %v6571, 4
      %v6574 = vrot.slane %v5710, 5
      %v6575 = vsel %vm3254, %v6573, %v6574
      %v6576 = vrot.slane %v6428, 5
      %v6577 = vrot.slane %v6576, 4
      %v6578 = vrot.slane %v5712, 5
      %v6579 = vsel %vm3254, %v6577, %v6578
      %v6580 = vrot.slane %v6578, 4
      %v6581 = vrot.slane %v5713, 5
      %v6582 = vsel %vm3254, %v6580, %v6581
      %v6583 = vrot.slane %v6429, 5
      %v6584 = vrot.slane %v6583, 4
      %v6585 = vrot.slane %v5715, 5
      %v6586 = vsel %vm3254, %v6584, %v6585
      %v6587 = vrot.slane %v6585, 4
      %v6588 = vrot.slane %v5716, 5
      %v6589 = vsel %vm3254, %v6587, %v6588
      %v6590 = vunpack.c.l.b16 %v6481
      %v6591 = vunpack.c.l.b16 %v6484
      %v6592 = vunpack.c.l.b16 %v6488
      %v6593 = vunpack.c.l.b16 %v6491
      %v6594 = vunpack.c.l.b16 %v6495
      %v6595 = vunpack.c.l.b16 %v6498
      %v6596 = vunpack.c.l.b16 %v6502
      %v6597 = vunpack.c.l.b16 %v6505
      %v6598 = vunpack.c.l.b16 %v6509
      %v6599 = vunpack.c.l.b16 %v6512
      %v6600 = vunpack.c.l.b16 %v6516
      %v6601 = vunpack.c.l.b16 %v6519
      %v6602 = vunpack.c.l.b16 %v6523
      %v6603 = vunpack.c.l.b16 %v6526
      %v6604 = vunpack.c.l.b16 %v6530
      %v6605 = vunpack.c.l.b16 %v6533
      %v6606 = vunpack.c.l.b16 %v6537
      %v6607 = vunpack.c.l.b16 %v6540
      %v6608 = vunpack.c.l.b16 %v6544
      %v6609 = vunpack.c.l.b16 %v6547
      %v6610 = vunpack.c.l.b16 %v6551
      %v6611 = vunpack.c.l.b16 %v6554
      %v6612 = vunpack.c.l.b16 %v6558
      %v6613 = vunpack.c.l.b16 %v6561
      %v6614 = vunpack.c.l.b16 %v6565
      %v6615 = vunpack.c.l.b16 %v6568
      %v6616 = vunpack.c.l.b16 %v6572
      %v6617 = vunpack.c.l.b16 %v6575
      %v6618 = vunpack.c.l.b16 %v6579
      %v6619 = vunpack.c.l.b16 %v6582
      %v6620 = vunpack.c.l.b16 %v6586
      %v6621 = vunpack.c.l.b16 %v6589
      %v6622 = vpack.c.b16 %v6591, %v6590
      %v6623 = vpack.c.b16 %v6593, %v6592
      %v6624 = vpack.c.b16 %v6595, %v6594
      %v6625 = vpack.c.b16 %v6597, %v6596
      %v6626 = vpack.c.b16 %v6599, %v6598
      %v6627 = vpack.c.b16 %v6601, %v6600
      %v6628 = vpack.c.b16 %v6603, %v6602
      %v6629 = vpack.c.b16 %v6605, %v6604
      %v6630 = vpack.c.b16 %v6607, %v6606
      %v6631 = vpack.c.b16 %v6609, %v6608
      %v6632 = vpack.c.b16 %v6611, %v6610
      %v6633 = vpack.c.b16 %v6613, %v6612
      %v6634 = vpack.c.b16 %v6615, %v6614
      %v6635 = vpack.c.b16 %v6617, %v6616
      %v6636 = vpack.c.b16 %v6619, %v6618
      %v6637 = vpack.c.b16 %v6621, %v6620
      %v6646 = vunpack.c.l.b16 %v2166
      %v6647 = vunpack.c.l.b16 %v2167
      %v6648 = vunpack.c.l.b16 %v2168
      %v6649 = vunpack.c.l.b16 %v2169
      %v6650 = vunpack.c.l.b16 %v2170
      %v6651 = vunpack.c.l.b16 %v2171
      %v6652 = vunpack.c.l.b16 %v2172
      %v6653 = vunpack.c.l.b16 %v2173
      %v6654 = vpack.c.b16 %v6647, %v6646
      %v6655 = vpack.c.b16 %v6649, %v6648
      %v6656 = vpack.c.b16 %v6651, %v6650
      %v6657 = vpack.c.b16 %v6653, %v6652
      %v6663 = vsel %vm2681, %v6622, 0
      %v6666 = vsel %vm2681, %v6623, 0
      %v6669 = vsel %vm2681, %v6624, 0
      %v6672 = vsel %vm2681, %v6625, 0
      %v6675 = vsel %vm2681, %v6626, 0
      %v6678 = vsel %vm2681, %v6627, 0
      %v6681 = vsel %vm2681, %v6628, 0
      %v6684 = vsel %vm2681, %v6629, 0
      %v6687 = vsel %vm2681, %v6630, 0
      %v6690 = vsel %vm2681, %v6631, 0
      %v6693 = vsel %vm2681, %v6632, 0
      %v6696 = vsel %vm2681, %v6633, 0
      %v6699 = vsel %vm2681, %v6634, 0
      %v6702 = vsel %vm2681, %v6635, 0
      %v6705 = vsel %vm2681, %v6636, 0
      %v6708 = vsel %vm2681, %v6637, 0
      %6710 = vmatprep.subr.bf16.mxu0 0
      %6711 = vmatpush1.bf16.msra.mxu0 %v6654
      %6712 = vmatprep.subr.bf16.mxu0 0
      %6713 = vmatpush1.bf16.msra.mxu0 %v6655
      %6714 = vmatprep.subr.bf16.mxu0 0
      %6715 = vmatpush1.bf16.msra.mxu0 %v6656
      %6716 = vmatprep.subr.bf16.mxu0 0
      %6717 = vmatpush1.bf16.msra.mxu0 %v6657
      %6718 = vmatprep.subr.bf16.mxu0 0
      %6719 = vmatpush1.bf16.msra.mxu0 0
      %6720 = vmatprep.subr.bf16.mxu0 0
      %6721 = vmatpush1.bf16.msra.mxu0 0
      %6722 = vmatprep.subr.bf16.mxu0 0
      %6723 = vmatpush1.bf16.msra.mxu0 0
      %6724 = vmatprep.subr.bf16.mxu0 0
      %6725 = vmatpush1.bf16.msra.mxu0 0
      %6726 = vmatprep.subr.bf16.mxu0 0
      %6727 = vmatpush1.bf16.msra.mxu0 0
      %6728 = vmatprep.subr.bf16.mxu0 0
      %6729 = vmatpush1.bf16.msra.mxu0 0
      %6730 = vmatprep.subr.bf16.mxu0 0
      %6731 = vmatpush1.bf16.msra.mxu0 0
      %6732 = vmatprep.subr.bf16.mxu0 0
      %6733 = vmatpush1.bf16.msra.mxu0 0
      %6734 = vmatprep.subr.bf16.mxu0 0
      %6735 = vmatpush1.bf16.msra.mxu0 0
      %6736 = vmatprep.subr.bf16.mxu0 0
      %6737 = vmatpush1.bf16.msra.mxu0 0
      %6738 = vmatprep.subr.bf16.mxu0 0
      %6739 = vmatpush1.bf16.msra.mxu0 0
      %6740 = vmatprep.subr.bf16.mxu0 0
      %6741 = vmatpush1.bf16.msra.mxu0 0
      %6742 = vmatprep.mubr.bf16.mxu0 0
      %6743 = vmatmul.mubr.bf16.gmra.mrb[0].mxu0 %v6663
      %v6744 = vpop.f32.mrb[0].mxu0
      %v6745 = vadd.f32 0.0, %v6744
      %v6746 = vpop.f32.mrb[0].mxu0
      %v6747 = vpop.f32.mrb[0].mxu0
      %v6748 = vadd.f32 0.0, %v6747
      %v6749 = vpop.f32.mrb[0].mxu0
      %6750 = vmatprep.mubr.bf16.mxu0 0
      %6751 = vmatmul.mubr.bf16.gmra.mrb[0].mxu0 %v6666
      %v6752 = vpop.f32.mrb[0].mxu0
      %v6753 = vadd.f32 0.0, %v6752
      %v6754 = vpop.f32.mrb[0].mxu0
      %v6755 = vpop.f32.mrb[0].mxu0
      %v6756 = vadd.f32 0.0, %v6755
      %v6757 = vpop.f32.mrb[0].mxu0
      %6758 = vmatprep.mubr.bf16.mxu0 0
      %6759 = vmatmul.mubr.bf16.gmra.mrb[0].mxu0 %v6669
      %v6760 = vpop.f32.mrb[0].mxu0
      %v6761 = vadd.f32 0.0, %v6760
      %v6762 = vpop.f32.mrb[0].mxu0
      %v6763 = vpop.f32.mrb[0].mxu0
      %v6764 = vadd.f32 0.0, %v6763
      %v6765 = vpop.f32.mrb[0].mxu0
      %6766 = vmatprep.mubr.bf16.mxu0 0
      %6767 = vmatmul.mubr.bf16.gmra.mrb[0].mxu0 %v6672
      %v6768 = vpop.f32.mrb[0].mxu0
      %v6769 = vadd.f32 0.0, %v6768
      %v6770 = vpop.f32.mrb[0].mxu0
      %v6771 = vpop.f32.mrb[0].mxu0
      %v6772 = vadd.f32 0.0, %v6771
      %v6773 = vpop.f32.mrb[0].mxu0
      %6774 = vmatprep.mubr.bf16.mxu0 0
      %6775 = vmatmul.mubr.bf16.gmra.mrb[0].mxu0 %v6675
      %v6776 = vpop.f32.mrb[0].mxu0
      %v6777 = vadd.f32 0.0, %v6776
      %v6778 = vpop.f32.mrb[0].mxu0
      %v6779 = vpop.f32.mrb[0].mxu0
      %v6780 = vadd.f32 0.0, %v6779
      %v6781 = vpop.f32.mrb[0].mxu0
      %6782 = vmatprep.mubr.bf16.mxu0 0
      %6783 = vmatmul.mubr.bf16.gmra.mrb[0].mxu0 %v6678
      %v6784 = vpop.f32.mrb[0].mxu0
      %v6785 = vadd.f32 0.0, %v6784
      %v6786 = vpop.f32.mrb[0].mxu0
      %v6787 = vpop.f32.mrb[0].mxu0
      %v6788 = vadd.f32 0.0, %v6787
      %v6789 = vpop.f32.mrb[0].mxu0
      %6790 = vmatprep.mubr.bf16.mxu0 0
      %6791 = vmatmul.mubr.bf16.gmra.mrb[0].mxu0 %v6681
      %v6792 = vpop.f32.mrb[0].mxu0
      %v6793 = vadd.f32 0.0, %v6792
      %v6794 = vpop.f32.mrb[0].mxu0
      %v6795 = vpop.f32.mrb[0].mxu0
      %v6796 = vadd.f32 0.0, %v6795
      %v6797 = vpop.f32.mrb[0].mxu0
      %6798 = vmatprep.mubr.bf16.mxu0 0
      %6799 = vmatmul.mubr.bf16.gmra.mrb[0].mxu0 %v6684
      %v6800 = vpop.f32.mrb[0].mxu0
      %v6801 = vadd.f32 0.0, %v6800
      %v6802 = vpop.f32.mrb[0].mxu0
      %v6803 = vpop.f32.mrb[0].mxu0
      %v6804 = vadd.f32 0.0, %v6803
      %v6805 = vpop.f32.mrb[0].mxu0
      %6806 = vmatprep.mubr.bf16.mxu0 0
      %6807 = vmatmul.mubr.bf16.gmra.mrb[0].mxu0 %v6687
      %v6808 = vpop.f32.mrb[0].mxu0
      %v6809 = vadd.f32 0.0, %v6808
      %v6810 = vpop.f32.mrb[0].mxu0
      %v6811 = vpop.f32.mrb[0].mxu0
      %v6812 = vadd.f32 0.0, %v6811
      %v6813 = vpop.f32.mrb[0].mxu0
      %6814 = vmatprep.mubr.bf16.mxu0 0
      %6815 = vmatmul.mubr.bf16.gmra.mrb[0].mxu0 %v6690
      %v6816 = vpop.f32.mrb[0].mxu0
      %v6817 = vadd.f32 0.0, %v6816
      %v6818 = vpop.f32.mrb[0].mxu0
      %v6819 = vpop.f32.mrb[0].mxu0
      %v6820 = vadd.f32 0.0, %v6819
      %v6821 = vpop.f32.mrb[0].mxu0
      %6822 = vmatprep.mubr.bf16.mxu0 0
      %6823 = vmatmul.mubr.bf16.gmra.mrb[0].mxu0 %v6693
      %v6824 = vpop.f32.mrb[0].mxu0
      %v6825 = vadd.f32 0.0, %v6824
      %v6826 = vpop.f32.mrb[0].mxu0
      %v6827 = vpop.f32.mrb[0].mxu0
      %v6828 = vadd.f32 0.0, %v6827
      %v6829 = vpop.f32.mrb[0].mxu0
      %6830 = vmatprep.mubr.bf16.mxu0 0
      %6831 = vmatmul.mubr.bf16.gmra.mrb[0].mxu0 %v6696
      %v6832 = vpop.f32.mrb[0].mxu0
      %v6833 = vadd.f32 0.0, %v6832
      %v6834 = vpop.f32.mrb[0].mxu0
      %v6835 = vpop.f32.mrb[0].mxu0
      %v6836 = vadd.f32 0.0, %v6835
      %v6837 = vpop.f32.mrb[0].mxu0
      %6838 = vmatprep.mubr.bf16.mxu0 0
      %6839 = vmatmul.mubr.bf16.gmra.mrb[0].mxu0 %v6699
      %v6840 = vpop.f32.mrb[0].mxu0
      %v6841 = vadd.f32 0.0, %v6840
      %v6842 = vpop.f32.mrb[0].mxu0
      %v6843 = vpop.f32.mrb[0].mxu0
      %v6844 = vadd.f32 0.0, %v6843
      %v6845 = vpop.f32.mrb[0].mxu0
      %6846 = vmatprep.mubr.bf16.mxu0 0
      %6847 = vmatmul.mubr.bf16.gmra.mrb[0].mxu0 %v6702
      %v6848 = vpop.f32.mrb[0].mxu0
      %v6849 = vadd.f32 0.0, %v6848
      %v6850 = vpop.f32.mrb[0].mxu0
      %v6851 = vpop.f32.mrb[0].mxu0
      %v6852 = vadd.f32 0.0, %v6851
      %v6853 = vpop.f32.mrb[0].mxu0
      %6854 = vmatprep.mubr.bf16.mxu0 0
      %6855 = vmatmul.mubr.bf16.gmra.mrb[0].mxu0 %v6705
      %v6856 = vpop.f32.mrb[0].mxu0
      %v6857 = vadd.f32 0.0, %v6856
      %v6858 = vpop.f32.mrb[0].mxu0
      %v6859 = vpop.f32.mrb[0].mxu0
      %v6860 = vadd.f32 0.0, %v6859
      %v6861 = vpop.f32.mrb[0].mxu0
      %6862 = vmatprep.mubr.bf16.mxu0 0
      %6863 = vmatmul.mubr.bf16.gmra.mrb[0].mxu0 %v6708
      %v6864 = vpop.f32.mrb[0].mxu0
      %v6865 = vadd.f32 0.0, %v6864
      %v6866 = vpop.f32.mrb[0].mxu0
      %v6867 = vpop.f32.mrb[0].mxu0
      %v6868 = vadd.f32 0.0, %v6867
      %v6869 = vpop.f32.mrb[0].mxu0
      %6870 = vdwg.mxu0
      %v6871 = vadd.f32 %v6382, %v6745
      %v6872 = vadd.f32 %v6383, %v6748
      %v6873 = vadd.f32 %v6384, %v6753
      %v6874 = vadd.f32 %v6385, %v6756
      %v6875 = vadd.f32 %v6386, %v6761
      %v6876 = vadd.f32 %v6387, %v6764
      %v6877 = vadd.f32 %v6388, %v6769
      %v6878 = vadd.f32 %v6389, %v6772
      %v6879 = vadd.f32 %v6390, %v6777
      %v6880 = vadd.f32 %v6391, %v6780
      %v6881 = vadd.f32 %v6392, %v6785
      %v6882 = vadd.f32 %v6393, %v6788
      %v6883 = vadd.f32 %v6394, %v6793
      %v6884 = vadd.f32 %v6395, %v6796
      %v6885 = vadd.f32 %v6396, %v6801
      %v6886 = vadd.f32 %v6397, %v6804
      %v6887 = vadd.f32 %v6398, %v6809
      %v6888 = vadd.f32 %v6399, %v6812
      %v6889 = vadd.f32 %v6400, %v6817
      %v6890 = vadd.f32 %v6401, %v6820
      %v6891 = vadd.f32 %v6402, %v6825
      %v6892 = vadd.f32 %v6403, %v6828
      %v6893 = vadd.f32 %v6404, %v6833
      %v6894 = vadd.f32 %v6405, %v6836
      %v6895 = vadd.f32 %v6406, %v6841
      %v6896 = vadd.f32 %v6407, %v6844
      %v6897 = vadd.f32 %v6408, %v6849
      %v6898 = vadd.f32 %v6409, %v6852
      %v6899 = vadd.f32 %v6410, %v6857
      %v6900 = vadd.f32 %v6411, %v6860
      %v6901 = vadd.f32 %v6412, %v6865
      %v6902 = vadd.f32 %v6413, %v6868
      %v6903 = vld [vmem:[%s4] sm:$0x1]
      %v6905 = vlaneseq
      %v6906 = vshrl.u32 %v6905, 7
      %v6907 = vsub.s32 0, %v6906
      %v6908 = vrot.slane %v6903, %v6907
      %v6910 = vadd.f32 %v6871, %v6908
      %v6911 = vadd.f32 %v6872, %v6908
      %v6912 = vadd.f32 %v6873, %v6908
      %v6913 = vadd.f32 %v6874, %v6908
      %v6914 = vadd.f32 %v6875, %v6908
      %v6915 = vadd.f32 %v6876, %v6908
      %v6916 = vadd.f32 %v6877, %v6908
      %v6917 = vadd.f32 %v6878, %v6908
      %v6918 = vadd.f32 %v6879, %v6908
      %v6919 = vadd.f32 %v6880, %v6908
      %v6920 = vadd.f32 %v6881, %v6908
      %v6921 = vadd.f32 %v6882, %v6908
      %v6922 = vadd.f32 %v6883, %v6908
      %v6923 = vadd.f32 %v6884, %v6908
      %v6924 = vadd.f32 %v6885, %v6908
      %v6925 = vadd.f32 %v6886, %v6908
      %v6926 = vadd.f32 %v6887, %v6908
      %v6927 = vadd.f32 %v6888, %v6908
      %v6928 = vadd.f32 %v6889, %v6908
      %v6929 = vadd.f32 %v6890, %v6908
      %v6930 = vadd.f32 %v6891, %v6908
      %v6931 = vadd.f32 %v6892, %v6908
      %v6932 = vadd.f32 %v6893, %v6908
      %v6933 = vadd.f32 %v6894, %v6908
      %v6934 = vadd.f32 %v6895, %v6908
      %v6935 = vadd.f32 %v6896, %v6908
      %v6936 = vadd.f32 %v6897, %v6908
      %v6937 = vadd.f32 %v6898, %v6908
      %v6938 = vadd.f32 %v6899, %v6908
      %v6939 = vadd.f32 %v6900, %v6908
      %v6940 = vadd.f32 %v6901, %v6908
      %v6941 = vadd.f32 %v6902, %v6908
      %v6942 = vmax.f32 %v6910, 0.0
      %v6943 = vmax.f32 %v6911, 0.0
      %v6944 = vmax.f32 %v6912, 0.0
      %v6945 = vmax.f32 %v6913, 0.0
      %v6946 = vmax.f32 %v6914, 0.0
      %v6947 = vmax.f32 %v6915, 0.0
      %v6948 = vmax.f32 %v6916, 0.0
      %v6949 = vmax.f32 %v6917, 0.0
      %v6950 = vmax.f32 %v6918, 0.0
      %v6951 = vmax.f32 %v6919, 0.0
      %v6952 = vmax.f32 %v6920, 0.0
      %v6953 = vmax.f32 %v6921, 0.0
      %v6954 = vmax.f32 %v6922, 0.0
      %v6955 = vmax.f32 %v6923, 0.0
      %v6956 = vmax.f32 %v6924, 0.0
      %v6957 = vmax.f32 %v6925, 0.0
      %v6958 = vmax.f32 %v6926, 0.0
      %v6959 = vmax.f32 %v6927, 0.0
      %v6960 = vmax.f32 %v6928, 0.0
      %v6961 = vmax.f32 %v6929, 0.0
      %v6962 = vmax.f32 %v6930, 0.0
      %v6963 = vmax.f32 %v6931, 0.0
      %v6964 = vmax.f32 %v6932, 0.0
      %v6965 = vmax.f32 %v6933, 0.0
      %v6966 = vmax.f32 %v6934, 0.0
      %v6967 = vmax.f32 %v6935, 0.0
      %v6968 = vmax.f32 %v6936, 0.0
      %v6969 = vmax.f32 %v6937, 0.0
      %v6970 = vmax.f32 %v6938, 0.0
      %v6971 = vmax.f32 %v6939, 0.0
      %v6972 = vmax.f32 %v6940, 0.0
      %v6973 = vmax.f32 %v6941, 0.0
      %v6974 = vpack.c.bf16 %v6943, %v6942
      %v6975 = vpack.c.bf16 %v6945, %v6944
      %v6976 = vpack.c.bf16 %v6947, %v6946
      %v6977 = vpack.c.bf16 %v6949, %v6948
      %v6978 = vpack.c.bf16 %v6951, %v6950
      %v6979 = vpack.c.bf16 %v6953, %v6952
      %v6980 = vpack.c.bf16 %v6955, %v6954
      %v6981 = vpack.c.bf16 %v6957, %v6956
      %v6982 = vpack.c.bf16 %v6959, %v6958
      %v6983 = vpack.c.bf16 %v6961, %v6960
      %v6984 = vpack.c.bf16 %v6963, %v6962
      %v6985 = vpack.c.bf16 %v6965, %v6964
      %v6986 = vpack.c.bf16 %v6967, %v6966
      %v6987 = vpack.c.bf16 %v6969, %v6968
      %v6988 = vpack.c.bf16 %v6971, %v6970
      %v6989 = vpack.c.bf16 %v6973, %v6972
      %v7006 = vunpack.c.l.b16 %v6974
      %v7007 = vunpack.c.h.b16 %v6974
      %v7008 = vunpack.c.l.b16 %v6975
      %v7009 = vunpack.c.h.b16 %v6975
      %v7010 = vunpack.c.l.b16 %v6976
      %v7011 = vunpack.c.h.b16 %v6976
      %v7012 = vunpack.c.l.b16 %v6977
      %v7013 = vunpack.c.h.b16 %v6977
      %v7014 = vunpack.c.l.b16 %v6978
      %v7015 = vunpack.c.h.b16 %v6978
      %v7016 = vunpack.c.l.b16 %v6979
      %v7017 = vunpack.c.h.b16 %v6979
      %v7018 = vunpack.c.l.b16 %v6980
      %v7019 = vunpack.c.h.b16 %v6980
      %v7020 = vunpack.c.l.b16 %v6981
      %v7021 = vunpack.c.h.b16 %v6981
      %v7022 = vunpack.c.l.b16 %v6982
      %v7023 = vunpack.c.h.b16 %v6982
      %v7024 = vunpack.c.l.b16 %v6983
      %v7025 = vunpack.c.h.b16 %v6983
      %v7026 = vunpack.c.l.b16 %v6984
      %v7027 = vunpack.c.h.b16 %v6984
      %v7028 = vunpack.c.l.b16 %v6985
      %v7029 = vunpack.c.h.b16 %v6985
      %v7030 = vunpack.c.l.b16 %v6986
      %v7031 = vunpack.c.h.b16 %v6986
      %v7032 = vunpack.c.l.b16 %v6987
      %v7033 = vunpack.c.h.b16 %v6987
      %v7034 = vunpack.c.l.b16 %v6988
      %v7035 = vunpack.c.h.b16 %v6988
      %v7036 = vunpack.c.l.b16 %v6989
      %v7037 = vunpack.c.h.b16 %v6989
      %v7038 = vpack.c.b16 %v7006, %v7006
      %v7039 = vpack.c.b16 %v7007, %v7007
      %v7040 = vpack.c.b16 %v7008, %v7008
      %v7041 = vpack.c.b16 %v7009, %v7009
      %v7042 = vpack.c.b16 %v7010, %v7010
      %v7043 = vpack.c.b16 %v7011, %v7011
      %v7044 = vpack.c.b16 %v7012, %v7012
      %v7045 = vpack.c.b16 %v7013, %v7013
      %v7046 = vpack.c.b16 %v7014, %v7014
      %v7047 = vpack.c.b16 %v7015, %v7015
      %v7048 = vpack.c.b16 %v7016, %v7016
      %v7049 = vpack.c.b16 %v7017, %v7017
      %v7050 = vpack.c.b16 %v7018, %v7018
      %v7051 = vpack.c.b16 %v7019, %v7019
      %v7052 = vpack.c.b16 %v7020, %v7020
      %v7053 = vpack.c.b16 %v7021, %v7021
      %v7054 = vpack.c.b16 %v7022, %v7022
      %v7055 = vpack.c.b16 %v7023, %v7023
      %v7056 = vpack.c.b16 %v7024, %v7024
      %v7057 = vpack.c.b16 %v7025, %v7025
      %v7058 = vpack.c.b16 %v7026, %v7026
      %v7059 = vpack.c.b16 %v7027, %v7027
      %v7060 = vpack.c.b16 %v7028, %v7028
      %v7061 = vpack.c.b16 %v7029, %v7029
      %v7062 = vpack.c.b16 %v7030, %v7030
      %v7063 = vpack.c.b16 %v7031, %v7031
      %v7064 = vpack.c.b16 %v7032, %v7032
      %v7065 = vpack.c.b16 %v7033, %v7033
      %v7066 = vpack.c.b16 %v7034, %v7034
      %v7067 = vpack.c.b16 %v7035, %v7035
      %v7068 = vpack.c.b16 %v7036, %v7036
      %v7069 = vpack.c.b16 %v7037, %v7037
      %v7071 = vshrl.u32 %v7038, 16
      %v7073 = vrot.slane %v7071, 7
      %v7074 = vshll.u32 %v7038, 16
      %v7076 = vor.u32 %v7073, %v7074
      %v7077 = vrot.slane %v7073, 4
      %v7079 = vshrl.u32 %v7039, 16
      %v7081 = vrot.slane %v7079, 7
      %v7082 = vshll.u32 %v7039, 16
      %v7084 = vor.u32 %v7081, %v7082
      %v7085 = vsel %vm1663, %v7077, %v7084
      %v7086 = vrot.slane %v7081, 4
      %v7088 = vshrl.u32 %v7040, 16
      %v7090 = vrot.slane %v7088, 7
      %v7091 = vshll.u32 %v7040, 16
      %v7093 = vor.u32 %v7090, %v7091
      %v7094 = vrot.slane %v7090, 4
      %v7096 = vshrl.u32 %v7041, 16
      %v7098 = vrot.slane %v7096, 7
      %v7099 = vshll.u32 %v7041, 16
      %v7101 = vor.u32 %v7098, %v7099
      %v7102 = vsel %vm1663, %v7094, %v7101
      %v7103 = vrot.slane %v7098, 4
      %v7105 = vshrl.u32 %v7042, 16
      %v7107 = vrot.slane %v7105, 7
      %v7108 = vshll.u32 %v7042, 16
      %v7110 = vor.u32 %v7107, %v7108
      %v7111 = vrot.slane %v7107, 4
      %v7113 = vshrl.u32 %v7043, 16
      %v7115 = vrot.slane %v7113, 7
      %v7116 = vshll.u32 %v7043, 16
      %v7118 = vor.u32 %v7115, %v7116
      %v7119 = vsel %vm1663, %v7111, %v7118
      %v7120 = vrot.slane %v7115, 4
      %v7122 = vshrl.u32 %v7044, 16
      %v7124 = vrot.slane %v7122, 7
      %v7125 = vshll.u32 %v7044, 16
      %v7127 = vor.u32 %v7124, %v7125
      %v7128 = vrot.slane %v7124, 4
      %v7130 = vshrl.u32 %v7045, 16
      %v7132 = vrot.slane %v7130, 7
      %v7133 = vshll.u32 %v7045, 16
      %v7135 = vor.u32 %v7132, %v7133
      %v7136 = vsel %vm1663, %v7128, %v7135
      %v7137 = vrot.slane %v7132, 4
      %v7139 = vshrl.u32 %v7046, 16
      %v7141 = vrot.slane %v7139, 7
      %v7142 = vshll.u32 %v7046, 16
      %v7144 = vor.u32 %v7141, %v7142
      %v7145 = vrot.slane %v7141, 4
      %v7147 = vshrl.u32 %v7047, 16
      %v7149 = vrot.slane %v7147, 7
      %v7150 = vshll.u32 %v7047, 16
      %v7152 = vor.u32 %v7149, %v7150
      %v7153 = vsel %vm1663, %v7145, %v7152
      %v7154 = vrot.slane %v7149, 4
      %v7156 = vshrl.u32 %v7048, 16
      %v7158 = vrot.slane %v7156, 7
      %v7159 = vshll.u32 %v7048, 16
      %v7161 = vor.u32 %v7158, %v7159
      %v7162 = vrot.slane %v7158, 4
      %v7164 = vshrl.u32 %v7049, 16
      %v7166 = vrot.slane %v7164, 7
      %v7167 = vshll.u32 %v7049, 16
      %v7169 = vor.u32 %v7166, %v7167
      %v7170 = vsel %vm1663, %v7162, %v7169
      %v7171 = vrot.slane %v7166, 4
      %v7173 = vshrl.u32 %v7050, 16
      %v7175 = vrot.slane %v7173, 7
      %v7176 = vshll.u32 %v7050, 16
      %v7178 = vor.u32 %v7175, %v7176
      %v7179 = vrot.slane %v7175, 4
      %v7181 = vshrl.u32 %v7051, 16
      %v7183 = vrot.slane %v7181, 7
      %v7184 = vshll.u32 %v7051, 16
      %v7186 = vor.u32 %v7183, %v7184
      %v7187 = vsel %vm1663, %v7179, %v7186
      %v7188 = vrot.slane %v7183, 4
      %v7190 = vshrl.u32 %v7052, 16
      %v7192 = vrot.slane %v7190, 7
      %v7193 = vshll.u32 %v7052, 16
      %v7195 = vor.u32 %v7192, %v7193
      %v7196 = vrot.slane %v7192, 4
      %v7198 = vshrl.u32 %v7053, 16
      %v7200 = vrot.slane %v7198, 7
      %v7201 = vshll.u32 %v7053, 16
      %v7203 = vor.u32 %v7200, %v7201
      %v7204 = vsel %vm1663, %v7196, %v7203
      %v7205 = vrot.slane %v7200, 4
      %v7207 = vshrl.u32 %v7054, 16
      %v7209 = vrot.slane %v7207, 7
      %v7210 = vshll.u32 %v7054, 16
      %v7212 = vor.u32 %v7209, %v7210
      %v7213 = vrot.slane %v7209, 4
      %v7215 = vshrl.u32 %v7055, 16
      %v7217 = vrot.slane %v7215, 7
      %v7218 = vshll.u32 %v7055, 16
      %v7220 = vor.u32 %v7217, %v7218
      %v7221 = vsel %vm1663, %v7213, %v7220
      %v7222 = vrot.slane %v7217, 4
      %v7224 = vshrl.u32 %v7056, 16
      %v7226 = vrot.slane %v7224, 7
      %v7227 = vshll.u32 %v7056, 16
      %v7229 = vor.u32 %v7226, %v7227
      %v7230 = vrot.slane %v7226, 4
      %v7232 = vshrl.u32 %v7057, 16
      %v7234 = vrot.slane %v7232, 7
      %v7235 = vshll.u32 %v7057, 16
      %v7237 = vor.u32 %v7234, %v7235
      %v7238 = vsel %vm1663, %v7230, %v7237
      %v7239 = vrot.slane %v7234, 4
      %v7241 = vshrl.u32 %v7058, 16
      %v7243 = vrot.slane %v7241, 7
      %v7244 = vshll.u32 %v7058, 16
      %v7246 = vor.u32 %v7243, %v7244
      %v7247 = vrot.slane %v7243, 4
      %v7249 = vshrl.u32 %v7059, 16
      %v7251 = vrot.slane %v7249, 7
      %v7252 = vshll.u32 %v7059, 16
      %v7254 = vor.u32 %v7251, %v7252
      %v7255 = vsel %vm1663, %v7247, %v7254
      %v7256 = vrot.slane %v7251, 4
      %v7258 = vshrl.u32 %v7060, 16
      %v7260 = vrot.slane %v7258, 7
      %v7261 = vshll.u32 %v7060, 16
      %v7263 = vor.u32 %v7260, %v7261
      %v7264 = vrot.slane %v7260, 4
      %v7266 = vshrl.u32 %v7061, 16
      %v7268 = vrot.slane %v7266, 7
      %v7269 = vshll.u32 %v7061, 16
      %v7271 = vor.u32 %v7268, %v7269
      %v7272 = vsel %vm1663, %v7264, %v7271
      %v7273 = vrot.slane %v7268, 4
      %v7275 = vshrl.u32 %v7062, 16
      %v7277 = vrot.slane %v7275, 7
      %v7278 = vshll.u32 %v7062, 16
      %v7280 = vor.u32 %v7277, %v7278
      %v7281 = vrot.slane %v7277, 4
      %v7283 = vshrl.u32 %v7063, 16
      %v7285 = vrot.slane %v7283, 7
      %v7286 = vshll.u32 %v7063, 16
      %v7288 = vor.u32 %v7285, %v7286
      %v7289 = vsel %vm1663, %v7281, %v7288
      %v7290 = vrot.slane %v7285, 4
      %v7292 = vshrl.u32 %v7064, 16
      %v7294 = vrot.slane %v7292, 7
      %v7295 = vshll.u32 %v7064, 16
      %v7297 = vor.u32 %v7294, %v7295
      %v7298 = vrot.slane %v7294, 4
      %v7300 = vshrl.u32 %v7065, 16
      %v7302 = vrot.slane %v7300, 7
      %v7303 = vshll.u32 %v7065, 16
      %v7305 = vor.u32 %v7302, %v7303
      %v7306 = vsel %vm1663, %v7298, %v7305
      %v7307 = vrot.slane %v7302, 4
      %v7309 = vshrl.u32 %v7066, 16
      %v7311 = vrot.slane %v7309, 7
      %v7312 = vshll.u32 %v7066, 16
      %v7314 = vor.u32 %v7311, %v7312
      %v7315 = vrot.slane %v7311, 4
      %v7317 = vshrl.u32 %v7067, 16
      %v7319 = vrot.slane %v7317, 7
      %v7320 = vshll.u32 %v7067, 16
      %v7322 = vor.u32 %v7319, %v7320
      %v7323 = vsel %vm1663, %v7315, %v7322
      %v7324 = vrot.slane %v7319, 4
      %v7326 = vshrl.u32 %v7068, 16
      %v7328 = vrot.slane %v7326, 7
      %v7329 = vshll.u32 %v7068, 16
      %v7331 = vor.u32 %v7328, %v7329
      %v7332 = vrot.slane %v7328, 4
      %v7334 = vshrl.u32 %v7069, 16
      %v7336 = vrot.slane %v7334, 7
      %v7337 = vshll.u32 %v7069, 16
      %v7339 = vor.u32 %v7336, %v7337
      %v7340 = vsel %vm1663, %v7332, %v7339
      %v7341 = vrot.slane %v7336, 4
      %s7390 = scalar_lea.vmem [#allocation3], 12
      %v7391 = vld [vmem:[%s7390] sm:$0xf]
      %v7392 = vsel %vm1987, %v7076, %v7391
      %7393 = vst [vmem:[%s7390] sm:$0xf] %v7392
      %7394 = vst.msk [vmem:[%s7390 + $0x4] sm:$0xf] %vm281, %v7085
      %v7395 = vld [vmem:[%s7390 + $0x8] sm:$0x1]
      %v7396 = vsel %vm1993, %v7086, %v7395
      %7397 = vst [vmem:[%s7390 + $0x8] sm:$0x1] %v7396
      %v7398 = vld [vmem:[%s7390 + $0xc] sm:$0xf]
      %v7399 = vsel %vm1987, %v7093, %v7398
      %7400 = vst [vmem:[%s7390 + $0xc] sm:$0xf] %v7399
      %7401 = vst.msk [vmem:[%s7390 + $0x10] sm:$0xf] %vm281, %v7102
      %v7402 = vld [vmem:[%s7390 + $0x14] sm:$0x1]
      %v7403 = vsel %vm1993, %v7103, %v7402
      %7404 = vst [vmem:[%s7390 + $0x14] sm:$0x1] %v7403
      %v7405 = vld [vmem:[%s7390 + $0x18] sm:$0xf]
      %v7406 = vsel %vm1987, %v7110, %v7405
      %7407 = vst [vmem:[%s7390 + $0x18] sm:$0xf] %v7406
      %7408 = vst.msk [vmem:[%s7390 + $0x1c] sm:$0xf] %vm281, %v7119
      %v7409 = vld [vmem:[%s7390 + $0x20] sm:$0x1]
      %v7410 = vsel %vm1993, %v7120, %v7409
      %7411 = vst [vmem:[%s7390 + $0x20] sm:$0x1] %v7410
      %v7412 = vld [vmem:[%s7390 + $0x24] sm:$0xf]
      %v7413 = vsel %vm1987, %v7127, %v7412
      %7414 = vst [vmem:[%s7390 + $0x24] sm:$0xf] %v7413
      %7415 = vst.msk [vmem:[%s7390 + $0x28] sm:$0xf] %vm281, %v7136
      %v7416 = vld [vmem:[%s7390 + $0x2c] sm:$0x1]
      %v7417 = vsel %vm1993, %v7137, %v7416
      %7418 = vst [vmem:[%s7390 + $0x2c] sm:$0x1] %v7417
      %v7419 = vld [vmem:[%s7390 + $0x30] sm:$0xf]
      %v7420 = vsel %vm1987, %v7144, %v7419
      %7421 = vst [vmem:[%s7390 + $0x30] sm:$0xf] %v7420
      %7422 = vst.msk [vmem:[%s7390 + $0x34] sm:$0xf] %vm281, %v7153
      %v7423 = vld [vmem:[%s7390 + $0x38] sm:$0x1]
      %v7424 = vsel %vm1993, %v7154, %v7423
      %7425 = vst [vmem:[%s7390 + $0x38] sm:$0x1] %v7424
      %v7426 = vld [vmem:[%s7390 + $0x3c] sm:$0xf]
      %v7427 = vsel %vm1987, %v7161, %v7426
      %7428 = vst [vmem:[%s7390 + $0x3c] sm:$0xf] %v7427
      %7429 = vst.msk [vmem:[%s7390 + $0x40] sm:$0xf] %vm281, %v7170
      %v7430 = vld [vmem:[%s7390 + $0x44] sm:$0x1]
      %v7431 = vsel %vm1993, %v7171, %v7430
      %7432 = vst [vmem:[%s7390 + $0x44] sm:$0x1] %v7431
      %v7433 = vld [vmem:[%s7390 + $0x48] sm:$0xf]
      %v7434 = vsel %vm1987, %v7178, %v7433
      %7435 = vst [vmem:[%s7390 + $0x48] sm:$0xf] %v7434
      %7436 = vst.msk [vmem:[%s7390 + $0x4c] sm:$0xf] %vm281, %v7187
      %v7437 = vld [vmem:[%s7390 + $0x50] sm:$0x1]
      %v7438 = vsel %vm1993, %v7188, %v7437
      %7439 = vst [vmem:[%s7390 + $0x50] sm:$0x1] %v7438
      %v7440 = vld [vmem:[%s7390 + $0x54] sm:$0xf]
      %v7441 = vsel %vm1987, %v7195, %v7440
      %7442 = vst [vmem:[%s7390 + $0x54] sm:$0xf] %v7441
      %7443 = vst.msk [vmem:[%s7390 + $0x58] sm:$0xf] %vm281, %v7204
      %v7444 = vld [vmem:[%s7390 + $0x5c] sm:$0x1]
      %v7445 = vsel %vm1993, %v7205, %v7444
      %7446 = vst [vmem:[%s7390 + $0x5c] sm:$0x1] %v7445
      %v7447 = vld [vmem:[%s7390 + $0x60] sm:$0xf]
      %v7448 = vsel %vm1987, %v7212, %v7447
      %7449 = vst [vmem:[%s7390 + $0x60] sm:$0xf] %v7448
      %7450 = vst.msk [vmem:[%s7390 + $0x64] sm:$0xf] %vm281, %v7221
      %v7451 = vld [vmem:[%s7390 + $0x68] sm:$0x1]
      %v7452 = vsel %vm1993, %v7222, %v7451
      %7453 = vst [vmem:[%s7390 + $0x68] sm:$0x1] %v7452
      %v7454 = vld [vmem:[%s7390 + $0x6c] sm:$0xf]
      %v7455 = vsel %vm1987, %v7229, %v7454
      %7456 = vst [vmem:[%s7390 + $0x6c] sm:$0xf] %v7455
      %7457 = vst.msk [vmem:[%s7390 + $0x70] sm:$0xf] %vm281, %v7238
      %v7458 = vld [vmem:[%s7390 + $0x74] sm:$0x1]
      %v7459 = vsel %vm1993, %v7239, %v7458
      %7460 = vst [vmem:[%s7390 + $0x74] sm:$0x1] %v7459
      %v7461 = vld [vmem:[%s7390 + $0x78] sm:$0xf]
      %v7462 = vsel %vm1987, %v7246, %v7461
      %7463 = vst [vmem:[%s7390 + $0x78] sm:$0xf] %v7462
      %7464 = vst.msk [vmem:[%s7390 + $0x7c] sm:$0xf] %vm281, %v7255
      %v7465 = vld [vmem:[%s7390 + $0x80] sm:$0x1]
      %v7466 = vsel %vm1993, %v7256, %v7465
      %7467 = vst [vmem:[%s7390 + $0x80] sm:$0x1] %v7466
      %v7468 = vld [vmem:[%s7390 + $0x84] sm:$0xf]
      %v7469 = vsel %vm1987, %v7263, %v7468
      %7470 = vst [vmem:[%s7390 + $0x84] sm:$0xf] %v7469
      %7471 = vst.msk [vmem:[%s7390 + $0x88] sm:$0xf] %vm281, %v7272
      %v7472 = vld [vmem:[%s7390 + $0x8c] sm:$0x1]
      %v7473 = vsel %vm1993, %v7273, %v7472
      %7474 = vst [vmem:[%s7390 + $0x8c] sm:$0x1] %v7473
      %v7475 = vld [vmem:[%s7390 + $0x90] sm:$0xf]
      %v7476 = vsel %vm1987, %v7280, %v7475
      %7477 = vst [vmem:[%s7390 + $0x90] sm:$0xf] %v7476
      %7478 = vst.msk [vmem:[%s7390 + $0x94] sm:$0xf] %vm281, %v7289
      %v7479 = vld [vmem:[%s7390 + $0x98] sm:$0x1]
      %v7480 = vsel %vm1993, %v7290, %v7479
      %7481 = vst [vmem:[%s7390 + $0x98] sm:$0x1] %v7480
      %v7482 = vld [vmem:[%s7390 + $0x9c] sm:$0xf]
      %v7483 = vsel %vm1987, %v7297, %v7482
      %7484 = vst [vmem:[%s7390 + $0x9c] sm:$0xf] %v7483
      %7485 = vst.msk [vmem:[%s7390 + $0xa0] sm:$0xf] %vm281, %v7306
      %v7486 = vld [vmem:[%s7390 + $0xa4] sm:$0x1]
      %v7487 = vsel %vm1993, %v7307, %v7486
      %7488 = vst [vmem:[%s7390 + $0xa4] sm:$0x1] %v7487
      %v7489 = vld [vmem:[%s7390 + $0xa8] sm:$0xf]
      %v7490 = vsel %vm1987, %v7314, %v7489
      %7491 = vst [vmem:[%s7390 + $0xa8] sm:$0xf] %v7490
      %7492 = vst.msk [vmem:[%s7390 + $0xac] sm:$0xf] %vm281, %v7323
      %v7493 = vld [vmem:[%s7390 + $0xb0] sm:$0x1]
      %v7494 = vsel %vm1993, %v7324, %v7493
      %7495 = vst [vmem:[%s7390 + $0xb0] sm:$0x1] %v7494
      %v7496 = vld [vmem:[%s7390 + $0xb4] sm:$0xf]
      %v7497 = vsel %vm1987, %v7331, %v7496
      %7498 = vst [vmem:[%s7390 + $0xb4] sm:$0xf] %v7497
      %7499 = vst.msk [vmem:[%s7390 + $0xb8] sm:$0xf] %vm281, %v7340
      %v7500 = vld [vmem:[%s7390 + $0xbc] sm:$0x1]
      %v7501 = vsel %vm1993, %v7341, %v7500
      %7502 = vst [vmem:[%s7390 + $0xbc] sm:$0x1] %v7501
      %v7503 = vld [vmem:[%s5] sm:$0xff]
      %v7504 = vld [vmem:[%s5 + $0x8] sm:$0x1]
      %v7505 = vld [vmem:[#allocation3] sm:$0xf]
      %v7506 = vld [vmem:[#allocation3 + $0x4] sm:$0xf]
      %v7507 = vld [vmem:[#allocation3 + $0xc] sm:$0xf]
      %v7508 = vld [vmem:[#allocation3 + $0x10] sm:$0xf]
      %v7509 = vld [vmem:[#allocation3 + $0x18] sm:$0xf]
      %v7510 = vld [vmem:[#allocation3 + $0x1c] sm:$0xf]
      %v7511 = vld [vmem:[#allocation3 + $0x24] sm:$0xf]
      %v7512 = vld [vmem:[#allocation3 + $0x28] sm:$0xf]
      %v7513 = vld [vmem:[#allocation3 + $0x30] sm:$0xf]
      %v7514 = vld [vmem:[#allocation3 + $0x34] sm:$0xf]
      %v7515 = vld [vmem:[#allocation3 + $0x3c] sm:$0xf]
      %v7516 = vld [vmem:[#allocation3 + $0x40] sm:$0xf]
      %v7517 = vld [vmem:[#allocation3 + $0x48] sm:$0xf]
      %v7518 = vld [vmem:[#allocation3 + $0x4c] sm:$0xf]
      %v7519 = vld [vmem:[#allocation3 + $0x54] sm:$0xf]
      %v7520 = vld [vmem:[#allocation3 + $0x58] sm:$0xf]
      %v7521 = vld [vmem:[#allocation3 + $0x60] sm:$0xf]
      %v7522 = vld [vmem:[#allocation3 + $0x64] sm:$0xf]
      %v7523 = vld [vmem:[#allocation3 + $0x6c] sm:$0xf]
      %v7524 = vld [vmem:[#allocation3 + $0x70] sm:$0xf]
      %v7525 = vld [vmem:[#allocation3 + $0x78] sm:$0xf]
      %v7526 = vld [vmem:[#allocation3 + $0x7c] sm:$0xf]
      %v7527 = vld [vmem:[#allocation3 + $0x84] sm:$0xf]
      %v7528 = vld [vmem:[#allocation3 + $0x88] sm:$0xf]
      %v7529 = vld [vmem:[#allocation3 + $0x90] sm:$0xf]
      %v7530 = vld [vmem:[#allocation3 + $0x94] sm:$0xf]
      %v7531 = vld [vmem:[#allocation3 + $0x9c] sm:$0xf]
      %v7532 = vld [vmem:[#allocation3 + $0xa0] sm:$0xf]
      %v7533 = vld [vmem:[#allocation3 + $0xa8] sm:$0xf]
      %v7534 = vld [vmem:[#allocation3 + $0xac] sm:$0xf]
      %v7535 = vld [vmem:[#allocation3 + $0xb4] sm:$0xf]
      %v7536 = vld [vmem:[#allocation3 + $0xb8] sm:$0xf]
      %v7537 = vunpack.c.l.bf16 %v7505
      %v7538 = vunpack.c.l.bf16 %v7506
      %v7539 = vunpack.c.l.bf16 %v7507
      %v7540 = vunpack.c.l.bf16 %v7508
      %v7541 = vunpack.c.l.bf16 %v7509
      %v7542 = vunpack.c.l.bf16 %v7510
      %v7543 = vunpack.c.l.bf16 %v7511
      %v7544 = vunpack.c.l.bf16 %v7512
      %v7545 = vunpack.c.l.bf16 %v7513
      %v7546 = vunpack.c.l.bf16 %v7514
      %v7547 = vunpack.c.l.bf16 %v7515
      %v7548 = vunpack.c.l.bf16 %v7516
      %v7549 = vunpack.c.l.bf16 %v7517
      %v7550 = vunpack.c.l.bf16 %v7518
      %v7551 = vunpack.c.l.bf16 %v7519
      %v7552 = vunpack.c.l.bf16 %v7520
      %v7553 = vunpack.c.l.bf16 %v7521
      %v7554 = vunpack.c.l.bf16 %v7522
      %v7555 = vunpack.c.l.bf16 %v7523
      %v7556 = vunpack.c.l.bf16 %v7524
      %v7557 = vunpack.c.l.bf16 %v7525
      %v7558 = vunpack.c.l.bf16 %v7526
      %v7559 = vunpack.c.l.bf16 %v7527
      %v7560 = vunpack.c.l.bf16 %v7528
      %v7561 = vunpack.c.l.bf16 %v7529
      %v7562 = vunpack.c.l.bf16 %v7530
      %v7563 = vunpack.c.l.bf16 %v7531
      %v7564 = vunpack.c.l.bf16 %v7532
      %v7565 = vunpack.c.l.bf16 %v7533
      %v7566 = vunpack.c.l.bf16 %v7534
      %v7567 = vunpack.c.l.bf16 %v7535
      %v7568 = vunpack.c.l.bf16 %v7536
      %v7569 = vlaneseq
      %v7570 = vshrl.u32 %v7569, 7
      %v7571 = vsub.s32 0, %v7570
      %v7572 = vrot.slane %v7503, %v7571
      %v7573 = vmul.f32 %v7537, %v7572
      %v7574 = vmul.f32 %v7538, %v7572
      %v7575 = vmul.f32 %v7539, %v7572
      %v7576 = vmul.f32 %v7540, %v7572
      %v7577 = vmul.f32 %v7541, %v7572
      %v7578 = vmul.f32 %v7542, %v7572
      %v7579 = vmul.f32 %v7543, %v7572
      %v7580 = vmul.f32 %v7544, %v7572
      %v7581 = vmul.f32 %v7545, %v7572
      %v7582 = vmul.f32 %v7546, %v7572
      %v7583 = vmul.f32 %v7547, %v7572
      %v7584 = vmul.f32 %v7548, %v7572
      %v7585 = vmul.f32 %v7549, %v7572
      %v7586 = vmul.f32 %v7550, %v7572
      %v7587 = vmul.f32 %v7551, %v7572
      %v7588 = vmul.f32 %v7552, %v7572
      %v7589 = vmul.f32 %v7553, %v7572
      %v7590 = vmul.f32 %v7554, %v7572
      %v7591 = vmul.f32 %v7555, %v7572
      %v7592 = vmul.f32 %v7556, %v7572
      %v7593 = vmul.f32 %v7557, %v7572
      %v7594 = vmul.f32 %v7558, %v7572
      %v7595 = vmul.f32 %v7559, %v7572
      %v7596 = vmul.f32 %v7560, %v7572
      %v7597 = vmul.f32 %v7561, %v7572
      %v7598 = vmul.f32 %v7562, %v7572
      %v7599 = vmul.f32 %v7563, %v7572
      %v7600 = vmul.f32 %v7564, %v7572
      %v7601 = vmul.f32 %v7565, %v7572
      %v7602 = vmul.f32 %v7566, %v7572
      %v7603 = vmul.f32 %v7567, %v7572
      %v7604 = vmul.f32 %v7568, %v7572
      %v7605 = vadd.f32 %v7573, 0.0
      %v7606 = vadd.f32 %v7574, 0.0
      %v7607 = vadd.f32 %v7575, 0.0
      %v7608 = vadd.f32 %v7576, 0.0
      %v7609 = vadd.f32 %v7577, 0.0
      %v7610 = vadd.f32 %v7578, 0.0
      %v7611 = vadd.f32 %v7579, 0.0
      %v7612 = vadd.f32 %v7580, 0.0
      %v7613 = vadd.f32 %v7581, 0.0
      %v7614 = vadd.f32 %v7582, 0.0
      %v7615 = vadd.f32 %v7583, 0.0
      %v7616 = vadd.f32 %v7584, 0.0
      %v7617 = vadd.f32 %v7585, 0.0
      %v7618 = vadd.f32 %v7586, 0.0
      %v7619 = vadd.f32 %v7587, 0.0
      %v7620 = vadd.f32 %v7588, 0.0
      %v7621 = vadd.f32 %v7589, 0.0
      %v7622 = vadd.f32 %v7590, 0.0
      %v7623 = vadd.f32 %v7591, 0.0
      %v7624 = vadd.f32 %v7592, 0.0
      %v7625 = vadd.f32 %v7593, 0.0
      %v7626 = vadd.f32 %v7594, 0.0
      %v7627 = vadd.f32 %v7595, 0.0
      %v7628 = vadd.f32 %v7596, 0.0
      %v7629 = vadd.f32 %v7597, 0.0
      %v7630 = vadd.f32 %v7598, 0.0
      %v7631 = vadd.f32 %v7599, 0.0
      %v7632 = vadd.f32 %v7600, 0.0
      %v7633 = vadd.f32 %v7601, 0.0
      %v7634 = vadd.f32 %v7602, 0.0
      %v7635 = vadd.f32 %v7603, 0.0
      %v7636 = vadd.f32 %v7604, 0.0
      %v7637 = vld [vmem:[#allocation3 + $0x8] sm:$0x1]
      %v7638 = vld [vmem:[#allocation3 + $0x14] sm:$0x1]
      %v7639 = vld [vmem:[#allocation3 + $0x20] sm:$0x1]
      %v7640 = vld [vmem:[#allocation3 + $0x2c] sm:$0x1]
      %v7641 = vld [vmem:[#allocation3 + $0x38] sm:$0x1]
      %v7642 = vld [vmem:[#allocation3 + $0x44] sm:$0x1]
      %v7643 = vld [vmem:[#allocation3 + $0x50] sm:$0x1]
      %v7644 = vld [vmem:[#allocation3 + $0x5c] sm:$0x1]
      %v7645 = vld [vmem:[#allocation3 + $0x68] sm:$0x1]
      %v7646 = vld [vmem:[#allocation3 + $0x74] sm:$0x1]
      %v7647 = vld [vmem:[#allocation3 + $0x80] sm:$0x1]
      %v7648 = vld [vmem:[#allocation3 + $0x8c] sm:$0x1]
      %v7649 = vld [vmem:[#allocation3 + $0x98] sm:$0x1]
      %v7650 = vld [vmem:[#allocation3 + $0xa4] sm:$0x1]
      %v7651 = vld [vmem:[#allocation3 + $0xb0] sm:$0x1]
      %v7652 = vld [vmem:[#allocation3 + $0xbc] sm:$0x1]
      %v7653 = vunpack.c.l.bf16 %v7637
      %v7654 = vunpack.c.l.bf16 %v7638
      %v7655 = vunpack.c.l.bf16 %v7639
      %v7656 = vunpack.c.l.bf16 %v7640
      %v7657 = vunpack.c.l.bf16 %v7641
      %v7658 = vunpack.c.l.bf16 %v7642
      %v7659 = vunpack.c.l.bf16 %v7643
      %v7660 = vunpack.c.l.bf16 %v7644
      %v7661 = vunpack.c.l.bf16 %v7645
      %v7662 = vunpack.c.l.bf16 %v7646
      %v7663 = vunpack.c.l.bf16 %v7647
      %v7664 = vunpack.c.l.bf16 %v7648
      %v7665 = vunpack.c.l.bf16 %v7649
      %v7666 = vunpack.c.l.bf16 %v7650
      %v7667 = vunpack.c.l.bf16 %v7651
      %v7668 = vunpack.c.l.bf16 %v7652
      %v7669 = vlaneseq
      %v7670 = vshrl.u32 %v7669, 7
      %v7671 = vsub.s32 1, %v7670
      %v7672 = vrot.slane %v7503, %v7671
      %v7673 = vmul.f32 %v7537, %v7672
      %v7674 = vmul.f32 %v7538, %v7672
      %v7675 = vmul.f32 %v7653, %v7672
      %v7676 = vmul.f32 %v7539, %v7672
      %v7677 = vmul.f32 %v7540, %v7672
      %v7678 = vmul.f32 %v7654, %v7672
      %v7679 = vmul.f32 %v7541, %v7672
      %v7680 = vmul.f32 %v7542, %v7672
      %v7681 = vmul.f32 %v7655, %v7672
      %v7682 = vmul.f32 %v7543, %v7672
      %v7683 = vmul.f32 %v7544, %v7672
      %v7684 = vmul.f32 %v7656, %v7672
      %v7685 = vmul.f32 %v7545, %v7672
      %v7686 = vmul.f32 %v7546, %v7672
      %v7687 = vmul.f32 %v7657, %v7672
      %v7688 = vmul.f32 %v7547, %v7672
      %v7689 = vmul.f32 %v7548, %v7672
      %v7690 = vmul.f32 %v7658, %v7672
      %v7691 = vmul.f32 %v7549, %v7672
      %v7692 = vmul.f32 %v7550, %v7672
      %v7693 = vmul.f32 %v7659, %v7672
      %v7694 = vmul.f32 %v7551, %v7672
      %v7695 = vmul.f32 %v7552, %v7672
      %v7696 = vmul.f32 %v7660, %v7672
      %v7697 = vmul.f32 %v7553, %v7672
      %v7698 = vmul.f32 %v7554, %v7672
      %v7699 = vmul.f32 %v7661, %v7672
      %v7700 = vmul.f32 %v7555, %v7672
      %v7701 = vmul.f32 %v7556, %v7672
      %v7702 = vmul.f32 %v7662, %v7672
      %v7703 = vmul.f32 %v7557, %v7672
      %v7704 = vmul.f32 %v7558, %v7672
      %v7705 = vmul.f32 %v7663, %v7672
      %v7706 = vmul.f32 %v7559, %v7672
      %v7707 = vmul.f32 %v7560, %v7672
      %v7708 = vmul.f32 %v7664, %v7672
      %v7709 = vmul.f32 %v7561, %v7672
      %v7710 = vmul.f32 %v7562, %v7672
      %v7711 = vmul.f32 %v7665, %v7672
      %v7712 = vmul.f32 %v7563, %v7672
      %v7713 = vmul.f32 %v7564, %v7672
      %v7714 = vmul.f32 %v7666, %v7672
      %v7715 = vmul.f32 %v7565, %v7672
      %v7716 = vmul.f32 %v7566, %v7672
      %v7717 = vmul.f32 %v7667, %v7672
      %v7718 = vmul.f32 %v7567, %v7672
      %v7719 = vmul.f32 %v7568, %v7672
      %v7720 = vmul.f32 %v7668, %v7672
      %vm7769 = vcmask 1046528
      %v7770 = vrot.slane %v7673, 1
      %v7771 = vrot.slane %v7674, 1
      %v7772 = vsel %vm7769, %v7770, %v7771
      %v7773 = vrot.slane %v7675, 1
      %v7774 = vsel %vm7769, %v7771, %v7773
      %v7775 = vrot.slane %v7676, 1
      %v7776 = vrot.slane %v7677, 1
      %v7777 = vsel %vm7769, %v7775, %v7776
      %v7778 = vrot.slane %v7678, 1
      %v7779 = vsel %vm7769, %v7776, %v7778
      %v7780 = vrot.slane %v7679, 1
      %v7781 = vrot.slane %v7680, 1
      %v7782 = vsel %vm7769, %v7780, %v7781
      %v7783 = vrot.slane %v7681, 1
      %v7784 = vsel %vm7769, %v7781, %v7783
      %v7785 = vrot.slane %v7682, 1
      %v7786 = vrot.slane %v7683, 1
      %v7787 = vsel %vm7769, %v7785, %v7786
      %v7788 = vrot.slane %v7684, 1
      %v7789 = vsel %vm7769, %v7786, %v7788
      %v7790 = vrot.slane %v7685, 1
      %v7791 = vrot.slane %v7686, 1
      %v7792 = vsel %vm7769, %v7790, %v7791
      %v7793 = vrot.slane %v7687, 1
      %v7794 = vsel %vm7769, %v7791, %v7793
      %v7795 = vrot.slane %v7688, 1
      %v7796 = vrot.slane %v7689, 1
      %v7797 = vsel %vm7769, %v7795, %v7796
      %v7798 = vrot.slane %v7690, 1
      %v7799 = vsel %vm7769, %v7796, %v7798
      %v7800 = vrot.slane %v7691, 1
      %v7801 = vrot.slane %v7692, 1
      %v7802 = vsel %vm7769, %v7800, %v7801
      %v7803 = vrot.slane %v7693, 1
      %v7804 = vsel %vm7769, %v7801, %v7803
      %v7805 = vrot.slane %v7694, 1
      %v7806 = vrot.slane %v7695, 1
      %v7807 = vsel %vm7769, %v7805, %v7806
      %v7808 = vrot.slane %v7696, 1
      %v7809 = vsel %vm7769, %v7806, %v7808
      %v7810 = vrot.slane %v7697, 1
      %v7811 = vrot.slane %v7698, 1
      %v7812 = vsel %vm7769, %v7810, %v7811
      %v7813 = vrot.slane %v7699, 1
      %v7814 = vsel %vm7769, %v7811, %v7813
      %v7815 = vrot.slane %v7700, 1
      %v7816 = vrot.slane %v7701, 1
      %v7817 = vsel %vm7769, %v7815, %v7816
      %v7818 = vrot.slane %v7702, 1
      %v7819 = vsel %vm7769, %v7816, %v7818
      %v7820 = vrot.slane %v7703, 1
      %v7821 = vrot.slane %v7704, 1
      %v7822 = vsel %vm7769, %v7820, %v7821
      %v7823 = vrot.slane %v7705, 1
      %v7824 = vsel %vm7769, %v7821, %v7823
      %v7825 = vrot.slane %v7706, 1
      %v7826 = vrot.slane %v7707, 1
      %v7827 = vsel %vm7769, %v7825, %v7826
      %v7828 = vrot.slane %v7708, 1
      %v7829 = vsel %vm7769, %v7826, %v7828
      %v7830 = vrot.slane %v7709, 1
      %v7831 = vrot.slane %v7710, 1
      %v7832 = vsel %vm7769, %v7830, %v7831
      %v7833 = vrot.slane %v7711, 1
      %v7834 = vsel %vm7769, %v7831, %v7833
      %v7835 = vrot.slane %v7712, 1
      %v7836 = vrot.slane %v7713, 1
      %v7837 = vsel %vm7769, %v7835, %v7836
      %v7838 = vrot.slane %v7714, 1
      %v7839 = vsel %vm7769, %v7836, %v7838
      %v7840 = vrot.slane %v7715, 1
      %v7841 = vrot.slane %v7716, 1
      %v7842 = vsel %vm7769, %v7840, %v7841
      %v7843 = vrot.slane %v7717, 1
      %v7844 = vsel %vm7769, %v7841, %v7843
      %v7845 = vrot.slane %v7718, 1
      %v7846 = vrot.slane %v7719, 1
      %v7847 = vsel %vm7769, %v7845, %v7846
      %v7848 = vrot.slane %v7720, 1
      %v7849 = vsel %vm7769, %v7846, %v7848
      %v7882 = vadd.f32 %v7605, %v7772
      %v7883 = vadd.f32 %v7606, %v7774
      %v7884 = vadd.f32 %v7607, %v7777
      %v7885 = vadd.f32 %v7608, %v7779
      %v7886 = vadd.f32 %v7609, %v7782
      %v7887 = vadd.f32 %v7610, %v7784
      %v7888 = vadd.f32 %v7611, %v7787
      %v7889 = vadd.f32 %v7612, %v7789
      %v7890 = vadd.f32 %v7613, %v7792
      %v7891 = vadd.f32 %v7614, %v7794
      %v7892 = vadd.f32 %v7615, %v7797
      %v7893 = vadd.f32 %v7616, %v7799
      %v7894 = vadd.f32 %v7617, %v7802
      %v7895 = vadd.f32 %v7618, %v7804
      %v7896 = vadd.f32 %v7619, %v7807
      %v7897 = vadd.f32 %v7620, %v7809
      %v7898 = vadd.f32 %v7621, %v7812
      %v7899 = vadd.f32 %v7622, %v7814
      %v7900 = vadd.f32 %v7623, %v7817
      %v7901 = vadd.f32 %v7624, %v7819
      %v7902 = vadd.f32 %v7625, %v7822
      %v7903 = vadd.f32 %v7626, %v7824
      %v7904 = vadd.f32 %v7627, %v7827
      %v7905 = vadd.f32 %v7628, %v7829
      %v7906 = vadd.f32 %v7629, %v7832
      %v7907 = vadd.f32 %v7630, %v7834
      %v7908 = vadd.f32 %v7631, %v7837
      %v7909 = vadd.f32 %v7632, %v7839
      %v7910 = vadd.f32 %v7633, %v7842
      %v7911 = vadd.f32 %v7634, %v7844
      %v7912 = vadd.f32 %v7635, %v7847
      %v7913 = vadd.f32 %v7636, %v7849
      %v7914 = vld [vmem:[#allocation3] sm:$0xe]
      %v7915 = vld [vmem:[#allocation3 + $0xc] sm:$0xe]
      %v7916 = vld [vmem:[#allocation3 + $0x18] sm:$0xe]
      %v7917 = vld [vmem:[#allocation3 + $0x24] sm:$0xe]
      %v7918 = vld [vmem:[#allocation3 + $0x30] sm:$0xe]
      %v7919 = vld [vmem:[#allocation3 + $0x3c] sm:$0xe]
      %v7920 = vld [vmem:[#allocation3 + $0x48] sm:$0xe]
      %v7921 = vld [vmem:[#allocation3 + $0x54] sm:$0xe]
      %v7922 = vld [vmem:[#allocation3 + $0x60] sm:$0xe]
      %v7923 = vld [vmem:[#allocation3 + $0x6c] sm:$0xe]
      %v7924 = vld [vmem:[#allocation3 + $0x78] sm:$0xe]
      %v7925 = vld [vmem:[#allocation3 + $0x84] sm:$0xe]
      %v7926 = vld [vmem:[#allocation3 + $0x90] sm:$0xe]
      %v7927 = vld [vmem:[#allocation3 + $0x9c] sm:$0xe]
      %v7928 = vld [vmem:[#allocation3 + $0xa8] sm:$0xe]
      %v7929 = vld [vmem:[#allocation3 + $0xb4] sm:$0xe]
      %v7930 = vunpack.c.l.bf16 %v7914
      %v7931 = vunpack.c.l.bf16 %v7915
      %v7932 = vunpack.c.l.bf16 %v7916
      %v7933 = vunpack.c.l.bf16 %v7917
      %v7934 = vunpack.c.l.bf16 %v7918
      %v7935 = vunpack.c.l.bf16 %v7919
      %v7936 = vunpack.c.l.bf16 %v7920
      %v7937 = vunpack.c.l.bf16 %v7921
      %v7938 = vunpack.c.l.bf16 %v7922
      %v7939 = vunpack.c.l.bf16 %v7923
      %v7940 = vunpack.c.l.bf16 %v7924
      %v7941 = vunpack.c.l.bf16 %v7925
      %v7942 = vunpack.c.l.bf16 %v7926
      %v7943 = vunpack.c.l.bf16 %v7927
      %v7944 = vunpack.c.l.bf16 %v7928
      %v7945 = vunpack.c.l.bf16 %v7929
      %v7946 = vlaneseq
      %v7947 = vshrl.u32 %v7946, 7
      %v7948 = vsub.s32 2, %v7947
      %v7949 = vrot.slane %v7503, %v7948
      %v7950 = vmul.f32 %v7930, %v7949
      %v7951 = vmul.f32 %v7538, %v7949
      %v7952 = vmul.f32 %v7653, %v7949
      %v7953 = vmul.f32 %v7931, %v7949
      %v7954 = vmul.f32 %v7540, %v7949
      %v7955 = vmul.f32 %v7654, %v7949
      %v7956 = vmul.f32 %v7932, %v7949
      %v7957 = vmul.f32 %v7542, %v7949
      %v7958 = vmul.f32 %v7655, %v7949
      %v7959 = vmul.f32 %v7933, %v7949
      %v7960 = vmul.f32 %v7544, %v7949
      %v7961 = vmul.f32 %v7656, %v7949
      %v7962 = vmul.f32 %v7934, %v7949
      %v7963 = vmul.f32 %v7546, %v7949
      %v7964 = vmul.f32 %v7657, %v7949
      %v7965 = vmul.f32 %v7935, %v7949
      %v7966 = vmul.f32 %v7548, %v7949
      %v7967 = vmul.f32 %v7658, %v7949
      %v7968 = vmul.f32 %v7936, %v7949
      %v7969 = vmul.f32 %v7550, %v7949
      %v7970 = vmul.f32 %v7659, %v7949
      %v7971 = vmul.f32 %v7937, %v7949
      %v7972 = vmul.f32 %v7552, %v7949
      %v7973 = vmul.f32 %v7660, %v7949
      %v7974 = vmul.f32 %v7938, %v7949
      %v7975 = vmul.f32 %v7554, %v7949
      %v7976 = vmul.f32 %v7661, %v7949
      %v7977 = vmul.f32 %v7939, %v7949
      %v7978 = vmul.f32 %v7556, %v7949
      %v7979 = vmul.f32 %v7662, %v7949
      %v7980 = vmul.f32 %v7940, %v7949
      %v7981 = vmul.f32 %v7558, %v7949
      %v7982 = vmul.f32 %v7663, %v7949
      %v7983 = vmul.f32 %v7941, %v7949
      %v7984 = vmul.f32 %v7560, %v7949
      %v7985 = vmul.f32 %v7664, %v7949
      %v7986 = vmul.f32 %v7942, %v7949
      %v7987 = vmul.f32 %v7562, %v7949
      %v7988 = vmul.f32 %v7665, %v7949
      %v7989 = vmul.f32 %v7943, %v7949
      %v7990 = vmul.f32 %v7564, %v7949
      %v7991 = vmul.f32 %v7666, %v7949
      %v7992 = vmul.f32 %v7944, %v7949
      %v7993 = vmul.f32 %v7566, %v7949
      %v7994 = vmul.f32 %v7667, %v7949
      %v7995 = vmul.f32 %v7945, %v7949
      %v7996 = vmul.f32 %v7568, %v7949
      %v7997 = vmul.f32 %v7668, %v7949
      %vm8046 = vcmask 1045504
      %v8047 = vrot.slane %v7950, 2
      %v8048 = vrot.slane %v7951, 2
      %v8049 = vsel %vm8046, %v8047, %v8048
      %v8050 = vrot.slane %v7952, 2
      %v8051 = vsel %vm8046, %v8048, %v8050
      %v8052 = vrot.slane %v7953, 2
      %v8053 = vrot.slane %v7954, 2
      %v8054 = vsel %vm8046, %v8052, %v8053
      %v8055 = vrot.slane %v7955, 2
      %v8056 = vsel %vm8046, %v8053, %v8055
      %v8057 = vrot.slane %v7956, 2
      %v8058 = vrot.slane %v7957, 2
      %v8059 = vsel %vm8046, %v8057, %v8058
      %v8060 = vrot.slane %v7958, 2
      %v8061 = vsel %vm8046, %v8058, %v8060
      %v8062 = vrot.slane %v7959, 2
      %v8063 = vrot.slane %v7960, 2
      %v8064 = vsel %vm8046, %v8062, %v8063
      %v8065 = vrot.slane %v7961, 2
      %v8066 = vsel %vm8046, %v8063, %v8065
      %v8067 = vrot.slane %v7962, 2
      %v8068 = vrot.slane %v7963, 2
      %v8069 = vsel %vm8046, %v8067, %v8068
      %v8070 = vrot.slane %v7964, 2
      %v8071 = vsel %vm8046, %v8068, %v8070
      %v8072 = vrot.slane %v7965, 2
      %v8073 = vrot.slane %v7966, 2
      %v8074 = vsel %vm8046, %v8072, %v8073
      %v8075 = vrot.slane %v7967, 2
      %v8076 = vsel %vm8046, %v8073, %v8075
      %v8077 = vrot.slane %v7968, 2
      %v8078 = vrot.slane %v7969, 2
      %v8079 = vsel %vm8046, %v8077, %v8078
      %v8080 = vrot.slane %v7970, 2
      %v8081 = vsel %vm8046, %v8078, %v8080
      %v8082 = vrot.slane %v7971, 2
      %v8083 = vrot.slane %v7972, 2
      %v8084 = vsel %vm8046, %v8082, %v8083
      %v8085 = vrot.slane %v7973, 2
      %v8086 = vsel %vm8046, %v8083, %v8085
      %v8087 = vrot.slane %v7974, 2
      %v8088 = vrot.slane %v7975, 2
      %v8089 = vsel %vm8046, %v8087, %v8088
      %v8090 = vrot.slane %v7976, 2
      %v8091 = vsel %vm8046, %v8088, %v8090
      %v8092 = vrot.slane %v7977, 2
      %v8093 = vrot.slane %v7978, 2
      %v8094 = vsel %vm8046, %v8092, %v8093
      %v8095 = vrot.slane %v7979, 2
      %v8096 = vsel %vm8046, %v8093, %v8095
      %v8097 = vrot.slane %v7980, 2
      %v8098 = vrot.slane %v7981, 2
      %v8099 = vsel %vm8046, %v8097, %v8098
      %v8100 = vrot.slane %v7982, 2
      %v8101 = vsel %vm8046, %v8098, %v8100
      %v8102 = vrot.slane %v7983, 2
      %v8103 = vrot.slane %v7984, 2
      %v8104 = vsel %vm8046, %v8102, %v8103
      %v8105 = vrot.slane %v7985, 2
      %v8106 = vsel %vm8046, %v8103, %v8105
      %v8107 = vrot.slane %v7986, 2
      %v8108 = vrot.slane %v7987, 2
      %v8109 = vsel %vm8046, %v8107, %v8108
      %v8110 = vrot.slane %v7988, 2
      %v8111 = vsel %vm8046, %v8108, %v8110
      %v8112 = vrot.slane %v7989, 2
      %v8113 = vrot.slane %v7990, 2
      %v8114 = vsel %vm8046, %v8112, %v8113
      %v8115 = vrot.slane %v7991, 2
      %v8116 = vsel %vm8046, %v8113, %v8115
      %v8117 = vrot.slane %v7992, 2
      %v8118 = vrot.slane %v7993, 2
      %v8119 = vsel %vm8046, %v8117, %v8118
      %v8120 = vrot.slane %v7994, 2
      %v8121 = vsel %vm8046, %v8118, %v8120
      %v8122 = vrot.slane %v7995, 2
      %v8123 = vrot.slane %v7996, 2
      %v8124 = vsel %vm8046, %v8122, %v8123
      %v8125 = vrot.slane %v7997, 2
      %v8126 = vsel %vm8046, %v8123, %v8125
      %v8159 = vadd.f32 %v7882, %v8049
      %v8160 = vadd.f32 %v7883, %v8051
      %v8161 = vadd.f32 %v7884, %v8054
      %v8162 = vadd.f32 %v7885, %v8056
      %v8163 = vadd.f32 %v7886, %v8059
      %v8164 = vadd.f32 %v7887, %v8061
      %v8165 = vadd.f32 %v7888, %v8064
      %v8166 = vadd.f32 %v7889, %v8066
      %v8167 = vadd.f32 %v7890, %v8069
      %v8168 = vadd.f32 %v7891, %v8071
      %v8169 = vadd.f32 %v7892, %v8074
      %v8170 = vadd.f32 %v7893, %v8076
      %v8171 = vadd.f32 %v7894, %v8079
      %v8172 = vadd.f32 %v7895, %v8081
      %v8173 = vadd.f32 %v7896, %v8084
      %v8174 = vadd.f32 %v7897, %v8086
      %v8175 = vadd.f32 %v7898, %v8089
      %v8176 = vadd.f32 %v7899, %v8091
      %v8177 = vadd.f32 %v7900, %v8094
      %v8178 = vadd.f32 %v7901, %v8096
      %v8179 = vadd.f32 %v7902, %v8099
      %v8180 = vadd.f32 %v7903, %v8101
      %v8181 = vadd.f32 %v7904, %v8104
      %v8182 = vadd.f32 %v7905, %v8106
      %v8183 = vadd.f32 %v7906, %v8109
      %v8184 = vadd.f32 %v7907, %v8111
      %v8185 = vadd.f32 %v7908, %v8114
      %v8186 = vadd.f32 %v7909, %v8116
      %v8187 = vadd.f32 %v7910, %v8119
      %v8188 = vadd.f32 %v7911, %v8121
      %v8189 = vadd.f32 %v7912, %v8124
      %v8190 = vadd.f32 %v7913, %v8126
      %v8191 = vld [vmem:[%s7390] sm:$0xf]
      %v8192 = vld [vmem:[%s7390 + $0x4] sm:$0xf]
      %v8193 = vld [vmem:[%s7390 + $0xc] sm:$0xf]
      %v8194 = vld [vmem:[%s7390 + $0x10] sm:$0xf]
      %v8195 = vld [vmem:[%s7390 + $0x18] sm:$0xf]
      %v8196 = vld [vmem:[%s7390 + $0x1c] sm:$0xf]
      %v8197 = vld [vmem:[%s7390 + $0x24] sm:$0xf]
      %v8198 = vld [vmem:[%s7390 + $0x28] sm:$0xf]
      %v8199 = vld [vmem:[%s7390 + $0x30] sm:$0xf]
      %v8200 = vld [vmem:[%s7390 + $0x34] sm:$0xf]
      %v8201 = vld [vmem:[%s7390 + $0x3c] sm:$0xf]
      %v8202 = vld [vmem:[%s7390 + $0x40] sm:$0xf]
      %v8203 = vld [vmem:[%s7390 + $0x48] sm:$0xf]
      %v8204 = vld [vmem:[%s7390 + $0x4c] sm:$0xf]
      %v8205 = vld [vmem:[%s7390 + $0x54] sm:$0xf]
      %v8206 = vld [vmem:[%s7390 + $0x58] sm:$0xf]
      %v8207 = vld [vmem:[%s7390 + $0x60] sm:$0xf]
      %v8208 = vld [vmem:[%s7390 + $0x64] sm:$0xf]
      %v8209 = vld [vmem:[%s7390 + $0x6c] sm:$0xf]
      %v8210 = vld [vmem:[%s7390 + $0x70] sm:$0xf]
      %v8211 = vld [vmem:[%s7390 + $0x78] sm:$0xf]
      %v8212 = vld [vmem:[%s7390 + $0x7c] sm:$0xf]
      %v8213 = vld [vmem:[%s7390 + $0x84] sm:$0xf]
      %v8214 = vld [vmem:[%s7390 + $0x88] sm:$0xf]
      %v8215 = vld [vmem:[%s7390 + $0x90] sm:$0xf]
      %v8216 = vld [vmem:[%s7390 + $0x94] sm:$0xf]
      %v8217 = vld [vmem:[%s7390 + $0x9c] sm:$0xf]
      %v8218 = vld [vmem:[%s7390 + $0xa0] sm:$0xf]
      %v8219 = vld [vmem:[%s7390 + $0xa8] sm:$0xf]
      %v8220 = vld [vmem:[%s7390 + $0xac] sm:$0xf]
      %v8221 = vld [vmem:[%s7390 + $0xb4] sm:$0xf]
      %v8222 = vld [vmem:[%s7390 + $0xb8] sm:$0xf]
      %v8223 = vunpack.c.l.bf16 %v8191
      %v8224 = vunpack.c.l.bf16 %v8192
      %v8225 = vunpack.c.l.bf16 %v8193
      %v8226 = vunpack.c.l.bf16 %v8194
      %v8227 = vunpack.c.l.bf16 %v8195
      %v8228 = vunpack.c.l.bf16 %v8196
      %v8229 = vunpack.c.l.bf16 %v8197
      %v8230 = vunpack.c.l.bf16 %v8198
      %v8231 = vunpack.c.l.bf16 %v8199
      %v8232 = vunpack.c.l.bf16 %v8200
      %v8233 = vunpack.c.l.bf16 %v8201
      %v8234 = vunpack.c.l.bf16 %v8202
      %v8235 = vunpack.c.l.bf16 %v8203
      %v8236 = vunpack.c.l.bf16 %v8204
      %v8237 = vunpack.c.l.bf16 %v8205
      %v8238 = vunpack.c.l.bf16 %v8206
      %v8239 = vunpack.c.l.bf16 %v8207
      %v8240 = vunpack.c.l.bf16 %v8208
      %v8241 = vunpack.c.l.bf16 %v8209
      %v8242 = vunpack.c.l.bf16 %v8210
      %v8243 = vunpack.c.l.bf16 %v8211
      %v8244 = vunpack.c.l.bf16 %v8212
      %v8245 = vunpack.c.l.bf16 %v8213
      %v8246 = vunpack.c.l.bf16 %v8214
      %v8247 = vunpack.c.l.bf16 %v8215
      %v8248 = vunpack.c.l.bf16 %v8216
      %v8249 = vunpack.c.l.bf16 %v8217
      %v8250 = vunpack.c.l.bf16 %v8218
      %v8251 = vunpack.c.l.bf16 %v8219
      %v8252 = vunpack.c.l.bf16 %v8220
      %v8253 = vunpack.c.l.bf16 %v8221
      %v8254 = vunpack.c.l.bf16 %v8222
      %v8255 = vlaneseq
      %v8256 = vshrl.u32 %v8255, 7
      %v8257 = vsub.s32 3, %v8256
      %v8258 = vrot.slane %v7503, %v8257
      %v8259 = vmul.f32 %v8223, %v8258
      %v8260 = vmul.f32 %v8224, %v8258
      %v8261 = vmul.f32 %v8225, %v8258
      %v8262 = vmul.f32 %v8226, %v8258
      %v8263 = vmul.f32 %v8227, %v8258
      %v8264 = vmul.f32 %v8228, %v8258
      %v8265 = vmul.f32 %v8229, %v8258
      %v8266 = vmul.f32 %v8230, %v8258
      %v8267 = vmul.f32 %v8231, %v8258
      %v8268 = vmul.f32 %v8232, %v8258
      %v8269 = vmul.f32 %v8233, %v8258
      %v8270 = vmul.f32 %v8234, %v8258
      %v8271 = vmul.f32 %v8235, %v8258
      %v8272 = vmul.f32 %v8236, %v8258
      %v8273 = vmul.f32 %v8237, %v8258
      %v8274 = vmul.f32 %v8238, %v8258
      %v8275 = vmul.f32 %v8239, %v8258
      %v8276 = vmul.f32 %v8240, %v8258
      %v8277 = vmul.f32 %v8241, %v8258
      %v8278 = vmul.f32 %v8242, %v8258
      %v8279 = vmul.f32 %v8243, %v8258
      %v8280 = vmul.f32 %v8244, %v8258
      %v8281 = vmul.f32 %v8245, %v8258
      %v8282 = vmul.f32 %v8246, %v8258
      %v8283 = vmul.f32 %v8247, %v8258
      %v8284 = vmul.f32 %v8248, %v8258
      %v8285 = vmul.f32 %v8249, %v8258
      %v8286 = vmul.f32 %v8250, %v8258
      %v8287 = vmul.f32 %v8251, %v8258
      %v8288 = vmul.f32 %v8252, %v8258
      %v8289 = vmul.f32 %v8253, %v8258
      %v8290 = vmul.f32 %v8254, %v8258
      %v8291 = vadd.f32 %v8159, %v8259
      %v8292 = vadd.f32 %v8160, %v8260
      %v8293 = vadd.f32 %v8161, %v8261
      %v8294 = vadd.f32 %v8162, %v8262
      %v8295 = vadd.f32 %v8163, %v8263
      %v8296 = vadd.f32 %v8164, %v8264
      %v8297 = vadd.f32 %v8165, %v8265
      %v8298 = vadd.f32 %v8166, %v8266
      %v8299 = vadd.f32 %v8167, %v8267
      %v8300 = vadd.f32 %v8168, %v8268
      %v8301 = vadd.f32 %v8169, %v8269
      %v8302 = vadd.f32 %v8170, %v8270
      %v8303 = vadd.f32 %v8171, %v8271
      %v8304 = vadd.f32 %v8172, %v8272
      %v8305 = vadd.f32 %v8173, %v8273
      %v8306 = vadd.f32 %v8174, %v8274
      %v8307 = vadd.f32 %v8175, %v8275
      %v8308 = vadd.f32 %v8176, %v8276
      %v8309 = vadd.f32 %v8177, %v8277
      %v8310 = vadd.f32 %v8178, %v8278
      %v8311 = vadd.f32 %v8179, %v8279
      %v8312 = vadd.f32 %v8180, %v8280
      %v8313 = vadd.f32 %v8181, %v8281
      %v8314 = vadd.f32 %v8182, %v8282
      %v8315 = vadd.f32 %v8183, %v8283
      %v8316 = vadd.f32 %v8184, %v8284
      %v8317 = vadd.f32 %v8185, %v8285
      %v8318 = vadd.f32 %v8186, %v8286
      %v8319 = vadd.f32 %v8187, %v8287
      %v8320 = vadd.f32 %v8188, %v8288
      %v8321 = vadd.f32 %v8189, %v8289
      %v8322 = vadd.f32 %v8190, %v8290
      %v8323 = vld [vmem:[%s7390 + $0x8] sm:$0x1]
      %v8324 = vld [vmem:[%s7390 + $0x14] sm:$0x1]
      %v8325 = vld [vmem:[%s7390 + $0x20] sm:$0x1]
      %v8326 = vld [vmem:[%s7390 + $0x2c] sm:$0x1]
      %v8327 = vld [vmem:[%s7390 + $0x38] sm:$0x1]
      %v8328 = vld [vmem:[%s7390 + $0x44] sm:$0x1]
      %v8329 = vld [vmem:[%s7390 + $0x50] sm:$0x1]
      %v8330 = vld [vmem:[%s7390 + $0x5c] sm:$0x1]
      %v8331 = vld [vmem:[%s7390 + $0x68] sm:$0x1]
      %v8332 = vld [vmem:[%s7390 + $0x74] sm:$0x1]
      %v8333 = vld [vmem:[%s7390 + $0x80] sm:$0x1]
      %v8334 = vld [vmem:[%s7390 + $0x8c] sm:$0x1]
      %v8335 = vld [vmem:[%s7390 + $0x98] sm:$0x1]
      %v8336 = vld [vmem:[%s7390 + $0xa4] sm:$0x1]
      %v8337 = vld [vmem:[%s7390 + $0xb0] sm:$0x1]
      %v8338 = vld [vmem:[%s7390 + $0xbc] sm:$0x1]
      %v8339 = vunpack.c.l.bf16 %v8323
      %v8340 = vunpack.c.l.bf16 %v8324
      %v8341 = vunpack.c.l.bf16 %v8325
      %v8342 = vunpack.c.l.bf16 %v8326
      %v8343 = vunpack.c.l.bf16 %v8327
      %v8344 = vunpack.c.l.bf16 %v8328
      %v8345 = vunpack.c.l.bf16 %v8329
      %v8346 = vunpack.c.l.bf16 %v8330
      %v8347 = vunpack.c.l.bf16 %v8331
      %v8348 = vunpack.c.l.bf16 %v8332
      %v8349 = vunpack.c.l.bf16 %v8333
      %v8350 = vunpack.c.l.bf16 %v8334
      %v8351 = vunpack.c.l.bf16 %v8335
      %v8352 = vunpack.c.l.bf16 %v8336
      %v8353 = vunpack.c.l.bf16 %v8337
      %v8354 = vunpack.c.l.bf16 %v8338
      %v8355 = vlaneseq
      %v8356 = vshrl.u32 %v8355, 7
      %v8357 = vsub.s32 4, %v8356
      %v8358 = vrot.slane %v7503, %v8357
      %v8359 = vmul.f32 %v8223, %v8358
      %v8360 = vmul.f32 %v8224, %v8358
      %v8361 = vmul.f32 %v8339, %v8358
      %v8362 = vmul.f32 %v8225, %v8358
      %v8363 = vmul.f32 %v8226, %v8358
      %v8364 = vmul.f32 %v8340, %v8358
      %v8365 = vmul.f32 %v8227, %v8358
      %v8366 = vmul.f32 %v8228, %v8358
      %v8367 = vmul.f32 %v8341, %v8358
      %v8368 = vmul.f32 %v8229, %v8358
      %v8369 = vmul.f32 %v8230, %v8358
      %v8370 = vmul.f32 %v8342, %v8358
      %v8371 = vmul.f32 %v8231, %v8358
      %v8372 = vmul.f32 %v8232, %v8358
      %v8373 = vmul.f32 %v8343, %v8358
      %v8374 = vmul.f32 %v8233, %v8358
      %v8375 = vmul.f32 %v8234, %v8358
      %v8376 = vmul.f32 %v8344, %v8358
      %v8377 = vmul.f32 %v8235, %v8358
      %v8378 = vmul.f32 %v8236, %v8358
      %v8379 = vmul.f32 %v8345, %v8358
      %v8380 = vmul.f32 %v8237, %v8358
      %v8381 = vmul.f32 %v8238, %v8358
      %v8382 = vmul.f32 %v8346, %v8358
      %v8383 = vmul.f32 %v8239, %v8358
      %v8384 = vmul.f32 %v8240, %v8358
      %v8385 = vmul.f32 %v8347, %v8358
      %v8386 = vmul.f32 %v8241, %v8358
      %v8387 = vmul.f32 %v8242, %v8358
      %v8388 = vmul.f32 %v8348, %v8358
      %v8389 = vmul.f32 %v8243, %v8358
      %v8390 = vmul.f32 %v8244, %v8358
      %v8391 = vmul.f32 %v8349, %v8358
      %v8392 = vmul.f32 %v8245, %v8358
      %v8393 = vmul.f32 %v8246, %v8358
      %v8394 = vmul.f32 %v8350, %v8358
      %v8395 = vmul.f32 %v8247, %v8358
      %v8396 = vmul.f32 %v8248, %v8358
      %v8397 = vmul.f32 %v8351, %v8358
      %v8398 = vmul.f32 %v8249, %v8358
      %v8399 = vmul.f32 %v8250, %v8358
      %v8400 = vmul.f32 %v8352, %v8358
      %v8401 = vmul.f32 %v8251, %v8358
      %v8402 = vmul.f32 %v8252, %v8358
      %v8403 = vmul.f32 %v8353, %v8358
      %v8404 = vmul.f32 %v8253, %v8358
      %v8405 = vmul.f32 %v8254, %v8358
      %v8406 = vmul.f32 %v8354, %v8358
      %v8455 = vrot.slane %v8359, 1
      %v8456 = vrot.slane %v8360, 1
      %v8457 = vsel %vm7769, %v8455, %v8456
      %v8458 = vrot.slane %v8361, 1
      %v8459 = vsel %vm7769, %v8456, %v8458
      %v8460 = vrot.slane %v8362, 1
      %v8461 = vrot.slane %v8363, 1
      %v8462 = vsel %vm7769, %v8460, %v8461
      %v8463 = vrot.slane %v8364, 1
      %v8464 = vsel %vm7769, %v8461, %v8463
      %v8465 = vrot.slane %v8365, 1
      %v8466 = vrot.slane %v8366, 1
      %v8467 = vsel %vm7769, %v8465, %v8466
      %v8468 = vrot.slane %v8367, 1
      %v8469 = vsel %vm7769, %v8466, %v8468
      %v8470 = vrot.slane %v8368, 1
      %v8471 = vrot.slane %v8369, 1
      %v8472 = vsel %vm7769, %v8470, %v8471
      %v8473 = vrot.slane %v8370, 1
      %v8474 = vsel %vm7769, %v8471, %v8473
      %v8475 = vrot.slane %v8371, 1
      %v8476 = vrot.slane %v8372, 1
      %v8477 = vsel %vm7769, %v8475, %v8476
      %v8478 = vrot.slane %v8373, 1
      %v8479 = vsel %vm7769, %v8476, %v8478
      %v8480 = vrot.slane %v8374, 1
      %v8481 = vrot.slane %v8375, 1
      %v8482 = vsel %vm7769, %v8480, %v8481
      %v8483 = vrot.slane %v8376, 1
      %v8484 = vsel %vm7769, %v8481, %v8483
      %v8485 = vrot.slane %v8377, 1
      %v8486 = vrot.slane %v8378, 1
      %v8487 = vsel %vm7769, %v8485, %v8486
      %v8488 = vrot.slane %v8379, 1
      %v8489 = vsel %vm7769, %v8486, %v8488
      %v8490 = vrot.slane %v8380, 1
      %v8491 = vrot.slane %v8381, 1
      %v8492 = vsel %vm7769, %v8490, %v8491
      %v8493 = vrot.slane %v8382, 1
      %v8494 = vsel %vm7769, %v8491, %v8493
      %v8495 = vrot.slane %v8383, 1
      %v8496 = vrot.slane %v8384, 1
      %v8497 = vsel %vm7769, %v8495, %v8496
      %v8498 = vrot.slane %v8385, 1
      %v8499 = vsel %vm7769, %v8496, %v8498
      %v8500 = vrot.slane %v8386, 1
      %v8501 = vrot.slane %v8387, 1
      %v8502 = vsel %vm7769, %v8500, %v8501
      %v8503 = vrot.slane %v8388, 1
      %v8504 = vsel %vm7769, %v8501, %v8503
      %v8505 = vrot.slane %v8389, 1
      %v8506 = vrot.slane %v8390, 1
      %v8507 = vsel %vm7769, %v8505, %v8506
      %v8508 = vrot.slane %v8391, 1
      %v8509 = vsel %vm7769, %v8506, %v8508
      %v8510 = vrot.slane %v8392, 1
      %v8511 = vrot.slane %v8393, 1
      %v8512 = vsel %vm7769, %v8510, %v8511
      %v8513 = vrot.slane %v8394, 1
      %v8514 = vsel %vm7769, %v8511, %v8513
      %v8515 = vrot.slane %v8395, 1
      %v8516 = vrot.slane %v8396, 1
      %v8517 = vsel %vm7769, %v8515, %v8516
      %v8518 = vrot.slane %v8397, 1
      %v8519 = vsel %vm7769, %v8516, %v8518
      %v8520 = vrot.slane %v8398, 1
      %v8521 = vrot.slane %v8399, 1
      %v8522 = vsel %vm7769, %v8520, %v8521
      %v8523 = vrot.slane %v8400, 1
      %v8524 = vsel %vm7769, %v8521, %v8523
      %v8525 = vrot.slane %v8401, 1
      %v8526 = vrot.slane %v8402, 1
      %v8527 = vsel %vm7769, %v8525, %v8526
      %v8528 = vrot.slane %v8403, 1
      %v8529 = vsel %vm7769, %v8526, %v8528
      %v8530 = vrot.slane %v8404, 1
      %v8531 = vrot.slane %v8405, 1
      %v8532 = vsel %vm7769, %v8530, %v8531
      %v8533 = vrot.slane %v8406, 1
      %v8534 = vsel %vm7769, %v8531, %v8533
      %v8567 = vadd.f32 %v8291, %v8457
      %v8568 = vadd.f32 %v8292, %v8459
      %v8569 = vadd.f32 %v8293, %v8462
      %v8570 = vadd.f32 %v8294, %v8464
      %v8571 = vadd.f32 %v8295, %v8467
      %v8572 = vadd.f32 %v8296, %v8469
      %v8573 = vadd.f32 %v8297, %v8472
      %v8574 = vadd.f32 %v8298, %v8474
      %v8575 = vadd.f32 %v8299, %v8477
      %v8576 = vadd.f32 %v8300, %v8479
      %v8577 = vadd.f32 %v8301, %v8482
      %v8578 = vadd.f32 %v8302, %v8484
      %v8579 = vadd.f32 %v8303, %v8487
      %v8580 = vadd.f32 %v8304, %v8489
      %v8581 = vadd.f32 %v8305, %v8492
      %v8582 = vadd.f32 %v8306, %v8494
      %v8583 = vadd.f32 %v8307, %v8497
      %v8584 = vadd.f32 %v8308, %v8499
      %v8585 = vadd.f32 %v8309, %v8502
      %v8586 = vadd.f32 %v8310, %v8504
      %v8587 = vadd.f32 %v8311, %v8507
      %v8588 = vadd.f32 %v8312, %v8509
      %v8589 = vadd.f32 %v8313, %v8512
      %v8590 = vadd.f32 %v8314, %v8514
      %v8591 = vadd.f32 %v8315, %v8517
      %v8592 = vadd.f32 %v8316, %v8519
      %v8593 = vadd.f32 %v8317, %v8522
      %v8594 = vadd.f32 %v8318, %v8524
      %v8595 = vadd.f32 %v8319, %v8527
      %v8596 = vadd.f32 %v8320, %v8529
      %v8597 = vadd.f32 %v8321, %v8532
      %v8598 = vadd.f32 %v8322, %v8534
      %v8599 = vld [vmem:[%s7390] sm:$0xe]
      %v8600 = vld [vmem:[%s7390 + $0xc] sm:$0xe]
      %v8601 = vld [vmem:[%s7390 + $0x18] sm:$0xe]
      %v8602 = vld [vmem:[%s7390 + $0x24] sm:$0xe]
      %v8603 = vld [vmem:[%s7390 + $0x30] sm:$0xe]
      %v8604 = vld [vmem:[%s7390 + $0x3c] sm:$0xe]
      %v8605 = vld [vmem:[%s7390 + $0x48] sm:$0xe]
      %v8606 = vld [vmem:[%s7390 + $0x54] sm:$0xe]
      %v8607 = vld [vmem:[%s7390 + $0x60] sm:$0xe]
      %v8608 = vld [vmem:[%s7390 + $0x6c] sm:$0xe]
      %v8609 = vld [vmem:[%s7390 + $0x78] sm:$0xe]
      %v8610 = vld [vmem:[%s7390 + $0x84] sm:$0xe]
      %v8611 = vld [vmem:[%s7390 + $0x90] sm:$0xe]
      %v8612 = vld [vmem:[%s7390 + $0x9c] sm:$0xe]
      %v8613 = vld [vmem:[%s7390 + $0xa8] sm:$0xe]
      %v8614 = vld [vmem:[%s7390 + $0xb4] sm:$0xe]
      %v8615 = vunpack.c.l.bf16 %v8599
      %v8616 = vunpack.c.l.bf16 %v8600
      %v8617 = vunpack.c.l.bf16 %v8601
      %v8618 = vunpack.c.l.bf16 %v8602
      %v8619 = vunpack.c.l.bf16 %v8603
      %v8620 = vunpack.c.l.bf16 %v8604
      %v8621 = vunpack.c.l.bf16 %v8605
      %v8622 = vunpack.c.l.bf16 %v8606
      %v8623 = vunpack.c.l.bf16 %v8607
      %v8624 = vunpack.c.l.bf16 %v8608
      %v8625 = vunpack.c.l.bf16 %v8609
      %v8626 = vunpack.c.l.bf16 %v8610
      %v8627 = vunpack.c.l.bf16 %v8611
      %v8628 = vunpack.c.l.bf16 %v8612
      %v8629 = vunpack.c.l.bf16 %v8613
      %v8630 = vunpack.c.l.bf16 %v8614
      %v8631 = vlaneseq
      %v8632 = vshrl.u32 %v8631, 7
      %v8633 = vsub.s32 5, %v8632
      %v8634 = vrot.slane %v7503, %v8633
      %v8635 = vmul.f32 %v8615, %v8634
      %v8636 = vmul.f32 %v8224, %v8634
      %v8637 = vmul.f32 %v8339, %v8634
      %v8638 = vmul.f32 %v8616, %v8634
      %v8639 = vmul.f32 %v8226, %v8634
      %v8640 = vmul.f32 %v8340, %v8634
      %v8641 = vmul.f32 %v8617, %v8634
      %v8642 = vmul.f32 %v8228, %v8634
      %v8643 = vmul.f32 %v8341, %v8634
      %v8644 = vmul.f32 %v8618, %v8634
      %v8645 = vmul.f32 %v8230, %v8634
      %v8646 = vmul.f32 %v8342, %v8634
      %v8647 = vmul.f32 %v8619, %v8634
      %v8648 = vmul.f32 %v8232, %v8634
      %v8649 = vmul.f32 %v8343, %v8634
      %v8650 = vmul.f32 %v8620, %v8634
      %v8651 = vmul.f32 %v8234, %v8634
      %v8652 = vmul.f32 %v8344, %v8634
      %v8653 = vmul.f32 %v8621, %v8634
      %v8654 = vmul.f32 %v8236, %v8634
      %v8655 = vmul.f32 %v8345, %v8634
      %v8656 = vmul.f32 %v8622, %v8634
      %v8657 = vmul.f32 %v8238, %v8634
      %v8658 = vmul.f32 %v8346, %v8634
      %v8659 = vmul.f32 %v8623, %v8634
      %v8660 = vmul.f32 %v8240, %v8634
      %v8661 = vmul.f32 %v8347, %v8634
      %v8662 = vmul.f32 %v8624, %v8634
      %v8663 = vmul.f32 %v8242, %v8634
      %v8664 = vmul.f32 %v8348, %v8634
      %v8665 = vmul.f32 %v8625, %v8634
      %v8666 = vmul.f32 %v8244, %v8634
      %v8667 = vmul.f32 %v8349, %v8634
      %v8668 = vmul.f32 %v8626, %v8634
      %v8669 = vmul.f32 %v8246, %v8634
      %v8670 = vmul.f32 %v8350, %v8634
      %v8671 = vmul.f32 %v8627, %v8634
      %v8672 = vmul.f32 %v8248, %v8634
      %v8673 = vmul.f32 %v8351, %v8634
      %v8674 = vmul.f32 %v8628, %v8634
      %v8675 = vmul.f32 %v8250, %v8634
      %v8676 = vmul.f32 %v8352, %v8634
      %v8677 = vmul.f32 %v8629, %v8634
      %v8678 = vmul.f32 %v8252, %v8634
      %v8679 = vmul.f32 %v8353, %v8634
      %v8680 = vmul.f32 %v8630, %v8634
      %v8681 = vmul.f32 %v8254, %v8634
      %v8682 = vmul.f32 %v8354, %v8634
      %v8731 = vrot.slane %v8635, 2
      %v8732 = vrot.slane %v8636, 2
      %v8733 = vsel %vm8046, %v8731, %v8732
      %v8734 = vrot.slane %v8637, 2
      %v8735 = vsel %vm8046, %v8732, %v8734
      %v8736 = vrot.slane %v8638, 2
      %v8737 = vrot.slane %v8639, 2
      %v8738 = vsel %vm8046, %v8736, %v8737
      %v8739 = vrot.slane %v8640, 2
      %v8740 = vsel %vm8046, %v8737, %v8739
      %v8741 = vrot.slane %v8641, 2
      %v8742 = vrot.slane %v8642, 2
      %v8743 = vsel %vm8046, %v8741, %v8742
      %v8744 = vrot.slane %v8643, 2
      %v8745 = vsel %vm8046, %v8742, %v8744
      %v8746 = vrot.slane %v8644, 2
      %v8747 = vrot.slane %v8645, 2
      %v8748 = vsel %vm8046, %v8746, %v8747
      %v8749 = vrot.slane %v8646, 2
      %v8750 = vsel %vm8046, %v8747, %v8749
      %v8751 = vrot.slane %v8647, 2
      %v8752 = vrot.slane %v8648, 2
      %v8753 = vsel %vm8046, %v8751, %v8752
      %v8754 = vrot.slane %v8649, 2
      %v8755 = vsel %vm8046, %v8752, %v8754
      %v8756 = vrot.slane %v8650, 2
      %v8757 = vrot.slane %v8651, 2
      %v8758 = vsel %vm8046, %v8756, %v8757
      %v8759 = vrot.slane %v8652, 2
      %v8760 = vsel %vm8046, %v8757, %v8759
      %v8761 = vrot.slane %v8653, 2
      %v8762 = vrot.slane %v8654, 2
      %v8763 = vsel %vm8046, %v8761, %v8762
      %v8764 = vrot.slane %v8655, 2
      %v8765 = vsel %vm8046, %v8762, %v8764
      %v8766 = vrot.slane %v8656, 2
      %v8767 = vrot.slane %v8657, 2
      %v8768 = vsel %vm8046, %v8766, %v8767
      %v8769 = vrot.slane %v8658, 2
      %v8770 = vsel %vm8046, %v8767, %v8769
      %v8771 = vrot.slane %v8659, 2
      %v8772 = vrot.slane %v8660, 2
      %v8773 = vsel %vm8046, %v8771, %v8772
      %v8774 = vrot.slane %v8661, 2
      %v8775 = vsel %vm8046, %v8772, %v8774
      %v8776 = vrot.slane %v8662, 2
      %v8777 = vrot.slane %v8663, 2
      %v8778 = vsel %vm8046, %v8776, %v8777
      %v8779 = vrot.slane %v8664, 2
      %v8780 = vsel %vm8046, %v8777, %v8779
      %v8781 = vrot.slane %v8665, 2
      %v8782 = vrot.slane %v8666, 2
      %v8783 = vsel %vm8046, %v8781, %v8782
      %v8784 = vrot.slane %v8667, 2
      %v8785 = vsel %vm8046, %v8782, %v8784
      %v8786 = vrot.slane %v8668, 2
      %v8787 = vrot.slane %v8669, 2
      %v8788 = vsel %vm8046, %v8786, %v8787
      %v8789 = vrot.slane %v8670, 2
      %v8790 = vsel %vm8046, %v8787, %v8789
      %v8791 = vrot.slane %v8671, 2
      %v8792 = vrot.slane %v8672, 2
      %v8793 = vsel %vm8046, %v8791, %v8792
      %v8794 = vrot.slane %v8673, 2
      %v8795 = vsel %vm8046, %v8792, %v8794
      %v8796 = vrot.slane %v8674, 2
      %v8797 = vrot.slane %v8675, 2
      %v8798 = vsel %vm8046, %v8796, %v8797
      %v8799 = vrot.slane %v8676, 2
      %v8800 = vsel %vm8046, %v8797, %v8799
      %v8801 = vrot.slane %v8677, 2
      %v8802 = vrot.slane %v8678, 2
      %v8803 = vsel %vm8046, %v8801, %v8802
      %v8804 = vrot.slane %v8679, 2
      %v8805 = vsel %vm8046, %v8802, %v8804
      %v8806 = vrot.slane %v8680, 2
      %v8807 = vrot.slane %v8681, 2
      %v8808 = vsel %vm8046, %v8806, %v8807
      %v8809 = vrot.slane %v8682, 2
      %v8810 = vsel %vm8046, %v8807, %v8809
      %v8843 = vadd.f32 %v8567, %v8733
      %v8844 = vadd.f32 %v8568, %v8735
      %v8845 = vadd.f32 %v8569, %v8738
      %v8846 = vadd.f32 %v8570, %v8740
      %v8847 = vadd.f32 %v8571, %v8743
      %v8848 = vadd.f32 %v8572, %v8745
      %v8849 = vadd.f32 %v8573, %v8748
      %v8850 = vadd.f32 %v8574, %v8750
      %v8851 = vadd.f32 %v8575, %v8753
      %v8852 = vadd.f32 %v8576, %v8755
      %v8853 = vadd.f32 %v8577, %v8758
      %v8854 = vadd.f32 %v8578, %v8760
      %v8855 = vadd.f32 %v8579, %v8763
      %v8856 = vadd.f32 %v8580, %v8765
      %v8857 = vadd.f32 %v8581, %v8768
      %v8858 = vadd.f32 %v8582, %v8770
      %v8859 = vadd.f32 %v8583, %v8773
      %v8860 = vadd.f32 %v8584, %v8775
      %v8861 = vadd.f32 %v8585, %v8778
      %v8862 = vadd.f32 %v8586, %v8780
      %v8863 = vadd.f32 %v8587, %v8783
      %v8864 = vadd.f32 %v8588, %v8785
      %v8865 = vadd.f32 %v8589, %v8788
      %v8866 = vadd.f32 %v8590, %v8790
      %v8867 = vadd.f32 %v8591, %v8793
      %v8868 = vadd.f32 %v8592, %v8795
      %v8869 = vadd.f32 %v8593, %v8798
      %v8870 = vadd.f32 %v8594, %v8800
      %v8871 = vadd.f32 %v8595, %v8803
      %v8872 = vadd.f32 %v8596, %v8805
      %v8873 = vadd.f32 %v8597, %v8808
      %v8874 = vadd.f32 %v8598, %v8810
      %s8875 = scalar_lea.vmem [#allocation3], 24
      %v8876 = vld [vmem:[%s8875] sm:$0xf]
      %v8877 = vld [vmem:[%s8875 + $0x4] sm:$0xf]
      %v8878 = vld [vmem:[%s8875 + $0xc] sm:$0xf]
      %v8879 = vld [vmem:[%s8875 + $0x10] sm:$0xf]
      %v8880 = vld [vmem:[%s8875 + $0x18] sm:$0xf]
      %v8881 = vld [vmem:[%s8875 + $0x1c] sm:$0xf]
      %v8882 = vld [vmem:[%s8875 + $0x24] sm:$0xf]
      %v8883 = vld [vmem:[%s8875 + $0x28] sm:$0xf]
      %v8884 = vld [vmem:[%s8875 + $0x30] sm:$0xf]
      %v8885 = vld [vmem:[%s8875 + $0x34] sm:$0xf]
      %v8886 = vld [vmem:[%s8875 + $0x3c] sm:$0xf]
      %v8887 = vld [vmem:[%s8875 + $0x40] sm:$0xf]
      %v8888 = vld [vmem:[%s8875 + $0x48] sm:$0xf]
      %v8889 = vld [vmem:[%s8875 + $0x4c] sm:$0xf]
      %v8890 = vld [vmem:[%s8875 + $0x54] sm:$0xf]
      %v8891 = vld [vmem:[%s8875 + $0x58] sm:$0xf]
      %v8892 = vld [vmem:[%s8875 + $0x60] sm:$0xf]
      %v8893 = vld [vmem:[%s8875 + $0x64] sm:$0xf]
      %v8894 = vld [vmem:[%s8875 + $0x6c] sm:$0xf]
      %v8895 = vld [vmem:[%s8875 + $0x70] sm:$0xf]
      %v8896 = vld [vmem:[%s8875 + $0x78] sm:$0xf]
      %v8897 = vld [vmem:[%s8875 + $0x7c] sm:$0xf]
      %v8898 = vld [vmem:[%s8875 + $0x84] sm:$0xf]
      %v8899 = vld [vmem:[%s8875 + $0x88] sm:$0xf]
      %v8900 = vld [vmem:[%s8875 + $0x90] sm:$0xf]
      %v8901 = vld [vmem:[%s8875 + $0x94] sm:$0xf]
      %v8902 = vld [vmem:[%s8875 + $0x9c] sm:$0xf]
      %v8903 = vld [vmem:[%s8875 + $0xa0] sm:$0xf]
      %v8904 = vld [vmem:[%s8875 + $0xa8] sm:$0xf]
      %v8905 = vld [vmem:[%s8875 + $0xac] sm:$0xf]
      %v8906 = vld [vmem:[%s8875 + $0xb4] sm:$0xf]
      %v8907 = vld [vmem:[%s8875 + $0xb8] sm:$0xf]
      %v8908 = vunpack.c.l.bf16 %v8876
      %v8909 = vunpack.c.l.bf16 %v8877
      %v8910 = vunpack.c.l.bf16 %v8878
      %v8911 = vunpack.c.l.bf16 %v8879
      %v8912 = vunpack.c.l.bf16 %v8880
      %v8913 = vunpack.c.l.bf16 %v8881
      %v8914 = vunpack.c.l.bf16 %v8882
      %v8915 = vunpack.c.l.bf16 %v8883
      %v8916 = vunpack.c.l.bf16 %v8884
      %v8917 = vunpack.c.l.bf16 %v8885
      %v8918 = vunpack.c.l.bf16 %v8886
      %v8919 = vunpack.c.l.bf16 %v8887
      %v8920 = vunpack.c.l.bf16 %v8888
      %v8921 = vunpack.c.l.bf16 %v8889
      %v8922 = vunpack.c.l.bf16 %v8890
      %v8923 = vunpack.c.l.bf16 %v8891
      %v8924 = vunpack.c.l.bf16 %v8892
      %v8925 = vunpack.c.l.bf16 %v8893
      %v8926 = vunpack.c.l.bf16 %v8894
      %v8927 = vunpack.c.l.bf16 %v8895
      %v8928 = vunpack.c.l.bf16 %v8896
      %v8929 = vunpack.c.l.bf16 %v8897
      %v8930 = vunpack.c.l.bf16 %v8898
      %v8931 = vunpack.c.l.bf16 %v8899
      %v8932 = vunpack.c.l.bf16 %v8900
      %v8933 = vunpack.c.l.bf16 %v8901
      %v8934 = vunpack.c.l.bf16 %v8902
      %v8935 = vunpack.c.l.bf16 %v8903
      %v8936 = vunpack.c.l.bf16 %v8904
      %v8937 = vunpack.c.l.bf16 %v8905
      %v8938 = vunpack.c.l.bf16 %v8906
      %v8939 = vunpack.c.l.bf16 %v8907
      %v8940 = vlaneseq
      %v8941 = vshrl.u32 %v8940, 7
      %v8942 = vsub.s32 6, %v8941
      %v8943 = vrot.slane %v7503, %v8942
      %v8944 = vmul.f32 %v8908, %v8943
      %v8945 = vmul.f32 %v8909, %v8943
      %v8946 = vmul.f32 %v8910, %v8943
      %v8947 = vmul.f32 %v8911, %v8943
      %v8948 = vmul.f32 %v8912, %v8943
      %v8949 = vmul.f32 %v8913, %v8943
      %v8950 = vmul.f32 %v8914, %v8943
      %v8951 = vmul.f32 %v8915, %v8943
      %v8952 = vmul.f32 %v8916, %v8943
      %v8953 = vmul.f32 %v8917, %v8943
      %v8954 = vmul.f32 %v8918, %v8943
      %v8955 = vmul.f32 %v8919, %v8943
      %v8956 = vmul.f32 %v8920, %v8943
      %v8957 = vmul.f32 %v8921, %v8943
      %v8958 = vmul.f32 %v8922, %v8943
      %v8959 = vmul.f32 %v8923, %v8943
      %v8960 = vmul.f32 %v8924, %v8943
      %v8961 = vmul.f32 %v8925, %v8943
      %v8962 = vmul.f32 %v8926, %v8943
      %v8963 = vmul.f32 %v8927, %v8943
      %v8964 = vmul.f32 %v8928, %v8943
      %v8965 = vmul.f32 %v8929, %v8943
      %v8966 = vmul.f32 %v8930, %v8943
      %v8967 = vmul.f32 %v8931, %v8943
      %v8968 = vmul.f32 %v8932, %v8943
      %v8969 = vmul.f32 %v8933, %v8943
      %v8970 = vmul.f32 %v8934, %v8943
      %v8971 = vmul.f32 %v8935, %v8943
      %v8972 = vmul.f32 %v8936, %v8943
      %v8973 = vmul.f32 %v8937, %v8943
      %v8974 = vmul.f32 %v8938, %v8943
      %v8975 = vmul.f32 %v8939, %v8943
      %v8976 = vadd.f32 %v8843, %v8944
      %v8977 = vadd.f32 %v8844, %v8945
      %v8978 = vadd.f32 %v8845, %v8946
      %v8979 = vadd.f32 %v8846, %v8947
      %v8980 = vadd.f32 %v8847, %v8948
      %v8981 = vadd.f32 %v8848, %v8949
      %v8982 = vadd.f32 %v8849, %v8950
      %v8983 = vadd.f32 %v8850, %v8951
      %v8984 = vadd.f32 %v8851, %v8952
      %v8985 = vadd.f32 %v8852, %v8953
      %v8986 = vadd.f32 %v8853, %v8954
      %v8987 = vadd.f32 %v8854, %v8955
      %v8988 = vadd.f32 %v8855, %v8956
      %v8989 = vadd.f32 %v8856, %v8957
      %v8990 = vadd.f32 %v8857, %v8958
      %v8991 = vadd.f32 %v8858, %v8959
      %v8992 = vadd.f32 %v8859, %v8960
      %v8993 = vadd.f32 %v8860, %v8961
      %v8994 = vadd.f32 %v8861, %v8962
      %v8995 = vadd.f32 %v8862, %v8963
      %v8996 = vadd.f32 %v8863, %v8964
      %v8997 = vadd.f32 %v8864, %v8965
      %v8998 = vadd.f32 %v8865, %v8966
      %v8999 = vadd.f32 %v8866, %v8967
      %v9000 = vadd.f32 %v8867, %v8968
      %v9001 = vadd.f32 %v8868, %v8969
      %v9002 = vadd.f32 %v8869, %v8970
      %v9003 = vadd.f32 %v8870, %v8971
      %v9004 = vadd.f32 %v8871, %v8972
      %v9005 = vadd.f32 %v8872, %v8973
      %v9006 = vadd.f32 %v8873, %v8974
      %v9007 = vadd.f32 %v8874, %v8975
      %v9008 = vld [vmem:[%s8875 + $0x8] sm:$0x1]
      %v9009 = vld [vmem:[%s8875 + $0x14] sm:$0x1]
      %v9010 = vld [vmem:[%s8875 + $0x20] sm:$0x1]
      %v9011 = vld [vmem:[%s8875 + $0x2c] sm:$0x1]
      %v9012 = vld [vmem:[%s8875 + $0x38] sm:$0x1]
      %v9013 = vld [vmem:[%s8875 + $0x44] sm:$0x1]
      %v9014 = vld [vmem:[%s8875 + $0x50] sm:$0x1]
      %v9015 = vld [vmem:[%s8875 + $0x5c] sm:$0x1]
      %v9016 = vld [vmem:[%s8875 + $0x68] sm:$0x1]
      %v9017 = vld [vmem:[%s8875 + $0x74] sm:$0x1]
      %v9018 = vld [vmem:[%s8875 + $0x80] sm:$0x1]
      %v9019 = vld [vmem:[%s8875 + $0x8c] sm:$0x1]
      %v9020 = vld [vmem:[%s8875 + $0x98] sm:$0x1]
      %v9021 = vld [vmem:[%s8875 + $0xa4] sm:$0x1]
      %v9022 = vld [vmem:[%s8875 + $0xb0] sm:$0x1]
      %v9023 = vld [vmem:[%s8875 + $0xbc] sm:$0x1]
      %v9024 = vunpack.c.l.bf16 %v9008
      %v9025 = vunpack.c.l.bf16 %v9009
      %v9026 = vunpack.c.l.bf16 %v9010
      %v9027 = vunpack.c.l.bf16 %v9011
      %v9028 = vunpack.c.l.bf16 %v9012
      %v9029 = vunpack.c.l.bf16 %v9013
      %v9030 = vunpack.c.l.bf16 %v9014
      %v9031 = vunpack.c.l.bf16 %v9015
      %v9032 = vunpack.c.l.bf16 %v9016
      %v9033 = vunpack.c.l.bf16 %v9017
      %v9034 = vunpack.c.l.bf16 %v9018
      %v9035 = vunpack.c.l.bf16 %v9019
      %v9036 = vunpack.c.l.bf16 %v9020
      %v9037 = vunpack.c.l.bf16 %v9021
      %v9038 = vunpack.c.l.bf16 %v9022
      %v9039 = vunpack.c.l.bf16 %v9023
      %v9040 = vlaneseq
      %v9041 = vshrl.u32 %v9040, 7
      %v9042 = vsub.s32 7, %v9041
      %v9043 = vrot.slane %v7503, %v9042
      %v9044 = vmul.f32 %v8908, %v9043
      %v9045 = vmul.f32 %v8909, %v9043
      %v9046 = vmul.f32 %v9024, %v9043
      %v9047 = vmul.f32 %v8910, %v9043
      %v9048 = vmul.f32 %v8911, %v9043
      %v9049 = vmul.f32 %v9025, %v9043
      %v9050 = vmul.f32 %v8912, %v9043
      %v9051 = vmul.f32 %v8913, %v9043
      %v9052 = vmul.f32 %v9026, %v9043
      %v9053 = vmul.f32 %v8914, %v9043
      %v9054 = vmul.f32 %v8915, %v9043
      %v9055 = vmul.f32 %v9027, %v9043
      %v9056 = vmul.f32 %v8916, %v9043
      %v9057 = vmul.f32 %v8917, %v9043
      %v9058 = vmul.f32 %v9028, %v9043
      %v9059 = vmul.f32 %v8918, %v9043
      %v9060 = vmul.f32 %v8919, %v9043
      %v9061 = vmul.f32 %v9029, %v9043
      %v9062 = vmul.f32 %v8920, %v9043
      %v9063 = vmul.f32 %v8921, %v9043
      %v9064 = vmul.f32 %v9030, %v9043
      %v9065 = vmul.f32 %v8922, %v9043
      %v9066 = vmul.f32 %v8923, %v9043
      %v9067 = vmul.f32 %v9031, %v9043
      %v9068 = vmul.f32 %v8924, %v9043
      %v9069 = vmul.f32 %v8925, %v9043
      %v9070 = vmul.f32 %v9032, %v9043
      %v9071 = vmul.f32 %v8926, %v9043
      %v9072 = vmul.f32 %v8927, %v9043
      %v9073 = vmul.f32 %v9033, %v9043
      %v9074 = vmul.f32 %v8928, %v9043
      %v9075 = vmul.f32 %v8929, %v9043
      %v9076 = vmul.f32 %v9034, %v9043
      %v9077 = vmul.f32 %v8930, %v9043
      %v9078 = vmul.f32 %v8931, %v9043
      %v9079 = vmul.f32 %v9035, %v9043
      %v9080 = vmul.f32 %v8932, %v9043
      %v9081 = vmul.f32 %v8933, %v9043
      %v9082 = vmul.f32 %v9036, %v9043
      %v9083 = vmul.f32 %v8934, %v9043
      %v9084 = vmul.f32 %v8935, %v9043
      %v9085 = vmul.f32 %v9037, %v9043
      %v9086 = vmul.f32 %v8936, %v9043
      %v9087 = vmul.f32 %v8937, %v9043
      %v9088 = vmul.f32 %v9038, %v9043
      %v9089 = vmul.f32 %v8938, %v9043
      %v9090 = vmul.f32 %v8939, %v9043
      %v9091 = vmul.f32 %v9039, %v9043
      %v9140 = vrot.slane %v9044, 1
      %v9141 = vrot.slane %v9045, 1
      %v9142 = vsel %vm7769, %v9140, %v9141
      %v9143 = vrot.slane %v9046, 1
      %v9144 = vsel %vm7769, %v9141, %v9143
      %v9145 = vrot.slane %v9047, 1
      %v9146 = vrot.slane %v9048, 1
      %v9147 = vsel %vm7769, %v9145, %v9146
      %v9148 = vrot.slane %v9049, 1
      %v9149 = vsel %vm7769, %v9146, %v9148
      %v9150 = vrot.slane %v9050, 1
      %v9151 = vrot.slane %v9051, 1
      %v9152 = vsel %vm7769, %v9150, %v9151
      %v9153 = vrot.slane %v9052, 1
      %v9154 = vsel %vm7769, %v9151, %v9153
      %v9155 = vrot.slane %v9053, 1
      %v9156 = vrot.slane %v9054, 1
      %v9157 = vsel %vm7769, %v9155, %v9156
      %v9158 = vrot.slane %v9055, 1
      %v9159 = vsel %vm7769, %v9156, %v9158
      %v9160 = vrot.slane %v9056, 1
      %v9161 = vrot.slane %v9057, 1
      %v9162 = vsel %vm7769, %v9160, %v9161
      %v9163 = vrot.slane %v9058, 1
      %v9164 = vsel %vm7769, %v9161, %v9163
      %v9165 = vrot.slane %v9059, 1
      %v9166 = vrot.slane %v9060, 1
      %v9167 = vsel %vm7769, %v9165, %v9166
      %v9168 = vrot.slane %v9061, 1
      %v9169 = vsel %vm7769, %v9166, %v9168
      %v9170 = vrot.slane %v9062, 1
      %v9171 = vrot.slane %v9063, 1
      %v9172 = vsel %vm7769, %v9170, %v9171
      %v9173 = vrot.slane %v9064, 1
      %v9174 = vsel %vm7769, %v9171, %v9173
      %v9175 = vrot.slane %v9065, 1
      %v9176 = vrot.slane %v9066, 1
      %v9177 = vsel %vm7769, %v9175, %v9176
      %v9178 = vrot.slane %v9067, 1
      %v9179 = vsel %vm7769, %v9176, %v9178
      %v9180 = vrot.slane %v9068, 1
      %v9181 = vrot.slane %v9069, 1
      %v9182 = vsel %vm7769, %v9180, %v9181
      %v9183 = vrot.slane %v9070, 1
      %v9184 = vsel %vm7769, %v9181, %v9183
      %v9185 = vrot.slane %v9071, 1
      %v9186 = vrot.slane %v9072, 1
      %v9187 = vsel %vm7769, %v9185, %v9186
      %v9188 = vrot.slane %v9073, 1
      %v9189 = vsel %vm7769, %v9186, %v9188
      %v9190 = vrot.slane %v9074, 1
      %v9191 = vrot.slane %v9075, 1
      %v9192 = vsel %vm7769, %v9190, %v9191
      %v9193 = vrot.slane %v9076, 1
      %v9194 = vsel %vm7769, %v9191, %v9193
      %v9195 = vrot.slane %v9077, 1
      %v9196 = vrot.slane %v9078, 1
      %v9197 = vsel %vm7769, %v9195, %v9196
      %v9198 = vrot.slane %v9079, 1
      %v9199 = vsel %vm7769, %v9196, %v9198
      %v9200 = vrot.slane %v9080, 1
      %v9201 = vrot.slane %v9081, 1
      %v9202 = vsel %vm7769, %v9200, %v9201
      %v9203 = vrot.slane %v9082, 1
      %v9204 = vsel %vm7769, %v9201, %v9203
      %v9205 = vrot.slane %v9083, 1
      %v9206 = vrot.slane %v9084, 1
      %v9207 = vsel %vm7769, %v9205, %v9206
      %v9208 = vrot.slane %v9085, 1
      %v9209 = vsel %vm7769, %v9206, %v9208
      %v9210 = vrot.slane %v9086, 1
      %v9211 = vrot.slane %v9087, 1
      %v9212 = vsel %vm7769, %v9210, %v9211
      %v9213 = vrot.slane %v9088, 1
      %v9214 = vsel %vm7769, %v9211, %v9213
      %v9215 = vrot.slane %v9089, 1
      %v9216 = vrot.slane %v9090, 1
      %v9217 = vsel %vm7769, %v9215, %v9216
      %v9218 = vrot.slane %v9091, 1
      %v9219 = vsel %vm7769, %v9216, %v9218
      %v9252 = vadd.f32 %v8976, %v9142
      %v9253 = vadd.f32 %v8977, %v9144
      %v9254 = vadd.f32 %v8978, %v9147
      %v9255 = vadd.f32 %v8979, %v9149
      %v9256 = vadd.f32 %v8980, %v9152
      %v9257 = vadd.f32 %v8981, %v9154
      %v9258 = vadd.f32 %v8982, %v9157
      %v9259 = vadd.f32 %v8983, %v9159
      %v9260 = vadd.f32 %v8984, %v9162
      %v9261 = vadd.f32 %v8985, %v9164
      %v9262 = vadd.f32 %v8986, %v9167
      %v9263 = vadd.f32 %v8987, %v9169
      %v9264 = vadd.f32 %v8988, %v9172
      %v9265 = vadd.f32 %v8989, %v9174
      %v9266 = vadd.f32 %v8990, %v9177
      %v9267 = vadd.f32 %v8991, %v9179
      %v9268 = vadd.f32 %v8992, %v9182
      %v9269 = vadd.f32 %v8993, %v9184
      %v9270 = vadd.f32 %v8994, %v9187
      %v9271 = vadd.f32 %v8995, %v9189
      %v9272 = vadd.f32 %v8996, %v9192
      %v9273 = vadd.f32 %v8997, %v9194
      %v9274 = vadd.f32 %v8998, %v9197
      %v9275 = vadd.f32 %v8999, %v9199
      %v9276 = vadd.f32 %v9000, %v9202
      %v9277 = vadd.f32 %v9001, %v9204
      %v9278 = vadd.f32 %v9002, %v9207
      %v9279 = vadd.f32 %v9003, %v9209
      %v9280 = vadd.f32 %v9004, %v9212
      %v9281 = vadd.f32 %v9005, %v9214
      %v9282 = vadd.f32 %v9006, %v9217
      %v9283 = vadd.f32 %v9007, %v9219
      %v9284 = vld [vmem:[%s8875] sm:$0xe]
      %v9285 = vld [vmem:[%s8875 + $0xc] sm:$0xe]
      %v9286 = vld [vmem:[%s8875 + $0x18] sm:$0xe]
      %v9287 = vld [vmem:[%s8875 + $0x24] sm:$0xe]
      %v9288 = vld [vmem:[%s8875 + $0x30] sm:$0xe]
      %v9289 = vld [vmem:[%s8875 + $0x3c] sm:$0xe]
      %v9290 = vld [vmem:[%s8875 + $0x48] sm:$0xe]
      %v9291 = vld [vmem:[%s8875 + $0x54] sm:$0xe]
      %v9292 = vld [vmem:[%s8875 + $0x60] sm:$0xe]
      %v9293 = vld [vmem:[%s8875 + $0x6c] sm:$0xe]
      %v9294 = vld [vmem:[%s8875 + $0x78] sm:$0xe]
      %v9295 = vld [vmem:[%s8875 + $0x84] sm:$0xe]
      %v9296 = vld [vmem:[%s8875 + $0x90] sm:$0xe]
      %v9297 = vld [vmem:[%s8875 + $0x9c] sm:$0xe]
      %v9298 = vld [vmem:[%s8875 + $0xa8] sm:$0xe]
      %v9299 = vld [vmem:[%s8875 + $0xb4] sm:$0xe]
      %v9300 = vunpack.c.l.bf16 %v9284
      %v9301 = vunpack.c.l.bf16 %v9285
      %v9302 = vunpack.c.l.bf16 %v9286
      %v9303 = vunpack.c.l.bf16 %v9287
      %v9304 = vunpack.c.l.bf16 %v9288
      %v9305 = vunpack.c.l.bf16 %v9289
      %v9306 = vunpack.c.l.bf16 %v9290
      %v9307 = vunpack.c.l.bf16 %v9291
      %v9308 = vunpack.c.l.bf16 %v9292
      %v9309 = vunpack.c.l.bf16 %v9293
      %v9310 = vunpack.c.l.bf16 %v9294
      %v9311 = vunpack.c.l.bf16 %v9295
      %v9312 = vunpack.c.l.bf16 %v9296
      %v9313 = vunpack.c.l.bf16 %v9297
      %v9314 = vunpack.c.l.bf16 %v9298
      %v9315 = vunpack.c.l.bf16 %v9299
      %v9316 = vlaneseq
      %v9317 = vshrl.u32 %v9316, 7
      %v9318 = vsub.s32 0, %v9317
      %v9319 = vrot.slane %v7504, %v9318
      %v9320 = vmul.f32 %v9300, %v9319
      %v9321 = vmul.f32 %v8909, %v9319
      %v9322 = vmul.f32 %v9024, %v9319
      %v9323 = vmul.f32 %v9301, %v9319
      %v9324 = vmul.f32 %v8911, %v9319
      %v9325 = vmul.f32 %v9025, %v9319
      %v9326 = vmul.f32 %v9302, %v9319
      %v9327 = vmul.f32 %v8913, %v9319
      %v9328 = vmul.f32 %v9026, %v9319
      %v9329 = vmul.f32 %v9303, %v9319
      %v9330 = vmul.f32 %v8915, %v9319
      %v9331 = vmul.f32 %v9027, %v9319
      %v9332 = vmul.f32 %v9304, %v9319
      %v9333 = vmul.f32 %v8917, %v9319
      %v9334 = vmul.f32 %v9028, %v9319
      %v9335 = vmul.f32 %v9305, %v9319
      %v9336 = vmul.f32 %v8919, %v9319
      %v9337 = vmul.f32 %v9029, %v9319
      %v9338 = vmul.f32 %v9306, %v9319
      %v9339 = vmul.f32 %v8921, %v9319
      %v9340 = vmul.f32 %v9030, %v9319
      %v9341 = vmul.f32 %v9307, %v9319
      %v9342 = vmul.f32 %v8923, %v9319
      %v9343 = vmul.f32 %v9031, %v9319
      %v9344 = vmul.f32 %v9308, %v9319
      %v9345 = vmul.f32 %v8925, %v9319
      %v9346 = vmul.f32 %v9032, %v9319
      %v9347 = vmul.f32 %v9309, %v9319
      %v9348 = vmul.f32 %v8927, %v9319
      %v9349 = vmul.f32 %v9033, %v9319
      %v9350 = vmul.f32 %v9310, %v9319
      %v9351 = vmul.f32 %v8929, %v9319
      %v9352 = vmul.f32 %v9034, %v9319
      %v9353 = vmul.f32 %v9311, %v9319
      %v9354 = vmul.f32 %v8931, %v9319
      %v9355 = vmul.f32 %v9035, %v9319
      %v9356 = vmul.f32 %v9312, %v9319
      %v9357 = vmul.f32 %v8933, %v9319
      %v9358 = vmul.f32 %v9036, %v9319
      %v9359 = vmul.f32 %v9313, %v9319
      %v9360 = vmul.f32 %v8935, %v9319
      %v9361 = vmul.f32 %v9037, %v9319
      %v9362 = vmul.f32 %v9314, %v9319
      %v9363 = vmul.f32 %v8937, %v9319
      %v9364 = vmul.f32 %v9038, %v9319
      %v9365 = vmul.f32 %v9315, %v9319
      %v9366 = vmul.f32 %v8939, %v9319
      %v9367 = vmul.f32 %v9039, %v9319
      %v9416 = vrot.slane %v9320, 2
      %v9417 = vrot.slane %v9321, 2
      %v9418 = vsel %vm8046, %v9416, %v9417
      %v9419 = vrot.slane %v9322, 2
      %v9420 = vsel %vm8046, %v9417, %v9419
      %v9421 = vrot.slane %v9323, 2
      %v9422 = vrot.slane %v9324, 2
      %v9423 = vsel %vm8046, %v9421, %v9422
      %v9424 = vrot.slane %v9325, 2
      %v9425 = vsel %vm8046, %v9422, %v9424
      %v9426 = vrot.slane %v9326, 2
      %v9427 = vrot.slane %v9327, 2
      %v9428 = vsel %vm8046, %v9426, %v9427
      %v9429 = vrot.slane %v9328, 2
      %v9430 = vsel %vm8046, %v9427, %v9429
      %v9431 = vrot.slane %v9329, 2
      %v9432 = vrot.slane %v9330, 2
      %v9433 = vsel %vm8046, %v9431, %v9432
      %v9434 = vrot.slane %v9331, 2
      %v9435 = vsel %vm8046, %v9432, %v9434
      %v9436 = vrot.slane %v9332, 2
      %v9437 = vrot.slane %v9333, 2
      %v9438 = vsel %vm8046, %v9436, %v9437
      %v9439 = vrot.slane %v9334, 2
      %v9440 = vsel %vm8046, %v9437, %v9439
      %v9441 = vrot.slane %v9335, 2
      %v9442 = vrot.slane %v9336, 2
      %v9443 = vsel %vm8046, %v9441, %v9442
      %v9444 = vrot.slane %v9337, 2
      %v9445 = vsel %vm8046, %v9442, %v9444
      %v9446 = vrot.slane %v9338, 2
      %v9447 = vrot.slane %v9339, 2
      %v9448 = vsel %vm8046, %v9446, %v9447
      %v9449 = vrot.slane %v9340, 2
      %v9450 = vsel %vm8046, %v9447, %v9449
      %v9451 = vrot.slane %v9341, 2
      %v9452 = vrot.slane %v9342, 2
      %v9453 = vsel %vm8046, %v9451, %v9452
      %v9454 = vrot.slane %v9343, 2
      %v9455 = vsel %vm8046, %v9452, %v9454
      %v9456 = vrot.slane %v9344, 2
      %v9457 = vrot.slane %v9345, 2
      %v9458 = vsel %vm8046, %v9456, %v9457
      %v9459 = vrot.slane %v9346, 2
      %v9460 = vsel %vm8046, %v9457, %v9459
      %v9461 = vrot.slane %v9347, 2
      %v9462 = vrot.slane %v9348, 2
      %v9463 = vsel %vm8046, %v9461, %v9462
      %v9464 = vrot.slane %v9349, 2
      %v9465 = vsel %vm8046, %v9462, %v9464
      %v9466 = vrot.slane %v9350, 2
      %v9467 = vrot.slane %v9351, 2
      %v9468 = vsel %vm8046, %v9466, %v9467
      %v9469 = vrot.slane %v9352, 2
      %v9470 = vsel %vm8046, %v9467, %v9469
      %v9471 = vrot.slane %v9353, 2
      %v9472 = vrot.slane %v9354, 2
      %v9473 = vsel %vm8046, %v9471, %v9472
      %v9474 = vrot.slane %v9355, 2
      %v9475 = vsel %vm8046, %v9472, %v9474
      %v9476 = vrot.slane %v9356, 2
      %v9477 = vrot.slane %v9357, 2
      %v9478 = vsel %vm8046, %v9476, %v9477
      %v9479 = vrot.slane %v9358, 2
      %v9480 = vsel %vm8046, %v9477, %v9479
      %v9481 = vrot.slane %v9359, 2
      %v9482 = vrot.slane %v9360, 2
      %v9483 = vsel %vm8046, %v9481, %v9482
      %v9484 = vrot.slane %v9361, 2
      %v9485 = vsel %vm8046, %v9482, %v9484
      %v9486 = vrot.slane %v9362, 2
      %v9487 = vrot.slane %v9363, 2
      %v9488 = vsel %vm8046, %v9486, %v9487
      %v9489 = vrot.slane %v9364, 2
      %v9490 = vsel %vm8046, %v9487, %v9489
      %v9491 = vrot.slane %v9365, 2
      %v9492 = vrot.slane %v9366, 2
      %v9493 = vsel %vm8046, %v9491, %v9492
      %v9494 = vrot.slane %v9367, 2
      %v9495 = vsel %vm8046, %v9492, %v9494
      %v9528 = vadd.f32 %v9252, %v9418
      %v9529 = vadd.f32 %v9253, %v9420
      %v9530 = vadd.f32 %v9254, %v9423
      %v9531 = vadd.f32 %v9255, %v9425
      %v9532 = vadd.f32 %v9256, %v9428
      %v9533 = vadd.f32 %v9257, %v9430
      %v9534 = vadd.f32 %v9258, %v9433
      %v9535 = vadd.f32 %v9259, %v9435
      %v9536 = vadd.f32 %v9260, %v9438
      %v9537 = vadd.f32 %v9261, %v9440
      %v9538 = vadd.f32 %v9262, %v9443
      %v9539 = vadd.f32 %v9263, %v9445
      %v9540 = vadd.f32 %v9264, %v9448
      %v9541 = vadd.f32 %v9265, %v9450
      %v9542 = vadd.f32 %v9266, %v9453
      %v9543 = vadd.f32 %v9267, %v9455
      %v9544 = vadd.f32 %v9268, %v9458
      %v9545 = vadd.f32 %v9269, %v9460
      %v9546 = vadd.f32 %v9270, %v9463
      %v9547 = vadd.f32 %v9271, %v9465
      %v9548 = vadd.f32 %v9272, %v9468
      %v9549 = vadd.f32 %v9273, %v9470
      %v9550 = vadd.f32 %v9274, %v9473
      %v9551 = vadd.f32 %v9275, %v9475
      %v9552 = vadd.f32 %v9276, %v9478
      %v9553 = vadd.f32 %v9277, %v9480
      %v9554 = vadd.f32 %v9278, %v9483
      %v9555 = vadd.f32 %v9279, %v9485
      %v9556 = vadd.f32 %v9280, %v9488
      %v9557 = vadd.f32 %v9281, %v9490
      %v9558 = vadd.f32 %v9282, %v9493
      %v9559 = vadd.f32 %v9283, %v9495
      %v9560 = vsel %vm2681, %v9528, 0.0
      %9561 = vadd.xlane.f32.xlu0 %v9560
      %v9562 = vpop.xlane.xlu0 %9561
      %v9563 = vsel %vm2681, %v9529, 0.0
      %9564 = vadd.xlane.f32.xlu0 %v9563
      %v9565 = vpop.xlane.xlu0 %9564
      %v9566 = vsel %vm2681, %v9530, 0.0
      %9567 = vadd.xlane.f32.xlu0 %v9566
      %v9568 = vpop.xlane.xlu0 %9567
      %v9569 = vsel %vm2681, %v9531, 0.0
      %9570 = vadd.xlane.f32.xlu0 %v9569
      %v9571 = vpop.xlane.xlu0 %9570
      %v9572 = vsel %vm2681, %v9532, 0.0
      %9573 = vadd.xlane.f32.xlu0 %v9572
      %v9574 = vpop.xlane.xlu0 %9573
      %v9575 = vsel %vm2681, %v9533, 0.0
      %9576 = vadd.xlane.f32.xlu0 %v9575
      %v9577 = vpop.xlane.xlu0 %9576
      %v9578 = vsel %vm2681, %v9534, 0.0
      %9579 = vadd.xlane.f32.xlu0 %v9578
      %v9580 = vpop.xlane.xlu0 %9579
      %v9581 = vsel %vm2681, %v9535, 0.0
      %9582 = vadd.xlane.f32.xlu0 %v9581
      %v9583 = vpop.xlane.xlu0 %9582
      %v9584 = vsel %vm2681, %v9536, 0.0
      %9585 = vadd.xlane.f32.xlu0 %v9584
      %v9586 = vpop.xlane.xlu0 %9585
      %v9587 = vsel %vm2681, %v9537, 0.0
      %9588 = vadd.xlane.f32.xlu0 %v9587
      %v9589 = vpop.xlane.xlu0 %9588
      %v9590 = vsel %vm2681, %v9538, 0.0
      %9591 = vadd.xlane.f32.xlu0 %v9590
      %v9592 = vpop.xlane.xlu0 %9591
      %v9593 = vsel %vm2681, %v9539, 0.0
      %9594 = vadd.xlane.f32.xlu0 %v9593
      %v9595 = vpop.xlane.xlu0 %9594
      %v9596 = vsel %vm2681, %v9540, 0.0
      %9597 = vadd.xlane.f32.xlu0 %v9596
      %v9598 = vpop.xlane.xlu0 %9597
      %v9599 = vsel %vm2681, %v9541, 0.0
      %9600 = vadd.xlane.f32.xlu0 %v9599
      %v9601 = vpop.xlane.xlu0 %9600
      %v9602 = vsel %vm2681, %v9542, 0.0
      %9603 = vadd.xlane.f32.xlu0 %v9602
      %v9604 = vpop.xlane.xlu0 %9603
      %v9605 = vsel %vm2681, %v9543, 0.0
      %9606 = vadd.xlane.f32.xlu0 %v9605
      %v9607 = vpop.xlane.xlu0 %9606
      %v9608 = vsel %vm2681, %v9544, 0.0
      %9609 = vadd.xlane.f32.xlu0 %v9608
      %v9610 = vpop.xlane.xlu0 %9609
      %v9611 = vsel %vm2681, %v9545, 0.0
      %9612 = vadd.xlane.f32.xlu0 %v9611
      %v9613 = vpop.xlane.xlu0 %9612
      %v9614 = vsel %vm2681, %v9546, 0.0
      %9615 = vadd.xlane.f32.xlu0 %v9614
      %v9616 = vpop.xlane.xlu0 %9615
      %v9617 = vsel %vm2681, %v9547, 0.0
      %9618 = vadd.xlane.f32.xlu0 %v9617
      %v9619 = vpop.xlane.xlu0 %9618
      %v9620 = vsel %vm2681, %v9548, 0.0
      %9621 = vadd.xlane.f32.xlu0 %v9620
      %v9622 = vpop.xlane.xlu0 %9621
      %v9623 = vsel %vm2681, %v9549, 0.0
      %9624 = vadd.xlane.f32.xlu0 %v9623
      %v9625 = vpop.xlane.xlu0 %9624
      %v9626 = vsel %vm2681, %v9550, 0.0
      %9627 = vadd.xlane.f32.xlu0 %v9626
      %v9628 = vpop.xlane.xlu0 %9627
      %v9629 = vsel %vm2681, %v9551, 0.0
      %9630 = vadd.xlane.f32.xlu0 %v9629
      %v9631 = vpop.xlane.xlu0 %9630
      %v9632 = vsel %vm2681, %v9552, 0.0
      %9633 = vadd.xlane.f32.xlu0 %v9632
      %v9634 = vpop.xlane.xlu0 %9633
      %v9635 = vsel %vm2681, %v9553, 0.0
      %9636 = vadd.xlane.f32.xlu0 %v9635
      %v9637 = vpop.xlane.xlu0 %9636
      %v9638 = vsel %vm2681, %v9554, 0.0
      %9639 = vadd.xlane.f32.xlu0 %v9638
      %v9640 = vpop.xlane.xlu0 %9639
      %v9641 = vsel %vm2681, %v9555, 0.0
      %9642 = vadd.xlane.f32.xlu0 %v9641
      %v9643 = vpop.xlane.xlu0 %9642
      %v9644 = vsel %vm2681, %v9556, 0.0
      %9645 = vadd.xlane.f32.xlu0 %v9644
      %v9646 = vpop.xlane.xlu0 %9645
      %v9647 = vsel %vm2681, %v9557, 0.0
      %9648 = vadd.xlane.f32.xlu0 %v9647
      %v9649 = vpop.xlane.xlu0 %9648
      %v9650 = vsel %vm2681, %v9558, 0.0
      %9651 = vadd.xlane.f32.xlu0 %v9650
      %v9652 = vpop.xlane.xlu0 %9651
      %v9653 = vsel %vm2681, %v9559, 0.0
      %9654 = vadd.xlane.f32.xlu0 %v9653
      %v9655 = vpop.xlane.xlu0 %9654
      %s9656 = sld [smem:[#allocation4]]
      %v9657 = vstv %s9656
      %v9658 = vadd.f32 %v9562, %v9657
      %v9659 = vadd.f32 %v9565, %v9657
      %v9660 = vadd.f32 %v9568, %v9657
      %v9661 = vadd.f32 %v9571, %v9657
      %v9662 = vadd.f32 %v9574, %v9657
      %v9663 = vadd.f32 %v9577, %v9657
      %v9664 = vadd.f32 %v9580, %v9657
      %v9665 = vadd.f32 %v9583, %v9657
      %v9666 = vadd.f32 %v9586, %v9657
      %v9667 = vadd.f32 %v9589, %v9657
      %v9668 = vadd.f32 %v9592, %v9657
      %v9669 = vadd.f32 %v9595, %v9657
      %v9670 = vadd.f32 %v9598, %v9657
      %v9671 = vadd.f32 %v9601, %v9657
      %v9672 = vadd.f32 %v9604, %v9657
      %v9673 = vadd.f32 %v9607, %v9657
      %v9674 = vadd.f32 %v9610, %v9657
      %v9675 = vadd.f32 %v9613, %v9657
      %v9676 = vadd.f32 %v9616, %v9657
      %v9677 = vadd.f32 %v9619, %v9657
      %v9678 = vadd.f32 %v9622, %v9657
      %v9679 = vadd.f32 %v9625, %v9657
      %v9680 = vadd.f32 %v9628, %v9657
      %v9681 = vadd.f32 %v9631, %v9657
      %v9682 = vadd.f32 %v9634, %v9657
      %v9683 = vadd.f32 %v9637, %v9657
      %v9684 = vadd.f32 %v9640, %v9657
      %v9685 = vadd.f32 %v9643, %v9657
      %v9686 = vadd.f32 %v9646, %v9657
      %v9687 = vadd.f32 %v9649, %v9657
      %v9688 = vadd.f32 %v9652, %v9657
      %v9689 = vadd.f32 %v9655, %v9657
      %v9722 = vlaneseq
      %v9723 = vand.u32 %v9722, 127
      %v9724 = vlaneseq
      %v9725 = vshrl.u32 %v9724, 7
      %v9726 = vsub.s32 %v9723, %v9725
      %v9727 = vrot.slane %v9658, %v9726
      %v9728 = vadd.s32 %v9723, 4294967288
      %v9729 = vlaneseq
      %v9730 = vshrl.u32 %v9729, 7
      %v9731 = vsub.s32 %v9728, %v9730
      %v9732 = vrot.slane %v9659, %v9731
      %vm9733 = vcmask 130112
      %v9734 = vsel %vm9733, %v9732, %v9727
      %v9735 = vlaneseq
      %v9736 = vshrl.u32 %v9735, 7
      %v9737 = vsub.s32 %v9723, %v9736
      %v9738 = vrot.slane %v9660, %v9737
      %v9739 = vlaneseq
      %v9740 = vshrl.u32 %v9739, 7
      %v9741 = vsub.s32 %v9728, %v9740
      %v9742 = vrot.slane %v9661, %v9741
      %v9743 = vsel %vm9733, %v9742, %v9738
      %v9744 = vlaneseq
      %v9745 = vshrl.u32 %v9744, 7
      %v9746 = vsub.s32 %v9723, %v9745
      %v9747 = vrot.slane %v9662, %v9746
      %v9748 = vlaneseq
      %v9749 = vshrl.u32 %v9748, 7
      %v9750 = vsub.s32 %v9728, %v9749
      %v9751 = vrot.slane %v9663, %v9750
      %v9752 = vsel %vm9733, %v9751, %v9747
      %v9753 = vlaneseq
      %v9754 = vshrl.u32 %v9753, 7
      %v9755 = vsub.s32 %v9723, %v9754
      %v9756 = vrot.slane %v9664, %v9755
      %v9757 = vlaneseq
      %v9758 = vshrl.u32 %v9757, 7
      %v9759 = vsub.s32 %v9728, %v9758
      %v9760 = vrot.slane %v9665, %v9759
      %v9761 = vsel %vm9733, %v9760, %v9756
      %v9762 = vlaneseq
      %v9763 = vshrl.u32 %v9762, 7
      %v9764 = vsub.s32 %v9723, %v9763
      %v9765 = vrot.slane %v9666, %v9764
      %v9766 = vlaneseq
      %v9767 = vshrl.u32 %v9766, 7
      %v9768 = vsub.s32 %v9728, %v9767
      %v9769 = vrot.slane %v9667, %v9768
      %v9770 = vsel %vm9733, %v9769, %v9765
      %v9771 = vlaneseq
      %v9772 = vshrl.u32 %v9771, 7
      %v9773 = vsub.s32 %v9723, %v9772
      %v9774 = vrot.slane %v9668, %v9773
      %v9775 = vlaneseq
      %v9776 = vshrl.u32 %v9775, 7
      %v9777 = vsub.s32 %v9728, %v9776
      %v9778 = vrot.slane %v9669, %v9777
      %v9779 = vsel %vm9733, %v9778, %v9774
      %v9780 = vlaneseq
      %v9781 = vshrl.u32 %v9780, 7
      %v9782 = vsub.s32 %v9723, %v9781
      %v9783 = vrot.slane %v9670, %v9782
      %v9784 = vlaneseq
      %v9785 = vshrl.u32 %v9784, 7
      %v9786 = vsub.s32 %v9728, %v9785
      %v9787 = vrot.slane %v9671, %v9786
      %v9788 = vsel %vm9733, %v9787, %v9783
      %v9789 = vlaneseq
      %v9790 = vshrl.u32 %v9789, 7
      %v9791 = vsub.s32 %v9723, %v9790
      %v9792 = vrot.slane %v9672, %v9791
      %v9793 = vlaneseq
      %v9794 = vshrl.u32 %v9793, 7
      %v9795 = vsub.s32 %v9728, %v9794
      %v9796 = vrot.slane %v9673, %v9795
      %v9797 = vsel %vm9733, %v9796, %v9792
      %v9798 = vlaneseq
      %v9799 = vshrl.u32 %v9798, 7
      %v9800 = vsub.s32 %v9723, %v9799
      %v9801 = vrot.slane %v9674, %v9800
      %v9802 = vlaneseq
      %v9803 = vshrl.u32 %v9802, 7
      %v9804 = vsub.s32 %v9728, %v9803
      %v9805 = vrot.slane %v9675, %v9804
      %v9806 = vsel %vm9733, %v9805, %v9801
      %v9807 = vlaneseq
      %v9808 = vshrl.u32 %v9807, 7
      %v9809 = vsub.s32 %v9723, %v9808
      %v9810 = vrot.slane %v9676, %v9809
      %v9811 = vlaneseq
      %v9812 = vshrl.u32 %v9811, 7
      %v9813 = vsub.s32 %v9728, %v9812
      %v9814 = vrot.slane %v9677, %v9813
      %v9815 = vsel %vm9733, %v9814, %v9810
      %v9816 = vlaneseq
      %v9817 = vshrl.u32 %v9816, 7
      %v9818 = vsub.s32 %v9723, %v9817
      %v9819 = vrot.slane %v9678, %v9818
      %v9820 = vlaneseq
      %v9821 = vshrl.u32 %v9820, 7
      %v9822 = vsub.s32 %v9728, %v9821
      %v9823 = vrot.slane %v9679, %v9822
      %v9824 = vsel %vm9733, %v9823, %v9819
      %v9825 = vlaneseq
      %v9826 = vshrl.u32 %v9825, 7
      %v9827 = vsub.s32 %v9723, %v9826
      %v9828 = vrot.slane %v9680, %v9827
      %v9829 = vlaneseq
      %v9830 = vshrl.u32 %v9829, 7
      %v9831 = vsub.s32 %v9728, %v9830
      %v9832 = vrot.slane %v9681, %v9831
      %v9833 = vsel %vm9733, %v9832, %v9828
      %v9834 = vlaneseq
      %v9835 = vshrl.u32 %v9834, 7
      %v9836 = vsub.s32 %v9723, %v9835
      %v9837 = vrot.slane %v9682, %v9836
      %v9838 = vlaneseq
      %v9839 = vshrl.u32 %v9838, 7
      %v9840 = vsub.s32 %v9728, %v9839
      %v9841 = vrot.slane %v9683, %v9840
      %v9842 = vsel %vm9733, %v9841, %v9837
      %v9843 = vlaneseq
      %v9844 = vshrl.u32 %v9843, 7
      %v9845 = vsub.s32 %v9723, %v9844
      %v9846 = vrot.slane %v9684, %v9845
      %v9847 = vlaneseq
      %v9848 = vshrl.u32 %v9847, 7
      %v9849 = vsub.s32 %v9728, %v9848
      %v9850 = vrot.slane %v9685, %v9849
      %v9851 = vsel %vm9733, %v9850, %v9846
      %v9852 = vlaneseq
      %v9853 = vshrl.u32 %v9852, 7
      %v9854 = vsub.s32 %v9723, %v9853
      %v9855 = vrot.slane %v9686, %v9854
      %v9856 = vlaneseq
      %v9857 = vshrl.u32 %v9856, 7
      %v9858 = vsub.s32 %v9728, %v9857
      %v9859 = vrot.slane %v9687, %v9858
      %v9860 = vsel %vm9733, %v9859, %v9855
      %v9861 = vlaneseq
      %v9862 = vshrl.u32 %v9861, 7
      %v9863 = vsub.s32 %v9723, %v9862
      %v9864 = vrot.slane %v9688, %v9863
      %v9865 = vlaneseq
      %v9866 = vshrl.u32 %v9865, 7
      %v9867 = vsub.s32 %v9728, %v9866
      %v9868 = vrot.slane %v9689, %v9867
      %v9869 = vsel %vm9733, %v9868, %v9864
      %vm9870 = vcmask 1041409
      %v9871 = vsel %vm9870, %v9743, %v9734
      %vm9872 = vcmask 1042434
      %v9873 = vsel %vm9872, %v9752, %v9871
      %vm9874 = vcmask 1043459
      %v9875 = vsel %vm9874, %v9761, %v9873
      %vm9876 = vcmask 1044484
      %v9877 = vsel %vm9876, %v9770, %v9875
      %vm9878 = vcmask 1045509
      %v9879 = vsel %vm9878, %v9779, %v9877
      %vm9880 = vcmask 1046534
      %v9881 = vsel %vm9880, %v9788, %v9879
      %vm9882 = vcmask 1047559
      %v9883 = vsel %vm9882, %v9797, %v9881
      %v9884 = vsel %vm9870, %v9815, %v9806
      %v9885 = vsel %vm9872, %v9824, %v9884
      %v9886 = vsel %vm9874, %v9833, %v9885
      %v9887 = vsel %vm9876, %v9842, %v9886
      %v9888 = vsel %vm9878, %v9851, %v9887
      %v9889 = vsel %vm9880, %v9860, %v9888
      %v9890 = vsel %vm9882, %v9869, %v9889
      %vm9893 = vcmask 130048
      %9894 = vst.msk [vmem:[%s279] sm:$0xff] %vm9893, %v9883
      %9895 = vst.msk [vmem:[%s279 + $0x8] sm:$0xff] %vm9893, %v9890
      %p9896 = scmp.lt.s32.totalorder %s19, 1
      %s9897 = scalar_select %p9896, %s19, 1
      %s9898 = smul.addr %s9897, 2
      %s9899 = smul.addr %s9898, 8
      %s9900 = scalar_lea.vmem %s7, %s9899
      // Predicated region
      $region49: #{_lambda_.9} parent=47 // pred_check
        %p9901 = pneg %p189
      $region50: #{_lambda_.9} parent=47 // pred_check_branch
        %9903 = sbr.rel (%p9901) target = $region52
      $region51: #{_lambda_.9} parent=47 // pred_region
        _
      $region52: #{_lambda_.9} parent=47 // pred_fallthru
        _
    $region48: #{_lambda_.9} parent=5 // pred_fallthru
      _
    %p9904 = scmp.le.s32.totalorder 2, %s14
    // Predicated region
    $region53: #{_lambda_.9} parent=5 // pred_check
      %p9905 = pneg %p9904
    $region54: #{_lambda_.9} parent=5 // pred_check_branch
      %9907 = sbr.rel (%p9905) target = $region56
    $region55: #{_lambda_.9} parent=5 // pred_region
      %s9908 = ssub.s32 %s14, 2
      // Predicated region
      $region57: #{_lambda_.9} parent=55 // pred_check
        %p9909 = pneg %p195
      $region58: #{_lambda_.9} parent=55 // pred_check_branch
        %9911 = sbr.rel (%p9909) target = $region60
      $region59: #{_lambda_.9} parent=55 // pred_region
        %p9912 = scmp.lt.s32.totalorder %s20, 1
        %s9913 = scalar_select %p9912, %s20, 1
        %s9914 = smul.addr %s9913, 2
        %s9915 = smul.addr %s9914, 8
        %s9916 = scalar_lea.vmem %s7, %s9915
      $region60: #{_lambda_.9} parent=55 // pred_fallthru
        _
    $region56: #{_lambda_.9} parent=5 // pred_fallthru
      _
  $region6: #{_lambda_.9} parent=0 // loop_footer
    %s18 = sadd.s32 1, %s14
  $region7: #{_lambda_.9} parent=0 // loop_footer_branch
    %13 = sbr.rel target = $region3
  $region8: #{_lambda_.9} parent=0 // loop_exit
    _

// kernel: _lambda_.11
$region0: #{_lambda_.11}
  #allocation0 [shape = 'u32[]', space=smem, size = 0x4, offset = 0x4, fixed_abs, tag = 'smem constant byte address 0x4 - core index']
  #allocation1 [shape = 'u32[144,128]{1,0:T(1,128)}', space=vmem, size = 0x12000, scoped, tag = 'internal scratch']
  #allocation2 [shape = 'f32[1]{0:T(128)S(6)}', space=smem, size = 0x200, scoped, tag = 'scoped memory for _lambda_.11']
  %s0 = inlined_call_operand.vmem [shape: f32[2,256], index: 0, kind: input, shape index: {}]
  %s1 = inlined_call_operand.vmem [shape: f32[2,128], index: 1, kind: input, shape index: {}]
  %s2 = inlined_call_operand.vmem [shape: f32[128,256], index: 2, kind: input, shape index: {}]
  %s3 = inlined_call_operand.vmem [shape: f32[2,256], index: 3, kind: input, shape index: {}]
  %s4 = inlined_call_operand.vmem [shape: f32[2,256], index: 4, kind: input, shape index: {}]
  %s5 = inlined_call_operand.<no memory space> [shape: f32[1], index: 5, kind: input, shape index: {}]
  %s6 = inlined_call_operand.vmem [shape: f32[2,256], index: 6, kind: output, shape index: {}]
  %s7 = sld [smem:[#allocation0]]
  $region34: #{_lambda_.11} parent=0
    _
  %s9 = ssub.s32 1, %s7
  %s10 = scalar_select 0, %s9, %s7
  %11 = sst [smem:[#allocation2]] %s5
  // Predicated region
  $region2: #{_lambda_.11} parent=0 // pred_check
    _
  $region3: #{_lambda_.11} parent=0 // pred_check_branch
    %13 = sbr.rel (0) target = $region5
  $region4: #{_lambda_.11} parent=0 // pred_region
    _
  $region5: #{_lambda_.11} parent=0 // pred_fallthru
    _
  // Predicated region
  $region6: #{_lambda_.11} parent=0 // pred_check
    _
  $region7: #{_lambda_.11} parent=0 // pred_check_branch
    %15 = sbr.rel (0) target = $region9
  $region8: #{_lambda_.11} parent=0 // pred_region
    _
  $region9: #{_lambda_.11} parent=0 // pred_fallthru
    _
  // Predicated region
  $region10: #{_lambda_.11} parent=0 // pred_check
    _
  $region11: #{_lambda_.11} parent=0 // pred_check_branch
    %17 = sbr.rel (0) target = $region13
  $region12: #{_lambda_.11} parent=0 // pred_region
    _
  $region13: #{_lambda_.11} parent=0 // pred_fallthru
    _
  // Predicated region
  $region14: #{_lambda_.11} parent=0 // pred_check
    _
  $region15: #{_lambda_.11} parent=0 // pred_check_branch
    %19 = sbr.rel (0) target = $region17
  $region16: #{_lambda_.11} parent=0 // pred_region
    _
  $region17: #{_lambda_.11} parent=0 // pred_fallthru
    _
  // Predicated region
  $region18: #{_lambda_.11} parent=0 // pred_check
    _
  $region19: #{_lambda_.11} parent=0 // pred_check_branch
    %21 = sbr.rel (0) target = $region21
  $region20: #{_lambda_.11} parent=0 // pred_region
    _
  $region21: #{_lambda_.11} parent=0 // pred_fallthru
    _
  // Predicated region
  $region22: #{_lambda_.11} parent=0 // pred_check
    _
  $region23: #{_lambda_.11} parent=0 // pred_check_branch
    %23 = sbr.rel (0) target = $region25
  $region24: #{_lambda_.11} parent=0 // pred_region
    _
  $region25: #{_lambda_.11} parent=0 // pred_fallthru
    _
  %v24 = vld [vmem:[%s0] sm:$0xf]
  %v25 = vld [vmem:[%s2] sm:$0xff]
  %v26 = vld [vmem:[%s2 + $0x8] sm:$0xff]
  %v27 = vld [vmem:[%s2 + $0x10] sm:$0xff]
  %v28 = vld [vmem:[%s2 + $0x18] sm:$0xff]
  %v29 = vld [vmem:[%s2 + $0x20] sm:$0xff]
  %v30 = vld [vmem:[%s2 + $0x28] sm:$0xff]
  %v31 = vld [vmem:[%s2 + $0x30] sm:$0xff]
  %v32 = vld [vmem:[%s2 + $0x38] sm:$0xff]
  %v33 = vld [vmem:[%s2 + $0x40] sm:$0xff]
  %v34 = vld [vmem:[%s2 + $0x48] sm:$0xff]
  %v35 = vld [vmem:[%s2 + $0x50] sm:$0xff]
  %v36 = vld [vmem:[%s2 + $0x58] sm:$0xff]
  %v37 = vld [vmem:[%s2 + $0x60] sm:$0xff]
  %v38 = vld [vmem:[%s2 + $0x68] sm:$0xff]
  %v39 = vld [vmem:[%s2 + $0x70] sm:$0xff]
  %v40 = vld [vmem:[%s2 + $0x78] sm:$0xff]
  %v41 = vld [vmem:[%s2 + $0x80] sm:$0xff]
  %v42 = vld [vmem:[%s2 + $0x88] sm:$0xff]
  %v43 = vld [vmem:[%s2 + $0x90] sm:$0xff]
  %v44 = vld [vmem:[%s2 + $0x98] sm:$0xff]
  %v45 = vld [vmem:[%s2 + $0xa0] sm:$0xff]
  %v46 = vld [vmem:[%s2 + $0xa8] sm:$0xff]
  %v47 = vld [vmem:[%s2 + $0xb0] sm:$0xff]
  %v48 = vld [vmem:[%s2 + $0xb8] sm:$0xff]
  %v49 = vld [vmem:[%s2 + $0xc0] sm:$0xff]
  %v50 = vld [vmem:[%s2 + $0xc8] sm:$0xff]
  %v51 = vld [vmem:[%s2 + $0xd0] sm:$0xff]
  %v52 = vld [vmem:[%s2 + $0xd8] sm:$0xff]
  %v53 = vld [vmem:[%s2 + $0xe0] sm:$0xff]
  %v54 = vld [vmem:[%s2 + $0xe8] sm:$0xff]
  %v55 = vld [vmem:[%s2 + $0xf0] sm:$0xff]
  %v56 = vld [vmem:[%s2 + $0xf8] sm:$0xff]
  %v59 = vunpack.c.l.s4 1983009808
  %v60 = vunpack.c.0.s8 %v59
  %v61 = vlaneseq
  %v62 = vshrl.u32 %v61, 7
  %v63 = vsub.s32 %v60, %v62
  %v64 = vrot.slane %v24, %v63
  %v65 = vcombine.high %v64, %v64
  %68 = vmatprep.subr.mxu0 %v26
  %69 = vmatpush1.xpose.msra.mxu0 %v25
  %70 = vmatprep.subr.mxu0 %v28
  %71 = vmatpush1.xpose.msra.mxu0 %v27
  %72 = vmatprep.subr.mxu0 %v30
  %73 = vmatpush1.xpose.msra.mxu0 %v29
  %74 = vmatprep.subr.mxu0 %v32
  %75 = vmatpush1.xpose.msra.mxu0 %v31
  %76 = vmatprep.subr.mxu0 %v34
  %77 = vmatpush1.xpose.msra.mxu0 %v33
  %78 = vmatprep.subr.mxu0 %v36
  %79 = vmatpush1.xpose.msra.mxu0 %v35
  %80 = vmatprep.subr.mxu0 %v38
  %81 = vmatpush1.xpose.msra.mxu0 %v37
  %82 = vmatprep.subr.mxu0 %v40
  %83 = vmatpush1.xpose.msra.mxu0 %v39
  %84 = vmatprep.subr.mxu0 %v42
  %85 = vmatpush1.xpose.msra.mxu0 %v41
  %86 = vmatprep.subr.mxu0 %v44
  %87 = vmatpush1.xpose.msra.mxu0 %v43
  %88 = vmatprep.subr.mxu0 %v46
  %89 = vmatpush1.xpose.msra.mxu0 %v45
  %90 = vmatprep.subr.mxu0 %v48
  %91 = vmatpush1.xpose.msra.mxu0 %v47
  %92 = vmatprep.subr.mxu0 %v50
  %93 = vmatpush1.xpose.msra.mxu0 %v49
  %94 = vmatprep.subr.mxu0 %v52
  %95 = vmatpush1.xpose.msra.mxu0 %v51
  %96 = vmatprep.subr.mxu0 %v54
  %97 = vmatpush1.xpose.msra.mxu0 %v53
  %98 = vmatprep.subr.mxu0 %v56
  %99 = vmatpush1.xpose.msra.mxu0 %v55
  %100 = vmatprep.subr.mxu0 0.0
  %101 = vmatpush1.xpose.msra.mxu0 0.0
  %102 = vmatprep.subr.mxu0 0.0
  %103 = vmatpush1.xpose.msra.mxu0 0.0
  %104 = vmatprep.subr.mxu0 0.0
  %105 = vmatpush1.xpose.msra.mxu0 0.0
  %106 = vmatprep.subr.mxu0 0.0
  %107 = vmatpush1.xpose.msra.mxu0 0.0
  %108 = vmatprep.subr.mxu0 0.0
  %109 = vmatpush1.xpose.msra.mxu0 0.0
  %110 = vmatprep.subr.mxu0 0.0
  %111 = vmatpush1.xpose.msra.mxu0 0.0
  %112 = vmatprep.subr.mxu0 0.0
  %113 = vmatpush1.xpose.msra.mxu0 0.0
  %114 = vmatprep.subr.mxu0 0.0
  %115 = vmatpush1.xpose.msra.mxu0 0.0
  %116 = vmatprep.subr.mxu0 0.0
  %117 = vmatpush1.xpose.msra.mxu0 0.0
  %118 = vmatprep.subr.mxu0 0.0
  %119 = vmatpush1.xpose.msra.mxu0 0.0
  %120 = vmatprep.subr.mxu0 0.0
  %121 = vmatpush1.xpose.msra.mxu0 0.0
  %122 = vmatprep.subr.mxu0 0.0
  %123 = vmatpush1.xpose.msra.mxu0 0.0
  %124 = vmatprep.subr.mxu0 0.0
  %125 = vmatpush1.xpose.msra.mxu0 0.0
  %126 = vmatprep.subr.mxu0 0.0
  %127 = vmatpush1.xpose.msra.mxu0 0.0
  %128 = vmatprep.subr.mxu0 0.0
  %129 = vmatpush1.xpose.msra.mxu0 0.0
  %130 = vmatprep.subr.mxu0 0.0
  %131 = vmatpush1.xpose.msra.mxu0 0.0
  %132 = vmatprep.mubr.f32.mxu0 %v65
  %133 = vmatmul.mubr.f32.gmra.mrb[0].mxu0 %v64
  %v134 = vpop.f32.mrb[0].mxu0
  %v135 = vadd.f32 0.0, %v134
  %v136 = vpop.f32.mrb[0].mxu0
  %137 = vdwg.mxu0
  %v138 = vld [vmem:[%s1] sm:$0x3]
  %v139 = vsub.f32 %v135, %v138
  %140 = vmatprep.subr.mxu0 %v26
  %141 = vmatpush1.msra.mxu0 %v25
  %142 = vmatprep.subr.mxu0 %v28
  %143 = vmatpush1.msra.mxu0 %v27
  %144 = vmatprep.subr.mxu0 %v30
  %145 = vmatpush1.msra.mxu0 %v29
  %146 = vmatprep.subr.mxu0 %v32
  %147 = vmatpush1.msra.mxu0 %v31
  %148 = vmatprep.subr.mxu0 %v34
  %149 = vmatpush1.msra.mxu0 %v33
  %150 = vmatprep.subr.mxu0 %v36
  %151 = vmatpush1.msra.mxu0 %v35
  %152 = vmatprep.subr.mxu0 %v38
  %153 = vmatpush1.msra.mxu0 %v37
  %154 = vmatprep.subr.mxu0 %v40
  %155 = vmatpush1.msra.mxu0 %v39
  %156 = vmatprep.subr.mxu0 %v42
  %157 = vmatpush1.msra.mxu0 %v41
  %158 = vmatprep.subr.mxu0 %v44
  %159 = vmatpush1.msra.mxu0 %v43
  %160 = vmatprep.subr.mxu0 %v46
  %161 = vmatpush1.msra.mxu0 %v45
  %162 = vmatprep.subr.mxu0 %v48
  %163 = vmatpush1.msra.mxu0 %v47
  %164 = vmatprep.subr.mxu0 %v50
  %165 = vmatpush1.msra.mxu0 %v49
  %166 = vmatprep.subr.mxu0 %v52
  %167 = vmatpush1.msra.mxu0 %v51
  %168 = vmatprep.subr.mxu0 %v54
  %169 = vmatpush1.msra.mxu0 %v53
  %170 = vmatprep.subr.mxu0 %v56
  %171 = vmatpush1.msra.mxu0 %v55
  %172 = vmatprep.subr.mxu0 0.0
  %173 = vmatpush1.msra.mxu0 0.0
  %174 = vmatprep.subr.mxu0 0.0
  %175 = vmatpush1.msra.mxu0 0.0
  %176 = vmatprep.subr.mxu0 0.0
  %177 = vmatpush1.msra.mxu0 0.0
  %178 = vmatprep.subr.mxu0 0.0
  %179 = vmatpush1.msra.mxu0 0.0
  %180 = vmatprep.subr.mxu0 0.0
  %181 = vmatpush1.msra.mxu0 0.0
  %182 = vmatprep.subr.mxu0 0.0
  %183 = vmatpush1.msra.mxu0 0.0
  %184 = vmatprep.subr.mxu0 0.0
  %185 = vmatpush1.msra.mxu0 0.0
  %186 = vmatprep.subr.mxu0 0.0
  %187 = vmatpush1.msra.mxu0 0.0
  %188 = vmatprep.subr.mxu0 0.0
  %189 = vmatpush1.msra.mxu0 0.0
  %190 = vmatprep.subr.mxu0 0.0
  %191 = vmatpush1.msra.mxu0 0.0
  %192 = vmatprep.subr.mxu0 0.0
  %193 = vmatpush1.msra.mxu0 0.0
  %194 = vmatprep.subr.mxu0 0.0
  %195 = vmatpush1.msra.mxu0 0.0
  %196 = vmatprep.subr.mxu0 0.0
  %197 = vmatpush1.msra.mxu0 0.0
  %198 = vmatprep.subr.mxu0 0.0
  %199 = vmatpush1.msra.mxu0 0.0
  %200 = vmatprep.subr.mxu0 0.0
  %201 = vmatpush1.msra.mxu0 0.0
  %202 = vmatprep.subr.mxu0 0.0
  %203 = vmatpush1.msra.mxu0 0.0
  %204 = vmatprep.mubr.f32.mxu0 0.0
  %205 = vmatmul.mubr.f32.gmra.mrb[0].mxu0 %v139
  %v206 = vpop.f32.mrb[0].mxu0
  %v207 = vadd.f32 0.0, %v206
  %v208 = vpop.f32.mrb[0].mxu0
  %v209 = vadd.f32 0.0, %v208
  %210 = vdwg.mxu0
  %s211 = sld [smem:[#allocation2]]
  %v212 = vstv %s211
  %v213 = vmul.f32 %v212, %v207
  %v214 = vmul.f32 %v212, %v209
  %v217 = vcombine.low %v213, %v214
  %v219 = vunpack.c.l.s4 1983009808
  %v220 = vunpack.c.0.s8 %v219
  %v221 = vlaneseq
  %v222 = vshrl.u32 %v221, 7
  %v223 = vsub.s32 %v220, %v222
  %v224 = vrot.slane %v217, %v223
  %v226 = vsub.f32 %v24, %v224
  %v227 = vld [vmem:[%s3] sm:$0xf]
  %v228 = vadd.f32 %v226, %v227
  %v229 = vld [vmem:[%s4] sm:$0xf]
  %v230 = vadd.f32 %v228, %v229
  %v231 = vmax.f32 %v230, 0.0
  %232 = vst [vmem:[%s6] sm:$0xf] %v231
  // Predicated region
  $region26: #{_lambda_.11} parent=0 // pred_check
    _
  $region27: #{_lambda_.11} parent=0 // pred_check_branch
    %234 = sbr.rel (0) target = $region29
  $region28: #{_lambda_.11} parent=0 // pred_region
    _
  $region29: #{_lambda_.11} parent=0 // pred_fallthru
    _
  // Predicated region
  $region30: #{_lambda_.11} parent=0 // pred_check
    _
  $region31: #{_lambda_.11} parent=0 // pred_check_branch
    %236 = sbr.rel (0) target = $region33
  $region32: #{_lambda_.11} parent=0 // pred_region
    _
  $region33: #{_lambda_.11} parent=0 // pred_fallthru
    _

</llo_original>
